<compile_context>
chip_gen: v7x
topology: tpu7x:2x2x1
jax: 0.10.0
libtpu: 0.0.40
codegen_flags: <defaults>
</compile_context>

<pallas_src>
import numpy as np

import jax
import jax.numpy as jnp
from jax.experimental import pallas as pl
from jax.experimental.pallas import tpu as pltpu

_BN_EPS = 1e-5


# ----------------------------------------------------------------------------
# One-time weight preprocessing (plain JAX, outside the kernel)
# ----------------------------------------------------------------------------
def _fold_bn(gamma, beta, mean, var):
    a = gamma / jnp.sqrt(var + _BN_EPS)
    return a, beta - mean * a


def _phase_map(s):
    """A[dh+1, v, u, kh] = 1 iff output sub-pixel row u / conv tap kh of the
    fused (nearest-up x2 -> conv3x3 pad1) reads sub-pixel row v of the input
    cell at relative cell offset dh.  s = input cell size, 2s = output size."""
    t = 2 * s
    A = np.zeros((3, s, t, 3), np.float32)
    for u in range(t):
        for kh in range(3):
            vp = (u + kh - 1) // 2                 # floor div handles -1
            dh = -1 if vp < 0 else (1 if vp >= s else 0)
            A[dh + 1, vp - dh * s, u, kh] = 1.0
    return A


def _cell_conv_weights(w_conv, bn, s):
    """(nearest-up x2 -> Conv2d 3x3 pad1 -> BN) as a 3x3 conv over the fixed
    4x4 cell grid in space-to-depth form.

    w_conv: (C_out, C_in, 3, 3) torch layout.  Returns
      w_eff: (9, s*s*C_in, (2s)*(2s)*C_out)  -- tap-major, [vrow,vcol,ci] in,
                                                [urow,ucol,co] out
      bias : (1, (2s)*(2s)*C_out)
    """
    gamma, beta, mean, var = bn
    a, c = _fold_bn(gamma, beta, mean, var)
    c_out, c_in = w_conv.shape[:2]
    t = 2 * s
    w = w_conv * a[:, None, None, None]            # fold BN scale per out-chan
    A = _phase_map(s)
    w_eff = jnp.einsum("avuk,bwxl,oikl->abvwiuxo", A, A, w,
                       precision=jax.lax.Precision.HIGHEST)
    w_eff = w_eff.reshape(9, s * s * c_in, t * t * c_out)
    bias = jnp.tile(c, t * t).reshape(1, t * t * c_out)
    return w_eff, bias


def prepare_params(params):
    """Fold BN (eval mode) and build the space-to-depth cell-conv weights."""
    fc_w, bn0, w1, bn1, w2, bn2, w3, bn3 = params
    feat, n_fc = fc_w.shape
    ngf = w1.shape[1]
    a0, c0 = _fold_bn(*bn0)
    # fc columns are (c, h, w) in torch's .view(-1, ngf, 4, 4); reorder to
    # (h, w, c) so the kernel scatters contiguous `ngf`-wide cell slices.
    wfc = (fc_w * a0[None, :]).reshape(feat, ngf, 4, 4)
    wfc = jnp.transpose(wfc, (0, 2, 3, 1)).reshape(feat, n_fc)
    bfc = jnp.transpose(c0.reshape(ngf, 4, 4), (1, 2, 0)).reshape(1, n_fc)

    w1e, b1e = _cell_conv_weights(w1, bn1, s=1)    # (9,  64, 128)
    w2e, b2e = _cell_conv_weights(w2, bn2, s=2)    # (9, 128, 256)
    w3e, b3e = _cell_conv_weights(w3, bn3, s=4)    # (9, 256,  64)
    return (wfc, bfc, w1e, b1e, w2e, b2e, w3e, b3e)


# ----------------------------------------------------------------------------
# The fused Pallas kernel
# ----------------------------------------------------------------------------
def _decoder_kernel(x_ref, wfc_ref, bfc_ref, w1_ref, b1_ref, w2_ref, b2_ref,
                    w3_ref, b3_ref, out_ref, pad1, pad2, pad3):
    B = x_ref.shape[0]
    c1 = w1_ref.shape[1]                                     # ngf (=64)

    # ---- fc (+ folded BN1d) + ReLU, scattered onto the padded 4x4 cell grid -
    h = jnp.dot(x_ref[...], wfc_ref[...], preferred_element_type=jnp.float32)
    h = jnp.maximum(h + bfc_ref[...], 0.0)                   # (B, 16*c1)

    pad1[...] = jnp.zeros_like(pad1)
    for ch in range(4):
        for cw in range(4):
            k = ch * 4 + cw
            pad1[:, ch + 1, cw + 1, :] = h[:, k * c1:(k + 1) * c1]

    # ---- one up-block == 3x3 conv over the zero-padded 4x4 cell grid --------
    def cell_conv(pad_ref, w_ref, b_ref):
        cin = w_ref.shape[1]
        cout = w_ref.shape[2]
        acc = jnp.zeros((B * 16, cout), jnp.float32)
        for dh in range(3):                                  # static unroll
            for dw in range(3):
                p = pad_ref[:, dh:dh + 4, dw:dw + 4, :]      # (B,4,4,cin)
                p = p.reshape(B * 16, cin)
                acc = acc + jnp.dot(p, w_ref[dh * 3 + dw],
                                    preferred_element_type=jnp.float32)
        return jnp.maximum(acc + b_ref[...], 0.0)            # (B*16, cout)

    y = cell_conv(pad1, w1_ref, b1_ref)                      # (B*16, 128)
    pad2[...] = jnp.zeros_like(pad2)
    pad2[:, 1:5, 1:5, :] = y.reshape(B, 4, 4, y.shape[-1])

    y = cell_conv(pad2, w2_ref, b2_ref)                      # (B*16, 256)
    pad3[...] = jnp.zeros_like(pad3)
    pad3[:, 1:5, 1:5, :] = y.reshape(B, 4, 4, y.shape[-1])

    y = cell_conv(pad3, w3_ref, b3_ref)                      # (B*16, 64)

    # ---- global (x - min) / (max + 1e-4) normalisation (single block) -------
    y = y - jnp.min(y)
    y = y / (jnp.max(y) + 1e-4)
    out_ref[...] = y


def decoder_forward(x, kparams):
    wfc, bfc, w1e, b1e, w2e, b2e, w3e, b3e = kparams
    B = x.shape[0]
    c1, c2, c3 = w1e.shape[1], w2e.shape[1], w3e.shape[1]
    n3 = w3e.shape[2]                                        # 8*8*out_channels
    out_ch = n3 // 64
    vmem = pl.BlockSpec(memory_space=pltpu.MemorySpace.VMEM)

    out = pl.pallas_call(
        _decoder_kernel,
        out_shape=jax.ShapeDtypeStruct((B * 16, n3), jnp.float32),
        in_specs=[vmem] * 9,
        out_specs=vmem,
        scratch_shapes=[
            pltpu.VMEM((B, 6, 6, c1), jnp.float32),          # padded cell grids
            pltpu.VMEM((B, 6, 6, c2), jnp.float32),
            pltpu.VMEM((B, 6, 6, c3), jnp.float32),
        ],
    )(x, wfc, bfc, w1e, b1e, w2e, b2e, w3e, b3e)

    # depth-to-space back to NCHW (pure layout plumbing, once, outside kernel)
    y = out.reshape(B, 4, 4, 8, 8, out_ch)                   # (b,ch,cw,u,x,co)
    y = jnp.transpose(y, (0, 5, 1, 3, 2, 4))                 # (b,co,ch,u,cw,x)
    return y.reshape(B, out_ch, 32, 32)


# ----------------------------------------------------------------------------
# Plain-JAX reference (eval-mode BN folded the same way) for correctness check
# ----------------------------------------------------------------------------
def decoder_reference(x, params):
    fc_w, bn0, w1, bn1, w2, bn2, w3, bn3 = params
    B = x.shape[0]
    ngf = w1.shape[1]
    a0, c0 = _fold_bn(*bn0)
    h = jnp.dot(x, fc_w, precision=jax.lax.Precision.HIGHEST)
    h = jnp.maximum(h * a0 + c0, 0.0).reshape(B, ngf, 4, 4)

    def upblock(z, w, bn):
        a, c = _fold_bn(*bn)
        z = jnp.repeat(jnp.repeat(z, 2, axis=2), 2, axis=3)  # nearest x2
        z = jax.lax.conv_general_dilated(
            z, w, window_strides=(1, 1), padding=[(1, 1), (1, 1)],
            dimension_numbers=("NCHW", "OIHW", "NCHW"),
            precision=jax.lax.Precision.HIGHEST)
        return jnp.maximum(z * a.reshape(1, -1, 1, 1) + c.reshape(1, -1, 1, 1),
                           0.0)

    y = upblock(h, w1, bn1)
    y = upblock(y, w2, bn2)
    y = upblock(y, w3, bn3)
    y = y - jnp.min(y)
    return y / (jnp.max(y) + 1e-4)


# ----------------------------------------------------------------------------
if __name__ == "__main__":
    B, FEAT, NGF, OUT_CH = 2, 512, 64, 1

    key = jax.random.PRNGKey(0)
    ks = jax.random.split(key, 9)

    def bn_params(k, n):
        k1, k2, k3, k4 = jax.random.split(k, 4)
        gamma = 1.0 + 0.1 * jax.random.normal(k1, (n,), jnp.float32)
        beta = 0.1 * jax.random.normal(k2, (n,), jnp.float32)
        mean = 0.1 * jax.random.normal(k3, (n,), jnp.float32)
        var = jax.random.uniform(k4, (n,), jnp.float32, 0.5, 1.5)
        return (gamma, beta, mean, var)

    fc_w = 0.05 * jax.random.normal(ks[0], (FEAT, NGF * 16), jnp.float32)
    bn0 = bn_params(ks[1], NGF * 16)
    w1 = 0.05 * jax.random.normal(ks[2], (NGF // 2, NGF, 3, 3), jnp.float32)
    bn1 = bn_params(ks[3], NGF // 2)
    w2 = 0.05 * jax.random.normal(ks[4], (NGF // 4, NGF // 2, 3, 3), jnp.float32)
    bn2 = bn_params(ks[5], NGF // 4)
    w3 = 0.05 * jax.random.normal(ks[6], (OUT_CH, NGF // 4, 3, 3), jnp.float32)
    bn3 = bn_params(ks[7], OUT_CH)
    x = jax.random.normal(ks[8], (B, FEAT), jnp.float32)

    params = (fc_w, bn0, w1, bn1, w2, bn2, w3, bn3)

    kparams = prepare_params(params)                # one-time weight prep
    out = jax.jit(decoder_forward)(x, kparams)
    out = jax.block_until_ready(out)

    ref = decoder_reference(x, params)
    assert out.shape == (B, OUT_CH, 32, 32), out.shape
    err = float(jnp.max(jnp.abs(out - ref)))
    assert jnp.allclose(out, ref, rtol=5e-3, atol=5e-3), err

    print("KERNEL_OK")
</pallas_src>

<mosaic_0001>
module attributes {stable_mosaic.version = 11 : i64} {
  func.func @_decoder_kernel(%arg0: memref<2x512xf32, #tpu.memory_space<vmem>>, %arg1: memref<512x1024xf32, #tpu.memory_space<vmem>>, %arg2: memref<1x1024xf32, #tpu.memory_space<vmem>>, %arg3: memref<9x64x128xf32, #tpu.memory_space<vmem>>, %arg4: memref<1x128xf32, #tpu.memory_space<vmem>>, %arg5: memref<9x128x256xf32, #tpu.memory_space<vmem>>, %arg6: memref<1x256xf32, #tpu.memory_space<vmem>>, %arg7: memref<9x256x64xf32, #tpu.memory_space<vmem>>, %arg8: memref<1x64xf32, #tpu.memory_space<vmem>>, %arg9: memref<32x64xf32, #tpu.memory_space<vmem>>, %arg10: memref<2x6x6x64xf32, #tpu.memory_space<vmem>>, %arg11: memref<2x6x6x128xf32, #tpu.memory_space<vmem>>, %arg12: memref<2x6x6x256xf32, #tpu.memory_space<vmem>>) attributes {dimension_semantics = [], scalar_prefetch = 0 : i64, scratch_operands = 3 : i64, tpu.core_type = #tpu.core_type<tc>} {
    %c0 = arith.constant 0 : index
    %c0_0 = arith.constant 0 : index
    %0 = vector.load %arg0[%c0, %c0_0] : memref<2x512xf32, #tpu.memory_space<vmem>>, vector<2x512xf32>
    %c0_1 = arith.constant 0 : index
    %c0_2 = arith.constant 0 : index
    %1 = vector.load %arg1[%c0_1, %c0_2] : memref<512x1024xf32, #tpu.memory_space<vmem>>, vector<512x1024xf32>
    %cst = arith.constant dense<0.000000e+00> : vector<2x1024xf32>
    %2 = tpu.matmul %0, %1, %cst {dimension_numbers = #tpu.dot_dimension_numbers<[1], [0], [0], [1], [0, 0, 1, 1], [], []>} : vector<2x512xf32>, vector<512x1024xf32>, vector<2x1024xf32> -> vector<2x1024xf32>
    %c0_3 = arith.constant 0 : index
    %c0_4 = arith.constant 0 : index
    %3 = vector.load %arg2[%c0_3, %c0_4] : memref<1x1024xf32, #tpu.memory_space<vmem>>, vector<1x1024xf32>
    %4 = vector.broadcast %3 : vector<1x1024xf32> to vector<2x1024xf32>
    %5 = arith.addf %2, %4 : vector<2x1024xf32>
    %cst_5 = arith.constant 0.000000e+00 : f32
    %6 = vector.broadcast %cst_5 : f32 to vector<2x1024xf32>
    %7 = arith.maximumf %5, %6 : vector<2x1024xf32>
    %cst_6 = arith.constant 0.000000e+00 : f32
    %8 = vector.broadcast %cst_6 : f32 to vector<2x6x6x64xf32>
    %c0_7 = arith.constant 0 : index
    %c0_8 = arith.constant 0 : index
    %c0_9 = arith.constant 0 : index
    %c0_10 = arith.constant 0 : index
    %9 = vector.load %arg10[%c0_7, %c0_8, %c0_9, %c0_10] : memref<2x6x6x64xf32, #tpu.memory_space<vmem>>, vector<2x6x6x64xf32>
    tpu.vector_store %arg10[%c0_7, %c0_8, %c0_9, %c0_10], %8 {strides = array<i32>} : memref<2x6x6x64xf32, #tpu.memory_space<vmem>>, vector<2x6x6x64xf32>,
    %10 = vector.extract_strided_slice %7 {offsets = [0, 0], sizes = [2, 64], strides = [1, 1]} : vector<2x1024xf32> to vector<2x64xf32>
    %c0_11 = arith.constant 0 : index
    %c1 = arith.constant 1 : index
    %c1_12 = arith.constant 1 : index
    %c0_13 = arith.constant 0 : index
    %11 = vector.load %arg10[%c0_11, %c1, %c1_12, %c0_13] : memref<2x6x6x64xf32, #tpu.memory_space<vmem>>, vector<2x1x1x64xf32>
    %12 = vector.shape_cast %11 : vector<2x1x1x64xf32> to vector<2x64xf32>
    %13 = vector.shape_cast %10 : vector<2x64xf32> to vector<2x1x1x64xf32>
    tpu.vector_store %arg10[%c0_11, %c1, %c1_12, %c0_13], %13 {strides = array<i32>} : memref<2x6x6x64xf32, #tpu.memory_space<vmem>>, vector<2x1x1x64xf32>,
    %14 = vector.extract_strided_slice %7 {offsets = [0, 64], sizes = [2, 64], strides = [1, 1]} : vector<2x1024xf32> to vector<2x64xf32>
    %c0_14 = arith.constant 0 : index
    %c1_15 = arith.constant 1 : index
    %c2 = arith.constant 2 : index
    %c0_16 = arith.constant 0 : index
    %15 = vector.load %arg10[%c0_14, %c1_15, %c2, %c0_16] : memref<2x6x6x64xf32, #tpu.memory_space<vmem>>, vector<2x1x1x64xf32>
    %16 = vector.shape_cast %15 : vector<2x1x1x64xf32> to vector<2x64xf32>
    %17 = vector.shape_cast %14 : vector<2x64xf32> to vector<2x1x1x64xf32>
    tpu.vector_store %arg10[%c0_14, %c1_15, %c2, %c0_16], %17 {strides = array<i32>} : memref<2x6x6x64xf32, #tpu.memory_space<vmem>>, vector<2x1x1x64xf32>,
    %18 = vector.extract_strided_slice %7 {offsets = [0, 128], sizes = [2, 64], strides = [1, 1]} : vector<2x1024xf32> to vector<2x64xf32>
    %c0_17 = arith.constant 0 : index
    %c1_18 = arith.constant 1 : index
    %c3 = arith.constant 3 : index
    %c0_19 = arith.constant 0 : index
    %19 = vector.load %arg10[%c0_17, %c1_18, %c3, %c0_19] : memref<2x6x6x64xf32, #tpu.memory_space<vmem>>, vector<2x1x1x64xf32>
    %20 = vector.shape_cast %19 : vector<2x1x1x64xf32> to vector<2x64xf32>
    %21 = vector.shape_cast %18 : vector<2x64xf32> to vector<2x1x1x64xf32>
    tpu.vector_store %arg10[%c0_17, %c1_18, %c3, %c0_19], %21 {strides = array<i32>} : memref<2x6x6x64xf32, #tpu.memory_space<vmem>>, vector<2x1x1x64xf32>,
    %22 = vector.extract_strided_slice %7 {offsets = [0, 192], sizes = [2, 64], strides = [1, 1]} : vector<2x1024xf32> to vector<2x64xf32>
    %c0_20 = arith.constant 0 : index
    %c1_21 = arith.constant 1 : index
    %c4 = arith.constant 4 : index
    %c0_22 = arith.constant 0 : index
    %23 = vector.load %arg10[%c0_20, %c1_21, %c4, %c0_22] : memref<2x6x6x64xf32, #tpu.memory_space<vmem>>, vector<2x1x1x64xf32>
    %24 = vector.shape_cast %23 : vector<2x1x1x64xf32> to vector<2x64xf32>
    %25 = vector.shape_cast %22 : vector<2x64xf32> to vector<2x1x1x64xf32>
    tpu.vector_store %arg10[%c0_20, %c1_21, %c4, %c0_22], %25 {strides = array<i32>} : memref<2x6x6x64xf32, #tpu.memory_space<vmem>>, vector<2x1x1x64xf32>,
    %26 = vector.extract_strided_slice %7 {offsets = [0, 256], sizes = [2, 64], strides = [1, 1]} : vector<2x1024xf32> to vector<2x64xf32>
    %c0_23 = arith.constant 0 : index
    %c2_24 = arith.constant 2 : index
    %c1_25 = arith.constant 1 : index
    %c0_26 = arith.constant 0 : index
    %27 = vector.load %arg10[%c0_23, %c2_24, %c1_25, %c0_26] : memref<2x6x6x64xf32, #tpu.memory_space<vmem>>, vector<2x1x1x64xf32>
    %28 = vector.shape_cast %27 : vector<2x1x1x64xf32> to vector<2x64xf32>
    %29 = vector.shape_cast %26 : vector<2x64xf32> to vector<2x1x1x64xf32>
    tpu.vector_store %arg10[%c0_23, %c2_24, %c1_25, %c0_26], %29 {strides = array<i32>} : memref<2x6x6x64xf32, #tpu.memory_space<vmem>>, vector<2x1x1x64xf32>,
    %30 = vector.extract_strided_slice %7 {offsets = [0, 320], sizes = [2, 64], strides = [1, 1]} : vector<2x1024xf32> to vector<2x64xf32>
    %c0_27 = arith.constant 0 : index
    %c2_28 = arith.constant 2 : index
    %c2_29 = arith.constant 2 : index
    %c0_30 = arith.constant 0 : index
    %31 = vector.load %arg10[%c0_27, %c2_28, %c2_29, %c0_30] : memref<2x6x6x64xf32, #tpu.memory_space<vmem>>, vector<2x1x1x64xf32>
    %32 = vector.shape_cast %31 : vector<2x1x1x64xf32> to vector<2x64xf32>
    %33 = vector.shape_cast %30 : vector<2x64xf32> to vector<2x1x1x64xf32>
    tpu.vector_store %arg10[%c0_27, %c2_28, %c2_29, %c0_30], %33 {strides = array<i32>} : memref<2x6x6x64xf32, #tpu.memory_space<vmem>>, vector<2x1x1x64xf32>,
    %34 = vector.extract_strided_slice %7 {offsets = [0, 384], sizes = [2, 64], strides = [1, 1]} : vector<2x1024xf32> to vector<2x64xf32>
    %c0_31 = arith.constant 0 : index
    %c2_32 = arith.constant 2 : index
    %c3_33 = arith.constant 3 : index
    %c0_34 = arith.constant 0 : index
    %35 = vector.load %arg10[%c0_31, %c2_32, %c3_33, %c0_34] : memref<2x6x6x64xf32, #tpu.memory_space<vmem>>, vector<2x1x1x64xf32>
    %36 = vector.shape_cast %35 : vector<2x1x1x64xf32> to vector<2x64xf32>
    %37 = vector.shape_cast %34 : vector<2x64xf32> to vector<2x1x1x64xf32>
    tpu.vector_store %arg10[%c0_31, %c2_32, %c3_33, %c0_34], %37 {strides = array<i32>} : memref<2x6x6x64xf32, #tpu.memory_space<vmem>>, vector<2x1x1x64xf32>,
    %38 = vector.extract_strided_slice %7 {offsets = [0, 448], sizes = [2, 64], strides = [1, 1]} : vector<2x1024xf32> to vector<2x64xf32>
    %c0_35 = arith.constant 0 : index
    %c2_36 = arith.constant 2 : index
    %c4_37 = arith.constant 4 : index
    %c0_38 = arith.constant 0 : index
    %39 = vector.load %arg10[%c0_35, %c2_36, %c4_37, %c0_38] : memref<2x6x6x64xf32, #tpu.memory_space<vmem>>, vector<2x1x1x64xf32>
    %40 = vector.shape_cast %39 : vector<2x1x1x64xf32> to vector<2x64xf32>
    %41 = vector.shape_cast %38 : vector<2x64xf32> to vector<2x1x1x64xf32>
    tpu.vector_store %arg10[%c0_35, %c2_36, %c4_37, %c0_38], %41 {strides = array<i32>} : memref<2x6x6x64xf32, #tpu.memory_space<vmem>>, vector<2x1x1x64xf32>,
    %42 = vector.extract_strided_slice %7 {offsets = [0, 512], sizes = [2, 64], strides = [1, 1]} : vector<2x1024xf32> to vector<2x64xf32>
    %c0_39 = arith.constant 0 : index
    %c3_40 = arith.constant 3 : index
    %c1_41 = arith.constant 1 : index
    %c0_42 = arith.constant 0 : index
    %43 = vector.load %arg10[%c0_39, %c3_40, %c1_41, %c0_42] : memref<2x6x6x64xf32, #tpu.memory_space<vmem>>, vector<2x1x1x64xf32>
    %44 = vector.shape_cast %43 : vector<2x1x1x64xf32> to vector<2x64xf32>
    %45 = vector.shape_cast %42 : vector<2x64xf32> to vector<2x1x1x64xf32>
    tpu.vector_store %arg10[%c0_39, %c3_40, %c1_41, %c0_42], %45 {strides = array<i32>} : memref<2x6x6x64xf32, #tpu.memory_space<vmem>>, vector<2x1x1x64xf32>,
    %46 = vector.extract_strided_slice %7 {offsets = [0, 576], sizes = [2, 64], strides = [1, 1]} : vector<2x1024xf32> to vector<2x64xf32>
    %c0_43 = arith.constant 0 : index
    %c3_44 = arith.constant 3 : index
    %c2_45 = arith.constant 2 : index
    %c0_46 = arith.constant 0 : index
    %47 = vector.load %arg10[%c0_43, %c3_44, %c2_45, %c0_46] : memref<2x6x6x64xf32, #tpu.memory_space<vmem>>, vector<2x1x1x64xf32>
    %48 = vector.shape_cast %47 : vector<2x1x1x64xf32> to vector<2x64xf32>
    %49 = vector.shape_cast %46 : vector<2x64xf32> to vector<2x1x1x64xf32>
    tpu.vector_store %arg10[%c0_43, %c3_44, %c2_45, %c0_46], %49 {strides = array<i32>} : memref<2x6x6x64xf32, #tpu.memory_space<vmem>>, vector<2x1x1x64xf32>,
    %50 = vector.extract_strided_slice %7 {offsets = [0, 640], sizes = [2, 64], strides = [1, 1]} : vector<2x1024xf32> to vector<2x64xf32>
    %c0_47 = arith.constant 0 : index
    %c3_48 = arith.constant 3 : index
    %c3_49 = arith.constant 3 : index
    %c0_50 = arith.constant 0 : index
    %51 = vector.load %arg10[%c0_47, %c3_48, %c3_49, %c0_50] : memref<2x6x6x64xf32, #tpu.memory_space<vmem>>, vector<2x1x1x64xf32>
    %52 = vector.shape_cast %51 : vector<2x1x1x64xf32> to vector<2x64xf32>
    %53 = vector.shape_cast %50 : vector<2x64xf32> to vector<2x1x1x64xf32>
    tpu.vector_store %arg10[%c0_47, %c3_48, %c3_49, %c0_50], %53 {strides = array<i32>} : memref<2x6x6x64xf32, #tpu.memory_space<vmem>>, vector<2x1x1x64xf32>,
    %54 = vector.extract_strided_slice %7 {offsets = [0, 704], sizes = [2, 64], strides = [1, 1]} : vector<2x1024xf32> to vector<2x64xf32>
    %c0_51 = arith.constant 0 : index
    %c3_52 = arith.constant 3 : index
    %c4_53 = arith.constant 4 : index
    %c0_54 = arith.constant 0 : index
    %55 = vector.load %arg10[%c0_51, %c3_52, %c4_53, %c0_54] : memref<2x6x6x64xf32, #tpu.memory_space<vmem>>, vector<2x1x1x64xf32>
    %56 = vector.shape_cast %55 : vector<2x1x1x64xf32> to vector<2x64xf32>
    %57 = vector.shape_cast %54 : vector<2x64xf32> to vector<2x1x1x64xf32>
    tpu.vector_store %arg10[%c0_51, %c3_52, %c4_53, %c0_54], %57 {strides = array<i32>} : memref<2x6x6x64xf32, #tpu.memory_space<vmem>>, vector<2x1x1x64xf32>,
    %58 = vector.extract_strided_slice %7 {offsets = [0, 768], sizes = [2, 64], strides = [1, 1]} : vector<2x1024xf32> to vector<2x64xf32>
    %c0_55 = arith.constant 0 : index
    %c4_56 = arith.constant 4 : index
    %c1_57 = arith.constant 1 : index
    %c0_58 = arith.constant 0 : index
    %59 = vector.load %arg10[%c0_55, %c4_56, %c1_57, %c0_58] : memref<2x6x6x64xf32, #tpu.memory_space<vmem>>, vector<2x1x1x64xf32>
    %60 = vector.shape_cast %59 : vector<2x1x1x64xf32> to vector<2x64xf32>
    %61 = vector.shape_cast %58 : vector<2x64xf32> to vector<2x1x1x64xf32>
    tpu.vector_store %arg10[%c0_55, %c4_56, %c1_57, %c0_58], %61 {strides = array<i32>} : memref<2x6x6x64xf32, #tpu.memory_space<vmem>>, vector<2x1x1x64xf32>,
    %62 = vector.extract_strided_slice %7 {offsets = [0, 832], sizes = [2, 64], strides = [1, 1]} : vector<2x1024xf32> to vector<2x64xf32>
    %c0_59 = arith.constant 0 : index
    %c4_60 = arith.constant 4 : index
    %c2_61 = arith.constant 2 : index
    %c0_62 = arith.constant 0 : index
    %63 = vector.load %arg10[%c0_59, %c4_60, %c2_61, %c0_62] : memref<2x6x6x64xf32, #tpu.memory_space<vmem>>, vector<2x1x1x64xf32>
    %64 = vector.shape_cast %63 : vector<2x1x1x64xf32> to vector<2x64xf32>
    %65 = vector.shape_cast %62 : vector<2x64xf32> to vector<2x1x1x64xf32>
    tpu.vector_store %arg10[%c0_59, %c4_60, %c2_61, %c0_62], %65 {strides = array<i32>} : memref<2x6x6x64xf32, #tpu.memory_space<vmem>>, vector<2x1x1x64xf32>,
    %66 = vector.extract_strided_slice %7 {offsets = [0, 896], sizes = [2, 64], strides = [1, 1]} : vector<2x1024xf32> to vector<2x64xf32>
    %c0_63 = arith.constant 0 : index
    %c4_64 = arith.constant 4 : index
    %c3_65 = arith.constant 3 : index
    %c0_66 = arith.constant 0 : index
    %67 = vector.load %arg10[%c0_63, %c4_64, %c3_65, %c0_66] : memref<2x6x6x64xf32, #tpu.memory_space<vmem>>, vector<2x1x1x64xf32>
    %68 = vector.shape_cast %67 : vector<2x1x1x64xf32> to vector<2x64xf32>
    %69 = vector.shape_cast %66 : vector<2x64xf32> to vector<2x1x1x64xf32>
    tpu.vector_store %arg10[%c0_63, %c4_64, %c3_65, %c0_66], %69 {strides = array<i32>} : memref<2x6x6x64xf32, #tpu.memory_space<vmem>>, vector<2x1x1x64xf32>,
    %70 = vector.extract_strided_slice %7 {offsets = [0, 960], sizes = [2, 64], strides = [1, 1]} : vector<2x1024xf32> to vector<2x64xf32>
    %c0_67 = arith.constant 0 : index
    %c4_68 = arith.constant 4 : index
    %c4_69 = arith.constant 4 : index
    %c0_70 = arith.constant 0 : index
    %71 = vector.load %arg10[%c0_67, %c4_68, %c4_69, %c0_70] : memref<2x6x6x64xf32, #tpu.memory_space<vmem>>, vector<2x1x1x64xf32>
    %72 = vector.shape_cast %71 : vector<2x1x1x64xf32> to vector<2x64xf32>
    %73 = vector.shape_cast %70 : vector<2x64xf32> to vector<2x1x1x64xf32>
    tpu.vector_store %arg10[%c0_67, %c4_68, %c4_69, %c0_70], %73 {strides = array<i32>} : memref<2x6x6x64xf32, #tpu.memory_space<vmem>>, vector<2x1x1x64xf32>,
    %cst_71 = arith.constant 0.000000e+00 : f32
    %74 = vector.broadcast %cst_71 : f32 to vector<32x128xf32>
    %c0_72 = arith.constant 0 : index
    %c0_73 = arith.constant 0 : index
    %c0_74 = arith.constant 0 : index
    %c0_75 = arith.constant 0 : index
    %75 = vector.load %arg10[%c0_72, %c0_73, %c0_74, %c0_75] : memref<2x6x6x64xf32, #tpu.memory_space<vmem>>, vector<2x4x4x64xf32>
    %76 = vector.shape_cast %75 : vector<2x4x4x64xf32> to vector<32x64xf32>
    %c0_76 = arith.constant 0 : index
    %c0_77 = arith.constant 0 : index
    %c0_78 = arith.constant 0 : index
    %77 = vector.load %arg3[%c0_76, %c0_77, %c0_78] : memref<9x64x128xf32, #tpu.memory_space<vmem>>, vector<1x64x128xf32>
    %78 = vector.shape_cast %77 : vector<1x64x128xf32> to vector<64x128xf32>
    %cst_79 = arith.constant dense<0.000000e+00> : vector<32x128xf32>
    %79 = tpu.matmul %76, %78, %cst_79 {dimension_numbers = #tpu.dot_dimension_numbers<[1], [0], [0], [1], [0, 0, 1, 1], [], []>} : vector<32x64xf32>, vector<64x128xf32>, vector<32x128xf32> -> vector<32x128xf32>
    %80 = arith.addf %74, %79 : vector<32x128xf32>
    %c0_80 = arith.constant 0 : index
    %c0_81 = arith.constant 0 : index
    %c1_82 = arith.constant 1 : index
    %c0_83 = arith.constant 0 : index
    %81 = vector.load %arg10[%c0_80, %c0_81, %c1_82, %c0_83] : memref<2x6x6x64xf32, #tpu.memory_space<vmem>>, vector<2x4x4x64xf32>
    %82 = vector.shape_cast %81 : vector<2x4x4x64xf32> to vector<32x64xf32>
    %c1_84 = arith.constant 1 : index
    %c0_85 = arith.constant 0 : index
    %c0_86 = arith.constant 0 : index
    %83 = vector.load %arg3[%c1_84, %c0_85, %c0_86] : memref<9x64x128xf32, #tpu.memory_space<vmem>>, vector<1x64x128xf32>
    %84 = vector.shape_cast %83 : vector<1x64x128xf32> to vector<64x128xf32>
    %cst_87 = arith.constant dense<0.000000e+00> : vector<32x128xf32>
    %85 = tpu.matmul %82, %84, %cst_87 {dimension_numbers = #tpu.dot_dimension_numbers<[1], [0], [0], [1], [0, 0, 1, 1], [], []>} : vector<32x64xf32>, vector<64x128xf32>, vector<32x128xf32> -> vector<32x128xf32>
    %86 = arith.addf %80, %85 : vector<32x128xf32>
    %c0_88 = arith.constant 0 : index
    %c0_89 = arith.constant 0 : index
    %c2_90 = arith.constant 2 : index
    %c0_91 = arith.constant 0 : index
    %87 = vector.load %arg10[%c0_88, %c0_89, %c2_90, %c0_91] : memref<2x6x6x64xf32, #tpu.memory_space<vmem>>, vector<2x4x4x64xf32>
    %88 = vector.shape_cast %87 : vector<2x4x4x64xf32> to vector<32x64xf32>
    %c2_92 = arith.constant 2 : index
    %c0_93 = arith.constant 0 : index
    %c0_94 = arith.constant 0 : index
    %89 = vector.load %arg3[%c2_92, %c0_93, %c0_94] : memref<9x64x128xf32, #tpu.memory_space<vmem>>, vector<1x64x128xf32>
    %90 = vector.shape_cast %89 : vector<1x64x128xf32> to vector<64x128xf32>
    %cst_95 = arith.constant dense<0.000000e+00> : vector<32x128xf32>
    %91 = tpu.matmul %88, %90, %cst_95 {dimension_numbers = #tpu.dot_dimension_numbers<[1], [0], [0], [1], [0, 0, 1, 1], [], []>} : vector<32x64xf32>, vector<64x128xf32>, vector<32x128xf32> -> vector<32x128xf32>
    %92 = arith.addf %86, %91 : vector<32x128xf32>
    %c0_96 = arith.constant 0 : index
    %c1_97 = arith.constant 1 : index
    %c0_98 = arith.constant 0 : index
    %c0_99 = arith.constant 0 : index
    %93 = vector.load %arg10[%c0_96, %c1_97, %c0_98, %c0_99] : memref<2x6x6x64xf32, #tpu.memory_space<vmem>>, vector<2x4x4x64xf32>
    %94 = vector.shape_cast %93 : vector<2x4x4x64xf32> to vector<32x64xf32>
    %c3_100 = arith.constant 3 : index
    %c0_101 = arith.constant 0 : index
    %c0_102 = arith.constant 0 : index
    %95 = vector.load %arg3[%c3_100, %c0_101, %c0_102] : memref<9x64x128xf32, #tpu.memory_space<vmem>>, vector<1x64x128xf32>
    %96 = vector.shape_cast %95 : vector<1x64x128xf32> to vector<64x128xf32>
    %cst_103 = arith.constant dense<0.000000e+00> : vector<32x128xf32>
    %97 = tpu.matmul %94, %96, %cst_103 {dimension_numbers = #tpu.dot_dimension_numbers<[1], [0], [0], [1], [0, 0, 1, 1], [], []>} : vector<32x64xf32>, vector<64x128xf32>, vector<32x128xf32> -> vector<32x128xf32>
    %98 = arith.addf %92, %97 : vector<32x128xf32>
    %c0_104 = arith.constant 0 : index
    %c1_105 = arith.constant 1 : index
    %c1_106 = arith.constant 1 : index
    %c0_107 = arith.constant 0 : index
    %99 = vector.load %arg10[%c0_104, %c1_105, %c1_106, %c0_107] : memref<2x6x6x64xf32, #tpu.memory_space<vmem>>, vector<2x4x4x64xf32>
    %100 = vector.shape_cast %99 : vector<2x4x4x64xf32> to vector<32x64xf32>
    %c4_108 = arith.constant 4 : index
    %c0_109 = arith.constant 0 : index
    %c0_110 = arith.constant 0 : index
    %101 = vector.load %arg3[%c4_108, %c0_109, %c0_110] : memref<9x64x128xf32, #tpu.memory_space<vmem>>, vector<1x64x128xf32>
    %102 = vector.shape_cast %101 : vector<1x64x128xf32> to vector<64x128xf32>
    %cst_111 = arith.constant dense<0.000000e+00> : vector<32x128xf32>
    %103 = tpu.matmul %100, %102, %cst_111 {dimension_numbers = #tpu.dot_dimension_numbers<[1], [0], [0], [1], [0, 0, 1, 1], [], []>} : vector<32x64xf32>, vector<64x128xf32>, vector<32x128xf32> -> vector<32x128xf32>
    %104 = arith.addf %98, %103 : vector<32x128xf32>
    %c0_112 = arith.constant 0 : index
    %c1_113 = arith.constant 1 : index
    %c2_114 = arith.constant 2 : index
    %c0_115 = arith.constant 0 : index
    %105 = vector.load %arg10[%c0_112, %c1_113, %c2_114, %c0_115] : memref<2x6x6x64xf32, #tpu.memory_space<vmem>>, vector<2x4x4x64xf32>
    %106 = vector.shape_cast %105 : vector<2x4x4x64xf32> to vector<32x64xf32>
    %c5 = arith.constant 5 : index
    %c0_116 = arith.constant 0 : index
    %c0_117 = arith.constant 0 : index
    %107 = vector.load %arg3[%c5, %c0_116, %c0_117] : memref<9x64x128xf32, #tpu.memory_space<vmem>>, vector<1x64x128xf32>
    %108 = vector.shape_cast %107 : vector<1x64x128xf32> to vector<64x128xf32>
    %cst_118 = arith.constant dense<0.000000e+00> : vector<32x128xf32>
    %109 = tpu.matmul %106, %108, %cst_118 {dimension_numbers = #tpu.dot_dimension_numbers<[1], [0], [0], [1], [0, 0, 1, 1], [], []>} : vector<32x64xf32>, vector<64x128xf32>, vector<32x128xf32> -> vector<32x128xf32>
    %110 = arith.addf %104, %109 : vector<32x128xf32>
    %c0_119 = arith.constant 0 : index
    %c2_120 = arith.constant 2 : index
    %c0_121 = arith.constant 0 : index
    %c0_122 = arith.constant 0 : index
    %111 = vector.load %arg10[%c0_119, %c2_120, %c0_121, %c0_122] : memref<2x6x6x64xf32, #tpu.memory_space<vmem>>, vector<2x4x4x64xf32>
    %112 = vector.shape_cast %111 : vector<2x4x4x64xf32> to vector<32x64xf32>
    %c6 = arith.constant 6 : index
    %c0_123 = arith.constant 0 : index
    %c0_124 = arith.constant 0 : index
    %113 = vector.load %arg3[%c6, %c0_123, %c0_124] : memref<9x64x128xf32, #tpu.memory_space<vmem>>, vector<1x64x128xf32>
    %114 = vector.shape_cast %113 : vector<1x64x128xf32> to vector<64x128xf32>
    %cst_125 = arith.constant dense<0.000000e+00> : vector<32x128xf32>
    %115 = tpu.matmul %112, %114, %cst_125 {dimension_numbers = #tpu.dot_dimension_numbers<[1], [0], [0], [1], [0, 0, 1, 1], [], []>} : vector<32x64xf32>, vector<64x128xf32>, vector<32x128xf32> -> vector<32x128xf32>
    %116 = arith.addf %110, %115 : vector<32x128xf32>
    %c0_126 = arith.constant 0 : index
    %c2_127 = arith.constant 2 : index
    %c1_128 = arith.constant 1 : index
    %c0_129 = arith.constant 0 : index
    %117 = vector.load %arg10[%c0_126, %c2_127, %c1_128, %c0_129] : memref<2x6x6x64xf32, #tpu.memory_space<vmem>>, vector<2x4x4x64xf32>
    %118 = vector.shape_cast %117 : vector<2x4x4x64xf32> to vector<32x64xf32>
    %c7 = arith.constant 7 : index
    %c0_130 = arith.constant 0 : index
    %c0_131 = arith.constant 0 : index
    %119 = vector.load %arg3[%c7, %c0_130, %c0_131] : memref<9x64x128xf32, #tpu.memory_space<vmem>>, vector<1x64x128xf32>
    %120 = vector.shape_cast %119 : vector<1x64x128xf32> to vector<64x128xf32>
    %cst_132 = arith.constant dense<0.000000e+00> : vector<32x128xf32>
    %121 = tpu.matmul %118, %120, %cst_132 {dimension_numbers = #tpu.dot_dimension_numbers<[1], [0], [0], [1], [0, 0, 1, 1], [], []>} : vector<32x64xf32>, vector<64x128xf32>, vector<32x128xf32> -> vector<32x128xf32>
    %122 = arith.addf %116, %121 : vector<32x128xf32>
    %c0_133 = arith.constant 0 : index
    %c2_134 = arith.constant 2 : index
    %c2_135 = arith.constant 2 : index
    %c0_136 = arith.constant 0 : index
    %123 = vector.load %arg10[%c0_133, %c2_134, %c2_135, %c0_136] : memref<2x6x6x64xf32, #tpu.memory_space<vmem>>, vector<2x4x4x64xf32>
    %124 = vector.shape_cast %123 : vector<2x4x4x64xf32> to vector<32x64xf32>
    %c8 = arith.constant 8 : index
    %c0_137 = arith.constant 0 : index
    %c0_138 = arith.constant 0 : index
    %125 = vector.load %arg3[%c8, %c0_137, %c0_138] : memref<9x64x128xf32, #tpu.memory_space<vmem>>, vector<1x64x128xf32>
    %126 = vector.shape_cast %125 : vector<1x64x128xf32> to vector<64x128xf32>
    %cst_139 = arith.constant dense<0.000000e+00> : vector<32x128xf32>
    %127 = tpu.matmul %124, %126, %cst_139 {dimension_numbers = #tpu.dot_dimension_numbers<[1], [0], [0], [1], [0, 0, 1, 1], [], []>} : vector<32x64xf32>, vector<64x128xf32>, vector<32x128xf32> -> vector<32x128xf32>
    %128 = arith.addf %122, %127 : vector<32x128xf32>
    %c0_140 = arith.constant 0 : index
    %c0_141 = arith.constant 0 : index
    %129 = vector.load %arg4[%c0_140, %c0_141] : memref<1x128xf32, #tpu.memory_space<vmem>>, vector<1x128xf32>
    %130 = vector.broadcast %129 : vector<1x128xf32> to vector<32x128xf32>
    %131 = arith.addf %128, %130 : vector<32x128xf32>
    %cst_142 = arith.constant 0.000000e+00 : f32
    %132 = vector.broadcast %cst_142 : f32 to vector<32x128xf32>
    %133 = arith.maximumf %131, %132 : vector<32x128xf32>
    %cst_143 = arith.constant 0.000000e+00 : f32
    %134 = vector.broadcast %cst_143 : f32 to vector<2x6x6x128xf32>
    %c0_144 = arith.constant 0 : index
    %c0_145 = arith.constant 0 : index
    %c0_146 = arith.constant 0 : index
    %c0_147 = arith.constant 0 : index
    %135 = vector.load %arg11[%c0_144, %c0_145, %c0_146, %c0_147] : memref<2x6x6x128xf32, #tpu.memory_space<vmem>>, vector<2x6x6x128xf32>
    tpu.vector_store %arg11[%c0_144, %c0_145, %c0_146, %c0_147], %134 {strides = array<i32>} : memref<2x6x6x128xf32, #tpu.memory_space<vmem>>, vector<2x6x6x128xf32>,
    %136 = vector.shape_cast %133 : vector<32x128xf32> to vector<2x4x4x128xf32>
    %c0_148 = arith.constant 0 : index
    %c1_149 = arith.constant 1 : index
    %c1_150 = arith.constant 1 : index
    %c0_151 = arith.constant 0 : index
    %137 = vector.load %arg11[%c0_148, %c1_149, %c1_150, %c0_151] : memref<2x6x6x128xf32, #tpu.memory_space<vmem>>, vector<2x4x4x128xf32>
    tpu.vector_store %arg11[%c0_148, %c1_149, %c1_150, %c0_151], %136 {strides = array<i32>} : memref<2x6x6x128xf32, #tpu.memory_space<vmem>>, vector<2x4x4x128xf32>,
    %cst_152 = arith.constant 0.000000e+00 : f32
    %138 = vector.broadcast %cst_152 : f32 to vector<32x256xf32>
    %c0_153 = arith.constant 0 : index
    %c0_154 = arith.constant 0 : index
    %c0_155 = arith.constant 0 : index
    %c0_156 = arith.constant 0 : index
    %139 = vector.load %arg11[%c0_153, %c0_154, %c0_155, %c0_156] : memref<2x6x6x128xf32, #tpu.memory_space<vmem>>, vector<2x4x4x128xf32>
    %140 = vector.shape_cast %139 : vector<2x4x4x128xf32> to vector<32x128xf32>
    %c0_157 = arith.constant 0 : index
    %c0_158 = arith.constant 0 : index
    %c0_159 = arith.constant 0 : index
    %141 = vector.load %arg5[%c0_157, %c0_158, %c0_159] : memref<9x128x256xf32, #tpu.memory_space<vmem>>, vector<1x128x256xf32>
    %142 = vector.shape_cast %141 : vector<1x128x256xf32> to vector<128x256xf32>
    %cst_160 = arith.constant dense<0.000000e+00> : vector<32x256xf32>
    %143 = tpu.matmul %140, %142, %cst_160 {dimension_numbers = #tpu.dot_dimension_numbers<[1], [0], [0], [1], [0, 0, 1, 1], [], []>} : vector<32x128xf32>, vector<128x256xf32>, vector<32x256xf32> -> vector<32x256xf32>
    %144 = arith.addf %138, %143 : vector<32x256xf32>
    %c0_161 = arith.constant 0 : index
    %c0_162 = arith.constant 0 : index
    %c1_163 = arith.constant 1 : index
    %c0_164 = arith.constant 0 : index
    %145 = vector.load %arg11[%c0_161, %c0_162, %c1_163, %c0_164] : memref<2x6x6x128xf32, #tpu.memory_space<vmem>>, vector<2x4x4x128xf32>
    %146 = vector.shape_cast %145 : vector<2x4x4x128xf32> to vector<32x128xf32>
    %c1_165 = arith.constant 1 : index
    %c0_166 = arith.constant 0 : index
    %c0_167 = arith.constant 0 : index
    %147 = vector.load %arg5[%c1_165, %c0_166, %c0_167] : memref<9x128x256xf32, #tpu.memory_space<vmem>>, vector<1x128x256xf32>
    %148 = vector.shape_cast %147 : vector<1x128x256xf32> to vector<128x256xf32>
    %cst_168 = arith.constant dense<0.000000e+00> : vector<32x256xf32>
    %149 = tpu.matmul %146, %148, %cst_168 {dimension_numbers = #tpu.dot_dimension_numbers<[1], [0], [0], [1], [0, 0, 1, 1], [], []>} : vector<32x128xf32>, vector<128x256xf32>, vector<32x256xf32> -> vector<32x256xf32>
    %150 = arith.addf %144, %149 : vector<32x256xf32>
    %c0_169 = arith.constant 0 : index
    %c0_170 = arith.constant 0 : index
    %c2_171 = arith.constant 2 : index
    %c0_172 = arith.constant 0 : index
    %151 = vector.load %arg11[%c0_169, %c0_170, %c2_171, %c0_172] : memref<2x6x6x128xf32, #tpu.memory_space<vmem>>, vector<2x4x4x128xf32>
    %152 = vector.shape_cast %151 : vector<2x4x4x128xf32> to vector<32x128xf32>
    %c2_173 = arith.constant 2 : index
    %c0_174 = arith.constant 0 : index
    %c0_175 = arith.constant 0 : index
    %153 = vector.load %arg5[%c2_173, %c0_174, %c0_175] : memref<9x128x256xf32, #tpu.memory_space<vmem>>, vector<1x128x256xf32>
    %154 = vector.shape_cast %153 : vector<1x128x256xf32> to vector<128x256xf32>
    %cst_176 = arith.constant dense<0.000000e+00> : vector<32x256xf32>
    %155 = tpu.matmul %152, %154, %cst_176 {dimension_numbers = #tpu.dot_dimension_numbers<[1], [0], [0], [1], [0, 0, 1, 1], [], []>} : vector<32x128xf32>, vector<128x256xf32>, vector<32x256xf32> -> vector<32x256xf32>
    %156 = arith.addf %150, %155 : vector<32x256xf32>
    %c0_177 = arith.constant 0 : index
    %c1_178 = arith.constant 1 : index
    %c0_179 = arith.constant 0 : index
    %c0_180 = arith.constant 0 : index
    %157 = vector.load %arg11[%c0_177, %c1_178, %c0_179, %c0_180] : memref<2x6x6x128xf32, #tpu.memory_space<vmem>>, vector<2x4x4x128xf32>
    %158 = vector.shape_cast %157 : vector<2x4x4x128xf32> to vector<32x128xf32>
    %c3_181 = arith.constant 3 : index
    %c0_182 = arith.constant 0 : index
    %c0_183 = arith.constant 0 : index
    %159 = vector.load %arg5[%c3_181, %c0_182, %c0_183] : memref<9x128x256xf32, #tpu.memory_space<vmem>>, vector<1x128x256xf32>
    %160 = vector.shape_cast %159 : vector<1x128x256xf32> to vector<128x256xf32>
    %cst_184 = arith.constant dense<0.000000e+00> : vector<32x256xf32>
    %161 = tpu.matmul %158, %160, %cst_184 {dimension_numbers = #tpu.dot_dimension_numbers<[1], [0], [0], [1], [0, 0, 1, 1], [], []>} : vector<32x128xf32>, vector<128x256xf32>, vector<32x256xf32> -> vector<32x256xf32>
    %162 = arith.addf %156, %161 : vector<32x256xf32>
    %c0_185 = arith.constant 0 : index
    %c1_186 = arith.constant 1 : index
    %c1_187 = arith.constant 1 : index
    %c0_188 = arith.constant 0 : index
    %163 = vector.load %arg11[%c0_185, %c1_186, %c1_187, %c0_188] : memref<2x6x6x128xf32, #tpu.memory_space<vmem>>, vector<2x4x4x128xf32>
    %164 = vector.shape_cast %163 : vector<2x4x4x128xf32> to vector<32x128xf32>
    %c4_189 = arith.constant 4 : index
    %c0_190 = arith.constant 0 : index
    %c0_191 = arith.constant 0 : index
    %165 = vector.load %arg5[%c4_189, %c0_190, %c0_191] : memref<9x128x256xf32, #tpu.memory_space<vmem>>, vector<1x128x256xf32>
    %166 = vector.shape_cast %165 : vector<1x128x256xf32> to vector<128x256xf32>
    %cst_192 = arith.constant dense<0.000000e+00> : vector<32x256xf32>
    %167 = tpu.matmul %164, %166, %cst_192 {dimension_numbers = #tpu.dot_dimension_numbers<[1], [0], [0], [1], [0, 0, 1, 1], [], []>} : vector<32x128xf32>, vector<128x256xf32>, vector<32x256xf32> -> vector<32x256xf32>
    %168 = arith.addf %162, %167 : vector<32x256xf32>
    %c0_193 = arith.constant 0 : index
    %c1_194 = arith.constant 1 : index
    %c2_195 = arith.constant 2 : index
    %c0_196 = arith.constant 0 : index
    %169 = vector.load %arg11[%c0_193, %c1_194, %c2_195, %c0_196] : memref<2x6x6x128xf32, #tpu.memory_space<vmem>>, vector<2x4x4x128xf32>
    %170 = vector.shape_cast %169 : vector<2x4x4x128xf32> to vector<32x128xf32>
    %c5_197 = arith.constant 5 : index
    %c0_198 = arith.constant 0 : index
    %c0_199 = arith.constant 0 : index
    %171 = vector.load %arg5[%c5_197, %c0_198, %c0_199] : memref<9x128x256xf32, #tpu.memory_space<vmem>>, vector<1x128x256xf32>
    %172 = vector.shape_cast %171 : vector<1x128x256xf32> to vector<128x256xf32>
    %cst_200 = arith.constant dense<0.000000e+00> : vector<32x256xf32>
    %173 = tpu.matmul %170, %172, %cst_200 {dimension_numbers = #tpu.dot_dimension_numbers<[1], [0], [0], [1], [0, 0, 1, 1], [], []>} : vector<32x128xf32>, vector<128x256xf32>, vector<32x256xf32> -> vector<32x256xf32>
    %174 = arith.addf %168, %173 : vector<32x256xf32>
    %c0_201 = arith.constant 0 : index
    %c2_202 = arith.constant 2 : index
    %c0_203 = arith.constant 0 : index
    %c0_204 = arith.constant 0 : index
    %175 = vector.load %arg11[%c0_201, %c2_202, %c0_203, %c0_204] : memref<2x6x6x128xf32, #tpu.memory_space<vmem>>, vector<2x4x4x128xf32>
    %176 = vector.shape_cast %175 : vector<2x4x4x128xf32> to vector<32x128xf32>
    %c6_205 = arith.constant 6 : index
    %c0_206 = arith.constant 0 : index
    %c0_207 = arith.constant 0 : index
    %177 = vector.load %arg5[%c6_205, %c0_206, %c0_207] : memref<9x128x256xf32, #tpu.memory_space<vmem>>, vector<1x128x256xf32>
    %178 = vector.shape_cast %177 : vector<1x128x256xf32> to vector<128x256xf32>
    %cst_208 = arith.constant dense<0.000000e+00> : vector<32x256xf32>
    %179 = tpu.matmul %176, %178, %cst_208 {dimension_numbers = #tpu.dot_dimension_numbers<[1], [0], [0], [1], [0, 0, 1, 1], [], []>} : vector<32x128xf32>, vector<128x256xf32>, vector<32x256xf32> -> vector<32x256xf32>
    %180 = arith.addf %174, %179 : vector<32x256xf32>
    %c0_209 = arith.constant 0 : index
    %c2_210 = arith.constant 2 : index
    %c1_211 = arith.constant 1 : index
    %c0_212 = arith.constant 0 : index
    %181 = vector.load %arg11[%c0_209, %c2_210, %c1_211, %c0_212] : memref<2x6x6x128xf32, #tpu.memory_space<vmem>>, vector<2x4x4x128xf32>
    %182 = vector.shape_cast %181 : vector<2x4x4x128xf32> to vector<32x128xf32>
    %c7_213 = arith.constant 7 : index
    %c0_214 = arith.constant 0 : index
    %c0_215 = arith.constant 0 : index
    %183 = vector.load %arg5[%c7_213, %c0_214, %c0_215] : memref<9x128x256xf32, #tpu.memory_space<vmem>>, vector<1x128x256xf32>
    %184 = vector.shape_cast %183 : vector<1x128x256xf32> to vector<128x256xf32>
    %cst_216 = arith.constant dense<0.000000e+00> : vector<32x256xf32>
    %185 = tpu.matmul %182, %184, %cst_216 {dimension_numbers = #tpu.dot_dimension_numbers<[1], [0], [0], [1], [0, 0, 1, 1], [], []>} : vector<32x128xf32>, vector<128x256xf32>, vector<32x256xf32> -> vector<32x256xf32>
    %186 = arith.addf %180, %185 : vector<32x256xf32>
    %c0_217 = arith.constant 0 : index
    %c2_218 = arith.constant 2 : index
    %c2_219 = arith.constant 2 : index
    %c0_220 = arith.constant 0 : index
    %187 = vector.load %arg11[%c0_217, %c2_218, %c2_219, %c0_220] : memref<2x6x6x128xf32, #tpu.memory_space<vmem>>, vector<2x4x4x128xf32>
    %188 = vector.shape_cast %187 : vector<2x4x4x128xf32> to vector<32x128xf32>
    %c8_221 = arith.constant 8 : index
    %c0_222 = arith.constant 0 : index
    %c0_223 = arith.constant 0 : index
    %189 = vector.load %arg5[%c8_221, %c0_222, %c0_223] : memref<9x128x256xf32, #tpu.memory_space<vmem>>, vector<1x128x256xf32>
    %190 = vector.shape_cast %189 : vector<1x128x256xf32> to vector<128x256xf32>
    %cst_224 = arith.constant dense<0.000000e+00> : vector<32x256xf32>
    %191 = tpu.matmul %188, %190, %cst_224 {dimension_numbers = #tpu.dot_dimension_numbers<[1], [0], [0], [1], [0, 0, 1, 1], [], []>} : vector<32x128xf32>, vector<128x256xf32>, vector<32x256xf32> -> vector<32x256xf32>
    %192 = arith.addf %186, %191 : vector<32x256xf32>
    %c0_225 = arith.constant 0 : index
    %c0_226 = arith.constant 0 : index
    %193 = vector.load %arg6[%c0_225, %c0_226] : memref<1x256xf32, #tpu.memory_space<vmem>>, vector<1x256xf32>
    %194 = vector.broadcast %193 : vector<1x256xf32> to vector<32x256xf32>
    %195 = arith.addf %192, %194 : vector<32x256xf32>
    %cst_227 = arith.constant 0.000000e+00 : f32
    %196 = vector.broadcast %cst_227 : f32 to vector<32x256xf32>
    %197 = arith.maximumf %195, %196 : vector<32x256xf32>
    %cst_228 = arith.constant 0.000000e+00 : f32
    %198 = vector.broadcast %cst_228 : f32 to vector<2x6x6x256xf32>
    %c0_229 = arith.constant 0 : index
    %c0_230 = arith.constant 0 : index
    %c0_231 = arith.constant 0 : index
    %c0_232 = arith.constant 0 : index
    %199 = vector.load %arg12[%c0_229, %c0_230, %c0_231, %c0_232] : memref<2x6x6x256xf32, #tpu.memory_space<vmem>>, vector<2x6x6x256xf32>
    tpu.vector_store %arg12[%c0_229, %c0_230, %c0_231, %c0_232], %198 {strides = array<i32>} : memref<2x6x6x256xf32, #tpu.memory_space<vmem>>, vector<2x6x6x256xf32>,
    %200 = vector.shape_cast %197 : vector<32x256xf32> to vector<2x4x4x256xf32>
    %c0_233 = arith.constant 0 : index
    %c1_234 = arith.constant 1 : index
    %c1_235 = arith.constant 1 : index
    %c0_236 = arith.constant 0 : index
    %201 = vector.load %arg12[%c0_233, %c1_234, %c1_235, %c0_236] : memref<2x6x6x256xf32, #tpu.memory_space<vmem>>, vector<2x4x4x256xf32>
    tpu.vector_store %arg12[%c0_233, %c1_234, %c1_235, %c0_236], %200 {strides = array<i32>} : memref<2x6x6x256xf32, #tpu.memory_space<vmem>>, vector<2x4x4x256xf32>,
    %cst_237 = arith.constant 0.000000e+00 : f32
    %202 = vector.broadcast %cst_237 : f32 to vector<32x64xf32>
    %c0_238 = arith.constant 0 : index
    %c0_239 = arith.constant 0 : index
    %c0_240 = arith.constant 0 : index
    %c0_241 = arith.constant 0 : index
    %203 = vector.load %arg12[%c0_238, %c0_239, %c0_240, %c0_241] : memref<2x6x6x256xf32, #tpu.memory_space<vmem>>, vector<2x4x4x256xf32>
    %204 = vector.shape_cast %203 : vector<2x4x4x256xf32> to vector<32x256xf32>
    %c0_242 = arith.constant 0 : index
    %c0_243 = arith.constant 0 : index
    %c0_244 = arith.constant 0 : index
    %205 = vector.load %arg7[%c0_242, %c0_243, %c0_244] : memref<9x256x64xf32, #tpu.memory_space<vmem>>, vector<1x256x64xf32>
    %206 = vector.shape_cast %205 : vector<1x256x64xf32> to vector<256x64xf32>
    %cst_245 = arith.constant dense<0.000000e+00> : vector<32x64xf32>
    %207 = tpu.matmul %204, %206, %cst_245 {dimension_numbers = #tpu.dot_dimension_numbers<[1], [0], [0], [1], [0, 0, 1, 1], [], []>} : vector<32x256xf32>, vector<256x64xf32>, vector<32x64xf32> -> vector<32x64xf32>
    %208 = arith.addf %202, %207 : vector<32x64xf32>
    %c0_246 = arith.constant 0 : index
    %c0_247 = arith.constant 0 : index
    %c1_248 = arith.constant 1 : index
    %c0_249 = arith.constant 0 : index
    %209 = vector.load %arg12[%c0_246, %c0_247, %c1_248, %c0_249] : memref<2x6x6x256xf32, #tpu.memory_space<vmem>>, vector<2x4x4x256xf32>
    %210 = vector.shape_cast %209 : vector<2x4x4x256xf32> to vector<32x256xf32>
    %c1_250 = arith.constant 1 : index
    %c0_251 = arith.constant 0 : index
    %c0_252 = arith.constant 0 : index
    %211 = vector.load %arg7[%c1_250, %c0_251, %c0_252] : memref<9x256x64xf32, #tpu.memory_space<vmem>>, vector<1x256x64xf32>
    %212 = vector.shape_cast %211 : vector<1x256x64xf32> to vector<256x64xf32>
    %cst_253 = arith.constant dense<0.000000e+00> : vector<32x64xf32>
    %213 = tpu.matmul %210, %212, %cst_253 {dimension_numbers = #tpu.dot_dimension_numbers<[1], [0], [0], [1], [0, 0, 1, 1], [], []>} : vector<32x256xf32>, vector<256x64xf32>, vector<32x64xf32> -> vector<32x64xf32>
    %214 = arith.addf %208, %213 : vector<32x64xf32>
    %c0_254 = arith.constant 0 : index
    %c0_255 = arith.constant 0 : index
    %c2_256 = arith.constant 2 : index
    %c0_257 = arith.constant 0 : index
    %215 = vector.load %arg12[%c0_254, %c0_255, %c2_256, %c0_257] : memref<2x6x6x256xf32, #tpu.memory_space<vmem>>, vector<2x4x4x256xf32>
    %216 = vector.shape_cast %215 : vector<2x4x4x256xf32> to vector<32x256xf32>
    %c2_258 = arith.constant 2 : index
    %c0_259 = arith.constant 0 : index
    %c0_260 = arith.constant 0 : index
    %217 = vector.load %arg7[%c2_258, %c0_259, %c0_260] : memref<9x256x64xf32, #tpu.memory_space<vmem>>, vector<1x256x64xf32>
    %218 = vector.shape_cast %217 : vector<1x256x64xf32> to vector<256x64xf32>
    %cst_261 = arith.constant dense<0.000000e+00> : vector<32x64xf32>
    %219 = tpu.matmul %216, %218, %cst_261 {dimension_numbers = #tpu.dot_dimension_numbers<[1], [0], [0], [1], [0, 0, 1, 1], [], []>} : vector<32x256xf32>, vector<256x64xf32>, vector<32x64xf32> -> vector<32x64xf32>
    %220 = arith.addf %214, %219 : vector<32x64xf32>
    %c0_262 = arith.constant 0 : index
    %c1_263 = arith.constant 1 : index
    %c0_264 = arith.constant 0 : index
    %c0_265 = arith.constant 0 : index
    %221 = vector.load %arg12[%c0_262, %c1_263, %c0_264, %c0_265] : memref<2x6x6x256xf32, #tpu.memory_space<vmem>>, vector<2x4x4x256xf32>
    %222 = vector.shape_cast %221 : vector<2x4x4x256xf32> to vector<32x256xf32>
    %c3_266 = arith.constant 3 : index
    %c0_267 = arith.constant 0 : index
    %c0_268 = arith.constant 0 : index
    %223 = vector.load %arg7[%c3_266, %c0_267, %c0_268] : memref<9x256x64xf32, #tpu.memory_space<vmem>>, vector<1x256x64xf32>
    %224 = vector.shape_cast %223 : vector<1x256x64xf32> to vector<256x64xf32>
    %cst_269 = arith.constant dense<0.000000e+00> : vector<32x64xf32>
    %225 = tpu.matmul %222, %224, %cst_269 {dimension_numbers = #tpu.dot_dimension_numbers<[1], [0], [0], [1], [0, 0, 1, 1], [], []>} : vector<32x256xf32>, vector<256x64xf32>, vector<32x64xf32> -> vector<32x64xf32>
    %226 = arith.addf %220, %225 : vector<32x64xf32>
    %c0_270 = arith.constant 0 : index
    %c1_271 = arith.constant 1 : index
    %c1_272 = arith.constant 1 : index
    %c0_273 = arith.constant 0 : index
    %227 = vector.load %arg12[%c0_270, %c1_271, %c1_272, %c0_273] : memref<2x6x6x256xf32, #tpu.memory_space<vmem>>, vector<2x4x4x256xf32>
    %228 = vector.shape_cast %227 : vector<2x4x4x256xf32> to vector<32x256xf32>
    %c4_274 = arith.constant 4 : index
    %c0_275 = arith.constant 0 : index
    %c0_276 = arith.constant 0 : index
    %229 = vector.load %arg7[%c4_274, %c0_275, %c0_276] : memref<9x256x64xf32, #tpu.memory_space<vmem>>, vector<1x256x64xf32>
    %230 = vector.shape_cast %229 : vector<1x256x64xf32> to vector<256x64xf32>
    %cst_277 = arith.constant dense<0.000000e+00> : vector<32x64xf32>
    %231 = tpu.matmul %228, %230, %cst_277 {dimension_numbers = #tpu.dot_dimension_numbers<[1], [0], [0], [1], [0, 0, 1, 1], [], []>} : vector<32x256xf32>, vector<256x64xf32>, vector<32x64xf32> -> vector<32x64xf32>
    %232 = arith.addf %226, %231 : vector<32x64xf32>
    %c0_278 = arith.constant 0 : index
    %c1_279 = arith.constant 1 : index
    %c2_280 = arith.constant 2 : index
    %c0_281 = arith.constant 0 : index
    %233 = vector.load %arg12[%c0_278, %c1_279, %c2_280, %c0_281] : memref<2x6x6x256xf32, #tpu.memory_space<vmem>>, vector<2x4x4x256xf32>
    %234 = vector.shape_cast %233 : vector<2x4x4x256xf32> to vector<32x256xf32>
    %c5_282 = arith.constant 5 : index
    %c0_283 = arith.constant 0 : index
    %c0_284 = arith.constant 0 : index
    %235 = vector.load %arg7[%c5_282, %c0_283, %c0_284] : memref<9x256x64xf32, #tpu.memory_space<vmem>>, vector<1x256x64xf32>
    %236 = vector.shape_cast %235 : vector<1x256x64xf32> to vector<256x64xf32>
    %cst_285 = arith.constant dense<0.000000e+00> : vector<32x64xf32>
    %237 = tpu.matmul %234, %236, %cst_285 {dimension_numbers = #tpu.dot_dimension_numbers<[1], [0], [0], [1], [0, 0, 1, 1], [], []>} : vector<32x256xf32>, vector<256x64xf32>, vector<32x64xf32> -> vector<32x64xf32>
    %238 = arith.addf %232, %237 : vector<32x64xf32>
    %c0_286 = arith.constant 0 : index
    %c2_287 = arith.constant 2 : index
    %c0_288 = arith.constant 0 : index
    %c0_289 = arith.constant 0 : index
    %239 = vector.load %arg12[%c0_286, %c2_287, %c0_288, %c0_289] : memref<2x6x6x256xf32, #tpu.memory_space<vmem>>, vector<2x4x4x256xf32>
    %240 = vector.shape_cast %239 : vector<2x4x4x256xf32> to vector<32x256xf32>
    %c6_290 = arith.constant 6 : index
    %c0_291 = arith.constant 0 : index
    %c0_292 = arith.constant 0 : index
    %241 = vector.load %arg7[%c6_290, %c0_291, %c0_292] : memref<9x256x64xf32, #tpu.memory_space<vmem>>, vector<1x256x64xf32>
    %242 = vector.shape_cast %241 : vector<1x256x64xf32> to vector<256x64xf32>
    %cst_293 = arith.constant dense<0.000000e+00> : vector<32x64xf32>
    %243 = tpu.matmul %240, %242, %cst_293 {dimension_numbers = #tpu.dot_dimension_numbers<[1], [0], [0], [1], [0, 0, 1, 1], [], []>} : vector<32x256xf32>, vector<256x64xf32>, vector<32x64xf32> -> vector<32x64xf32>
    %244 = arith.addf %238, %243 : vector<32x64xf32>
    %c0_294 = arith.constant 0 : index
    %c2_295 = arith.constant 2 : index
    %c1_296 = arith.constant 1 : index
    %c0_297 = arith.constant 0 : index
    %245 = vector.load %arg12[%c0_294, %c2_295, %c1_296, %c0_297] : memref<2x6x6x256xf32, #tpu.memory_space<vmem>>, vector<2x4x4x256xf32>
    %246 = vector.shape_cast %245 : vector<2x4x4x256xf32> to vector<32x256xf32>
    %c7_298 = arith.constant 7 : index
    %c0_299 = arith.constant 0 : index
    %c0_300 = arith.constant 0 : index
    %247 = vector.load %arg7[%c7_298, %c0_299, %c0_300] : memref<9x256x64xf32, #tpu.memory_space<vmem>>, vector<1x256x64xf32>
    %248 = vector.shape_cast %247 : vector<1x256x64xf32> to vector<256x64xf32>
    %cst_301 = arith.constant dense<0.000000e+00> : vector<32x64xf32>
    %249 = tpu.matmul %246, %248, %cst_301 {dimension_numbers = #tpu.dot_dimension_numbers<[1], [0], [0], [1], [0, 0, 1, 1], [], []>} : vector<32x256xf32>, vector<256x64xf32>, vector<32x64xf32> -> vector<32x64xf32>
    %250 = arith.addf %244, %249 : vector<32x64xf32>
    %c0_302 = arith.constant 0 : index
    %c2_303 = arith.constant 2 : index
    %c2_304 = arith.constant 2 : index
    %c0_305 = arith.constant 0 : index
    %251 = vector.load %arg12[%c0_302, %c2_303, %c2_304, %c0_305] : memref<2x6x6x256xf32, #tpu.memory_space<vmem>>, vector<2x4x4x256xf32>
    %252 = vector.shape_cast %251 : vector<2x4x4x256xf32> to vector<32x256xf32>
    %c8_306 = arith.constant 8 : index
    %c0_307 = arith.constant 0 : index
    %c0_308 = arith.constant 0 : index
    %253 = vector.load %arg7[%c8_306, %c0_307, %c0_308] : memref<9x256x64xf32, #tpu.memory_space<vmem>>, vector<1x256x64xf32>
    %254 = vector.shape_cast %253 : vector<1x256x64xf32> to vector<256x64xf32>
    %cst_309 = arith.constant dense<0.000000e+00> : vector<32x64xf32>
    %255 = tpu.matmul %252, %254, %cst_309 {dimension_numbers = #tpu.dot_dimension_numbers<[1], [0], [0], [1], [0, 0, 1, 1], [], []>} : vector<32x256xf32>, vector<256x64xf32>, vector<32x64xf32> -> vector<32x64xf32>
    %256 = arith.addf %250, %255 : vector<32x64xf32>
    %c0_310 = arith.constant 0 : index
    %c0_311 = arith.constant 0 : index
    %257 = vector.load %arg8[%c0_310, %c0_311] : memref<1x64xf32, #tpu.memory_space<vmem>>, vector<1x64xf32>
    %258 = vector.broadcast %257 : vector<1x64xf32> to vector<32x64xf32>
    %259 = arith.addf %256, %258 : vector<32x64xf32>
    %cst_312 = arith.constant 0.000000e+00 : f32
    %260 = vector.broadcast %cst_312 : f32 to vector<32x64xf32>
    %261 = arith.maximumf %259, %260 : vector<32x64xf32>
    %262 = vector.shape_cast %261 : vector<32x64xf32> to vector<1x32x64xf32>
    %cst_313 = arith.constant dense<0x7F800000> : vector<1xf32>
    %263 = vector.multi_reduction <minimumf>, %262, %cst_313 [1, 2] : vector<1x32x64xf32> to vector<1xf32>
    %264 = vector.shape_cast %263 : vector<1xf32> to vector<1x1x1xf32>
    %265 = vector.extract %264[0, 0, 0] : f32 from vector<1x1x1xf32>
    %266 = vector.broadcast %265 : f32 to vector<32x64xf32>
    %267 = arith.subf %261, %266 : vector<32x64xf32>
    %268 = vector.shape_cast %267 : vector<32x64xf32> to vector<1x32x64xf32>
    %cst_314 = arith.constant dense<0xFF800000> : vector<1xf32>
    %269 = vector.multi_reduction <maximumf>, %268, %cst_314 [1, 2] : vector<1x32x64xf32> to vector<1xf32>
    %270 = vector.shape_cast %269 : vector<1xf32> to vector<1x1x1xf32>
    %271 = vector.extract %270[0, 0, 0] : f32 from vector<1x1x1xf32>
    %cst_315 = arith.constant 9.99999974E-5 : f32
    %272 = arith.addf %271, %cst_315 : f32
    %273 = vector.broadcast %272 : f32 to vector<32x64xf32>
    %274 = arith.divf %267, %273 : vector<32x64xf32>
    %c0_316 = arith.constant 0 : index
    %c0_317 = arith.constant 0 : index
    %275 = vector.load %arg9[%c0_316, %c0_317] : memref<32x64xf32, #tpu.memory_space<vmem>>, vector<32x64xf32>
    tpu.vector_store %arg9[%c0_316, %c0_317], %274 {strides = array<i32>} : memref<32x64xf32, #tpu.memory_space<vmem>>, vector<32x64xf32>,
    return
  }
}

</mosaic_0001>

<llo_original>
// kernel: decoder_forward.1
$region0: #{decoder_forward.1}
  #allocation0 [shape = 'u32[]', space=smem, size = 0x4, offset = 0x4, fixed_abs, tag = 'smem constant byte address 0x4 - core index']
  #allocation1 [shape = 'u32[144,128]{1,0:T(1,128)}', space=vmem, size = 0x12000, scoped, tag = 'internal scratch']
  #allocation2 [shape = 'f32[2,6,6,64]{3,2,1,0:T(8,128)}', space=vmem, size = 0xc000, scoped, tag = 'scratch operand']
  #allocation3 [shape = 'f32[2,6,6,128]{3,2,1,0:T(8,128)}', space=vmem, size = 0xc000, scoped, tag = 'scratch operand']
  #allocation4 [shape = 'f32[2,6,6,256]{3,2,1,0:T(8,128)}', space=vmem, size = 0x18000, scoped, tag = 'scratch operand']
  %s0 = inlined_call_operand.vmem [shape: f32[2,512], index: 0, kind: input, shape index: {}]
  %s1 = inlined_call_operand.hbm [shape: f32[512,1024], index: 1, kind: input, shape index: {}]
  %s2 = inlined_call_operand.vmem [shape: f32[1,1024], index: 2, kind: input, shape index: {}]
  %s3 = inlined_call_operand.vmem [shape: f32[9,64,128], index: 3, kind: input, shape index: {}]
  %s4 = inlined_call_operand.vmem [shape: f32[1,128], index: 4, kind: input, shape index: {}]
  %s5 = inlined_call_operand.vmem [shape: f32[9,128,256], index: 5, kind: input, shape index: {}]
  %s6 = inlined_call_operand.vmem [shape: f32[1,256], index: 6, kind: input, shape index: {}]
  %s7 = inlined_call_operand.vmem [shape: f32[9,256,64], index: 7, kind: input, shape index: {}]
  %s8 = inlined_call_operand.vmem [shape: f32[1,64], index: 8, kind: input, shape index: {}]
  %s9 = inlined_call_operand.vmem [shape: f32[32,64], index: 9, kind: output, shape index: {}]
  %s10 = sld [smem:[#allocation0]]
  $region50: #{decoder_forward.1} parent=0
    _
  %s12 = ssub.s32 1, %s10
  %s13 = scalar_select 0, %s12, %s10
  $region1: #{decoder_forward.1} parent=0
    #allocation5 [shape = 'u8[2097152]{0}', space=vmem, size = 0x200000, scoped, tag = 'input window, operand 1, single buffered']
    #allocation6 [shape = 's32[1]{0}', space=sflag, size = 0x4, scoped, tag = 'scoped memory for decoder_forward.1']
    %14 = vsyncpa [#allocation6], 0
    // Predicated region
    $region2: #{decoder_forward.1} parent=1 // pred_check
      _
    $region3: #{decoder_forward.1} parent=1 // pred_check_branch
      %16 = sbr.rel (0) target = $region5
    $region4: #{decoder_forward.1} parent=1 // pred_region
      _
    $region5: #{decoder_forward.1} parent=1 // pred_fallthru
      _
    // Predicated region
    $region6: #{decoder_forward.1} parent=1 // pred_check
      _
    $region7: #{decoder_forward.1} parent=1 // pred_check_branch
      %18 = sbr.rel (0) target = $region9
    $region8: #{decoder_forward.1} parent=1 // pred_region
      %s20 = ssub.s32 65536, 65536
      %21 = vsyncadd [#allocation6], %s20
      %s22 = sshll.u32 [#allocation5], 4
      %s23 = int_to_ptr.vmem [resolvable:$true] %s22
      %28 = dma.hbm_to_vmem [thread:$0]  %s1, 65536, %s23, [#allocation6], 1024, 1024, 64
    $region9: #{decoder_forward.1} parent=1 // pred_fallthru
      _
    // Predicated region
    $region10: #{decoder_forward.1} parent=1 // pred_check
      _
    $region11: #{decoder_forward.1} parent=1 // pred_check_branch
      %30 = sbr.rel (0) target = $region13
    $region12: #{decoder_forward.1} parent=1 // pred_region
      _
    $region13: #{decoder_forward.1} parent=1 // pred_fallthru
      _
    // Predicated region
    $region14: #{decoder_forward.1} parent=1 // pred_check
      _
    $region15: #{decoder_forward.1} parent=1 // pred_check_branch
      %32 = sbr.rel (0) target = $region17
    $region16: #{decoder_forward.1} parent=1 // pred_region
      _
    $region17: #{decoder_forward.1} parent=1 // pred_fallthru
      _
    // Predicated region
    $region18: #{decoder_forward.1} parent=1 // pred_check
      _
    $region19: #{decoder_forward.1} parent=1 // pred_check_branch
      %34 = sbr.rel (0) target = $region21
    $region20: #{decoder_forward.1} parent=1 // pred_region
      _
    $region21: #{decoder_forward.1} parent=1 // pred_fallthru
      _
    // Predicated region
    $region22: #{decoder_forward.1} parent=1 // pred_check
      _
    $region23: #{decoder_forward.1} parent=1 // pred_check_branch
      %36 = sbr.rel (0) target = $region25
    $region24: #{decoder_forward.1} parent=1 // pred_region
      _
    $region25: #{decoder_forward.1} parent=1 // pred_fallthru
      _
    // Predicated region
    $region26: #{decoder_forward.1} parent=1 // pred_check
      _
    $region27: #{decoder_forward.1} parent=1 // pred_check_branch
      %38 = sbr.rel (0) target = $region29
    $region28: #{decoder_forward.1} parent=1 // pred_region
      _
    $region29: #{decoder_forward.1} parent=1 // pred_fallthru
      _
    // Predicated region
    $region30: #{decoder_forward.1} parent=1 // pred_check
      _
    $region31: #{decoder_forward.1} parent=1 // pred_check_branch
      %40 = sbr.rel (0) target = $region33
    $region32: #{decoder_forward.1} parent=1 // pred_region
      _
    $region33: #{decoder_forward.1} parent=1 // pred_fallthru
      _
    // Predicated region
    $region34: #{decoder_forward.1} parent=1 // pred_check
      _
    $region35: #{decoder_forward.1} parent=1 // pred_check_branch
      %42 = sbr.rel (0) target = $region37
    $region36: #{decoder_forward.1} parent=1 // pred_region
      _
    $region37: #{decoder_forward.1} parent=1 // pred_fallthru
      _
    // Predicated region
    $region38: #{decoder_forward.1} parent=1 // pred_check
      _
    $region39: #{decoder_forward.1} parent=1 // pred_check_branch
      %44 = sbr.rel (0) target = $region41
    $region40: #{decoder_forward.1} parent=1 // pred_region
      %45 = dma.done [#allocation6], 65536
    $region41: #{decoder_forward.1} parent=1 // pred_fallthru
      _
    %v46 = vld [vmem:[%s0] sm:$0xff]
    %v47 = vld [vmem:[#allocation5] sm:$0xff]
    %v48 = vld [vmem:[#allocation5 + $0x8] sm:$0xff]
    %v49 = vld [vmem:[#allocation5 + $0x10] sm:$0xff]
    %v50 = vld [vmem:[#allocation5 + $0x18] sm:$0xff]
    %v51 = vld [vmem:[#allocation5 + $0x20] sm:$0xff]
    %v52 = vld [vmem:[#allocation5 + $0x28] sm:$0xff]
    %v53 = vld [vmem:[#allocation5 + $0x30] sm:$0xff]
    %v54 = vld [vmem:[#allocation5 + $0x38] sm:$0xff]
    %v55 = vld [vmem:[#allocation5 + $0x40] sm:$0xff]
    %v56 = vld [vmem:[#allocation5 + $0x48] sm:$0xff]
    %v57 = vld [vmem:[#allocation5 + $0x50] sm:$0xff]
    %v58 = vld [vmem:[#allocation5 + $0x58] sm:$0xff]
    %v59 = vld [vmem:[#allocation5 + $0x60] sm:$0xff]
    %v60 = vld [vmem:[#allocation5 + $0x68] sm:$0xff]
    %v61 = vld [vmem:[#allocation5 + $0x70] sm:$0xff]
    %v62 = vld [vmem:[#allocation5 + $0x78] sm:$0xff]
    %v63 = vld [vmem:[#allocation5 + $0x80] sm:$0xff]
    %v64 = vld [vmem:[#allocation5 + $0x88] sm:$0xff]
    %v65 = vld [vmem:[#allocation5 + $0x90] sm:$0xff]
    %v66 = vld [vmem:[#allocation5 + $0x98] sm:$0xff]
    %v67 = vld [vmem:[#allocation5 + $0xa0] sm:$0xff]
    %v68 = vld [vmem:[#allocation5 + $0xa8] sm:$0xff]
    %v69 = vld [vmem:[#allocation5 + $0xb0] sm:$0xff]
    %v70 = vld [vmem:[#allocation5 + $0xb8] sm:$0xff]
    %v71 = vld [vmem:[#allocation5 + $0xc0] sm:$0xff]
    %v72 = vld [vmem:[#allocation5 + $0xc8] sm:$0xff]
    %v73 = vld [vmem:[#allocation5 + $0xd0] sm:$0xff]
    %v74 = vld [vmem:[#allocation5 + $0xd8] sm:$0xff]
    %v75 = vld [vmem:[#allocation5 + $0xe0] sm:$0xff]
    %v76 = vld [vmem:[#allocation5 + $0xe8] sm:$0xff]
    %v77 = vld [vmem:[#allocation5 + $0xf0] sm:$0xff]
    %v78 = vld [vmem:[#allocation5 + $0xf8] sm:$0xff]
    %v79 = vld [vmem:[#allocation5 + $0x100] sm:$0xff]
    %v80 = vld [vmem:[#allocation5 + $0x108] sm:$0xff]
    %v81 = vld [vmem:[#allocation5 + $0x110] sm:$0xff]
    %v82 = vld [vmem:[#allocation5 + $0x118] sm:$0xff]
    %v83 = vld [vmem:[#allocation5 + $0x120] sm:$0xff]
    %v84 = vld [vmem:[#allocation5 + $0x128] sm:$0xff]
    %v85 = vld [vmem:[#allocation5 + $0x130] sm:$0xff]
    %v86 = vld [vmem:[#allocation5 + $0x138] sm:$0xff]
    %v87 = vld [vmem:[#allocation5 + $0x140] sm:$0xff]
    %v88 = vld [vmem:[#allocation5 + $0x148] sm:$0xff]
    %v89 = vld [vmem:[#allocation5 + $0x150] sm:$0xff]
    %v90 = vld [vmem:[#allocation5 + $0x158] sm:$0xff]
    %v91 = vld [vmem:[#allocation5 + $0x160] sm:$0xff]
    %v92 = vld [vmem:[#allocation5 + $0x168] sm:$0xff]
    %v93 = vld [vmem:[#allocation5 + $0x170] sm:$0xff]
    %v94 = vld [vmem:[#allocation5 + $0x178] sm:$0xff]
    %v95 = vld [vmem:[#allocation5 + $0x180] sm:$0xff]
    %v96 = vld [vmem:[#allocation5 + $0x188] sm:$0xff]
    %v97 = vld [vmem:[#allocation5 + $0x190] sm:$0xff]
    %v98 = vld [vmem:[#allocation5 + $0x198] sm:$0xff]
    %v99 = vld [vmem:[#allocation5 + $0x1a0] sm:$0xff]
    %v100 = vld [vmem:[#allocation5 + $0x1a8] sm:$0xff]
    %v101 = vld [vmem:[#allocation5 + $0x1b0] sm:$0xff]
    %v102 = vld [vmem:[#allocation5 + $0x1b8] sm:$0xff]
    %v103 = vld [vmem:[#allocation5 + $0x1c0] sm:$0xff]
    %v104 = vld [vmem:[#allocation5 + $0x1c8] sm:$0xff]
    %v105 = vld [vmem:[#allocation5 + $0x1d0] sm:$0xff]
    %v106 = vld [vmem:[#allocation5 + $0x1d8] sm:$0xff]
    %v107 = vld [vmem:[#allocation5 + $0x1e0] sm:$0xff]
    %v108 = vld [vmem:[#allocation5 + $0x1e8] sm:$0xff]
    %v109 = vld [vmem:[#allocation5 + $0x1f0] sm:$0xff]
    %v110 = vld [vmem:[#allocation5 + $0x1f8] sm:$0xff]
    %v111 = vld [vmem:[#allocation5 + $0x200] sm:$0xff]
    %v112 = vld [vmem:[#allocation5 + $0x208] sm:$0xff]
    %v113 = vld [vmem:[#allocation5 + $0x210] sm:$0xff]
    %v114 = vld [vmem:[#allocation5 + $0x218] sm:$0xff]
    %v115 = vld [vmem:[#allocation5 + $0x220] sm:$0xff]
    %v116 = vld [vmem:[#allocation5 + $0x228] sm:$0xff]
    %v117 = vld [vmem:[#allocation5 + $0x230] sm:$0xff]
    %v118 = vld [vmem:[#allocation5 + $0x238] sm:$0xff]
    %v119 = vld [vmem:[#allocation5 + $0x240] sm:$0xff]
    %v120 = vld [vmem:[#allocation5 + $0x248] sm:$0xff]
    %v121 = vld [vmem:[#allocation5 + $0x250] sm:$0xff]
    %v122 = vld [vmem:[#allocation5 + $0x258] sm:$0xff]
    %v123 = vld [vmem:[#allocation5 + $0x260] sm:$0xff]
    %v124 = vld [vmem:[#allocation5 + $0x268] sm:$0xff]
    %v125 = vld [vmem:[#allocation5 + $0x270] sm:$0xff]
    %v126 = vld [vmem:[#allocation5 + $0x278] sm:$0xff]
    %v127 = vld [vmem:[#allocation5 + $0x280] sm:$0xff]
    %v128 = vld [vmem:[#allocation5 + $0x288] sm:$0xff]
    %v129 = vld [vmem:[#allocation5 + $0x290] sm:$0xff]
    %v130 = vld [vmem:[#allocation5 + $0x298] sm:$0xff]
    %v131 = vld [vmem:[#allocation5 + $0x2a0] sm:$0xff]
    %v132 = vld [vmem:[#allocation5 + $0x2a8] sm:$0xff]
    %v133 = vld [vmem:[#allocation5 + $0x2b0] sm:$0xff]
    %v134 = vld [vmem:[#allocation5 + $0x2b8] sm:$0xff]
    %v135 = vld [vmem:[#allocation5 + $0x2c0] sm:$0xff]
    %v136 = vld [vmem:[#allocation5 + $0x2c8] sm:$0xff]
    %v137 = vld [vmem:[#allocation5 + $0x2d0] sm:$0xff]
    %v138 = vld [vmem:[#allocation5 + $0x2d8] sm:$0xff]
    %v139 = vld [vmem:[#allocation5 + $0x2e0] sm:$0xff]
    %v140 = vld [vmem:[#allocation5 + $0x2e8] sm:$0xff]
    %v141 = vld [vmem:[#allocation5 + $0x2f0] sm:$0xff]
    %v142 = vld [vmem:[#allocation5 + $0x2f8] sm:$0xff]
    %v143 = vld [vmem:[#allocation5 + $0x300] sm:$0xff]
    %v144 = vld [vmem:[#allocation5 + $0x308] sm:$0xff]
    %v145 = vld [vmem:[#allocation5 + $0x310] sm:$0xff]
    %v146 = vld [vmem:[#allocation5 + $0x318] sm:$0xff]
    %v147 = vld [vmem:[#allocation5 + $0x320] sm:$0xff]
    %v148 = vld [vmem:[#allocation5 + $0x328] sm:$0xff]
    %v149 = vld [vmem:[#allocation5 + $0x330] sm:$0xff]
    %v150 = vld [vmem:[#allocation5 + $0x338] sm:$0xff]
    %v151 = vld [vmem:[#allocation5 + $0x340] sm:$0xff]
    %v152 = vld [vmem:[#allocation5 + $0x348] sm:$0xff]
    %v153 = vld [vmem:[#allocation5 + $0x350] sm:$0xff]
    %v154 = vld [vmem:[#allocation5 + $0x358] sm:$0xff]
    %v155 = vld [vmem:[#allocation5 + $0x360] sm:$0xff]
    %v156 = vld [vmem:[#allocation5 + $0x368] sm:$0xff]
    %v157 = vld [vmem:[#allocation5 + $0x370] sm:$0xff]
    %v158 = vld [vmem:[#allocation5 + $0x378] sm:$0xff]
    %v159 = vld [vmem:[#allocation5 + $0x380] sm:$0xff]
    %v160 = vld [vmem:[#allocation5 + $0x388] sm:$0xff]
    %v161 = vld [vmem:[#allocation5 + $0x390] sm:$0xff]
    %v162 = vld [vmem:[#allocation5 + $0x398] sm:$0xff]
    %v163 = vld [vmem:[#allocation5 + $0x3a0] sm:$0xff]
    %v164 = vld [vmem:[#allocation5 + $0x3a8] sm:$0xff]
    %v165 = vld [vmem:[#allocation5 + $0x3b0] sm:$0xff]
    %v166 = vld [vmem:[#allocation5 + $0x3b8] sm:$0xff]
    %v167 = vld [vmem:[#allocation5 + $0x3c0] sm:$0xff]
    %v168 = vld [vmem:[#allocation5 + $0x3c8] sm:$0xff]
    %v169 = vld [vmem:[#allocation5 + $0x3d0] sm:$0xff]
    %v170 = vld [vmem:[#allocation5 + $0x3d8] sm:$0xff]
    %v171 = vld [vmem:[#allocation5 + $0x3e0] sm:$0xff]
    %v172 = vld [vmem:[#allocation5 + $0x3e8] sm:$0xff]
    %v173 = vld [vmem:[#allocation5 + $0x3f0] sm:$0xff]
    %v174 = vld [vmem:[#allocation5 + $0x3f8] sm:$0xff]
    %v175 = vld [vmem:[#allocation5 + $0x400] sm:$0xff]
    %v176 = vld [vmem:[#allocation5 + $0x408] sm:$0xff]
    %v177 = vld [vmem:[#allocation5 + $0x410] sm:$0xff]
    %v178 = vld [vmem:[#allocation5 + $0x418] sm:$0xff]
    %v179 = vld [vmem:[#allocation5 + $0x420] sm:$0xff]
    %v180 = vld [vmem:[#allocation5 + $0x428] sm:$0xff]
    %v181 = vld [vmem:[#allocation5 + $0x430] sm:$0xff]
    %v182 = vld [vmem:[#allocation5 + $0x438] sm:$0xff]
    %v183 = vld [vmem:[#allocation5 + $0x440] sm:$0xff]
    %v184 = vld [vmem:[#allocation5 + $0x448] sm:$0xff]
    %v185 = vld [vmem:[#allocation5 + $0x450] sm:$0xff]
    %v186 = vld [vmem:[#allocation5 + $0x458] sm:$0xff]
    %v187 = vld [vmem:[#allocation5 + $0x460] sm:$0xff]
    %v188 = vld [vmem:[#allocation5 + $0x468] sm:$0xff]
    %v189 = vld [vmem:[#allocation5 + $0x470] sm:$0xff]
    %v190 = vld [vmem:[#allocation5 + $0x478] sm:$0xff]
    %v191 = vld [vmem:[#allocation5 + $0x480] sm:$0xff]
    %v192 = vld [vmem:[#allocation5 + $0x488] sm:$0xff]
    %v193 = vld [vmem:[#allocation5 + $0x490] sm:$0xff]
    %v194 = vld [vmem:[#allocation5 + $0x498] sm:$0xff]
    %v195 = vld [vmem:[#allocation5 + $0x4a0] sm:$0xff]
    %v196 = vld [vmem:[#allocation5 + $0x4a8] sm:$0xff]
    %v197 = vld [vmem:[#allocation5 + $0x4b0] sm:$0xff]
    %v198 = vld [vmem:[#allocation5 + $0x4b8] sm:$0xff]
    %v199 = vld [vmem:[#allocation5 + $0x4c0] sm:$0xff]
    %v200 = vld [vmem:[#allocation5 + $0x4c8] sm:$0xff]
    %v201 = vld [vmem:[#allocation5 + $0x4d0] sm:$0xff]
    %v202 = vld [vmem:[#allocation5 + $0x4d8] sm:$0xff]
    %v203 = vld [vmem:[#allocation5 + $0x4e0] sm:$0xff]
    %v204 = vld [vmem:[#allocation5 + $0x4e8] sm:$0xff]
    %v205 = vld [vmem:[#allocation5 + $0x4f0] sm:$0xff]
    %v206 = vld [vmem:[#allocation5 + $0x4f8] sm:$0xff]
    %v207 = vld [vmem:[#allocation5 + $0x500] sm:$0xff]
    %v208 = vld [vmem:[#allocation5 + $0x508] sm:$0xff]
    %v209 = vld [vmem:[#allocation5 + $0x510] sm:$0xff]
    %v210 = vld [vmem:[#allocation5 + $0x518] sm:$0xff]
    %v211 = vld [vmem:[#allocation5 + $0x520] sm:$0xff]
    %v212 = vld [vmem:[#allocation5 + $0x528] sm:$0xff]
    %v213 = vld [vmem:[#allocation5 + $0x530] sm:$0xff]
    %v214 = vld [vmem:[#allocation5 + $0x538] sm:$0xff]
    %v215 = vld [vmem:[#allocation5 + $0x540] sm:$0xff]
    %v216 = vld [vmem:[#allocation5 + $0x548] sm:$0xff]
    %v217 = vld [vmem:[#allocation5 + $0x550] sm:$0xff]
    %v218 = vld [vmem:[#allocation5 + $0x558] sm:$0xff]
    %v219 = vld [vmem:[#allocation5 + $0x560] sm:$0xff]
    %v220 = vld [vmem:[#allocation5 + $0x568] sm:$0xff]
    %v221 = vld [vmem:[#allocation5 + $0x570] sm:$0xff]
    %v222 = vld [vmem:[#allocation5 + $0x578] sm:$0xff]
    %v223 = vld [vmem:[#allocation5 + $0x580] sm:$0xff]
    %v224 = vld [vmem:[#allocation5 + $0x588] sm:$0xff]
    %v225 = vld [vmem:[#allocation5 + $0x590] sm:$0xff]
    %v226 = vld [vmem:[#allocation5 + $0x598] sm:$0xff]
    %v227 = vld [vmem:[#allocation5 + $0x5a0] sm:$0xff]
    %v228 = vld [vmem:[#allocation5 + $0x5a8] sm:$0xff]
    %v229 = vld [vmem:[#allocation5 + $0x5b0] sm:$0xff]
    %v230 = vld [vmem:[#allocation5 + $0x5b8] sm:$0xff]
    %v231 = vld [vmem:[#allocation5 + $0x5c0] sm:$0xff]
    %v232 = vld [vmem:[#allocation5 + $0x5c8] sm:$0xff]
    %v233 = vld [vmem:[#allocation5 + $0x5d0] sm:$0xff]
    %v234 = vld [vmem:[#allocation5 + $0x5d8] sm:$0xff]
    %v235 = vld [vmem:[#allocation5 + $0x5e0] sm:$0xff]
    %v236 = vld [vmem:[#allocation5 + $0x5e8] sm:$0xff]
    %v237 = vld [vmem:[#allocation5 + $0x5f0] sm:$0xff]
    %v238 = vld [vmem:[#allocation5 + $0x5f8] sm:$0xff]
    %v239 = vld [vmem:[#allocation5 + $0x600] sm:$0xff]
    %v240 = vld [vmem:[#allocation5 + $0x608] sm:$0xff]
    %v241 = vld [vmem:[#allocation5 + $0x610] sm:$0xff]
    %v242 = vld [vmem:[#allocation5 + $0x618] sm:$0xff]
    %v243 = vld [vmem:[#allocation5 + $0x620] sm:$0xff]
    %v244 = vld [vmem:[#allocation5 + $0x628] sm:$0xff]
    %v245 = vld [vmem:[#allocation5 + $0x630] sm:$0xff]
    %v246 = vld [vmem:[#allocation5 + $0x638] sm:$0xff]
    %v247 = vld [vmem:[#allocation5 + $0x640] sm:$0xff]
    %v248 = vld [vmem:[#allocation5 + $0x648] sm:$0xff]
    %v249 = vld [vmem:[#allocation5 + $0x650] sm:$0xff]
    %v250 = vld [vmem:[#allocation5 + $0x658] sm:$0xff]
    %v251 = vld [vmem:[#allocation5 + $0x660] sm:$0xff]
    %v252 = vld [vmem:[#allocation5 + $0x668] sm:$0xff]
    %v253 = vld [vmem:[#allocation5 + $0x670] sm:$0xff]
    %v254 = vld [vmem:[#allocation5 + $0x678] sm:$0xff]
    %v255 = vld [vmem:[#allocation5 + $0x680] sm:$0xff]
    %v256 = vld [vmem:[#allocation5 + $0x688] sm:$0xff]
    %v257 = vld [vmem:[#allocation5 + $0x690] sm:$0xff]
    %v258 = vld [vmem:[#allocation5 + $0x698] sm:$0xff]
    %v259 = vld [vmem:[#allocation5 + $0x6a0] sm:$0xff]
    %v260 = vld [vmem:[#allocation5 + $0x6a8] sm:$0xff]
    %v261 = vld [vmem:[#allocation5 + $0x6b0] sm:$0xff]
    %v262 = vld [vmem:[#allocation5 + $0x6b8] sm:$0xff]
    %v263 = vld [vmem:[#allocation5 + $0x6c0] sm:$0xff]
    %v264 = vld [vmem:[#allocation5 + $0x6c8] sm:$0xff]
    %v265 = vld [vmem:[#allocation5 + $0x6d0] sm:$0xff]
    %v266 = vld [vmem:[#allocation5 + $0x6d8] sm:$0xff]
    %v267 = vld [vmem:[#allocation5 + $0x6e0] sm:$0xff]
    %v268 = vld [vmem:[#allocation5 + $0x6e8] sm:$0xff]
    %v269 = vld [vmem:[#allocation5 + $0x6f0] sm:$0xff]
    %v270 = vld [vmem:[#allocation5 + $0x6f8] sm:$0xff]
    %v271 = vld [vmem:[#allocation5 + $0x700] sm:$0xff]
    %v272 = vld [vmem:[#allocation5 + $0x708] sm:$0xff]
    %v273 = vld [vmem:[#allocation5 + $0x710] sm:$0xff]
    %v274 = vld [vmem:[#allocation5 + $0x718] sm:$0xff]
    %v275 = vld [vmem:[#allocation5 + $0x720] sm:$0xff]
    %v276 = vld [vmem:[#allocation5 + $0x728] sm:$0xff]
    %v277 = vld [vmem:[#allocation5 + $0x730] sm:$0xff]
    %v278 = vld [vmem:[#allocation5 + $0x738] sm:$0xff]
    %v279 = vld [vmem:[#allocation5 + $0x740] sm:$0xff]
    %v280 = vld [vmem:[#allocation5 + $0x748] sm:$0xff]
    %v281 = vld [vmem:[#allocation5 + $0x750] sm:$0xff]
    %v282 = vld [vmem:[#allocation5 + $0x758] sm:$0xff]
    %v283 = vld [vmem:[#allocation5 + $0x760] sm:$0xff]
    %v284 = vld [vmem:[#allocation5 + $0x768] sm:$0xff]
    %v285 = vld [vmem:[#allocation5 + $0x770] sm:$0xff]
    %v286 = vld [vmem:[#allocation5 + $0x778] sm:$0xff]
    %v287 = vld [vmem:[#allocation5 + $0x780] sm:$0xff]
    %v288 = vld [vmem:[#allocation5 + $0x788] sm:$0xff]
    %v289 = vld [vmem:[#allocation5 + $0x790] sm:$0xff]
    %v290 = vld [vmem:[#allocation5 + $0x798] sm:$0xff]
    %v291 = vld [vmem:[#allocation5 + $0x7a0] sm:$0xff]
    %v292 = vld [vmem:[#allocation5 + $0x7a8] sm:$0xff]
    %v293 = vld [vmem:[#allocation5 + $0x7b0] sm:$0xff]
    %v294 = vld [vmem:[#allocation5 + $0x7b8] sm:$0xff]
    %v295 = vld [vmem:[#allocation5 + $0x7c0] sm:$0xff]
    %v296 = vld [vmem:[#allocation5 + $0x7c8] sm:$0xff]
    %v297 = vld [vmem:[#allocation5 + $0x7d0] sm:$0xff]
    %v298 = vld [vmem:[#allocation5 + $0x7d8] sm:$0xff]
    %v299 = vld [vmem:[#allocation5 + $0x7e0] sm:$0xff]
    %v300 = vld [vmem:[#allocation5 + $0x7e8] sm:$0xff]
    %v301 = vld [vmem:[#allocation5 + $0x7f0] sm:$0xff]
    %v302 = vld [vmem:[#allocation5 + $0x7f8] sm:$0xff]
    %v303 = vld [vmem:[#allocation5 + $0x800] sm:$0xff]
    %v304 = vld [vmem:[#allocation5 + $0x808] sm:$0xff]
    %v305 = vld [vmem:[#allocation5 + $0x810] sm:$0xff]
    %v306 = vld [vmem:[#allocation5 + $0x818] sm:$0xff]
    %v307 = vld [vmem:[#allocation5 + $0x820] sm:$0xff]
    %v308 = vld [vmem:[#allocation5 + $0x828] sm:$0xff]
    %v309 = vld [vmem:[#allocation5 + $0x830] sm:$0xff]
    %v310 = vld [vmem:[#allocation5 + $0x838] sm:$0xff]
    %v311 = vld [vmem:[#allocation5 + $0x840] sm:$0xff]
    %v312 = vld [vmem:[#allocation5 + $0x848] sm:$0xff]
    %v313 = vld [vmem:[#allocation5 + $0x850] sm:$0xff]
    %v314 = vld [vmem:[#allocation5 + $0x858] sm:$0xff]
    %v315 = vld [vmem:[#allocation5 + $0x860] sm:$0xff]
    %v316 = vld [vmem:[#allocation5 + $0x868] sm:$0xff]
    %v317 = vld [vmem:[#allocation5 + $0x870] sm:$0xff]
    %v318 = vld [vmem:[#allocation5 + $0x878] sm:$0xff]
    %v319 = vld [vmem:[#allocation5 + $0x880] sm:$0xff]
    %v320 = vld [vmem:[#allocation5 + $0x888] sm:$0xff]
    %v321 = vld [vmem:[#allocation5 + $0x890] sm:$0xff]
    %v322 = vld [vmem:[#allocation5 + $0x898] sm:$0xff]
    %v323 = vld [vmem:[#allocation5 + $0x8a0] sm:$0xff]
    %v324 = vld [vmem:[#allocation5 + $0x8a8] sm:$0xff]
    %v325 = vld [vmem:[#allocation5 + $0x8b0] sm:$0xff]
    %v326 = vld [vmem:[#allocation5 + $0x8b8] sm:$0xff]
    %v327 = vld [vmem:[#allocation5 + $0x8c0] sm:$0xff]
    %v328 = vld [vmem:[#allocation5 + $0x8c8] sm:$0xff]
    %v329 = vld [vmem:[#allocation5 + $0x8d0] sm:$0xff]
    %v330 = vld [vmem:[#allocation5 + $0x8d8] sm:$0xff]
    %v331 = vld [vmem:[#allocation5 + $0x8e0] sm:$0xff]
    %v332 = vld [vmem:[#allocation5 + $0x8e8] sm:$0xff]
    %v333 = vld [vmem:[#allocation5 + $0x8f0] sm:$0xff]
    %v334 = vld [vmem:[#allocation5 + $0x8f8] sm:$0xff]
    %v335 = vld [vmem:[#allocation5 + $0x900] sm:$0xff]
    %v336 = vld [vmem:[#allocation5 + $0x908] sm:$0xff]
    %v337 = vld [vmem:[#allocation5 + $0x910] sm:$0xff]
    %v338 = vld [vmem:[#allocation5 + $0x918] sm:$0xff]
    %v339 = vld [vmem:[#allocation5 + $0x920] sm:$0xff]
    %v340 = vld [vmem:[#allocation5 + $0x928] sm:$0xff]
    %v341 = vld [vmem:[#allocation5 + $0x930] sm:$0xff]
    %v342 = vld [vmem:[#allocation5 + $0x938] sm:$0xff]
    %v343 = vld [vmem:[#allocation5 + $0x940] sm:$0xff]
    %v344 = vld [vmem:[#allocation5 + $0x948] sm:$0xff]
    %v345 = vld [vmem:[#allocation5 + $0x950] sm:$0xff]
    %v346 = vld [vmem:[#allocation5 + $0x958] sm:$0xff]
    %v347 = vld [vmem:[#allocation5 + $0x960] sm:$0xff]
    %v348 = vld [vmem:[#allocation5 + $0x968] sm:$0xff]
    %v349 = vld [vmem:[#allocation5 + $0x970] sm:$0xff]
    %v350 = vld [vmem:[#allocation5 + $0x978] sm:$0xff]
    %v351 = vld [vmem:[#allocation5 + $0x980] sm:$0xff]
    %v352 = vld [vmem:[#allocation5 + $0x988] sm:$0xff]
    %v353 = vld [vmem:[#allocation5 + $0x990] sm:$0xff]
    %v354 = vld [vmem:[#allocation5 + $0x998] sm:$0xff]
    %v355 = vld [vmem:[#allocation5 + $0x9a0] sm:$0xff]
    %v356 = vld [vmem:[#allocation5 + $0x9a8] sm:$0xff]
    %v357 = vld [vmem:[#allocation5 + $0x9b0] sm:$0xff]
    %v358 = vld [vmem:[#allocation5 + $0x9b8] sm:$0xff]
    %v359 = vld [vmem:[#allocation5 + $0x9c0] sm:$0xff]
    %v360 = vld [vmem:[#allocation5 + $0x9c8] sm:$0xff]
    %v361 = vld [vmem:[#allocation5 + $0x9d0] sm:$0xff]
    %v362 = vld [vmem:[#allocation5 + $0x9d8] sm:$0xff]
    %v363 = vld [vmem:[#allocation5 + $0x9e0] sm:$0xff]
    %v364 = vld [vmem:[#allocation5 + $0x9e8] sm:$0xff]
    %v365 = vld [vmem:[#allocation5 + $0x9f0] sm:$0xff]
    %v366 = vld [vmem:[#allocation5 + $0x9f8] sm:$0xff]
    %v367 = vld [vmem:[#allocation5 + $0xa00] sm:$0xff]
    %v368 = vld [vmem:[#allocation5 + $0xa08] sm:$0xff]
    %v369 = vld [vmem:[#allocation5 + $0xa10] sm:$0xff]
    %v370 = vld [vmem:[#allocation5 + $0xa18] sm:$0xff]
    %v371 = vld [vmem:[#allocation5 + $0xa20] sm:$0xff]
    %v372 = vld [vmem:[#allocation5 + $0xa28] sm:$0xff]
    %v373 = vld [vmem:[#allocation5 + $0xa30] sm:$0xff]
    %v374 = vld [vmem:[#allocation5 + $0xa38] sm:$0xff]
    %v375 = vld [vmem:[#allocation5 + $0xa40] sm:$0xff]
    %v376 = vld [vmem:[#allocation5 + $0xa48] sm:$0xff]
    %v377 = vld [vmem:[#allocation5 + $0xa50] sm:$0xff]
    %v378 = vld [vmem:[#allocation5 + $0xa58] sm:$0xff]
    %v379 = vld [vmem:[#allocation5 + $0xa60] sm:$0xff]
    %v380 = vld [vmem:[#allocation5 + $0xa68] sm:$0xff]
    %v381 = vld [vmem:[#allocation5 + $0xa70] sm:$0xff]
    %v382 = vld [vmem:[#allocation5 + $0xa78] sm:$0xff]
    %v383 = vld [vmem:[#allocation5 + $0xa80] sm:$0xff]
    %v384 = vld [vmem:[#allocation5 + $0xa88] sm:$0xff]
    %v385 = vld [vmem:[#allocation5 + $0xa90] sm:$0xff]
    %v386 = vld [vmem:[#allocation5 + $0xa98] sm:$0xff]
    %v387 = vld [vmem:[#allocation5 + $0xaa0] sm:$0xff]
    %v388 = vld [vmem:[#allocation5 + $0xaa8] sm:$0xff]
    %v389 = vld [vmem:[#allocation5 + $0xab0] sm:$0xff]
    %v390 = vld [vmem:[#allocation5 + $0xab8] sm:$0xff]
    %v391 = vld [vmem:[#allocation5 + $0xac0] sm:$0xff]
    %v392 = vld [vmem:[#allocation5 + $0xac8] sm:$0xff]
    %v393 = vld [vmem:[#allocation5 + $0xad0] sm:$0xff]
    %v394 = vld [vmem:[#allocation5 + $0xad8] sm:$0xff]
    %v395 = vld [vmem:[#allocation5 + $0xae0] sm:$0xff]
    %v396 = vld [vmem:[#allocation5 + $0xae8] sm:$0xff]
    %v397 = vld [vmem:[#allocation5 + $0xaf0] sm:$0xff]
    %v398 = vld [vmem:[#allocation5 + $0xaf8] sm:$0xff]
    %v399 = vld [vmem:[#allocation5 + $0xb00] sm:$0xff]
    %v400 = vld [vmem:[#allocation5 + $0xb08] sm:$0xff]
    %v401 = vld [vmem:[#allocation5 + $0xb10] sm:$0xff]
    %v402 = vld [vmem:[#allocation5 + $0xb18] sm:$0xff]
    %v403 = vld [vmem:[#allocation5 + $0xb20] sm:$0xff]
    %v404 = vld [vmem:[#allocation5 + $0xb28] sm:$0xff]
    %v405 = vld [vmem:[#allocation5 + $0xb30] sm:$0xff]
    %v406 = vld [vmem:[#allocation5 + $0xb38] sm:$0xff]
    %v407 = vld [vmem:[#allocation5 + $0xb40] sm:$0xff]
    %v408 = vld [vmem:[#allocation5 + $0xb48] sm:$0xff]
    %v409 = vld [vmem:[#allocation5 + $0xb50] sm:$0xff]
    %v410 = vld [vmem:[#allocation5 + $0xb58] sm:$0xff]
    %v411 = vld [vmem:[#allocation5 + $0xb60] sm:$0xff]
    %v412 = vld [vmem:[#allocation5 + $0xb68] sm:$0xff]
    %v413 = vld [vmem:[#allocation5 + $0xb70] sm:$0xff]
    %v414 = vld [vmem:[#allocation5 + $0xb78] sm:$0xff]
    %v415 = vld [vmem:[#allocation5 + $0xb80] sm:$0xff]
    %v416 = vld [vmem:[#allocation5 + $0xb88] sm:$0xff]
    %v417 = vld [vmem:[#allocation5 + $0xb90] sm:$0xff]
    %v418 = vld [vmem:[#allocation5 + $0xb98] sm:$0xff]
    %v419 = vld [vmem:[#allocation5 + $0xba0] sm:$0xff]
    %v420 = vld [vmem:[#allocation5 + $0xba8] sm:$0xff]
    %v421 = vld [vmem:[#allocation5 + $0xbb0] sm:$0xff]
    %v422 = vld [vmem:[#allocation5 + $0xbb8] sm:$0xff]
    %v423 = vld [vmem:[#allocation5 + $0xbc0] sm:$0xff]
    %v424 = vld [vmem:[#allocation5 + $0xbc8] sm:$0xff]
    %v425 = vld [vmem:[#allocation5 + $0xbd0] sm:$0xff]
    %v426 = vld [vmem:[#allocation5 + $0xbd8] sm:$0xff]
    %v427 = vld [vmem:[#allocation5 + $0xbe0] sm:$0xff]
    %v428 = vld [vmem:[#allocation5 + $0xbe8] sm:$0xff]
    %v429 = vld [vmem:[#allocation5 + $0xbf0] sm:$0xff]
    %v430 = vld [vmem:[#allocation5 + $0xbf8] sm:$0xff]
    %v431 = vld [vmem:[#allocation5 + $0xc00] sm:$0xff]
    %v432 = vld [vmem:[#allocation5 + $0xc08] sm:$0xff]
    %v433 = vld [vmem:[#allocation5 + $0xc10] sm:$0xff]
    %v434 = vld [vmem:[#allocation5 + $0xc18] sm:$0xff]
    %v435 = vld [vmem:[#allocation5 + $0xc20] sm:$0xff]
    %v436 = vld [vmem:[#allocation5 + $0xc28] sm:$0xff]
    %v437 = vld [vmem:[#allocation5 + $0xc30] sm:$0xff]
    %v438 = vld [vmem:[#allocation5 + $0xc38] sm:$0xff]
    %v439 = vld [vmem:[#allocation5 + $0xc40] sm:$0xff]
    %v440 = vld [vmem:[#allocation5 + $0xc48] sm:$0xff]
    %v441 = vld [vmem:[#allocation5 + $0xc50] sm:$0xff]
    %v442 = vld [vmem:[#allocation5 + $0xc58] sm:$0xff]
    %v443 = vld [vmem:[#allocation5 + $0xc60] sm:$0xff]
    %v444 = vld [vmem:[#allocation5 + $0xc68] sm:$0xff]
    %v445 = vld [vmem:[#allocation5 + $0xc70] sm:$0xff]
    %v446 = vld [vmem:[#allocation5 + $0xc78] sm:$0xff]
    %v447 = vld [vmem:[#allocation5 + $0xc80] sm:$0xff]
    %v448 = vld [vmem:[#allocation5 + $0xc88] sm:$0xff]
    %v449 = vld [vmem:[#allocation5 + $0xc90] sm:$0xff]
    %v450 = vld [vmem:[#allocation5 + $0xc98] sm:$0xff]
    %v451 = vld [vmem:[#allocation5 + $0xca0] sm:$0xff]
    %v452 = vld [vmem:[#allocation5 + $0xca8] sm:$0xff]
    %v453 = vld [vmem:[#allocation5 + $0xcb0] sm:$0xff]
    %v454 = vld [vmem:[#allocation5 + $0xcb8] sm:$0xff]
    %v455 = vld [vmem:[#allocation5 + $0xcc0] sm:$0xff]
    %v456 = vld [vmem:[#allocation5 + $0xcc8] sm:$0xff]
    %v457 = vld [vmem:[#allocation5 + $0xcd0] sm:$0xff]
    %v458 = vld [vmem:[#allocation5 + $0xcd8] sm:$0xff]
    %v459 = vld [vmem:[#allocation5 + $0xce0] sm:$0xff]
    %v460 = vld [vmem:[#allocation5 + $0xce8] sm:$0xff]
    %v461 = vld [vmem:[#allocation5 + $0xcf0] sm:$0xff]
    %v462 = vld [vmem:[#allocation5 + $0xcf8] sm:$0xff]
    %v463 = vld [vmem:[#allocation5 + $0xd00] sm:$0xff]
    %v464 = vld [vmem:[#allocation5 + $0xd08] sm:$0xff]
    %v465 = vld [vmem:[#allocation5 + $0xd10] sm:$0xff]
    %v466 = vld [vmem:[#allocation5 + $0xd18] sm:$0xff]
    %v467 = vld [vmem:[#allocation5 + $0xd20] sm:$0xff]
    %v468 = vld [vmem:[#allocation5 + $0xd28] sm:$0xff]
    %v469 = vld [vmem:[#allocation5 + $0xd30] sm:$0xff]
    %v470 = vld [vmem:[#allocation5 + $0xd38] sm:$0xff]
    %v471 = vld [vmem:[#allocation5 + $0xd40] sm:$0xff]
    %v472 = vld [vmem:[#allocation5 + $0xd48] sm:$0xff]
    %v473 = vld [vmem:[#allocation5 + $0xd50] sm:$0xff]
    %v474 = vld [vmem:[#allocation5 + $0xd58] sm:$0xff]
    %v475 = vld [vmem:[#allocation5 + $0xd60] sm:$0xff]
    %v476 = vld [vmem:[#allocation5 + $0xd68] sm:$0xff]
    %v477 = vld [vmem:[#allocation5 + $0xd70] sm:$0xff]
    %v478 = vld [vmem:[#allocation5 + $0xd78] sm:$0xff]
    %v479 = vld [vmem:[#allocation5 + $0xd80] sm:$0xff]
    %v480 = vld [vmem:[#allocation5 + $0xd88] sm:$0xff]
    %v481 = vld [vmem:[#allocation5 + $0xd90] sm:$0xff]
    %v482 = vld [vmem:[#allocation5 + $0xd98] sm:$0xff]
    %v483 = vld [vmem:[#allocation5 + $0xda0] sm:$0xff]
    %v484 = vld [vmem:[#allocation5 + $0xda8] sm:$0xff]
    %v485 = vld [vmem:[#allocation5 + $0xdb0] sm:$0xff]
    %v486 = vld [vmem:[#allocation5 + $0xdb8] sm:$0xff]
    %v487 = vld [vmem:[#allocation5 + $0xdc0] sm:$0xff]
    %v488 = vld [vmem:[#allocation5 + $0xdc8] sm:$0xff]
    %v489 = vld [vmem:[#allocation5 + $0xdd0] sm:$0xff]
    %v490 = vld [vmem:[#allocation5 + $0xdd8] sm:$0xff]
    %v491 = vld [vmem:[#allocation5 + $0xde0] sm:$0xff]
    %v492 = vld [vmem:[#allocation5 + $0xde8] sm:$0xff]
    %v493 = vld [vmem:[#allocation5 + $0xdf0] sm:$0xff]
    %v494 = vld [vmem:[#allocation5 + $0xdf8] sm:$0xff]
    %v495 = vld [vmem:[#allocation5 + $0xe00] sm:$0xff]
    %v496 = vld [vmem:[#allocation5 + $0xe08] sm:$0xff]
    %v497 = vld [vmem:[#allocation5 + $0xe10] sm:$0xff]
    %v498 = vld [vmem:[#allocation5 + $0xe18] sm:$0xff]
    %v499 = vld [vmem:[#allocation5 + $0xe20] sm:$0xff]
    %v500 = vld [vmem:[#allocation5 + $0xe28] sm:$0xff]
    %v501 = vld [vmem:[#allocation5 + $0xe30] sm:$0xff]
    %v502 = vld [vmem:[#allocation5 + $0xe38] sm:$0xff]
    %v503 = vld [vmem:[#allocation5 + $0xe40] sm:$0xff]
    %v504 = vld [vmem:[#allocation5 + $0xe48] sm:$0xff]
    %v505 = vld [vmem:[#allocation5 + $0xe50] sm:$0xff]
    %v506 = vld [vmem:[#allocation5 + $0xe58] sm:$0xff]
    %v507 = vld [vmem:[#allocation5 + $0xe60] sm:$0xff]
    %v508 = vld [vmem:[#allocation5 + $0xe68] sm:$0xff]
    %v509 = vld [vmem:[#allocation5 + $0xe70] sm:$0xff]
    %v510 = vld [vmem:[#allocation5 + $0xe78] sm:$0xff]
    %v511 = vld [vmem:[#allocation5 + $0xe80] sm:$0xff]
    %v512 = vld [vmem:[#allocation5 + $0xe88] sm:$0xff]
    %v513 = vld [vmem:[#allocation5 + $0xe90] sm:$0xff]
    %v514 = vld [vmem:[#allocation5 + $0xe98] sm:$0xff]
    %v515 = vld [vmem:[#allocation5 + $0xea0] sm:$0xff]
    %v516 = vld [vmem:[#allocation5 + $0xea8] sm:$0xff]
    %v517 = vld [vmem:[#allocation5 + $0xeb0] sm:$0xff]
    %v518 = vld [vmem:[#allocation5 + $0xeb8] sm:$0xff]
    %v519 = vld [vmem:[#allocation5 + $0xec0] sm:$0xff]
    %v520 = vld [vmem:[#allocation5 + $0xec8] sm:$0xff]
    %v521 = vld [vmem:[#allocation5 + $0xed0] sm:$0xff]
    %v522 = vld [vmem:[#allocation5 + $0xed8] sm:$0xff]
    %v523 = vld [vmem:[#allocation5 + $0xee0] sm:$0xff]
    %v524 = vld [vmem:[#allocation5 + $0xee8] sm:$0xff]
    %v525 = vld [vmem:[#allocation5 + $0xef0] sm:$0xff]
    %v526 = vld [vmem:[#allocation5 + $0xef8] sm:$0xff]
    %v527 = vld [vmem:[#allocation5 + $0xf00] sm:$0xff]
    %v528 = vld [vmem:[#allocation5 + $0xf08] sm:$0xff]
    %v529 = vld [vmem:[#allocation5 + $0xf10] sm:$0xff]
    %v530 = vld [vmem:[#allocation5 + $0xf18] sm:$0xff]
    %v531 = vld [vmem:[#allocation5 + $0xf20] sm:$0xff]
    %v532 = vld [vmem:[#allocation5 + $0xf28] sm:$0xff]
    %v533 = vld [vmem:[#allocation5 + $0xf30] sm:$0xff]
    %v534 = vld [vmem:[#allocation5 + $0xf38] sm:$0xff]
    %v535 = vld [vmem:[#allocation5 + $0xf40] sm:$0xff]
    %v536 = vld [vmem:[#allocation5 + $0xf48] sm:$0xff]
    %v537 = vld [vmem:[#allocation5 + $0xf50] sm:$0xff]
    %v538 = vld [vmem:[#allocation5 + $0xf58] sm:$0xff]
    %v539 = vld [vmem:[#allocation5 + $0xf60] sm:$0xff]
    %v540 = vld [vmem:[#allocation5 + $0xf68] sm:$0xff]
    %v541 = vld [vmem:[#allocation5 + $0xf70] sm:$0xff]
    %v542 = vld [vmem:[#allocation5 + $0xf78] sm:$0xff]
    %v543 = vld [vmem:[#allocation5 + $0xf80] sm:$0xff]
    %v544 = vld [vmem:[#allocation5 + $0xf88] sm:$0xff]
    %v545 = vld [vmem:[#allocation5 + $0xf90] sm:$0xff]
    %v546 = vld [vmem:[#allocation5 + $0xf98] sm:$0xff]
    %v547 = vld [vmem:[#allocation5 + $0xfa0] sm:$0xff]
    %v548 = vld [vmem:[#allocation5 + $0xfa8] sm:$0xff]
    %v549 = vld [vmem:[#allocation5 + $0xfb0] sm:$0xff]
    %v550 = vld [vmem:[#allocation5 + $0xfb8] sm:$0xff]
    %v551 = vld [vmem:[#allocation5 + $0xfc0] sm:$0xff]
    %v552 = vld [vmem:[#allocation5 + $0xfc8] sm:$0xff]
    %v553 = vld [vmem:[#allocation5 + $0xfd0] sm:$0xff]
    %v554 = vld [vmem:[#allocation5 + $0xfd8] sm:$0xff]
    %v555 = vld [vmem:[#allocation5 + $0xfe0] sm:$0xff]
    %v556 = vld [vmem:[#allocation5 + $0xfe8] sm:$0xff]
    %v557 = vld [vmem:[#allocation5 + $0xff0] sm:$0xff]
    %v558 = vld [vmem:[#allocation5 + $0xff8] sm:$0xff]
    %v559 = vld [vmem:[%s2] sm:$0xff]
    %v561 = vlaneseq
    %v562 = vshrl.u32 %v561, 7
    %v563 = vsub.s32 0, %v562
    %v564 = vrot.slane %v559, %v563
    %v565 = vlaneseq
    %v566 = vshrl.u32 %v565, 7
    %v567 = vsub.s32 1, %v566
    %v568 = vrot.slane %v559, %v567
    %v569 = vlaneseq
    %v570 = vshrl.u32 %v569, 7
    %v571 = vsub.s32 2, %v570
    %v572 = vrot.slane %v559, %v571
    %v573 = vlaneseq
    %v574 = vshrl.u32 %v573, 7
    %v575 = vsub.s32 3, %v574
    %v576 = vrot.slane %v559, %v575
    %v577 = vlaneseq
    %v578 = vshrl.u32 %v577, 7
    %v579 = vsub.s32 4, %v578
    %v580 = vrot.slane %v559, %v579
    %v581 = vlaneseq
    %v582 = vshrl.u32 %v581, 7
    %v583 = vsub.s32 5, %v582
    %v584 = vrot.slane %v559, %v583
    %v585 = vlaneseq
    %v586 = vshrl.u32 %v585, 7
    %v587 = vsub.s32 6, %v586
    %v588 = vrot.slane %v559, %v587
    %v589 = vlaneseq
    %v590 = vshrl.u32 %v589, 7
    %v591 = vsub.s32 7, %v590
    %v592 = vrot.slane %v559, %v591
    %v602 = vcombine.high %v46, %v46
    %v604 = vunpack.c.l.s4 1983009808
    %v605 = vunpack.c.0.s8 %v604
    %v606 = vlaneseq
    %v607 = vshrl.u32 %v606, 7
    %v608 = vsub.s32 %v605, %v607
    %v609 = vrot.slane %v46, %v608
    %v611 = vunpack.c.l.s4 1983009808
    %v612 = vunpack.c.0.s8 %v611
    %v613 = vlaneseq
    %v614 = vshrl.u32 %v613, 7
    %v615 = vsub.s32 %v612, %v614
    %v616 = vrot.slane %v602, %v615
    %v617 = vcombine.high %v609, %v609
    %v618 = vcombine.high %v616, %v616
    %623 = vmatprep.subr.mxu0 %v48
    %624 = vmatpush1.msra.mxu0 %v47
    %625 = vmatprep.subr.mxu0 %v56
    %626 = vmatpush1.msra.mxu0 %v55
    %627 = vmatprep.subr.mxu0 %v64
    %628 = vmatpush1.msra.mxu0 %v63
    %629 = vmatprep.subr.mxu0 %v72
    %630 = vmatpush1.msra.mxu0 %v71
    %631 = vmatprep.subr.mxu0 %v80
    %632 = vmatpush1.msra.mxu0 %v79
    %633 = vmatprep.subr.mxu0 %v88
    %634 = vmatpush1.msra.mxu0 %v87
    %635 = vmatprep.subr.mxu0 %v96
    %636 = vmatpush1.msra.mxu0 %v95
    %637 = vmatprep.subr.mxu0 %v104
    %638 = vmatpush1.msra.mxu0 %v103
    %639 = vmatprep.subr.mxu0 %v112
    %640 = vmatpush1.msra.mxu0 %v111
    %641 = vmatprep.subr.mxu0 %v120
    %642 = vmatpush1.msra.mxu0 %v119
    %643 = vmatprep.subr.mxu0 %v128
    %644 = vmatpush1.msra.mxu0 %v127
    %645 = vmatprep.subr.mxu0 %v136
    %646 = vmatpush1.msra.mxu0 %v135
    %647 = vmatprep.subr.mxu0 %v144
    %648 = vmatpush1.msra.mxu0 %v143
    %649 = vmatprep.subr.mxu0 %v152
    %650 = vmatpush1.msra.mxu0 %v151
    %651 = vmatprep.subr.mxu0 %v160
    %652 = vmatpush1.msra.mxu0 %v159
    %653 = vmatprep.subr.mxu0 %v168
    %654 = vmatpush1.msra.mxu0 %v167
    %655 = vmatprep.subr.mxu0 %v176
    %656 = vmatpush1.msra.mxu0 %v175
    %657 = vmatprep.subr.mxu0 %v184
    %658 = vmatpush1.msra.mxu0 %v183
    %659 = vmatprep.subr.mxu0 %v192
    %660 = vmatpush1.msra.mxu0 %v191
    %661 = vmatprep.subr.mxu0 %v200
    %662 = vmatpush1.msra.mxu0 %v199
    %663 = vmatprep.subr.mxu0 %v208
    %664 = vmatpush1.msra.mxu0 %v207
    %665 = vmatprep.subr.mxu0 %v216
    %666 = vmatpush1.msra.mxu0 %v215
    %667 = vmatprep.subr.mxu0 %v224
    %668 = vmatpush1.msra.mxu0 %v223
    %669 = vmatprep.subr.mxu0 %v232
    %670 = vmatpush1.msra.mxu0 %v231
    %671 = vmatprep.subr.mxu0 %v240
    %672 = vmatpush1.msra.mxu0 %v239
    %673 = vmatprep.subr.mxu0 %v248
    %674 = vmatpush1.msra.mxu0 %v247
    %675 = vmatprep.subr.mxu0 %v256
    %676 = vmatpush1.msra.mxu0 %v255
    %677 = vmatprep.subr.mxu0 %v264
    %678 = vmatpush1.msra.mxu0 %v263
    %679 = vmatprep.subr.mxu0 %v272
    %680 = vmatpush1.msra.mxu0 %v271
    %681 = vmatprep.subr.mxu0 %v280
    %682 = vmatpush1.msra.mxu0 %v279
    %683 = vmatprep.subr.mxu0 %v288
    %684 = vmatpush1.msra.mxu0 %v287
    %685 = vmatprep.subr.mxu0 %v296
    %686 = vmatpush1.msra.mxu0 %v295
    %687 = vmatprep.mubr.f32.mxu0 %v617
    %688 = vmatmul.mubr.f32.gmra.mrb[0].mxu0 %v609
    %v689 = vpop.f32.mrb[0].mxu0
    %v690 = vadd.f32 %v564, %v689
    %v691 = vpop.f32.mrb[0].mxu0
    %v692 = vadd.f32 %v568, %v691
    %693 = vdwg.mxu0
    %694 = vmatprep.subr.mxu0 %v304
    %695 = vmatpush1.msra.mxu0 %v303
    %696 = vmatprep.subr.mxu0 %v312
    %697 = vmatpush1.msra.mxu0 %v311
    %698 = vmatprep.subr.mxu0 %v320
    %699 = vmatpush1.msra.mxu0 %v319
    %700 = vmatprep.subr.mxu0 %v328
    %701 = vmatpush1.msra.mxu0 %v327
    %702 = vmatprep.subr.mxu0 %v336
    %703 = vmatpush1.msra.mxu0 %v335
    %704 = vmatprep.subr.mxu0 %v344
    %705 = vmatpush1.msra.mxu0 %v343
    %706 = vmatprep.subr.mxu0 %v352
    %707 = vmatpush1.msra.mxu0 %v351
    %708 = vmatprep.subr.mxu0 %v360
    %709 = vmatpush1.msra.mxu0 %v359
    %710 = vmatprep.subr.mxu0 %v368
    %711 = vmatpush1.msra.mxu0 %v367
    %712 = vmatprep.subr.mxu0 %v376
    %713 = vmatpush1.msra.mxu0 %v375
    %714 = vmatprep.subr.mxu0 %v384
    %715 = vmatpush1.msra.mxu0 %v383
    %716 = vmatprep.subr.mxu0 %v392
    %717 = vmatpush1.msra.mxu0 %v391
    %718 = vmatprep.subr.mxu0 %v400
    %719 = vmatpush1.msra.mxu0 %v399
    %720 = vmatprep.subr.mxu0 %v408
    %721 = vmatpush1.msra.mxu0 %v407
    %722 = vmatprep.subr.mxu0 %v416
    %723 = vmatpush1.msra.mxu0 %v415
    %724 = vmatprep.subr.mxu0 %v424
    %725 = vmatpush1.msra.mxu0 %v423
    %726 = vmatprep.subr.mxu0 %v432
    %727 = vmatpush1.msra.mxu0 %v431
    %728 = vmatprep.subr.mxu0 %v440
    %729 = vmatpush1.msra.mxu0 %v439
    %730 = vmatprep.subr.mxu0 %v448
    %731 = vmatpush1.msra.mxu0 %v447
    %732 = vmatprep.subr.mxu0 %v456
    %733 = vmatpush1.msra.mxu0 %v455
    %734 = vmatprep.subr.mxu0 %v464
    %735 = vmatpush1.msra.mxu0 %v463
    %736 = vmatprep.subr.mxu0 %v472
    %737 = vmatpush1.msra.mxu0 %v471
    %738 = vmatprep.subr.mxu0 %v480
    %739 = vmatpush1.msra.mxu0 %v479
    %740 = vmatprep.subr.mxu0 %v488
    %741 = vmatpush1.msra.mxu0 %v487
    %742 = vmatprep.subr.mxu0 %v496
    %743 = vmatpush1.msra.mxu0 %v495
    %744 = vmatprep.subr.mxu0 %v504
    %745 = vmatpush1.msra.mxu0 %v503
    %746 = vmatprep.subr.mxu0 %v512
    %747 = vmatpush1.msra.mxu0 %v511
    %748 = vmatprep.subr.mxu0 %v520
    %749 = vmatpush1.msra.mxu0 %v519
    %750 = vmatprep.subr.mxu0 %v528
    %751 = vmatpush1.msra.mxu0 %v527
    %752 = vmatprep.subr.mxu0 %v536
    %753 = vmatpush1.msra.mxu0 %v535
    %754 = vmatprep.subr.mxu0 %v544
    %755 = vmatpush1.msra.mxu0 %v543
    %756 = vmatprep.subr.mxu0 %v552
    %757 = vmatpush1.msra.mxu0 %v551
    %758 = vmatprep.mubr.f32.mxu0 %v618
    %759 = vmatmul.mubr.f32.gmra.mrb[0].mxu0 %v616
    %v760 = vpop.f32.mrb[0].mxu0
    %v761 = vadd.f32 %v690, %v760
    %v762 = vpop.f32.mrb[0].mxu0
    %v763 = vadd.f32 %v692, %v762
    %764 = vdwg.mxu0
    %765 = vmatprep.subr.mxu0 %v50
    %766 = vmatpush1.msra.mxu0 %v49
    %767 = vmatprep.subr.mxu0 %v58
    %768 = vmatpush1.msra.mxu0 %v57
    %769 = vmatprep.subr.mxu0 %v66
    %770 = vmatpush1.msra.mxu0 %v65
    %771 = vmatprep.subr.mxu0 %v74
    %772 = vmatpush1.msra.mxu0 %v73
    %773 = vmatprep.subr.mxu0 %v82
    %774 = vmatpush1.msra.mxu0 %v81
    %775 = vmatprep.subr.mxu0 %v90
    %776 = vmatpush1.msra.mxu0 %v89
    %777 = vmatprep.subr.mxu0 %v98
    %778 = vmatpush1.msra.mxu0 %v97
    %779 = vmatprep.subr.mxu0 %v106
    %780 = vmatpush1.msra.mxu0 %v105
    %781 = vmatprep.subr.mxu0 %v114
    %782 = vmatpush1.msra.mxu0 %v113
    %783 = vmatprep.subr.mxu0 %v122
    %784 = vmatpush1.msra.mxu0 %v121
    %785 = vmatprep.subr.mxu0 %v130
    %786 = vmatpush1.msra.mxu0 %v129
    %787 = vmatprep.subr.mxu0 %v138
    %788 = vmatpush1.msra.mxu0 %v137
    %789 = vmatprep.subr.mxu0 %v146
    %790 = vmatpush1.msra.mxu0 %v145
    %791 = vmatprep.subr.mxu0 %v154
    %792 = vmatpush1.msra.mxu0 %v153
    %793 = vmatprep.subr.mxu0 %v162
    %794 = vmatpush1.msra.mxu0 %v161
    %795 = vmatprep.subr.mxu0 %v170
    %796 = vmatpush1.msra.mxu0 %v169
    %797 = vmatprep.subr.mxu0 %v178
    %798 = vmatpush1.msra.mxu0 %v177
    %799 = vmatprep.subr.mxu0 %v186
    %800 = vmatpush1.msra.mxu0 %v185
    %801 = vmatprep.subr.mxu0 %v194
    %802 = vmatpush1.msra.mxu0 %v193
    %803 = vmatprep.subr.mxu0 %v202
    %804 = vmatpush1.msra.mxu0 %v201
    %805 = vmatprep.subr.mxu0 %v210
    %806 = vmatpush1.msra.mxu0 %v209
    %807 = vmatprep.subr.mxu0 %v218
    %808 = vmatpush1.msra.mxu0 %v217
    %809 = vmatprep.subr.mxu0 %v226
    %810 = vmatpush1.msra.mxu0 %v225
    %811 = vmatprep.subr.mxu0 %v234
    %812 = vmatpush1.msra.mxu0 %v233
    %813 = vmatprep.subr.mxu0 %v242
    %814 = vmatpush1.msra.mxu0 %v241
    %815 = vmatprep.subr.mxu0 %v250
    %816 = vmatpush1.msra.mxu0 %v249
    %817 = vmatprep.subr.mxu0 %v258
    %818 = vmatpush1.msra.mxu0 %v257
    %819 = vmatprep.subr.mxu0 %v266
    %820 = vmatpush1.msra.mxu0 %v265
    %821 = vmatprep.subr.mxu0 %v274
    %822 = vmatpush1.msra.mxu0 %v273
    %823 = vmatprep.subr.mxu0 %v282
    %824 = vmatpush1.msra.mxu0 %v281
    %825 = vmatprep.subr.mxu0 %v290
    %826 = vmatpush1.msra.mxu0 %v289
    %827 = vmatprep.subr.mxu0 %v298
    %828 = vmatpush1.msra.mxu0 %v297
    %829 = vmatprep.mubr.f32.mxu0 %v617
    %830 = vmatmul.mubr.f32.gmra.mrb[0].mxu0 %v609
    %v831 = vpop.f32.mrb[0].mxu0
    %v832 = vadd.f32 %v572, %v831
    %v833 = vpop.f32.mrb[0].mxu0
    %v834 = vadd.f32 %v576, %v833
    %835 = vdwg.mxu0
    %836 = vmatprep.subr.mxu0 %v306
    %837 = vmatpush1.msra.mxu0 %v305
    %838 = vmatprep.subr.mxu0 %v314
    %839 = vmatpush1.msra.mxu0 %v313
    %840 = vmatprep.subr.mxu0 %v322
    %841 = vmatpush1.msra.mxu0 %v321
    %842 = vmatprep.subr.mxu0 %v330
    %843 = vmatpush1.msra.mxu0 %v329
    %844 = vmatprep.subr.mxu0 %v338
    %845 = vmatpush1.msra.mxu0 %v337
    %846 = vmatprep.subr.mxu0 %v346
    %847 = vmatpush1.msra.mxu0 %v345
    %848 = vmatprep.subr.mxu0 %v354
    %849 = vmatpush1.msra.mxu0 %v353
    %850 = vmatprep.subr.mxu0 %v362
    %851 = vmatpush1.msra.mxu0 %v361
    %852 = vmatprep.subr.mxu0 %v370
    %853 = vmatpush1.msra.mxu0 %v369
    %854 = vmatprep.subr.mxu0 %v378
    %855 = vmatpush1.msra.mxu0 %v377
    %856 = vmatprep.subr.mxu0 %v386
    %857 = vmatpush1.msra.mxu0 %v385
    %858 = vmatprep.subr.mxu0 %v394
    %859 = vmatpush1.msra.mxu0 %v393
    %860 = vmatprep.subr.mxu0 %v402
    %861 = vmatpush1.msra.mxu0 %v401
    %862 = vmatprep.subr.mxu0 %v410
    %863 = vmatpush1.msra.mxu0 %v409
    %864 = vmatprep.subr.mxu0 %v418
    %865 = vmatpush1.msra.mxu0 %v417
    %866 = vmatprep.subr.mxu0 %v426
    %867 = vmatpush1.msra.mxu0 %v425
    %868 = vmatprep.subr.mxu0 %v434
    %869 = vmatpush1.msra.mxu0 %v433
    %870 = vmatprep.subr.mxu0 %v442
    %871 = vmatpush1.msra.mxu0 %v441
    %872 = vmatprep.subr.mxu0 %v450
    %873 = vmatpush1.msra.mxu0 %v449
    %874 = vmatprep.subr.mxu0 %v458
    %875 = vmatpush1.msra.mxu0 %v457
    %876 = vmatprep.subr.mxu0 %v466
    %877 = vmatpush1.msra.mxu0 %v465
    %878 = vmatprep.subr.mxu0 %v474
    %879 = vmatpush1.msra.mxu0 %v473
    %880 = vmatprep.subr.mxu0 %v482
    %881 = vmatpush1.msra.mxu0 %v481
    %882 = vmatprep.subr.mxu0 %v490
    %883 = vmatpush1.msra.mxu0 %v489
    %884 = vmatprep.subr.mxu0 %v498
    %885 = vmatpush1.msra.mxu0 %v497
    %886 = vmatprep.subr.mxu0 %v506
    %887 = vmatpush1.msra.mxu0 %v505
    %888 = vmatprep.subr.mxu0 %v514
    %889 = vmatpush1.msra.mxu0 %v513
    %890 = vmatprep.subr.mxu0 %v522
    %891 = vmatpush1.msra.mxu0 %v521
    %892 = vmatprep.subr.mxu0 %v530
    %893 = vmatpush1.msra.mxu0 %v529
    %894 = vmatprep.subr.mxu0 %v538
    %895 = vmatpush1.msra.mxu0 %v537
    %896 = vmatprep.subr.mxu0 %v546
    %897 = vmatpush1.msra.mxu0 %v545
    %898 = vmatprep.subr.mxu0 %v554
    %899 = vmatpush1.msra.mxu0 %v553
    %900 = vmatprep.mubr.f32.mxu0 %v618
    %901 = vmatmul.mubr.f32.gmra.mrb[0].mxu0 %v616
    %v902 = vpop.f32.mrb[0].mxu0
    %v903 = vadd.f32 %v832, %v902
    %v904 = vpop.f32.mrb[0].mxu0
    %v905 = vadd.f32 %v834, %v904
    %906 = vdwg.mxu0
    %907 = vmatprep.subr.mxu0 %v52
    %908 = vmatpush1.msra.mxu0 %v51
    %909 = vmatprep.subr.mxu0 %v60
    %910 = vmatpush1.msra.mxu0 %v59
    %911 = vmatprep.subr.mxu0 %v68
    %912 = vmatpush1.msra.mxu0 %v67
    %913 = vmatprep.subr.mxu0 %v76
    %914 = vmatpush1.msra.mxu0 %v75
    %915 = vmatprep.subr.mxu0 %v84
    %916 = vmatpush1.msra.mxu0 %v83
    %917 = vmatprep.subr.mxu0 %v92
    %918 = vmatpush1.msra.mxu0 %v91
    %919 = vmatprep.subr.mxu0 %v100
    %920 = vmatpush1.msra.mxu0 %v99
    %921 = vmatprep.subr.mxu0 %v108
    %922 = vmatpush1.msra.mxu0 %v107
    %923 = vmatprep.subr.mxu0 %v116
    %924 = vmatpush1.msra.mxu0 %v115
    %925 = vmatprep.subr.mxu0 %v124
    %926 = vmatpush1.msra.mxu0 %v123
    %927 = vmatprep.subr.mxu0 %v132
    %928 = vmatpush1.msra.mxu0 %v131
    %929 = vmatprep.subr.mxu0 %v140
    %930 = vmatpush1.msra.mxu0 %v139
    %931 = vmatprep.subr.mxu0 %v148
    %932 = vmatpush1.msra.mxu0 %v147
    %933 = vmatprep.subr.mxu0 %v156
    %934 = vmatpush1.msra.mxu0 %v155
    %935 = vmatprep.subr.mxu0 %v164
    %936 = vmatpush1.msra.mxu0 %v163
    %937 = vmatprep.subr.mxu0 %v172
    %938 = vmatpush1.msra.mxu0 %v171
    %939 = vmatprep.subr.mxu0 %v180
    %940 = vmatpush1.msra.mxu0 %v179
    %941 = vmatprep.subr.mxu0 %v188
    %942 = vmatpush1.msra.mxu0 %v187
    %943 = vmatprep.subr.mxu0 %v196
    %944 = vmatpush1.msra.mxu0 %v195
    %945 = vmatprep.subr.mxu0 %v204
    %946 = vmatpush1.msra.mxu0 %v203
    %947 = vmatprep.subr.mxu0 %v212
    %948 = vmatpush1.msra.mxu0 %v211
    %949 = vmatprep.subr.mxu0 %v220
    %950 = vmatpush1.msra.mxu0 %v219
    %951 = vmatprep.subr.mxu0 %v228
    %952 = vmatpush1.msra.mxu0 %v227
    %953 = vmatprep.subr.mxu0 %v236
    %954 = vmatpush1.msra.mxu0 %v235
    %955 = vmatprep.subr.mxu0 %v244
    %956 = vmatpush1.msra.mxu0 %v243
    %957 = vmatprep.subr.mxu0 %v252
    %958 = vmatpush1.msra.mxu0 %v251
    %959 = vmatprep.subr.mxu0 %v260
    %960 = vmatpush1.msra.mxu0 %v259
    %961 = vmatprep.subr.mxu0 %v268
    %962 = vmatpush1.msra.mxu0 %v267
    %963 = vmatprep.subr.mxu0 %v276
    %964 = vmatpush1.msra.mxu0 %v275
    %965 = vmatprep.subr.mxu0 %v284
    %966 = vmatpush1.msra.mxu0 %v283
    %967 = vmatprep.subr.mxu0 %v292
    %968 = vmatpush1.msra.mxu0 %v291
    %969 = vmatprep.subr.mxu0 %v300
    %970 = vmatpush1.msra.mxu0 %v299
    %971 = vmatprep.mubr.f32.mxu0 %v617
    %972 = vmatmul.mubr.f32.gmra.mrb[0].mxu0 %v609
    %v973 = vpop.f32.mrb[0].mxu0
    %v974 = vadd.f32 %v580, %v973
    %v975 = vpop.f32.mrb[0].mxu0
    %v976 = vadd.f32 %v584, %v975
    %977 = vdwg.mxu0
    %978 = vmatprep.subr.mxu0 %v308
    %979 = vmatpush1.msra.mxu0 %v307
    %980 = vmatprep.subr.mxu0 %v316
    %981 = vmatpush1.msra.mxu0 %v315
    %982 = vmatprep.subr.mxu0 %v324
    %983 = vmatpush1.msra.mxu0 %v323
    %984 = vmatprep.subr.mxu0 %v332
    %985 = vmatpush1.msra.mxu0 %v331
    %986 = vmatprep.subr.mxu0 %v340
    %987 = vmatpush1.msra.mxu0 %v339
    %988 = vmatprep.subr.mxu0 %v348
    %989 = vmatpush1.msra.mxu0 %v347
    %990 = vmatprep.subr.mxu0 %v356
    %991 = vmatpush1.msra.mxu0 %v355
    %992 = vmatprep.subr.mxu0 %v364
    %993 = vmatpush1.msra.mxu0 %v363
    %994 = vmatprep.subr.mxu0 %v372
    %995 = vmatpush1.msra.mxu0 %v371
    %996 = vmatprep.subr.mxu0 %v380
    %997 = vmatpush1.msra.mxu0 %v379
    %998 = vmatprep.subr.mxu0 %v388
    %999 = vmatpush1.msra.mxu0 %v387
    %1000 = vmatprep.subr.mxu0 %v396
    %1001 = vmatpush1.msra.mxu0 %v395
    %1002 = vmatprep.subr.mxu0 %v404
    %1003 = vmatpush1.msra.mxu0 %v403
    %1004 = vmatprep.subr.mxu0 %v412
    %1005 = vmatpush1.msra.mxu0 %v411
    %1006 = vmatprep.subr.mxu0 %v420
    %1007 = vmatpush1.msra.mxu0 %v419
    %1008 = vmatprep.subr.mxu0 %v428
    %1009 = vmatpush1.msra.mxu0 %v427
    %1010 = vmatprep.subr.mxu0 %v436
    %1011 = vmatpush1.msra.mxu0 %v435
    %1012 = vmatprep.subr.mxu0 %v444
    %1013 = vmatpush1.msra.mxu0 %v443
    %1014 = vmatprep.subr.mxu0 %v452
    %1015 = vmatpush1.msra.mxu0 %v451
    %1016 = vmatprep.subr.mxu0 %v460
    %1017 = vmatpush1.msra.mxu0 %v459
    %1018 = vmatprep.subr.mxu0 %v468
    %1019 = vmatpush1.msra.mxu0 %v467
    %1020 = vmatprep.subr.mxu0 %v476
    %1021 = vmatpush1.msra.mxu0 %v475
    %1022 = vmatprep.subr.mxu0 %v484
    %1023 = vmatpush1.msra.mxu0 %v483
    %1024 = vmatprep.subr.mxu0 %v492
    %1025 = vmatpush1.msra.mxu0 %v491
    %1026 = vmatprep.subr.mxu0 %v500
    %1027 = vmatpush1.msra.mxu0 %v499
    %1028 = vmatprep.subr.mxu0 %v508
    %1029 = vmatpush1.msra.mxu0 %v507
    %1030 = vmatprep.subr.mxu0 %v516
    %1031 = vmatpush1.msra.mxu0 %v515
    %1032 = vmatprep.subr.mxu0 %v524
    %1033 = vmatpush1.msra.mxu0 %v523
    %1034 = vmatprep.subr.mxu0 %v532
    %1035 = vmatpush1.msra.mxu0 %v531
    %1036 = vmatprep.subr.mxu0 %v540
    %1037 = vmatpush1.msra.mxu0 %v539
    %1038 = vmatprep.subr.mxu0 %v548
    %1039 = vmatpush1.msra.mxu0 %v547
    %1040 = vmatprep.subr.mxu0 %v556
    %1041 = vmatpush1.msra.mxu0 %v555
    %1042 = vmatprep.mubr.f32.mxu0 %v618
    %1043 = vmatmul.mubr.f32.gmra.mrb[0].mxu0 %v616
    %v1044 = vpop.f32.mrb[0].mxu0
    %v1045 = vadd.f32 %v974, %v1044
    %v1046 = vpop.f32.mrb[0].mxu0
    %v1047 = vadd.f32 %v976, %v1046
    %1048 = vdwg.mxu0
    %1049 = vmatprep.subr.mxu0 %v54
    %1050 = vmatpush1.msra.mxu0 %v53
    %1051 = vmatprep.subr.mxu0 %v62
    %1052 = vmatpush1.msra.mxu0 %v61
    %1053 = vmatprep.subr.mxu0 %v70
    %1054 = vmatpush1.msra.mxu0 %v69
    %1055 = vmatprep.subr.mxu0 %v78
    %1056 = vmatpush1.msra.mxu0 %v77
    %1057 = vmatprep.subr.mxu0 %v86
    %1058 = vmatpush1.msra.mxu0 %v85
    %1059 = vmatprep.subr.mxu0 %v94
    %1060 = vmatpush1.msra.mxu0 %v93
    %1061 = vmatprep.subr.mxu0 %v102
    %1062 = vmatpush1.msra.mxu0 %v101
    %1063 = vmatprep.subr.mxu0 %v110
    %1064 = vmatpush1.msra.mxu0 %v109
    %1065 = vmatprep.subr.mxu0 %v118
    %1066 = vmatpush1.msra.mxu0 %v117
    %1067 = vmatprep.subr.mxu0 %v126
    %1068 = vmatpush1.msra.mxu0 %v125
    %1069 = vmatprep.subr.mxu0 %v134
    %1070 = vmatpush1.msra.mxu0 %v133
    %1071 = vmatprep.subr.mxu0 %v142
    %1072 = vmatpush1.msra.mxu0 %v141
    %1073 = vmatprep.subr.mxu0 %v150
    %1074 = vmatpush1.msra.mxu0 %v149
    %1075 = vmatprep.subr.mxu0 %v158
    %1076 = vmatpush1.msra.mxu0 %v157
    %1077 = vmatprep.subr.mxu0 %v166
    %1078 = vmatpush1.msra.mxu0 %v165
    %1079 = vmatprep.subr.mxu0 %v174
    %1080 = vmatpush1.msra.mxu0 %v173
    %1081 = vmatprep.subr.mxu0 %v182
    %1082 = vmatpush1.msra.mxu0 %v181
    %1083 = vmatprep.subr.mxu0 %v190
    %1084 = vmatpush1.msra.mxu0 %v189
    %1085 = vmatprep.subr.mxu0 %v198
    %1086 = vmatpush1.msra.mxu0 %v197
    %1087 = vmatprep.subr.mxu0 %v206
    %1088 = vmatpush1.msra.mxu0 %v205
    %1089 = vmatprep.subr.mxu0 %v214
    %1090 = vmatpush1.msra.mxu0 %v213
    %1091 = vmatprep.subr.mxu0 %v222
    %1092 = vmatpush1.msra.mxu0 %v221
    %1093 = vmatprep.subr.mxu0 %v230
    %1094 = vmatpush1.msra.mxu0 %v229
    %1095 = vmatprep.subr.mxu0 %v238
    %1096 = vmatpush1.msra.mxu0 %v237
    %1097 = vmatprep.subr.mxu0 %v246
    %1098 = vmatpush1.msra.mxu0 %v245
    %1099 = vmatprep.subr.mxu0 %v254
    %1100 = vmatpush1.msra.mxu0 %v253
    %1101 = vmatprep.subr.mxu0 %v262
    %1102 = vmatpush1.msra.mxu0 %v261
    %1103 = vmatprep.subr.mxu0 %v270
    %1104 = vmatpush1.msra.mxu0 %v269
    %1105 = vmatprep.subr.mxu0 %v278
    %1106 = vmatpush1.msra.mxu0 %v277
    %1107 = vmatprep.subr.mxu0 %v286
    %1108 = vmatpush1.msra.mxu0 %v285
    %1109 = vmatprep.subr.mxu0 %v294
    %1110 = vmatpush1.msra.mxu0 %v293
    %1111 = vmatprep.subr.mxu0 %v302
    %1112 = vmatpush1.msra.mxu0 %v301
    %1113 = vmatprep.mubr.f32.mxu0 %v617
    %1114 = vmatmul.mubr.f32.gmra.mrb[0].mxu0 %v609
    %v1115 = vpop.f32.mrb[0].mxu0
    %v1116 = vadd.f32 %v588, %v1115
    %v1117 = vpop.f32.mrb[0].mxu0
    %v1118 = vadd.f32 %v592, %v1117
    %1119 = vdwg.mxu0
    %1120 = vmatprep.subr.mxu0 %v310
    %1121 = vmatpush1.msra.mxu0 %v309
    %1122 = vmatprep.subr.mxu0 %v318
    %1123 = vmatpush1.msra.mxu0 %v317
    %1124 = vmatprep.subr.mxu0 %v326
    %1125 = vmatpush1.msra.mxu0 %v325
    %1126 = vmatprep.subr.mxu0 %v334
    %1127 = vmatpush1.msra.mxu0 %v333
    %1128 = vmatprep.subr.mxu0 %v342
    %1129 = vmatpush1.msra.mxu0 %v341
    %1130 = vmatprep.subr.mxu0 %v350
    %1131 = vmatpush1.msra.mxu0 %v349
    %1132 = vmatprep.subr.mxu0 %v358
    %1133 = vmatpush1.msra.mxu0 %v357
    %1134 = vmatprep.subr.mxu0 %v366
    %1135 = vmatpush1.msra.mxu0 %v365
    %1136 = vmatprep.subr.mxu0 %v374
    %1137 = vmatpush1.msra.mxu0 %v373
    %1138 = vmatprep.subr.mxu0 %v382
    %1139 = vmatpush1.msra.mxu0 %v381
    %1140 = vmatprep.subr.mxu0 %v390
    %1141 = vmatpush1.msra.mxu0 %v389
    %1142 = vmatprep.subr.mxu0 %v398
    %1143 = vmatpush1.msra.mxu0 %v397
    %1144 = vmatprep.subr.mxu0 %v406
    %1145 = vmatpush1.msra.mxu0 %v405
    %1146 = vmatprep.subr.mxu0 %v414
    %1147 = vmatpush1.msra.mxu0 %v413
    %1148 = vmatprep.subr.mxu0 %v422
    %1149 = vmatpush1.msra.mxu0 %v421
    %1150 = vmatprep.subr.mxu0 %v430
    %1151 = vmatpush1.msra.mxu0 %v429
    %1152 = vmatprep.subr.mxu0 %v438
    %1153 = vmatpush1.msra.mxu0 %v437
    %1154 = vmatprep.subr.mxu0 %v446
    %1155 = vmatpush1.msra.mxu0 %v445
    %1156 = vmatprep.subr.mxu0 %v454
    %1157 = vmatpush1.msra.mxu0 %v453
    %1158 = vmatprep.subr.mxu0 %v462
    %1159 = vmatpush1.msra.mxu0 %v461
    %1160 = vmatprep.subr.mxu0 %v470
    %1161 = vmatpush1.msra.mxu0 %v469
    %1162 = vmatprep.subr.mxu0 %v478
    %1163 = vmatpush1.msra.mxu0 %v477
    %1164 = vmatprep.subr.mxu0 %v486
    %1165 = vmatpush1.msra.mxu0 %v485
    %1166 = vmatprep.subr.mxu0 %v494
    %1167 = vmatpush1.msra.mxu0 %v493
    %1168 = vmatprep.subr.mxu0 %v502
    %1169 = vmatpush1.msra.mxu0 %v501
    %1170 = vmatprep.subr.mxu0 %v510
    %1171 = vmatpush1.msra.mxu0 %v509
    %1172 = vmatprep.subr.mxu0 %v518
    %1173 = vmatpush1.msra.mxu0 %v517
    %1174 = vmatprep.subr.mxu0 %v526
    %1175 = vmatpush1.msra.mxu0 %v525
    %1176 = vmatprep.subr.mxu0 %v534
    %1177 = vmatpush1.msra.mxu0 %v533
    %1178 = vmatprep.subr.mxu0 %v542
    %1179 = vmatpush1.msra.mxu0 %v541
    %1180 = vmatprep.subr.mxu0 %v550
    %1181 = vmatpush1.msra.mxu0 %v549
    %1182 = vmatprep.subr.mxu0 %v558
    %1183 = vmatpush1.msra.mxu0 %v557
    %1184 = vmatprep.mubr.f32.mxu0 %v618
    %1185 = vmatmul.mubr.f32.gmra.mrb[0].mxu0 %v616
    %v1186 = vpop.f32.mrb[0].mxu0
    %v1187 = vadd.f32 %v1116, %v1186
    %v1188 = vpop.f32.mrb[0].mxu0
    %v1189 = vadd.f32 %v1118, %v1188
    %1190 = vdwg.mxu0
    %v1191 = vmax.f32 %v761, 0.0
    %v1192 = vmax.f32 %v763, 0.0
    %v1193 = vmax.f32 %v903, 0.0
    %v1194 = vmax.f32 %v905, 0.0
    %v1195 = vmax.f32 %v1045, 0.0
    %v1196 = vmax.f32 %v1047, 0.0
    %v1197 = vmax.f32 %v1187, 0.0
    %v1198 = vmax.f32 %v1189, 0.0
    %vm1199 = vcmask 521216
    %1200 = vst.msk [vmem:[#allocation2] sm:$0x3f] %vm1199, 0.0
    %1201 = vst.msk [vmem:[#allocation2 + $0x8] sm:$0x3f] %vm1199, 0.0
    %1202 = vst.msk [vmem:[#allocation2 + $0x10] sm:$0x3f] %vm1199, 0.0
    %1203 = vst.msk [vmem:[#allocation2 + $0x18] sm:$0x3f] %vm1199, 0.0
    %1204 = vst.msk [vmem:[#allocation2 + $0x20] sm:$0x3f] %vm1199, 0.0
    %1205 = vst.msk [vmem:[#allocation2 + $0x28] sm:$0x3f] %vm1199, 0.0
    %1206 = vst.msk [vmem:[#allocation2 + $0x30] sm:$0x3f] %vm1199, 0.0
    %1207 = vst.msk [vmem:[#allocation2 + $0x38] sm:$0x3f] %vm1199, 0.0
    %1208 = vst.msk [vmem:[#allocation2 + $0x40] sm:$0x3f] %vm1199, 0.0
    %1209 = vst.msk [vmem:[#allocation2 + $0x48] sm:$0x3f] %vm1199, 0.0
    %1210 = vst.msk [vmem:[#allocation2 + $0x50] sm:$0x3f] %vm1199, 0.0
    %1211 = vst.msk [vmem:[#allocation2 + $0x58] sm:$0x3f] %vm1199, 0.0
    %v1214 = vunpack.c.l.s4 1966171168
    %v1215 = vunpack.c.0.s8 %v1214
    %v1216 = vlaneseq
    %v1217 = vshrl.u32 %v1216, 7
    %v1218 = vsub.s32 %v1215, %v1217
    %v1219 = vrot.slane %v1191, %v1218
    %v1220 = vcombine.high %v1219, %v1219
    %v1222 = vunpack.c.l.s4 1966171168
    %v1223 = vunpack.c.0.s8 %v1222
    %v1224 = vlaneseq
    %v1225 = vshrl.u32 %v1224, 7
    %v1226 = vsub.s32 %v1223, %v1225
    %v1227 = vrot.slane %v1219, %v1226
    %v1229 = vunpack.c.l.s4 1966171168
    %v1230 = vunpack.c.0.s8 %v1229
    %v1231 = vlaneseq
    %v1232 = vshrl.u32 %v1231, 7
    %v1233 = vsub.s32 %v1230, %v1232
    %v1234 = vrot.slane %v1220, %v1233
    %s1237 = scalar_lea.vmem [#allocation2], 8
    %vm1238 = vcmask 516096
    %1239 = vst.msk [vmem:[%s1237 + $0x1] sm:$0x1] %vm1238, %v1227
    %1240 = vst.msk [vmem:[%s1237 + $0x31] sm:$0x1] %vm1238, %v1234
    %v1241 = vlaneseq
    %v1242 = vshrl.u32 %v1241, 7
    %v1243 = vsub.s32 0, %v1242
    %v1244 = vrot.slane %v1227, %v1243
    %v1245 = vlaneseq
    %v1246 = vshrl.u32 %v1245, 7
    %v1247 = vsub.s32 0, %v1246
    %v1248 = vrot.slane %v1234, %v1247
    %1249 = vrot.lane.b32.xlu0 %v1244, 64
    %v1250 = vpop.permute.xlu0 %1249
    %1251 = vrot.lane.b32.xlu0 %v1248, 64
    %v1252 = vpop.permute.xlu0 %1251
    %1255 = vst.msk [vmem:[%s1237 + $0x2] sm:$0x1] %vm1238, %v1250
    %1256 = vst.msk [vmem:[%s1237 + $0x32] sm:$0x1] %vm1238, %v1252
    %v1259 = vunpack.c.l.s4 1966171168
    %v1260 = vunpack.c.0.s8 %v1259
    %v1261 = vlaneseq
    %v1262 = vshrl.u32 %v1261, 7
    %v1263 = vsub.s32 %v1260, %v1262
    %v1264 = vrot.slane %v1192, %v1263
    %v1265 = vcombine.high %v1264, %v1264
    %v1267 = vunpack.c.l.s4 1966171168
    %v1268 = vunpack.c.0.s8 %v1267
    %v1269 = vlaneseq
    %v1270 = vshrl.u32 %v1269, 7
    %v1271 = vsub.s32 %v1268, %v1270
    %v1272 = vrot.slane %v1264, %v1271
    %v1274 = vunpack.c.l.s4 1966171168
    %v1275 = vunpack.c.0.s8 %v1274
    %v1276 = vlaneseq
    %v1277 = vshrl.u32 %v1276, 7
    %v1278 = vsub.s32 %v1275, %v1277
    %v1279 = vrot.slane %v1265, %v1278
    %1282 = vst.msk [vmem:[%s1237 + $0x3] sm:$0x1] %vm1238, %v1272
    %1283 = vst.msk [vmem:[%s1237 + $0x33] sm:$0x1] %vm1238, %v1279
    %v1284 = vlaneseq
    %v1285 = vshrl.u32 %v1284, 7
    %v1286 = vsub.s32 0, %v1285
    %v1287 = vrot.slane %v1272, %v1286
    %v1288 = vlaneseq
    %v1289 = vshrl.u32 %v1288, 7
    %v1290 = vsub.s32 0, %v1289
    %v1291 = vrot.slane %v1279, %v1290
    %1292 = vrot.lane.b32.xlu0 %v1287, 64
    %v1293 = vpop.permute.xlu0 %1292
    %1294 = vrot.lane.b32.xlu0 %v1291, 64
    %v1295 = vpop.permute.xlu0 %1294
    %1298 = vst.msk [vmem:[%s1237 + $0x4] sm:$0x1] %vm1238, %v1293
    %1299 = vst.msk [vmem:[%s1237 + $0x34] sm:$0x1] %vm1238, %v1295
    %v1302 = vunpack.c.l.s4 1966171168
    %v1303 = vunpack.c.0.s8 %v1302
    %v1304 = vlaneseq
    %v1305 = vshrl.u32 %v1304, 7
    %v1306 = vsub.s32 %v1303, %v1305
    %v1307 = vrot.slane %v1193, %v1306
    %v1308 = vcombine.high %v1307, %v1307
    %v1310 = vunpack.c.l.s4 1966171168
    %v1311 = vunpack.c.0.s8 %v1310
    %v1312 = vlaneseq
    %v1313 = vshrl.u32 %v1312, 7
    %v1314 = vsub.s32 %v1311, %v1313
    %v1315 = vrot.slane %v1307, %v1314
    %v1317 = vunpack.c.l.s4 1966171168
    %v1318 = vunpack.c.0.s8 %v1317
    %v1319 = vlaneseq
    %v1320 = vshrl.u32 %v1319, 7
    %v1321 = vsub.s32 %v1318, %v1320
    %v1322 = vrot.slane %v1308, %v1321
    %s1325 = scalar_lea.vmem [#allocation2], 16
    %1326 = vst.msk [vmem:[%s1325 + $0x1] sm:$0x1] %vm1238, %v1315
    %1327 = vst.msk [vmem:[%s1325 + $0x31] sm:$0x1] %vm1238, %v1322
    %v1328 = vlaneseq
    %v1329 = vshrl.u32 %v1328, 7
    %v1330 = vsub.s32 0, %v1329
    %v1331 = vrot.slane %v1315, %v1330
    %v1332 = vlaneseq
    %v1333 = vshrl.u32 %v1332, 7
    %v1334 = vsub.s32 0, %v1333
    %v1335 = vrot.slane %v1322, %v1334
    %1336 = vrot.lane.b32.xlu0 %v1331, 64
    %v1337 = vpop.permute.xlu0 %1336
    %1338 = vrot.lane.b32.xlu0 %v1335, 64
    %v1339 = vpop.permute.xlu0 %1338
    %1342 = vst.msk [vmem:[%s1325 + $0x2] sm:$0x1] %vm1238, %v1337
    %1343 = vst.msk [vmem:[%s1325 + $0x32] sm:$0x1] %vm1238, %v1339
    %v1346 = vunpack.c.l.s4 1966171168
    %v1347 = vunpack.c.0.s8 %v1346
    %v1348 = vlaneseq
    %v1349 = vshrl.u32 %v1348, 7
    %v1350 = vsub.s32 %v1347, %v1349
    %v1351 = vrot.slane %v1194, %v1350
    %v1352 = vcombine.high %v1351, %v1351
    %v1354 = vunpack.c.l.s4 1966171168
    %v1355 = vunpack.c.0.s8 %v1354
    %v1356 = vlaneseq
    %v1357 = vshrl.u32 %v1356, 7
    %v1358 = vsub.s32 %v1355, %v1357
    %v1359 = vrot.slane %v1351, %v1358
    %v1361 = vunpack.c.l.s4 1966171168
    %v1362 = vunpack.c.0.s8 %v1361
    %v1363 = vlaneseq
    %v1364 = vshrl.u32 %v1363, 7
    %v1365 = vsub.s32 %v1362, %v1364
    %v1366 = vrot.slane %v1352, %v1365
    %1369 = vst.msk [vmem:[%s1325 + $0x3] sm:$0x1] %vm1238, %v1359
    %1370 = vst.msk [vmem:[%s1325 + $0x33] sm:$0x1] %vm1238, %v1366
    %v1371 = vlaneseq
    %v1372 = vshrl.u32 %v1371, 7
    %v1373 = vsub.s32 0, %v1372
    %v1374 = vrot.slane %v1359, %v1373
    %v1375 = vlaneseq
    %v1376 = vshrl.u32 %v1375, 7
    %v1377 = vsub.s32 0, %v1376
    %v1378 = vrot.slane %v1366, %v1377
    %1379 = vrot.lane.b32.xlu0 %v1374, 64
    %v1380 = vpop.permute.xlu0 %1379
    %1381 = vrot.lane.b32.xlu0 %v1378, 64
    %v1382 = vpop.permute.xlu0 %1381
    %1385 = vst.msk [vmem:[%s1325 + $0x4] sm:$0x1] %vm1238, %v1380
    %1386 = vst.msk [vmem:[%s1325 + $0x34] sm:$0x1] %vm1238, %v1382
    %v1389 = vunpack.c.l.s4 1966171168
    %v1390 = vunpack.c.0.s8 %v1389
    %v1391 = vlaneseq
    %v1392 = vshrl.u32 %v1391, 7
    %v1393 = vsub.s32 %v1390, %v1392
    %v1394 = vrot.slane %v1195, %v1393
    %v1395 = vcombine.high %v1394, %v1394
    %v1397 = vunpack.c.l.s4 1966171168
    %v1398 = vunpack.c.0.s8 %v1397
    %v1399 = vlaneseq
    %v1400 = vshrl.u32 %v1399, 7
    %v1401 = vsub.s32 %v1398, %v1400
    %v1402 = vrot.slane %v1394, %v1401
    %v1404 = vunpack.c.l.s4 1966171168
    %v1405 = vunpack.c.0.s8 %v1404
    %v1406 = vlaneseq
    %v1407 = vshrl.u32 %v1406, 7
    %v1408 = vsub.s32 %v1405, %v1407
    %v1409 = vrot.slane %v1395, %v1408
    %s1412 = scalar_lea.vmem [#allocation2], 24
    %1413 = vst.msk [vmem:[%s1412 + $0x1] sm:$0x1] %vm1238, %v1402
    %1414 = vst.msk [vmem:[%s1412 + $0x31] sm:$0x1] %vm1238, %v1409
    %v1415 = vlaneseq
    %v1416 = vshrl.u32 %v1415, 7
    %v1417 = vsub.s32 0, %v1416
    %v1418 = vrot.slane %v1402, %v1417
    %v1419 = vlaneseq
    %v1420 = vshrl.u32 %v1419, 7
    %v1421 = vsub.s32 0, %v1420
    %v1422 = vrot.slane %v1409, %v1421
    %1423 = vrot.lane.b32.xlu0 %v1418, 64
    %v1424 = vpop.permute.xlu0 %1423
    %1425 = vrot.lane.b32.xlu0 %v1422, 64
    %v1426 = vpop.permute.xlu0 %1425
    %1429 = vst.msk [vmem:[%s1412 + $0x2] sm:$0x1] %vm1238, %v1424
    %1430 = vst.msk [vmem:[%s1412 + $0x32] sm:$0x1] %vm1238, %v1426
    %v1433 = vunpack.c.l.s4 1966171168
    %v1434 = vunpack.c.0.s8 %v1433
    %v1435 = vlaneseq
    %v1436 = vshrl.u32 %v1435, 7
    %v1437 = vsub.s32 %v1434, %v1436
    %v1438 = vrot.slane %v1196, %v1437
    %v1439 = vcombine.high %v1438, %v1438
    %v1441 = vunpack.c.l.s4 1966171168
    %v1442 = vunpack.c.0.s8 %v1441
    %v1443 = vlaneseq
    %v1444 = vshrl.u32 %v1443, 7
    %v1445 = vsub.s32 %v1442, %v1444
    %v1446 = vrot.slane %v1438, %v1445
    %v1448 = vunpack.c.l.s4 1966171168
    %v1449 = vunpack.c.0.s8 %v1448
    %v1450 = vlaneseq
    %v1451 = vshrl.u32 %v1450, 7
    %v1452 = vsub.s32 %v1449, %v1451
    %v1453 = vrot.slane %v1439, %v1452
    %1456 = vst.msk [vmem:[%s1412 + $0x3] sm:$0x1] %vm1238, %v1446
    %1457 = vst.msk [vmem:[%s1412 + $0x33] sm:$0x1] %vm1238, %v1453
    %v1458 = vlaneseq
    %v1459 = vshrl.u32 %v1458, 7
    %v1460 = vsub.s32 0, %v1459
    %v1461 = vrot.slane %v1446, %v1460
    %v1462 = vlaneseq
    %v1463 = vshrl.u32 %v1462, 7
    %v1464 = vsub.s32 0, %v1463
    %v1465 = vrot.slane %v1453, %v1464
    %1466 = vrot.lane.b32.xlu0 %v1461, 64
    %v1467 = vpop.permute.xlu0 %1466
    %1468 = vrot.lane.b32.xlu0 %v1465, 64
    %v1469 = vpop.permute.xlu0 %1468
    %1472 = vst.msk [vmem:[%s1412 + $0x4] sm:$0x1] %vm1238, %v1467
    %1473 = vst.msk [vmem:[%s1412 + $0x34] sm:$0x1] %vm1238, %v1469
    %v1476 = vunpack.c.l.s4 1966171168
    %v1477 = vunpack.c.0.s8 %v1476
    %v1478 = vlaneseq
    %v1479 = vshrl.u32 %v1478, 7
    %v1480 = vsub.s32 %v1477, %v1479
    %v1481 = vrot.slane %v1197, %v1480
    %v1482 = vcombine.high %v1481, %v1481
    %v1484 = vunpack.c.l.s4 1966171168
    %v1485 = vunpack.c.0.s8 %v1484
    %v1486 = vlaneseq
    %v1487 = vshrl.u32 %v1486, 7
    %v1488 = vsub.s32 %v1485, %v1487
    %v1489 = vrot.slane %v1481, %v1488
    %v1491 = vunpack.c.l.s4 1966171168
    %v1492 = vunpack.c.0.s8 %v1491
    %v1493 = vlaneseq
    %v1494 = vshrl.u32 %v1493, 7
    %v1495 = vsub.s32 %v1492, %v1494
    %v1496 = vrot.slane %v1482, %v1495
    %s1499 = scalar_lea.vmem [#allocation2], 32
    %1500 = vst.msk [vmem:[%s1499 + $0x1] sm:$0x1] %vm1238, %v1489
    %1501 = vst.msk [vmem:[%s1499 + $0x31] sm:$0x1] %vm1238, %v1496
    %v1502 = vlaneseq
    %v1503 = vshrl.u32 %v1502, 7
    %v1504 = vsub.s32 0, %v1503
    %v1505 = vrot.slane %v1489, %v1504
    %v1506 = vlaneseq
    %v1507 = vshrl.u32 %v1506, 7
    %v1508 = vsub.s32 0, %v1507
    %v1509 = vrot.slane %v1496, %v1508
    %1510 = vrot.lane.b32.xlu0 %v1505, 64
    %v1511 = vpop.permute.xlu0 %1510
    %1512 = vrot.lane.b32.xlu0 %v1509, 64
    %v1513 = vpop.permute.xlu0 %1512
    %1516 = vst.msk [vmem:[%s1499 + $0x2] sm:$0x1] %vm1238, %v1511
    %1517 = vst.msk [vmem:[%s1499 + $0x32] sm:$0x1] %vm1238, %v1513
    %v1520 = vunpack.c.l.s4 1966171168
    %v1521 = vunpack.c.0.s8 %v1520
    %v1522 = vlaneseq
    %v1523 = vshrl.u32 %v1522, 7
    %v1524 = vsub.s32 %v1521, %v1523
    %v1525 = vrot.slane %v1198, %v1524
    %v1526 = vcombine.high %v1525, %v1525
    %v1528 = vunpack.c.l.s4 1966171168
    %v1529 = vunpack.c.0.s8 %v1528
    %v1530 = vlaneseq
    %v1531 = vshrl.u32 %v1530, 7
    %v1532 = vsub.s32 %v1529, %v1531
    %v1533 = vrot.slane %v1525, %v1532
    %v1535 = vunpack.c.l.s4 1966171168
    %v1536 = vunpack.c.0.s8 %v1535
    %v1537 = vlaneseq
    %v1538 = vshrl.u32 %v1537, 7
    %v1539 = vsub.s32 %v1536, %v1538
    %v1540 = vrot.slane %v1526, %v1539
    %1543 = vst.msk [vmem:[%s1499 + $0x3] sm:$0x1] %vm1238, %v1533
    %1544 = vst.msk [vmem:[%s1499 + $0x33] sm:$0x1] %vm1238, %v1540
    %v1545 = vlaneseq
    %v1546 = vshrl.u32 %v1545, 7
    %v1547 = vsub.s32 0, %v1546
    %v1548 = vrot.slane %v1533, %v1547
    %v1549 = vlaneseq
    %v1550 = vshrl.u32 %v1549, 7
    %v1551 = vsub.s32 0, %v1550
    %v1552 = vrot.slane %v1540, %v1551
    %1553 = vrot.lane.b32.xlu0 %v1548, 64
    %v1554 = vpop.permute.xlu0 %1553
    %1555 = vrot.lane.b32.xlu0 %v1552, 64
    %v1556 = vpop.permute.xlu0 %1555
    %1559 = vst.msk [vmem:[%s1499 + $0x4] sm:$0x1] %vm1238, %v1554
    %1560 = vst.msk [vmem:[%s1499 + $0x34] sm:$0x1] %vm1238, %v1556
    %v1561 = vld [vmem:[#allocation2] sm:$0xf]
    %v1562 = vld [vmem:[#allocation2 + $0x8] sm:$0xf]
    %v1563 = vld [vmem:[#allocation2 + $0x10] sm:$0xf]
    %v1564 = vld [vmem:[#allocation2 + $0x18] sm:$0xf]
    %v1565 = vld [vmem:[#allocation2 + $0x30] sm:$0xf]
    %v1566 = vld [vmem:[#allocation2 + $0x38] sm:$0xf]
    %v1567 = vld [vmem:[#allocation2 + $0x40] sm:$0xf]
    %v1568 = vld [vmem:[#allocation2 + $0x48] sm:$0xf]
    %v1569 = vld [vmem:[%s3] sm:$0xff]
    %v1570 = vld [vmem:[%s3 + $0x8] sm:$0xff]
    %v1571 = vld [vmem:[%s3 + $0x10] sm:$0xff]
    %v1572 = vld [vmem:[%s3 + $0x18] sm:$0xff]
    %v1573 = vld [vmem:[%s3 + $0x20] sm:$0xff]
    %v1574 = vld [vmem:[%s3 + $0x28] sm:$0xff]
    %v1575 = vld [vmem:[%s3 + $0x30] sm:$0xff]
    %v1576 = vld [vmem:[%s3 + $0x38] sm:$0xff]
    %v1577 = vld [vmem:[#allocation2 + $0x1] sm:$0xf]
    %v1578 = vld [vmem:[#allocation2 + $0x9] sm:$0xf]
    %v1579 = vld [vmem:[#allocation2 + $0x11] sm:$0xf]
    %v1580 = vld [vmem:[#allocation2 + $0x19] sm:$0xf]
    %v1581 = vld [vmem:[#allocation2 + $0x31] sm:$0xf]
    %v1582 = vld [vmem:[#allocation2 + $0x39] sm:$0xf]
    %v1583 = vld [vmem:[#allocation2 + $0x41] sm:$0xf]
    %v1584 = vld [vmem:[#allocation2 + $0x49] sm:$0xf]
    %s1585 = scalar_lea.vmem %s3, 64
    %v1586 = vld [vmem:[%s1585] sm:$0xff]
    %v1587 = vld [vmem:[%s1585 + $0x8] sm:$0xff]
    %v1588 = vld [vmem:[%s1585 + $0x10] sm:$0xff]
    %v1589 = vld [vmem:[%s1585 + $0x18] sm:$0xff]
    %v1590 = vld [vmem:[%s1585 + $0x20] sm:$0xff]
    %v1591 = vld [vmem:[%s1585 + $0x28] sm:$0xff]
    %v1592 = vld [vmem:[%s1585 + $0x30] sm:$0xff]
    %v1593 = vld [vmem:[%s1585 + $0x38] sm:$0xff]
    %v1602 = vcombine.low %v1577, %v1578
    %v1603 = vcombine.low %v1579, %v1580
    %v1604 = vcombine.low %v1581, %v1582
    %v1605 = vcombine.low %v1583, %v1584
    %vm1606 = vcmask 523264
    %v1607 = vsel %vm1606, %v1602, 0
    %v1609 = vsel %vm1606, %v1603, 0
    %v1611 = vsel %vm1606, %v1604, 0
    %v1613 = vsel %vm1606, %v1605, 0
    %1615 = vmatprep.subr.mxu0 0.0
    %1616 = vmatpush1.msra.mxu0 %v1586
    %1617 = vmatprep.subr.mxu0 0.0
    %1618 = vmatpush1.msra.mxu0 %v1587
    %1619 = vmatprep.subr.mxu0 0.0
    %1620 = vmatpush1.msra.mxu0 %v1588
    %1621 = vmatprep.subr.mxu0 0.0
    %1622 = vmatpush1.msra.mxu0 %v1589
    %1623 = vmatprep.subr.mxu0 0.0
    %1624 = vmatpush1.msra.mxu0 %v1590
    %1625 = vmatprep.subr.mxu0 0.0
    %1626 = vmatpush1.msra.mxu0 %v1591
    %1627 = vmatprep.subr.mxu0 0.0
    %1628 = vmatpush1.msra.mxu0 %v1592
    %1629 = vmatprep.subr.mxu0 0.0
    %1630 = vmatpush1.msra.mxu0 %v1593
    %1631 = vmatprep.subr.mxu0 0.0
    %1632 = vmatpush1.msra.mxu0 0.0
    %1633 = vmatprep.subr.mxu0 0.0
    %1634 = vmatpush1.msra.mxu0 0.0
    %1635 = vmatprep.subr.mxu0 0.0
    %1636 = vmatpush1.msra.mxu0 0.0
    %1637 = vmatprep.subr.mxu0 0.0
    %1638 = vmatpush1.msra.mxu0 0.0
    %1639 = vmatprep.subr.mxu0 0.0
    %1640 = vmatpush1.msra.mxu0 0.0
    %1641 = vmatprep.subr.mxu0 0.0
    %1642 = vmatpush1.msra.mxu0 0.0
    %1643 = vmatprep.subr.mxu0 0.0
    %1644 = vmatpush1.msra.mxu0 0.0
    %1645 = vmatprep.subr.mxu0 0.0
    %1646 = vmatpush1.msra.mxu0 0.0
    %1647 = vmatprep.subr.mxu0 0.0
    %1648 = vmatpush1.msra.mxu0 0.0
    %1649 = vmatprep.subr.mxu0 0.0
    %1650 = vmatpush1.msra.mxu0 0.0
    %1651 = vmatprep.subr.mxu0 0.0
    %1652 = vmatpush1.msra.mxu0 0.0
    %1653 = vmatprep.subr.mxu0 0.0
    %1654 = vmatpush1.msra.mxu0 0.0
    %1655 = vmatprep.subr.mxu0 0.0
    %1656 = vmatpush1.msra.mxu0 0.0
    %1657 = vmatprep.subr.mxu0 0.0
    %1658 = vmatpush1.msra.mxu0 0.0
    %1659 = vmatprep.subr.mxu0 0.0
    %1660 = vmatpush1.msra.mxu0 0.0
    %1661 = vmatprep.subr.mxu0 0.0
    %1662 = vmatpush1.msra.mxu0 0.0
    %1663 = vmatprep.subr.mxu0 0.0
    %1664 = vmatpush1.msra.mxu0 0.0
    %1665 = vmatprep.subr.mxu0 0.0
    %1666 = vmatpush1.msra.mxu0 0.0
    %1667 = vmatprep.subr.mxu0 0.0
    %1668 = vmatpush1.msra.mxu0 0.0
    %1669 = vmatprep.subr.mxu0 0.0
    %1670 = vmatpush1.msra.mxu0 0.0
    %1671 = vmatprep.subr.mxu0 0.0
    %1672 = vmatpush1.msra.mxu0 0.0
    %1673 = vmatprep.subr.mxu0 0.0
    %1674 = vmatpush1.msra.mxu0 0.0
    %1675 = vmatprep.subr.mxu0 0.0
    %1676 = vmatpush1.msra.mxu0 0.0
    %1677 = vmatprep.subr.mxu0 0.0
    %1678 = vmatpush1.msra.mxu0 0.0
    %1679 = vmatprep.mubr.f32.mxu0 0.0
    %1680 = vmatmul.mubr.f32.gmra.mrb[0].mxu0 %v1607
    %v1681 = vpop.f32.mrb[0].mxu0
    %v1682 = vadd.f32 0.0, %v1681
    %v1683 = vpop.f32.mrb[0].mxu0
    %1684 = vmatprep.mubr.f32.mxu0 0.0
    %1685 = vmatmul.mubr.f32.gmra.mrb[0].mxu0 %v1609
    %v1686 = vpop.f32.mrb[0].mxu0
    %v1687 = vadd.f32 0.0, %v1686
    %v1688 = vpop.f32.mrb[0].mxu0
    %1689 = vmatprep.mubr.f32.mxu0 0.0
    %1690 = vmatmul.mubr.f32.gmra.mrb[0].mxu0 %v1611
    %v1691 = vpop.f32.mrb[0].mxu0
    %v1692 = vadd.f32 0.0, %v1691
    %v1693 = vpop.f32.mrb[0].mxu0
    %1694 = vmatprep.mubr.f32.mxu0 0.0
    %1695 = vmatmul.mubr.f32.gmra.mrb[0].mxu0 %v1613
    %v1696 = vpop.f32.mrb[0].mxu0
    %v1697 = vadd.f32 0.0, %v1696
    %v1698 = vpop.f32.mrb[0].mxu0
    %1699 = vdwg.mxu0
    %v1708 = vcombine.low %v1561, %v1562
    %v1709 = vcombine.low %v1563, %v1564
    %v1710 = vcombine.low %v1565, %v1566
    %v1711 = vcombine.low %v1567, %v1568
    %v1712 = vsel %vm1606, %v1708, 0
    %v1714 = vsel %vm1606, %v1709, 0
    %v1716 = vsel %vm1606, %v1710, 0
    %v1718 = vsel %vm1606, %v1711, 0
    %1720 = vmatprep.subr.mxu0 0.0
    %1721 = vmatpush1.msra.mxu0 %v1569
    %1722 = vmatprep.subr.mxu0 0.0
    %1723 = vmatpush1.msra.mxu0 %v1570
    %1724 = vmatprep.subr.mxu0 0.0
    %1725 = vmatpush1.msra.mxu0 %v1571
    %1726 = vmatprep.subr.mxu0 0.0
    %1727 = vmatpush1.msra.mxu0 %v1572
    %1728 = vmatprep.subr.mxu0 0.0
    %1729 = vmatpush1.msra.mxu0 %v1573
    %1730 = vmatprep.subr.mxu0 0.0
    %1731 = vmatpush1.msra.mxu0 %v1574
    %1732 = vmatprep.subr.mxu0 0.0
    %1733 = vmatpush1.msra.mxu0 %v1575
    %1734 = vmatprep.subr.mxu0 0.0
    %1735 = vmatpush1.msra.mxu0 %v1576
    %1736 = vmatprep.subr.mxu0 0.0
    %1737 = vmatpush1.msra.mxu0 0.0
    %1738 = vmatprep.subr.mxu0 0.0
    %1739 = vmatpush1.msra.mxu0 0.0
    %1740 = vmatprep.subr.mxu0 0.0
    %1741 = vmatpush1.msra.mxu0 0.0
    %1742 = vmatprep.subr.mxu0 0.0
    %1743 = vmatpush1.msra.mxu0 0.0
    %1744 = vmatprep.subr.mxu0 0.0
    %1745 = vmatpush1.msra.mxu0 0.0
    %1746 = vmatprep.subr.mxu0 0.0
    %1747 = vmatpush1.msra.mxu0 0.0
    %1748 = vmatprep.subr.mxu0 0.0
    %1749 = vmatpush1.msra.mxu0 0.0
    %1750 = vmatprep.subr.mxu0 0.0
    %1751 = vmatpush1.msra.mxu0 0.0
    %1752 = vmatprep.subr.mxu0 0.0
    %1753 = vmatpush1.msra.mxu0 0.0
    %1754 = vmatprep.subr.mxu0 0.0
    %1755 = vmatpush1.msra.mxu0 0.0
    %1756 = vmatprep.subr.mxu0 0.0
    %1757 = vmatpush1.msra.mxu0 0.0
    %1758 = vmatprep.subr.mxu0 0.0
    %1759 = vmatpush1.msra.mxu0 0.0
    %1760 = vmatprep.subr.mxu0 0.0
    %1761 = vmatpush1.msra.mxu0 0.0
    %1762 = vmatprep.subr.mxu0 0.0
    %1763 = vmatpush1.msra.mxu0 0.0
    %1764 = vmatprep.subr.mxu0 0.0
    %1765 = vmatpush1.msra.mxu0 0.0
    %1766 = vmatprep.subr.mxu0 0.0
    %1767 = vmatpush1.msra.mxu0 0.0
    %1768 = vmatprep.subr.mxu0 0.0
    %1769 = vmatpush1.msra.mxu0 0.0
    %1770 = vmatprep.subr.mxu0 0.0
    %1771 = vmatpush1.msra.mxu0 0.0
    %1772 = vmatprep.subr.mxu0 0.0
    %1773 = vmatpush1.msra.mxu0 0.0
    %1774 = vmatprep.subr.mxu0 0.0
    %1775 = vmatpush1.msra.mxu0 0.0
    %1776 = vmatprep.subr.mxu0 0.0
    %1777 = vmatpush1.msra.mxu0 0.0
    %1778 = vmatprep.subr.mxu0 0.0
    %1779 = vmatpush1.msra.mxu0 0.0
    %1780 = vmatprep.subr.mxu0 0.0
    %1781 = vmatpush1.msra.mxu0 0.0
    %1782 = vmatprep.subr.mxu0 0.0
    %1783 = vmatpush1.msra.mxu0 0.0
    %1784 = vmatprep.mubr.f32.mxu0 0.0
    %1785 = vmatmul.mubr.f32.gmra.mrb[0].mxu0 %v1712
    %v1786 = vpop.f32.mrb[0].mxu0
    %v1787 = vadd.f32 %v1682, %v1786
    %v1788 = vpop.f32.mrb[0].mxu0
    %1789 = vmatprep.mubr.f32.mxu0 0.0
    %1790 = vmatmul.mubr.f32.gmra.mrb[0].mxu0 %v1714
    %v1791 = vpop.f32.mrb[0].mxu0
    %v1792 = vadd.f32 %v1687, %v1791
    %v1793 = vpop.f32.mrb[0].mxu0
    %1794 = vmatprep.mubr.f32.mxu0 0.0
    %1795 = vmatmul.mubr.f32.gmra.mrb[0].mxu0 %v1716
    %v1796 = vpop.f32.mrb[0].mxu0
    %v1797 = vadd.f32 %v1692, %v1796
    %v1798 = vpop.f32.mrb[0].mxu0
    %1799 = vmatprep.mubr.f32.mxu0 0.0
    %1800 = vmatmul.mubr.f32.gmra.mrb[0].mxu0 %v1718
    %v1801 = vpop.f32.mrb[0].mxu0
    %v1802 = vadd.f32 %v1697, %v1801
    %v1803 = vpop.f32.mrb[0].mxu0
    %1804 = vdwg.mxu0
    %v1805 = vld [vmem:[#allocation2 + $0x2] sm:$0xf]
    %v1806 = vld [vmem:[#allocation2 + $0xa] sm:$0xf]
    %v1807 = vld [vmem:[#allocation2 + $0x12] sm:$0xf]
    %v1808 = vld [vmem:[#allocation2 + $0x1a] sm:$0xf]
    %v1809 = vld [vmem:[#allocation2 + $0x32] sm:$0xf]
    %v1810 = vld [vmem:[#allocation2 + $0x3a] sm:$0xf]
    %v1811 = vld [vmem:[#allocation2 + $0x42] sm:$0xf]
    %v1812 = vld [vmem:[#allocation2 + $0x4a] sm:$0xf]
    %s1813 = scalar_lea.vmem %s3, 128
    %v1814 = vld [vmem:[%s1813] sm:$0xff]
    %v1815 = vld [vmem:[%s1813 + $0x8] sm:$0xff]
    %v1816 = vld [vmem:[%s1813 + $0x10] sm:$0xff]
    %v1817 = vld [vmem:[%s1813 + $0x18] sm:$0xff]
    %v1818 = vld [vmem:[%s1813 + $0x20] sm:$0xff]
    %v1819 = vld [vmem:[%s1813 + $0x28] sm:$0xff]
    %v1820 = vld [vmem:[%s1813 + $0x30] sm:$0xff]
    %v1821 = vld [vmem:[%s1813 + $0x38] sm:$0xff]
    %v1830 = vcombine.low %v1805, %v1806
    %v1831 = vcombine.low %v1807, %v1808
    %v1832 = vcombine.low %v1809, %v1810
    %v1833 = vcombine.low %v1811, %v1812
    %v1834 = vsel %vm1606, %v1830, 0
    %v1836 = vsel %vm1606, %v1831, 0
    %v1838 = vsel %vm1606, %v1832, 0
    %v1840 = vsel %vm1606, %v1833, 0
    %1842 = vmatprep.subr.mxu0 0.0
    %1843 = vmatpush1.msra.mxu0 %v1814
    %1844 = vmatprep.subr.mxu0 0.0
    %1845 = vmatpush1.msra.mxu0 %v1815
    %1846 = vmatprep.subr.mxu0 0.0
    %1847 = vmatpush1.msra.mxu0 %v1816
    %1848 = vmatprep.subr.mxu0 0.0
    %1849 = vmatpush1.msra.mxu0 %v1817
    %1850 = vmatprep.subr.mxu0 0.0
    %1851 = vmatpush1.msra.mxu0 %v1818
    %1852 = vmatprep.subr.mxu0 0.0
    %1853 = vmatpush1.msra.mxu0 %v1819
    %1854 = vmatprep.subr.mxu0 0.0
    %1855 = vmatpush1.msra.mxu0 %v1820
    %1856 = vmatprep.subr.mxu0 0.0
    %1857 = vmatpush1.msra.mxu0 %v1821
    %1858 = vmatprep.subr.mxu0 0.0
    %1859 = vmatpush1.msra.mxu0 0.0
    %1860 = vmatprep.subr.mxu0 0.0
    %1861 = vmatpush1.msra.mxu0 0.0
    %1862 = vmatprep.subr.mxu0 0.0
    %1863 = vmatpush1.msra.mxu0 0.0
    %1864 = vmatprep.subr.mxu0 0.0
    %1865 = vmatpush1.msra.mxu0 0.0
    %1866 = vmatprep.subr.mxu0 0.0
    %1867 = vmatpush1.msra.mxu0 0.0
    %1868 = vmatprep.subr.mxu0 0.0
    %1869 = vmatpush1.msra.mxu0 0.0
    %1870 = vmatprep.subr.mxu0 0.0
    %1871 = vmatpush1.msra.mxu0 0.0
    %1872 = vmatprep.subr.mxu0 0.0
    %1873 = vmatpush1.msra.mxu0 0.0
    %1874 = vmatprep.subr.mxu0 0.0
    %1875 = vmatpush1.msra.mxu0 0.0
    %1876 = vmatprep.subr.mxu0 0.0
    %1877 = vmatpush1.msra.mxu0 0.0
    %1878 = vmatprep.subr.mxu0 0.0
    %1879 = vmatpush1.msra.mxu0 0.0
    %1880 = vmatprep.subr.mxu0 0.0
    %1881 = vmatpush1.msra.mxu0 0.0
    %1882 = vmatprep.subr.mxu0 0.0
    %1883 = vmatpush1.msra.mxu0 0.0
    %1884 = vmatprep.subr.mxu0 0.0
    %1885 = vmatpush1.msra.mxu0 0.0
    %1886 = vmatprep.subr.mxu0 0.0
    %1887 = vmatpush1.msra.mxu0 0.0
    %1888 = vmatprep.subr.mxu0 0.0
    %1889 = vmatpush1.msra.mxu0 0.0
    %1890 = vmatprep.subr.mxu0 0.0
    %1891 = vmatpush1.msra.mxu0 0.0
    %1892 = vmatprep.subr.mxu0 0.0
    %1893 = vmatpush1.msra.mxu0 0.0
    %1894 = vmatprep.subr.mxu0 0.0
    %1895 = vmatpush1.msra.mxu0 0.0
    %1896 = vmatprep.subr.mxu0 0.0
    %1897 = vmatpush1.msra.mxu0 0.0
    %1898 = vmatprep.subr.mxu0 0.0
    %1899 = vmatpush1.msra.mxu0 0.0
    %1900 = vmatprep.subr.mxu0 0.0
    %1901 = vmatpush1.msra.mxu0 0.0
    %1902 = vmatprep.subr.mxu0 0.0
    %1903 = vmatpush1.msra.mxu0 0.0
    %1904 = vmatprep.subr.mxu0 0.0
    %1905 = vmatpush1.msra.mxu0 0.0
    %1906 = vmatprep.mubr.f32.mxu0 0.0
    %1907 = vmatmul.mubr.f32.gmra.mrb[0].mxu0 %v1834
    %v1908 = vpop.f32.mrb[0].mxu0
    %v1909 = vadd.f32 0.0, %v1908
    %v1910 = vpop.f32.mrb[0].mxu0
    %1911 = vmatprep.mubr.f32.mxu0 0.0
    %1912 = vmatmul.mubr.f32.gmra.mrb[0].mxu0 %v1836
    %v1913 = vpop.f32.mrb[0].mxu0
    %v1914 = vadd.f32 0.0, %v1913
    %v1915 = vpop.f32.mrb[0].mxu0
    %1916 = vmatprep.mubr.f32.mxu0 0.0
    %1917 = vmatmul.mubr.f32.gmra.mrb[0].mxu0 %v1838
    %v1918 = vpop.f32.mrb[0].mxu0
    %v1919 = vadd.f32 0.0, %v1918
    %v1920 = vpop.f32.mrb[0].mxu0
    %1921 = vmatprep.mubr.f32.mxu0 0.0
    %1922 = vmatmul.mubr.f32.gmra.mrb[0].mxu0 %v1840
    %v1923 = vpop.f32.mrb[0].mxu0
    %v1924 = vadd.f32 0.0, %v1923
    %v1925 = vpop.f32.mrb[0].mxu0
    %1926 = vdwg.mxu0
    %v1927 = vadd.f32 %v1787, %v1909
    %v1928 = vadd.f32 %v1792, %v1914
    %v1929 = vadd.f32 %v1797, %v1919
    %v1930 = vadd.f32 %v1802, %v1924
    %v1931 = vld [vmem:[%s1237] sm:$0xf]
    %v1932 = vld [vmem:[%s1237 + $0x8] sm:$0xf]
    %v1933 = vld [vmem:[%s1237 + $0x10] sm:$0xf]
    %v1934 = vld [vmem:[%s1237 + $0x18] sm:$0xf]
    %v1935 = vld [vmem:[%s1237 + $0x30] sm:$0xf]
    %v1936 = vld [vmem:[%s1237 + $0x38] sm:$0xf]
    %v1937 = vld [vmem:[%s1237 + $0x40] sm:$0xf]
    %v1938 = vld [vmem:[%s1237 + $0x48] sm:$0xf]
    %s1939 = scalar_lea.vmem %s3, 192
    %v1940 = vld [vmem:[%s1939] sm:$0xff]
    %v1941 = vld [vmem:[%s1939 + $0x8] sm:$0xff]
    %v1942 = vld [vmem:[%s1939 + $0x10] sm:$0xff]
    %v1943 = vld [vmem:[%s1939 + $0x18] sm:$0xff]
    %v1944 = vld [vmem:[%s1939 + $0x20] sm:$0xff]
    %v1945 = vld [vmem:[%s1939 + $0x28] sm:$0xff]
    %v1946 = vld [vmem:[%s1939 + $0x30] sm:$0xff]
    %v1947 = vld [vmem:[%s1939 + $0x38] sm:$0xff]
    %v1956 = vcombine.low %v1931, %v1932
    %v1957 = vcombine.low %v1933, %v1934
    %v1958 = vcombine.low %v1935, %v1936
    %v1959 = vcombine.low %v1937, %v1938
    %v1960 = vsel %vm1606, %v1956, 0
    %v1962 = vsel %vm1606, %v1957, 0
    %v1964 = vsel %vm1606, %v1958, 0
    %v1966 = vsel %vm1606, %v1959, 0
    %1968 = vmatprep.subr.mxu0 0.0
    %1969 = vmatpush1.msra.mxu0 %v1940
    %1970 = vmatprep.subr.mxu0 0.0
    %1971 = vmatpush1.msra.mxu0 %v1941
    %1972 = vmatprep.subr.mxu0 0.0
    %1973 = vmatpush1.msra.mxu0 %v1942
    %1974 = vmatprep.subr.mxu0 0.0
    %1975 = vmatpush1.msra.mxu0 %v1943
    %1976 = vmatprep.subr.mxu0 0.0
    %1977 = vmatpush1.msra.mxu0 %v1944
    %1978 = vmatprep.subr.mxu0 0.0
    %1979 = vmatpush1.msra.mxu0 %v1945
    %1980 = vmatprep.subr.mxu0 0.0
    %1981 = vmatpush1.msra.mxu0 %v1946
    %1982 = vmatprep.subr.mxu0 0.0
    %1983 = vmatpush1.msra.mxu0 %v1947
    %1984 = vmatprep.subr.mxu0 0.0
    %1985 = vmatpush1.msra.mxu0 0.0
    %1986 = vmatprep.subr.mxu0 0.0
    %1987 = vmatpush1.msra.mxu0 0.0
    %1988 = vmatprep.subr.mxu0 0.0
    %1989 = vmatpush1.msra.mxu0 0.0
    %1990 = vmatprep.subr.mxu0 0.0
    %1991 = vmatpush1.msra.mxu0 0.0
    %1992 = vmatprep.subr.mxu0 0.0
    %1993 = vmatpush1.msra.mxu0 0.0
    %1994 = vmatprep.subr.mxu0 0.0
    %1995 = vmatpush1.msra.mxu0 0.0
    %1996 = vmatprep.subr.mxu0 0.0
    %1997 = vmatpush1.msra.mxu0 0.0
    %1998 = vmatprep.subr.mxu0 0.0
    %1999 = vmatpush1.msra.mxu0 0.0
    %2000 = vmatprep.subr.mxu0 0.0
    %2001 = vmatpush1.msra.mxu0 0.0
    %2002 = vmatprep.subr.mxu0 0.0
    %2003 = vmatpush1.msra.mxu0 0.0
    %2004 = vmatprep.subr.mxu0 0.0
    %2005 = vmatpush1.msra.mxu0 0.0
    %2006 = vmatprep.subr.mxu0 0.0
    %2007 = vmatpush1.msra.mxu0 0.0
    %2008 = vmatprep.subr.mxu0 0.0
    %2009 = vmatpush1.msra.mxu0 0.0
    %2010 = vmatprep.subr.mxu0 0.0
    %2011 = vmatpush1.msra.mxu0 0.0
    %2012 = vmatprep.subr.mxu0 0.0
    %2013 = vmatpush1.msra.mxu0 0.0
    %2014 = vmatprep.subr.mxu0 0.0
    %2015 = vmatpush1.msra.mxu0 0.0
    %2016 = vmatprep.subr.mxu0 0.0
    %2017 = vmatpush1.msra.mxu0 0.0
    %2018 = vmatprep.subr.mxu0 0.0
    %2019 = vmatpush1.msra.mxu0 0.0
    %2020 = vmatprep.subr.mxu0 0.0
    %2021 = vmatpush1.msra.mxu0 0.0
    %2022 = vmatprep.subr.mxu0 0.0
    %2023 = vmatpush1.msra.mxu0 0.0
    %2024 = vmatprep.subr.mxu0 0.0
    %2025 = vmatpush1.msra.mxu0 0.0
    %2026 = vmatprep.subr.mxu0 0.0
    %2027 = vmatpush1.msra.mxu0 0.0
    %2028 = vmatprep.subr.mxu0 0.0
    %2029 = vmatpush1.msra.mxu0 0.0
    %2030 = vmatprep.subr.mxu0 0.0
    %2031 = vmatpush1.msra.mxu0 0.0
    %2032 = vmatprep.mubr.f32.mxu0 0.0
    %2033 = vmatmul.mubr.f32.gmra.mrb[0].mxu0 %v1960
    %v2034 = vpop.f32.mrb[0].mxu0
    %v2035 = vadd.f32 0.0, %v2034
    %v2036 = vpop.f32.mrb[0].mxu0
    %2037 = vmatprep.mubr.f32.mxu0 0.0
    %2038 = vmatmul.mubr.f32.gmra.mrb[0].mxu0 %v1962
    %v2039 = vpop.f32.mrb[0].mxu0
    %v2040 = vadd.f32 0.0, %v2039
    %v2041 = vpop.f32.mrb[0].mxu0
    %2042 = vmatprep.mubr.f32.mxu0 0.0
    %2043 = vmatmul.mubr.f32.gmra.mrb[0].mxu0 %v1964
    %v2044 = vpop.f32.mrb[0].mxu0
    %v2045 = vadd.f32 0.0, %v2044
    %v2046 = vpop.f32.mrb[0].mxu0
    %2047 = vmatprep.mubr.f32.mxu0 0.0
    %2048 = vmatmul.mubr.f32.gmra.mrb[0].mxu0 %v1966
    %v2049 = vpop.f32.mrb[0].mxu0
    %v2050 = vadd.f32 0.0, %v2049
    %v2051 = vpop.f32.mrb[0].mxu0
    %2052 = vdwg.mxu0
    %v2053 = vadd.f32 %v1927, %v2035
    %v2054 = vadd.f32 %v1928, %v2040
    %v2055 = vadd.f32 %v1929, %v2045
    %v2056 = vadd.f32 %v1930, %v2050
    %v2057 = vld [vmem:[%s1237 + $0x1] sm:$0xf]
    %v2058 = vld [vmem:[%s1237 + $0x9] sm:$0xf]
    %v2059 = vld [vmem:[%s1237 + $0x11] sm:$0xf]
    %v2060 = vld [vmem:[%s1237 + $0x19] sm:$0xf]
    %v2061 = vld [vmem:[%s1237 + $0x31] sm:$0xf]
    %v2062 = vld [vmem:[%s1237 + $0x39] sm:$0xf]
    %v2063 = vld [vmem:[%s1237 + $0x41] sm:$0xf]
    %v2064 = vld [vmem:[%s1237 + $0x49] sm:$0xf]
    %s2065 = scalar_lea.vmem %s3, 256
    %v2066 = vld [vmem:[%s2065] sm:$0xff]
    %v2067 = vld [vmem:[%s2065 + $0x8] sm:$0xff]
    %v2068 = vld [vmem:[%s2065 + $0x10] sm:$0xff]
    %v2069 = vld [vmem:[%s2065 + $0x18] sm:$0xff]
    %v2070 = vld [vmem:[%s2065 + $0x20] sm:$0xff]
    %v2071 = vld [vmem:[%s2065 + $0x28] sm:$0xff]
    %v2072 = vld [vmem:[%s2065 + $0x30] sm:$0xff]
    %v2073 = vld [vmem:[%s2065 + $0x38] sm:$0xff]
    %v2082 = vcombine.low %v2057, %v2058
    %v2083 = vcombine.low %v2059, %v2060
    %v2084 = vcombine.low %v2061, %v2062
    %v2085 = vcombine.low %v2063, %v2064
    %v2086 = vsel %vm1606, %v2082, 0
    %v2088 = vsel %vm1606, %v2083, 0
    %v2090 = vsel %vm1606, %v2084, 0
    %v2092 = vsel %vm1606, %v2085, 0
    %2094 = vmatprep.subr.mxu0 0.0
    %2095 = vmatpush1.msra.mxu0 %v2066
    %2096 = vmatprep.subr.mxu0 0.0
    %2097 = vmatpush1.msra.mxu0 %v2067
    %2098 = vmatprep.subr.mxu0 0.0
    %2099 = vmatpush1.msra.mxu0 %v2068
    %2100 = vmatprep.subr.mxu0 0.0
    %2101 = vmatpush1.msra.mxu0 %v2069
    %2102 = vmatprep.subr.mxu0 0.0
    %2103 = vmatpush1.msra.mxu0 %v2070
    %2104 = vmatprep.subr.mxu0 0.0
    %2105 = vmatpush1.msra.mxu0 %v2071
    %2106 = vmatprep.subr.mxu0 0.0
    %2107 = vmatpush1.msra.mxu0 %v2072
    %2108 = vmatprep.subr.mxu0 0.0
    %2109 = vmatpush1.msra.mxu0 %v2073
    %2110 = vmatprep.subr.mxu0 0.0
    %2111 = vmatpush1.msra.mxu0 0.0
    %2112 = vmatprep.subr.mxu0 0.0
    %2113 = vmatpush1.msra.mxu0 0.0
    %2114 = vmatprep.subr.mxu0 0.0
    %2115 = vmatpush1.msra.mxu0 0.0
    %2116 = vmatprep.subr.mxu0 0.0
    %2117 = vmatpush1.msra.mxu0 0.0
    %2118 = vmatprep.subr.mxu0 0.0
    %2119 = vmatpush1.msra.mxu0 0.0
    %2120 = vmatprep.subr.mxu0 0.0
    %2121 = vmatpush1.msra.mxu0 0.0
    %2122 = vmatprep.subr.mxu0 0.0
    %2123 = vmatpush1.msra.mxu0 0.0
    %2124 = vmatprep.subr.mxu0 0.0
    %2125 = vmatpush1.msra.mxu0 0.0
    %2126 = vmatprep.subr.mxu0 0.0
    %2127 = vmatpush1.msra.mxu0 0.0
    %2128 = vmatprep.subr.mxu0 0.0
    %2129 = vmatpush1.msra.mxu0 0.0
    %2130 = vmatprep.subr.mxu0 0.0
    %2131 = vmatpush1.msra.mxu0 0.0
    %2132 = vmatprep.subr.mxu0 0.0
    %2133 = vmatpush1.msra.mxu0 0.0
    %2134 = vmatprep.subr.mxu0 0.0
    %2135 = vmatpush1.msra.mxu0 0.0
    %2136 = vmatprep.subr.mxu0 0.0
    %2137 = vmatpush1.msra.mxu0 0.0
    %2138 = vmatprep.subr.mxu0 0.0
    %2139 = vmatpush1.msra.mxu0 0.0
    %2140 = vmatprep.subr.mxu0 0.0
    %2141 = vmatpush1.msra.mxu0 0.0
    %2142 = vmatprep.subr.mxu0 0.0
    %2143 = vmatpush1.msra.mxu0 0.0
    %2144 = vmatprep.subr.mxu0 0.0
    %2145 = vmatpush1.msra.mxu0 0.0
    %2146 = vmatprep.subr.mxu0 0.0
    %2147 = vmatpush1.msra.mxu0 0.0
    %2148 = vmatprep.subr.mxu0 0.0
    %2149 = vmatpush1.msra.mxu0 0.0
    %2150 = vmatprep.subr.mxu0 0.0
    %2151 = vmatpush1.msra.mxu0 0.0
    %2152 = vmatprep.subr.mxu0 0.0
    %2153 = vmatpush1.msra.mxu0 0.0
    %2154 = vmatprep.subr.mxu0 0.0
    %2155 = vmatpush1.msra.mxu0 0.0
    %2156 = vmatprep.subr.mxu0 0.0
    %2157 = vmatpush1.msra.mxu0 0.0
    %2158 = vmatprep.mubr.f32.mxu0 0.0
    %2159 = vmatmul.mubr.f32.gmra.mrb[0].mxu0 %v2086
    %v2160 = vpop.f32.mrb[0].mxu0
    %v2161 = vadd.f32 0.0, %v2160
    %v2162 = vpop.f32.mrb[0].mxu0
    %2163 = vmatprep.mubr.f32.mxu0 0.0
    %2164 = vmatmul.mubr.f32.gmra.mrb[0].mxu0 %v2088
    %v2165 = vpop.f32.mrb[0].mxu0
    %v2166 = vadd.f32 0.0, %v2165
    %v2167 = vpop.f32.mrb[0].mxu0
    %2168 = vmatprep.mubr.f32.mxu0 0.0
    %2169 = vmatmul.mubr.f32.gmra.mrb[0].mxu0 %v2090
    %v2170 = vpop.f32.mrb[0].mxu0
    %v2171 = vadd.f32 0.0, %v2170
    %v2172 = vpop.f32.mrb[0].mxu0
    %2173 = vmatprep.mubr.f32.mxu0 0.0
    %2174 = vmatmul.mubr.f32.gmra.mrb[0].mxu0 %v2092
    %v2175 = vpop.f32.mrb[0].mxu0
    %v2176 = vadd.f32 0.0, %v2175
    %v2177 = vpop.f32.mrb[0].mxu0
    %2178 = vdwg.mxu0
    %v2179 = vadd.f32 %v2053, %v2161
    %v2180 = vadd.f32 %v2054, %v2166
    %v2181 = vadd.f32 %v2055, %v2171
    %v2182 = vadd.f32 %v2056, %v2176
    %v2183 = vld [vmem:[%s1237 + $0x2] sm:$0xf]
    %v2184 = vld [vmem:[%s1237 + $0xa] sm:$0xf]
    %v2185 = vld [vmem:[%s1237 + $0x12] sm:$0xf]
    %v2186 = vld [vmem:[%s1237 + $0x1a] sm:$0xf]
    %v2187 = vld [vmem:[%s1237 + $0x32] sm:$0xf]
    %v2188 = vld [vmem:[%s1237 + $0x3a] sm:$0xf]
    %v2189 = vld [vmem:[%s1237 + $0x42] sm:$0xf]
    %v2190 = vld [vmem:[%s1237 + $0x4a] sm:$0xf]
    %s2191 = scalar_lea.vmem %s3, 320
    %v2192 = vld [vmem:[%s2191] sm:$0xff]
    %v2193 = vld [vmem:[%s2191 + $0x8] sm:$0xff]
    %v2194 = vld [vmem:[%s2191 + $0x10] sm:$0xff]
    %v2195 = vld [vmem:[%s2191 + $0x18] sm:$0xff]
    %v2196 = vld [vmem:[%s2191 + $0x20] sm:$0xff]
    %v2197 = vld [vmem:[%s2191 + $0x28] sm:$0xff]
    %v2198 = vld [vmem:[%s2191 + $0x30] sm:$0xff]
    %v2199 = vld [vmem:[%s2191 + $0x38] sm:$0xff]
    %v2208 = vcombine.low %v2183, %v2184
    %v2209 = vcombine.low %v2185, %v2186
    %v2210 = vcombine.low %v2187, %v2188
    %v2211 = vcombine.low %v2189, %v2190
    %v2212 = vsel %vm1606, %v2208, 0
    %v2214 = vsel %vm1606, %v2209, 0
    %v2216 = vsel %vm1606, %v2210, 0
    %v2218 = vsel %vm1606, %v2211, 0
    %2220 = vmatprep.subr.mxu0 0.0
    %2221 = vmatpush1.msra.mxu0 %v2192
    %2222 = vmatprep.subr.mxu0 0.0
    %2223 = vmatpush1.msra.mxu0 %v2193
    %2224 = vmatprep.subr.mxu0 0.0
    %2225 = vmatpush1.msra.mxu0 %v2194
    %2226 = vmatprep.subr.mxu0 0.0
    %2227 = vmatpush1.msra.mxu0 %v2195
    %2228 = vmatprep.subr.mxu0 0.0
    %2229 = vmatpush1.msra.mxu0 %v2196
    %2230 = vmatprep.subr.mxu0 0.0
    %2231 = vmatpush1.msra.mxu0 %v2197
    %2232 = vmatprep.subr.mxu0 0.0
    %2233 = vmatpush1.msra.mxu0 %v2198
    %2234 = vmatprep.subr.mxu0 0.0
    %2235 = vmatpush1.msra.mxu0 %v2199
    %2236 = vmatprep.subr.mxu0 0.0
    %2237 = vmatpush1.msra.mxu0 0.0
    %2238 = vmatprep.subr.mxu0 0.0
    %2239 = vmatpush1.msra.mxu0 0.0
    %2240 = vmatprep.subr.mxu0 0.0
    %2241 = vmatpush1.msra.mxu0 0.0
    %2242 = vmatprep.subr.mxu0 0.0
    %2243 = vmatpush1.msra.mxu0 0.0
    %2244 = vmatprep.subr.mxu0 0.0
    %2245 = vmatpush1.msra.mxu0 0.0
    %2246 = vmatprep.subr.mxu0 0.0
    %2247 = vmatpush1.msra.mxu0 0.0
    %2248 = vmatprep.subr.mxu0 0.0
    %2249 = vmatpush1.msra.mxu0 0.0
    %2250 = vmatprep.subr.mxu0 0.0
    %2251 = vmatpush1.msra.mxu0 0.0
    %2252 = vmatprep.subr.mxu0 0.0
    %2253 = vmatpush1.msra.mxu0 0.0
    %2254 = vmatprep.subr.mxu0 0.0
    %2255 = vmatpush1.msra.mxu0 0.0
    %2256 = vmatprep.subr.mxu0 0.0
    %2257 = vmatpush1.msra.mxu0 0.0
    %2258 = vmatprep.subr.mxu0 0.0
    %2259 = vmatpush1.msra.mxu0 0.0
    %2260 = vmatprep.subr.mxu0 0.0
    %2261 = vmatpush1.msra.mxu0 0.0
    %2262 = vmatprep.subr.mxu0 0.0
    %2263 = vmatpush1.msra.mxu0 0.0
    %2264 = vmatprep.subr.mxu0 0.0
    %2265 = vmatpush1.msra.mxu0 0.0
    %2266 = vmatprep.subr.mxu0 0.0
    %2267 = vmatpush1.msra.mxu0 0.0
    %2268 = vmatprep.subr.mxu0 0.0
    %2269 = vmatpush1.msra.mxu0 0.0
    %2270 = vmatprep.subr.mxu0 0.0
    %2271 = vmatpush1.msra.mxu0 0.0
    %2272 = vmatprep.subr.mxu0 0.0
    %2273 = vmatpush1.msra.mxu0 0.0
    %2274 = vmatprep.subr.mxu0 0.0
    %2275 = vmatpush1.msra.mxu0 0.0
    %2276 = vmatprep.subr.mxu0 0.0
    %2277 = vmatpush1.msra.mxu0 0.0
    %2278 = vmatprep.subr.mxu0 0.0
    %2279 = vmatpush1.msra.mxu0 0.0
    %2280 = vmatprep.subr.mxu0 0.0
    %2281 = vmatpush1.msra.mxu0 0.0
    %2282 = vmatprep.subr.mxu0 0.0
    %2283 = vmatpush1.msra.mxu0 0.0
    %2284 = vmatprep.mubr.f32.mxu0 0.0
    %2285 = vmatmul.mubr.f32.gmra.mrb[0].mxu0 %v2212
    %v2286 = vpop.f32.mrb[0].mxu0
    %v2287 = vadd.f32 0.0, %v2286
    %v2288 = vpop.f32.mrb[0].mxu0
    %2289 = vmatprep.mubr.f32.mxu0 0.0
    %2290 = vmatmul.mubr.f32.gmra.mrb[0].mxu0 %v2214
    %v2291 = vpop.f32.mrb[0].mxu0
    %v2292 = vadd.f32 0.0, %v2291
    %v2293 = vpop.f32.mrb[0].mxu0
    %2294 = vmatprep.mubr.f32.mxu0 0.0
    %2295 = vmatmul.mubr.f32.gmra.mrb[0].mxu0 %v2216
    %v2296 = vpop.f32.mrb[0].mxu0
    %v2297 = vadd.f32 0.0, %v2296
    %v2298 = vpop.f32.mrb[0].mxu0
    %2299 = vmatprep.mubr.f32.mxu0 0.0
    %2300 = vmatmul.mubr.f32.gmra.mrb[0].mxu0 %v2218
    %v2301 = vpop.f32.mrb[0].mxu0
    %v2302 = vadd.f32 0.0, %v2301
    %v2303 = vpop.f32.mrb[0].mxu0
    %2304 = vdwg.mxu0
    %v2305 = vadd.f32 %v2179, %v2287
    %v2306 = vadd.f32 %v2180, %v2292
    %v2307 = vadd.f32 %v2181, %v2297
    %v2308 = vadd.f32 %v2182, %v2302
    %v2309 = vld [vmem:[%s1325] sm:$0xf]
    %v2310 = vld [vmem:[%s1325 + $0x8] sm:$0xf]
    %v2311 = vld [vmem:[%s1325 + $0x10] sm:$0xf]
    %v2312 = vld [vmem:[%s1325 + $0x18] sm:$0xf]
    %v2313 = vld [vmem:[%s1325 + $0x30] sm:$0xf]
    %v2314 = vld [vmem:[%s1325 + $0x38] sm:$0xf]
    %v2315 = vld [vmem:[%s1325 + $0x40] sm:$0xf]
    %v2316 = vld [vmem:[%s1325 + $0x48] sm:$0xf]
    %s2317 = scalar_lea.vmem %s3, 384
    %v2318 = vld [vmem:[%s2317] sm:$0xff]
    %v2319 = vld [vmem:[%s2317 + $0x8] sm:$0xff]
    %v2320 = vld [vmem:[%s2317 + $0x10] sm:$0xff]
    %v2321 = vld [vmem:[%s2317 + $0x18] sm:$0xff]
    %v2322 = vld [vmem:[%s2317 + $0x20] sm:$0xff]
    %v2323 = vld [vmem:[%s2317 + $0x28] sm:$0xff]
    %v2324 = vld [vmem:[%s2317 + $0x30] sm:$0xff]
    %v2325 = vld [vmem:[%s2317 + $0x38] sm:$0xff]
    %v2334 = vcombine.low %v2309, %v2310
    %v2335 = vcombine.low %v2311, %v2312
    %v2336 = vcombine.low %v2313, %v2314
    %v2337 = vcombine.low %v2315, %v2316
    %v2338 = vsel %vm1606, %v2334, 0
    %v2340 = vsel %vm1606, %v2335, 0
    %v2342 = vsel %vm1606, %v2336, 0
    %v2344 = vsel %vm1606, %v2337, 0
    %2346 = vmatprep.subr.mxu0 0.0
    %2347 = vmatpush1.msra.mxu0 %v2318
    %2348 = vmatprep.subr.mxu0 0.0
    %2349 = vmatpush1.msra.mxu0 %v2319
    %2350 = vmatprep.subr.mxu0 0.0
    %2351 = vmatpush1.msra.mxu0 %v2320
    %2352 = vmatprep.subr.mxu0 0.0
    %2353 = vmatpush1.msra.mxu0 %v2321
    %2354 = vmatprep.subr.mxu0 0.0
    %2355 = vmatpush1.msra.mxu0 %v2322
    %2356 = vmatprep.subr.mxu0 0.0
    %2357 = vmatpush1.msra.mxu0 %v2323
    %2358 = vmatprep.subr.mxu0 0.0
    %2359 = vmatpush1.msra.mxu0 %v2324
    %2360 = vmatprep.subr.mxu0 0.0
    %2361 = vmatpush1.msra.mxu0 %v2325
    %2362 = vmatprep.subr.mxu0 0.0
    %2363 = vmatpush1.msra.mxu0 0.0
    %2364 = vmatprep.subr.mxu0 0.0
    %2365 = vmatpush1.msra.mxu0 0.0
    %2366 = vmatprep.subr.mxu0 0.0
    %2367 = vmatpush1.msra.mxu0 0.0
    %2368 = vmatprep.subr.mxu0 0.0
    %2369 = vmatpush1.msra.mxu0 0.0
    %2370 = vmatprep.subr.mxu0 0.0
    %2371 = vmatpush1.msra.mxu0 0.0
    %2372 = vmatprep.subr.mxu0 0.0
    %2373 = vmatpush1.msra.mxu0 0.0
    %2374 = vmatprep.subr.mxu0 0.0
    %2375 = vmatpush1.msra.mxu0 0.0
    %2376 = vmatprep.subr.mxu0 0.0
    %2377 = vmatpush1.msra.mxu0 0.0
    %2378 = vmatprep.subr.mxu0 0.0
    %2379 = vmatpush1.msra.mxu0 0.0
    %2380 = vmatprep.subr.mxu0 0.0
    %2381 = vmatpush1.msra.mxu0 0.0
    %2382 = vmatprep.subr.mxu0 0.0
    %2383 = vmatpush1.msra.mxu0 0.0
    %2384 = vmatprep.subr.mxu0 0.0
    %2385 = vmatpush1.msra.mxu0 0.0
    %2386 = vmatprep.subr.mxu0 0.0
    %2387 = vmatpush1.msra.mxu0 0.0
    %2388 = vmatprep.subr.mxu0 0.0
    %2389 = vmatpush1.msra.mxu0 0.0
    %2390 = vmatprep.subr.mxu0 0.0
    %2391 = vmatpush1.msra.mxu0 0.0
    %2392 = vmatprep.subr.mxu0 0.0
    %2393 = vmatpush1.msra.mxu0 0.0
    %2394 = vmatprep.subr.mxu0 0.0
    %2395 = vmatpush1.msra.mxu0 0.0
    %2396 = vmatprep.subr.mxu0 0.0
    %2397 = vmatpush1.msra.mxu0 0.0
    %2398 = vmatprep.subr.mxu0 0.0
    %2399 = vmatpush1.msra.mxu0 0.0
    %2400 = vmatprep.subr.mxu0 0.0
    %2401 = vmatpush1.msra.mxu0 0.0
    %2402 = vmatprep.subr.mxu0 0.0
    %2403 = vmatpush1.msra.mxu0 0.0
    %2404 = vmatprep.subr.mxu0 0.0
    %2405 = vmatpush1.msra.mxu0 0.0
    %2406 = vmatprep.subr.mxu0 0.0
    %2407 = vmatpush1.msra.mxu0 0.0
    %2408 = vmatprep.subr.mxu0 0.0
    %2409 = vmatpush1.msra.mxu0 0.0
    %2410 = vmatprep.mubr.f32.mxu0 0.0
    %2411 = vmatmul.mubr.f32.gmra.mrb[0].mxu0 %v2338
    %v2412 = vpop.f32.mrb[0].mxu0
    %v2413 = vadd.f32 0.0, %v2412
    %v2414 = vpop.f32.mrb[0].mxu0
    %2415 = vmatprep.mubr.f32.mxu0 0.0
    %2416 = vmatmul.mubr.f32.gmra.mrb[0].mxu0 %v2340
    %v2417 = vpop.f32.mrb[0].mxu0
    %v2418 = vadd.f32 0.0, %v2417
    %v2419 = vpop.f32.mrb[0].mxu0
    %2420 = vmatprep.mubr.f32.mxu0 0.0
    %2421 = vmatmul.mubr.f32.gmra.mrb[0].mxu0 %v2342
    %v2422 = vpop.f32.mrb[0].mxu0
    %v2423 = vadd.f32 0.0, %v2422
    %v2424 = vpop.f32.mrb[0].mxu0
    %2425 = vmatprep.mubr.f32.mxu0 0.0
    %2426 = vmatmul.mubr.f32.gmra.mrb[0].mxu0 %v2344
    %v2427 = vpop.f32.mrb[0].mxu0
    %v2428 = vadd.f32 0.0, %v2427
    %v2429 = vpop.f32.mrb[0].mxu0
    %2430 = vdwg.mxu0
    %v2431 = vadd.f32 %v2305, %v2413
    %v2432 = vadd.f32 %v2306, %v2418
    %v2433 = vadd.f32 %v2307, %v2423
    %v2434 = vadd.f32 %v2308, %v2428
    %v2435 = vld [vmem:[%s1325 + $0x1] sm:$0xf]
    %v2436 = vld [vmem:[%s1325 + $0x9] sm:$0xf]
    %v2437 = vld [vmem:[%s1325 + $0x11] sm:$0xf]
    %v2438 = vld [vmem:[%s1325 + $0x19] sm:$0xf]
    %v2439 = vld [vmem:[%s1325 + $0x31] sm:$0xf]
    %v2440 = vld [vmem:[%s1325 + $0x39] sm:$0xf]
    %v2441 = vld [vmem:[%s1325 + $0x41] sm:$0xf]
    %v2442 = vld [vmem:[%s1325 + $0x49] sm:$0xf]
    %s2443 = scalar_lea.vmem %s3, 448
    %v2444 = vld [vmem:[%s2443] sm:$0xff]
    %v2445 = vld [vmem:[%s2443 + $0x8] sm:$0xff]
    %v2446 = vld [vmem:[%s2443 + $0x10] sm:$0xff]
    %v2447 = vld [vmem:[%s2443 + $0x18] sm:$0xff]
    %v2448 = vld [vmem:[%s2443 + $0x20] sm:$0xff]
    %v2449 = vld [vmem:[%s2443 + $0x28] sm:$0xff]
    %v2450 = vld [vmem:[%s2443 + $0x30] sm:$0xff]
    %v2451 = vld [vmem:[%s2443 + $0x38] sm:$0xff]
    %v2460 = vcombine.low %v2435, %v2436
    %v2461 = vcombine.low %v2437, %v2438
    %v2462 = vcombine.low %v2439, %v2440
    %v2463 = vcombine.low %v2441, %v2442
    %v2464 = vsel %vm1606, %v2460, 0
    %v2466 = vsel %vm1606, %v2461, 0
    %v2468 = vsel %vm1606, %v2462, 0
    %v2470 = vsel %vm1606, %v2463, 0
    %2472 = vmatprep.subr.mxu0 0.0
    %2473 = vmatpush1.msra.mxu0 %v2444
    %2474 = vmatprep.subr.mxu0 0.0
    %2475 = vmatpush1.msra.mxu0 %v2445
    %2476 = vmatprep.subr.mxu0 0.0
    %2477 = vmatpush1.msra.mxu0 %v2446
    %2478 = vmatprep.subr.mxu0 0.0
    %2479 = vmatpush1.msra.mxu0 %v2447
    %2480 = vmatprep.subr.mxu0 0.0
    %2481 = vmatpush1.msra.mxu0 %v2448
    %2482 = vmatprep.subr.mxu0 0.0
    %2483 = vmatpush1.msra.mxu0 %v2449
    %2484 = vmatprep.subr.mxu0 0.0
    %2485 = vmatpush1.msra.mxu0 %v2450
    %2486 = vmatprep.subr.mxu0 0.0
    %2487 = vmatpush1.msra.mxu0 %v2451
    %2488 = vmatprep.subr.mxu0 0.0
    %2489 = vmatpush1.msra.mxu0 0.0
    %2490 = vmatprep.subr.mxu0 0.0
    %2491 = vmatpush1.msra.mxu0 0.0
    %2492 = vmatprep.subr.mxu0 0.0
    %2493 = vmatpush1.msra.mxu0 0.0
    %2494 = vmatprep.subr.mxu0 0.0
    %2495 = vmatpush1.msra.mxu0 0.0
    %2496 = vmatprep.subr.mxu0 0.0
    %2497 = vmatpush1.msra.mxu0 0.0
    %2498 = vmatprep.subr.mxu0 0.0
    %2499 = vmatpush1.msra.mxu0 0.0
    %2500 = vmatprep.subr.mxu0 0.0
    %2501 = vmatpush1.msra.mxu0 0.0
    %2502 = vmatprep.subr.mxu0 0.0
    %2503 = vmatpush1.msra.mxu0 0.0
    %2504 = vmatprep.subr.mxu0 0.0
    %2505 = vmatpush1.msra.mxu0 0.0
    %2506 = vmatprep.subr.mxu0 0.0
    %2507 = vmatpush1.msra.mxu0 0.0
    %2508 = vmatprep.subr.mxu0 0.0
    %2509 = vmatpush1.msra.mxu0 0.0
    %2510 = vmatprep.subr.mxu0 0.0
    %2511 = vmatpush1.msra.mxu0 0.0
    %2512 = vmatprep.subr.mxu0 0.0
    %2513 = vmatpush1.msra.mxu0 0.0
    %2514 = vmatprep.subr.mxu0 0.0
    %2515 = vmatpush1.msra.mxu0 0.0
    %2516 = vmatprep.subr.mxu0 0.0
    %2517 = vmatpush1.msra.mxu0 0.0
    %2518 = vmatprep.subr.mxu0 0.0
    %2519 = vmatpush1.msra.mxu0 0.0
    %2520 = vmatprep.subr.mxu0 0.0
    %2521 = vmatpush1.msra.mxu0 0.0
    %2522 = vmatprep.subr.mxu0 0.0
    %2523 = vmatpush1.msra.mxu0 0.0
    %2524 = vmatprep.subr.mxu0 0.0
    %2525 = vmatpush1.msra.mxu0 0.0
    %2526 = vmatprep.subr.mxu0 0.0
    %2527 = vmatpush1.msra.mxu0 0.0
    %2528 = vmatprep.subr.mxu0 0.0
    %2529 = vmatpush1.msra.mxu0 0.0
    %2530 = vmatprep.subr.mxu0 0.0
    %2531 = vmatpush1.msra.mxu0 0.0
    %2532 = vmatprep.subr.mxu0 0.0
    %2533 = vmatpush1.msra.mxu0 0.0
    %2534 = vmatprep.subr.mxu0 0.0
    %2535 = vmatpush1.msra.mxu0 0.0
    %2536 = vmatprep.mubr.f32.mxu0 0.0
    %2537 = vmatmul.mubr.f32.gmra.mrb[0].mxu0 %v2464
    %v2538 = vpop.f32.mrb[0].mxu0
    %v2539 = vadd.f32 0.0, %v2538
    %v2540 = vpop.f32.mrb[0].mxu0
    %2541 = vmatprep.mubr.f32.mxu0 0.0
    %2542 = vmatmul.mubr.f32.gmra.mrb[0].mxu0 %v2466
    %v2543 = vpop.f32.mrb[0].mxu0
    %v2544 = vadd.f32 0.0, %v2543
    %v2545 = vpop.f32.mrb[0].mxu0
    %2546 = vmatprep.mubr.f32.mxu0 0.0
    %2547 = vmatmul.mubr.f32.gmra.mrb[0].mxu0 %v2468
    %v2548 = vpop.f32.mrb[0].mxu0
    %v2549 = vadd.f32 0.0, %v2548
    %v2550 = vpop.f32.mrb[0].mxu0
    %2551 = vmatprep.mubr.f32.mxu0 0.0
    %2552 = vmatmul.mubr.f32.gmra.mrb[0].mxu0 %v2470
    %v2553 = vpop.f32.mrb[0].mxu0
    %v2554 = vadd.f32 0.0, %v2553
    %v2555 = vpop.f32.mrb[0].mxu0
    %2556 = vdwg.mxu0
    %v2557 = vadd.f32 %v2431, %v2539
    %v2558 = vadd.f32 %v2432, %v2544
    %v2559 = vadd.f32 %v2433, %v2549
    %v2560 = vadd.f32 %v2434, %v2554
    %v2561 = vld [vmem:[%s1325 + $0x2] sm:$0xf]
    %v2562 = vld [vmem:[%s1325 + $0xa] sm:$0xf]
    %v2563 = vld [vmem:[%s1325 + $0x12] sm:$0xf]
    %v2564 = vld [vmem:[%s1325 + $0x1a] sm:$0xf]
    %v2565 = vld [vmem:[%s1325 + $0x32] sm:$0xf]
    %v2566 = vld [vmem:[%s1325 + $0x3a] sm:$0xf]
    %v2567 = vld [vmem:[%s1325 + $0x42] sm:$0xf]
    %v2568 = vld [vmem:[%s1325 + $0x4a] sm:$0xf]
    %s2569 = scalar_lea.vmem %s3, 512
    %v2570 = vld [vmem:[%s2569] sm:$0xff]
    %v2571 = vld [vmem:[%s2569 + $0x8] sm:$0xff]
    %v2572 = vld [vmem:[%s2569 + $0x10] sm:$0xff]
    %v2573 = vld [vmem:[%s2569 + $0x18] sm:$0xff]
    %v2574 = vld [vmem:[%s2569 + $0x20] sm:$0xff]
    %v2575 = vld [vmem:[%s2569 + $0x28] sm:$0xff]
    %v2576 = vld [vmem:[%s2569 + $0x30] sm:$0xff]
    %v2577 = vld [vmem:[%s2569 + $0x38] sm:$0xff]
    %v2586 = vcombine.low %v2561, %v2562
    %v2587 = vcombine.low %v2563, %v2564
    %v2588 = vcombine.low %v2565, %v2566
    %v2589 = vcombine.low %v2567, %v2568
    %v2590 = vsel %vm1606, %v2586, 0
    %v2592 = vsel %vm1606, %v2587, 0
    %v2594 = vsel %vm1606, %v2588, 0
    %v2596 = vsel %vm1606, %v2589, 0
    %2598 = vmatprep.subr.mxu0 0.0
    %2599 = vmatpush1.msra.mxu0 %v2570
    %2600 = vmatprep.subr.mxu0 0.0
    %2601 = vmatpush1.msra.mxu0 %v2571
    %2602 = vmatprep.subr.mxu0 0.0
    %2603 = vmatpush1.msra.mxu0 %v2572
    %2604 = vmatprep.subr.mxu0 0.0
    %2605 = vmatpush1.msra.mxu0 %v2573
    %2606 = vmatprep.subr.mxu0 0.0
    %2607 = vmatpush1.msra.mxu0 %v2574
    %2608 = vmatprep.subr.mxu0 0.0
    %2609 = vmatpush1.msra.mxu0 %v2575
    %2610 = vmatprep.subr.mxu0 0.0
    %2611 = vmatpush1.msra.mxu0 %v2576
    %2612 = vmatprep.subr.mxu0 0.0
    %2613 = vmatpush1.msra.mxu0 %v2577
    %2614 = vmatprep.subr.mxu0 0.0
    %2615 = vmatpush1.msra.mxu0 0.0
    %2616 = vmatprep.subr.mxu0 0.0
    %2617 = vmatpush1.msra.mxu0 0.0
    %2618 = vmatprep.subr.mxu0 0.0
    %2619 = vmatpush1.msra.mxu0 0.0
    %2620 = vmatprep.subr.mxu0 0.0
    %2621 = vmatpush1.msra.mxu0 0.0
    %2622 = vmatprep.subr.mxu0 0.0
    %2623 = vmatpush1.msra.mxu0 0.0
    %2624 = vmatprep.subr.mxu0 0.0
    %2625 = vmatpush1.msra.mxu0 0.0
    %2626 = vmatprep.subr.mxu0 0.0
    %2627 = vmatpush1.msra.mxu0 0.0
    %2628 = vmatprep.subr.mxu0 0.0
    %2629 = vmatpush1.msra.mxu0 0.0
    %2630 = vmatprep.subr.mxu0 0.0
    %2631 = vmatpush1.msra.mxu0 0.0
    %2632 = vmatprep.subr.mxu0 0.0
    %2633 = vmatpush1.msra.mxu0 0.0
    %2634 = vmatprep.subr.mxu0 0.0
    %2635 = vmatpush1.msra.mxu0 0.0
    %2636 = vmatprep.subr.mxu0 0.0
    %2637 = vmatpush1.msra.mxu0 0.0
    %2638 = vmatprep.subr.mxu0 0.0
    %2639 = vmatpush1.msra.mxu0 0.0
    %2640 = vmatprep.subr.mxu0 0.0
    %2641 = vmatpush1.msra.mxu0 0.0
    %2642 = vmatprep.subr.mxu0 0.0
    %2643 = vmatpush1.msra.mxu0 0.0
    %2644 = vmatprep.subr.mxu0 0.0
    %2645 = vmatpush1.msra.mxu0 0.0
    %2646 = vmatprep.subr.mxu0 0.0
    %2647 = vmatpush1.msra.mxu0 0.0
    %2648 = vmatprep.subr.mxu0 0.0
    %2649 = vmatpush1.msra.mxu0 0.0
    %2650 = vmatprep.subr.mxu0 0.0
    %2651 = vmatpush1.msra.mxu0 0.0
    %2652 = vmatprep.subr.mxu0 0.0
    %2653 = vmatpush1.msra.mxu0 0.0
    %2654 = vmatprep.subr.mxu0 0.0
    %2655 = vmatpush1.msra.mxu0 0.0
    %2656 = vmatprep.subr.mxu0 0.0
    %2657 = vmatpush1.msra.mxu0 0.0
    %2658 = vmatprep.subr.mxu0 0.0
    %2659 = vmatpush1.msra.mxu0 0.0
    %2660 = vmatprep.subr.mxu0 0.0
    %2661 = vmatpush1.msra.mxu0 0.0
    %2662 = vmatprep.mubr.f32.mxu0 0.0
    %2663 = vmatmul.mubr.f32.gmra.mrb[0].mxu0 %v2590
    %v2664 = vpop.f32.mrb[0].mxu0
    %v2665 = vadd.f32 0.0, %v2664
    %v2666 = vpop.f32.mrb[0].mxu0
    %2667 = vmatprep.mubr.f32.mxu0 0.0
    %2668 = vmatmul.mubr.f32.gmra.mrb[0].mxu0 %v2592
    %v2669 = vpop.f32.mrb[0].mxu0
    %v2670 = vadd.f32 0.0, %v2669
    %v2671 = vpop.f32.mrb[0].mxu0
    %2672 = vmatprep.mubr.f32.mxu0 0.0
    %2673 = vmatmul.mubr.f32.gmra.mrb[0].mxu0 %v2594
    %v2674 = vpop.f32.mrb[0].mxu0
    %v2675 = vadd.f32 0.0, %v2674
    %v2676 = vpop.f32.mrb[0].mxu0
    %2677 = vmatprep.mubr.f32.mxu0 0.0
    %2678 = vmatmul.mubr.f32.gmra.mrb[0].mxu0 %v2596
    %v2679 = vpop.f32.mrb[0].mxu0
    %v2680 = vadd.f32 0.0, %v2679
    %v2681 = vpop.f32.mrb[0].mxu0
    %2682 = vdwg.mxu0
    %v2683 = vadd.f32 %v2557, %v2665
    %v2684 = vadd.f32 %v2558, %v2670
    %v2685 = vadd.f32 %v2559, %v2675
    %v2686 = vadd.f32 %v2560, %v2680
    %v2687 = vld [vmem:[%s4] sm:$0x1]
    %v2689 = vlaneseq
    %v2690 = vshrl.u32 %v2689, 7
    %v2691 = vsub.s32 0, %v2690
    %v2692 = vrot.slane %v2687, %v2691
    %v2694 = vadd.f32 %v2683, %v2692
    %v2695 = vadd.f32 %v2684, %v2692
    %v2696 = vadd.f32 %v2685, %v2692
    %v2697 = vadd.f32 %v2686, %v2692
    %v2698 = vmax.f32 %v2694, 0.0
    %v2699 = vmax.f32 %v2695, 0.0
    %v2700 = vmax.f32 %v2696, 0.0
    %v2701 = vmax.f32 %v2697, 0.0
    %2702 = vst [vmem:[#allocation3] sm:$0x3f] 0.0
    %2703 = vst [vmem:[#allocation3 + $0x8] sm:$0x3f] 0.0
    %2704 = vst [vmem:[#allocation3 + $0x10] sm:$0x3f] 0.0
    %2705 = vst [vmem:[#allocation3 + $0x18] sm:$0x3f] 0.0
    %2706 = vst [vmem:[#allocation3 + $0x20] sm:$0x3f] 0.0
    %2707 = vst [vmem:[#allocation3 + $0x28] sm:$0x3f] 0.0
    %2708 = vst [vmem:[#allocation3 + $0x30] sm:$0x3f] 0.0
    %2709 = vst [vmem:[#allocation3 + $0x38] sm:$0x3f] 0.0
    %2710 = vst [vmem:[#allocation3 + $0x40] sm:$0x3f] 0.0
    %2711 = vst [vmem:[#allocation3 + $0x48] sm:$0x3f] 0.0
    %2712 = vst [vmem:[#allocation3 + $0x50] sm:$0x3f] 0.0
    %2713 = vst [vmem:[#allocation3 + $0x58] sm:$0x3f] 0.0
    %v2718 = vcombine.high %v2698, %v2698
    %v2719 = vcombine.high %v2699, %v2699
    %v2720 = vcombine.high %v2700, %v2700
    %v2721 = vcombine.high %v2701, %v2701
    %s2726 = scalar_lea.vmem [#allocation3], 8
    %2727 = vst [vmem:[%s2726 + $0x1] sm:$0xf] %v2698
    %2728 = vst [vmem:[%s2726 + $0x9] sm:$0xf] %v2718
    %2729 = vst [vmem:[%s2726 + $0x11] sm:$0xf] %v2699
    %2730 = vst [vmem:[%s2726 + $0x19] sm:$0xf] %v2719
    %2731 = vst [vmem:[%s2726 + $0x31] sm:$0xf] %v2700
    %2732 = vst [vmem:[%s2726 + $0x39] sm:$0xf] %v2720
    %2733 = vst [vmem:[%s2726 + $0x41] sm:$0xf] %v2701
    %2734 = vst [vmem:[%s2726 + $0x49] sm:$0xf] %v2721
    %v2735 = vld [vmem:[#allocation3] sm:$0xf]
    %v2736 = vld [vmem:[#allocation3 + $0x8] sm:$0xf]
    %v2737 = vld [vmem:[#allocation3 + $0x10] sm:$0xf]
    %v2738 = vld [vmem:[#allocation3 + $0x18] sm:$0xf]
    %v2739 = vld [vmem:[#allocation3 + $0x30] sm:$0xf]
    %v2740 = vld [vmem:[#allocation3 + $0x38] sm:$0xf]
    %v2741 = vld [vmem:[#allocation3 + $0x40] sm:$0xf]
    %v2742 = vld [vmem:[#allocation3 + $0x48] sm:$0xf]
    %v2743 = vld [vmem:[%s5] sm:$0xff]
    %v2744 = vld [vmem:[%s5 + $0x8] sm:$0xff]
    %v2745 = vld [vmem:[%s5 + $0x10] sm:$0xff]
    %v2746 = vld [vmem:[%s5 + $0x18] sm:$0xff]
    %v2747 = vld [vmem:[%s5 + $0x20] sm:$0xff]
    %v2748 = vld [vmem:[%s5 + $0x28] sm:$0xff]
    %v2749 = vld [vmem:[%s5 + $0x30] sm:$0xff]
    %v2750 = vld [vmem:[%s5 + $0x38] sm:$0xff]
    %v2751 = vld [vmem:[%s5 + $0x40] sm:$0xff]
    %v2752 = vld [vmem:[%s5 + $0x48] sm:$0xff]
    %v2753 = vld [vmem:[%s5 + $0x50] sm:$0xff]
    %v2754 = vld [vmem:[%s5 + $0x58] sm:$0xff]
    %v2755 = vld [vmem:[%s5 + $0x60] sm:$0xff]
    %v2756 = vld [vmem:[%s5 + $0x68] sm:$0xff]
    %v2757 = vld [vmem:[%s5 + $0x70] sm:$0xff]
    %v2758 = vld [vmem:[%s5 + $0x78] sm:$0xff]
    %v2759 = vld [vmem:[%s5 + $0x80] sm:$0xff]
    %v2760 = vld [vmem:[%s5 + $0x88] sm:$0xff]
    %v2761 = vld [vmem:[%s5 + $0x90] sm:$0xff]
    %v2762 = vld [vmem:[%s5 + $0x98] sm:$0xff]
    %v2763 = vld [vmem:[%s5 + $0xa0] sm:$0xff]
    %v2764 = vld [vmem:[%s5 + $0xa8] sm:$0xff]
    %v2765 = vld [vmem:[%s5 + $0xb0] sm:$0xff]
    %v2766 = vld [vmem:[%s5 + $0xb8] sm:$0xff]
    %v2767 = vld [vmem:[%s5 + $0xc0] sm:$0xff]
    %v2768 = vld [vmem:[%s5 + $0xc8] sm:$0xff]
    %v2769 = vld [vmem:[%s5 + $0xd0] sm:$0xff]
    %v2770 = vld [vmem:[%s5 + $0xd8] sm:$0xff]
    %v2771 = vld [vmem:[%s5 + $0xe0] sm:$0xff]
    %v2772 = vld [vmem:[%s5 + $0xe8] sm:$0xff]
    %v2773 = vld [vmem:[%s5 + $0xf0] sm:$0xff]
    %v2774 = vld [vmem:[%s5 + $0xf8] sm:$0xff]
    %v2775 = vld [vmem:[#allocation3 + $0x1] sm:$0xf]
    %v2776 = vld [vmem:[#allocation3 + $0x9] sm:$0xf]
    %v2777 = vld [vmem:[#allocation3 + $0x11] sm:$0xf]
    %v2778 = vld [vmem:[#allocation3 + $0x19] sm:$0xf]
    %v2779 = vld [vmem:[#allocation3 + $0x31] sm:$0xf]
    %v2780 = vld [vmem:[#allocation3 + $0x39] sm:$0xf]
    %v2781 = vld [vmem:[#allocation3 + $0x41] sm:$0xf]
    %v2782 = vld [vmem:[#allocation3 + $0x49] sm:$0xf]
    %s2783 = scalar_lea.vmem %s5, 256
    %v2784 = vld [vmem:[%s2783] sm:$0xff]
    %v2785 = vld [vmem:[%s2783 + $0x8] sm:$0xff]
    %v2786 = vld [vmem:[%s2783 + $0x10] sm:$0xff]
    %v2787 = vld [vmem:[%s2783 + $0x18] sm:$0xff]
    %v2788 = vld [vmem:[%s2783 + $0x20] sm:$0xff]
    %v2789 = vld [vmem:[%s2783 + $0x28] sm:$0xff]
    %v2790 = vld [vmem:[%s2783 + $0x30] sm:$0xff]
    %v2791 = vld [vmem:[%s2783 + $0x38] sm:$0xff]
    %v2792 = vld [vmem:[%s2783 + $0x40] sm:$0xff]
    %v2793 = vld [vmem:[%s2783 + $0x48] sm:$0xff]
    %v2794 = vld [vmem:[%s2783 + $0x50] sm:$0xff]
    %v2795 = vld [vmem:[%s2783 + $0x58] sm:$0xff]
    %v2796 = vld [vmem:[%s2783 + $0x60] sm:$0xff]
    %v2797 = vld [vmem:[%s2783 + $0x68] sm:$0xff]
    %v2798 = vld [vmem:[%s2783 + $0x70] sm:$0xff]
    %v2799 = vld [vmem:[%s2783 + $0x78] sm:$0xff]
    %v2800 = vld [vmem:[%s2783 + $0x80] sm:$0xff]
    %v2801 = vld [vmem:[%s2783 + $0x88] sm:$0xff]
    %v2802 = vld [vmem:[%s2783 + $0x90] sm:$0xff]
    %v2803 = vld [vmem:[%s2783 + $0x98] sm:$0xff]
    %v2804 = vld [vmem:[%s2783 + $0xa0] sm:$0xff]
    %v2805 = vld [vmem:[%s2783 + $0xa8] sm:$0xff]
    %v2806 = vld [vmem:[%s2783 + $0xb0] sm:$0xff]
    %v2807 = vld [vmem:[%s2783 + $0xb8] sm:$0xff]
    %v2808 = vld [vmem:[%s2783 + $0xc0] sm:$0xff]
    %v2809 = vld [vmem:[%s2783 + $0xc8] sm:$0xff]
    %v2810 = vld [vmem:[%s2783 + $0xd0] sm:$0xff]
    %v2811 = vld [vmem:[%s2783 + $0xd8] sm:$0xff]
    %v2812 = vld [vmem:[%s2783 + $0xe0] sm:$0xff]
    %v2813 = vld [vmem:[%s2783 + $0xe8] sm:$0xff]
    %v2814 = vld [vmem:[%s2783 + $0xf0] sm:$0xff]
    %v2815 = vld [vmem:[%s2783 + $0xf8] sm:$0xff]
    %v2824 = vcombine.low %v2775, %v2776
    %v2825 = vcombine.low %v2777, %v2778
    %v2826 = vcombine.low %v2779, %v2780
    %v2827 = vcombine.low %v2781, %v2782
    %2832 = vmatprep.subr.mxu0 %v2785
    %2833 = vmatpush1.msra.mxu0 %v2784
    %2834 = vmatprep.subr.mxu0 %v2787
    %2835 = vmatpush1.msra.mxu0 %v2786
    %2836 = vmatprep.subr.mxu0 %v2789
    %2837 = vmatpush1.msra.mxu0 %v2788
    %2838 = vmatprep.subr.mxu0 %v2791
    %2839 = vmatpush1.msra.mxu0 %v2790
    %2840 = vmatprep.subr.mxu0 %v2793
    %2841 = vmatpush1.msra.mxu0 %v2792
    %2842 = vmatprep.subr.mxu0 %v2795
    %2843 = vmatpush1.msra.mxu0 %v2794
    %2844 = vmatprep.subr.mxu0 %v2797
    %2845 = vmatpush1.msra.mxu0 %v2796
    %2846 = vmatprep.subr.mxu0 %v2799
    %2847 = vmatpush1.msra.mxu0 %v2798
    %2848 = vmatprep.subr.mxu0 %v2801
    %2849 = vmatpush1.msra.mxu0 %v2800
    %2850 = vmatprep.subr.mxu0 %v2803
    %2851 = vmatpush1.msra.mxu0 %v2802
    %2852 = vmatprep.subr.mxu0 %v2805
    %2853 = vmatpush1.msra.mxu0 %v2804
    %2854 = vmatprep.subr.mxu0 %v2807
    %2855 = vmatpush1.msra.mxu0 %v2806
    %2856 = vmatprep.subr.mxu0 %v2809
    %2857 = vmatpush1.msra.mxu0 %v2808
    %2858 = vmatprep.subr.mxu0 %v2811
    %2859 = vmatpush1.msra.mxu0 %v2810
    %2860 = vmatprep.subr.mxu0 %v2813
    %2861 = vmatpush1.msra.mxu0 %v2812
    %2862 = vmatprep.subr.mxu0 %v2815
    %2863 = vmatpush1.msra.mxu0 %v2814
    %2864 = vmatprep.subr.mxu0 0.0
    %2865 = vmatpush1.msra.mxu0 0.0
    %2866 = vmatprep.subr.mxu0 0.0
    %2867 = vmatpush1.msra.mxu0 0.0
    %2868 = vmatprep.subr.mxu0 0.0
    %2869 = vmatpush1.msra.mxu0 0.0
    %2870 = vmatprep.subr.mxu0 0.0
    %2871 = vmatpush1.msra.mxu0 0.0
    %2872 = vmatprep.subr.mxu0 0.0
    %2873 = vmatpush1.msra.mxu0 0.0
    %2874 = vmatprep.subr.mxu0 0.0
    %2875 = vmatpush1.msra.mxu0 0.0
    %2876 = vmatprep.subr.mxu0 0.0
    %2877 = vmatpush1.msra.mxu0 0.0
    %2878 = vmatprep.subr.mxu0 0.0
    %2879 = vmatpush1.msra.mxu0 0.0
    %2880 = vmatprep.subr.mxu0 0.0
    %2881 = vmatpush1.msra.mxu0 0.0
    %2882 = vmatprep.subr.mxu0 0.0
    %2883 = vmatpush1.msra.mxu0 0.0
    %2884 = vmatprep.subr.mxu0 0.0
    %2885 = vmatpush1.msra.mxu0 0.0
    %2886 = vmatprep.subr.mxu0 0.0
    %2887 = vmatpush1.msra.mxu0 0.0
    %2888 = vmatprep.subr.mxu0 0.0
    %2889 = vmatpush1.msra.mxu0 0.0
    %2890 = vmatprep.subr.mxu0 0.0
    %2891 = vmatpush1.msra.mxu0 0.0
    %2892 = vmatprep.subr.mxu0 0.0
    %2893 = vmatpush1.msra.mxu0 0.0
    %2894 = vmatprep.subr.mxu0 0.0
    %2895 = vmatpush1.msra.mxu0 0.0
    %2896 = vmatprep.mubr.f32.mxu0 0.0
    %2897 = vmatmul.mubr.f32.gmra.mrb[0].mxu0 %v2824
    %v2898 = vpop.f32.mrb[0].mxu0
    %v2899 = vadd.f32 0.0, %v2898
    %v2900 = vpop.f32.mrb[0].mxu0
    %v2901 = vadd.f32 0.0, %v2900
    %2902 = vmatprep.mubr.f32.mxu0 0.0
    %2903 = vmatmul.mubr.f32.gmra.mrb[0].mxu0 %v2825
    %v2904 = vpop.f32.mrb[0].mxu0
    %v2905 = vadd.f32 0.0, %v2904
    %v2906 = vpop.f32.mrb[0].mxu0
    %v2907 = vadd.f32 0.0, %v2906
    %2908 = vmatprep.mubr.f32.mxu0 0.0
    %2909 = vmatmul.mubr.f32.gmra.mrb[0].mxu0 %v2826
    %v2910 = vpop.f32.mrb[0].mxu0
    %v2911 = vadd.f32 0.0, %v2910
    %v2912 = vpop.f32.mrb[0].mxu0
    %v2913 = vadd.f32 0.0, %v2912
    %2914 = vmatprep.mubr.f32.mxu0 0.0
    %2915 = vmatmul.mubr.f32.gmra.mrb[0].mxu0 %v2827
    %v2916 = vpop.f32.mrb[0].mxu0
    %v2917 = vadd.f32 0.0, %v2916
    %v2918 = vpop.f32.mrb[0].mxu0
    %v2919 = vadd.f32 0.0, %v2918
    %2920 = vdwg.mxu0
    %v2929 = vcombine.low %v2735, %v2736
    %v2930 = vcombine.low %v2737, %v2738
    %v2931 = vcombine.low %v2739, %v2740
    %v2932 = vcombine.low %v2741, %v2742
    %2937 = vmatprep.subr.mxu0 %v2744
    %2938 = vmatpush1.msra.mxu0 %v2743
    %2939 = vmatprep.subr.mxu0 %v2746
    %2940 = vmatpush1.msra.mxu0 %v2745
    %2941 = vmatprep.subr.mxu0 %v2748
    %2942 = vmatpush1.msra.mxu0 %v2747
    %2943 = vmatprep.subr.mxu0 %v2750
    %2944 = vmatpush1.msra.mxu0 %v2749
    %2945 = vmatprep.subr.mxu0 %v2752
    %2946 = vmatpush1.msra.mxu0 %v2751
    %2947 = vmatprep.subr.mxu0 %v2754
    %2948 = vmatpush1.msra.mxu0 %v2753
    %2949 = vmatprep.subr.mxu0 %v2756
    %2950 = vmatpush1.msra.mxu0 %v2755
    %2951 = vmatprep.subr.mxu0 %v2758
    %2952 = vmatpush1.msra.mxu0 %v2757
    %2953 = vmatprep.subr.mxu0 %v2760
    %2954 = vmatpush1.msra.mxu0 %v2759
    %2955 = vmatprep.subr.mxu0 %v2762
    %2956 = vmatpush1.msra.mxu0 %v2761
    %2957 = vmatprep.subr.mxu0 %v2764
    %2958 = vmatpush1.msra.mxu0 %v2763
    %2959 = vmatprep.subr.mxu0 %v2766
    %2960 = vmatpush1.msra.mxu0 %v2765
    %2961 = vmatprep.subr.mxu0 %v2768
    %2962 = vmatpush1.msra.mxu0 %v2767
    %2963 = vmatprep.subr.mxu0 %v2770
    %2964 = vmatpush1.msra.mxu0 %v2769
    %2965 = vmatprep.subr.mxu0 %v2772
    %2966 = vmatpush1.msra.mxu0 %v2771
    %2967 = vmatprep.subr.mxu0 %v2774
    %2968 = vmatpush1.msra.mxu0 %v2773
    %2969 = vmatprep.subr.mxu0 0.0
    %2970 = vmatpush1.msra.mxu0 0.0
    %2971 = vmatprep.subr.mxu0 0.0
    %2972 = vmatpush1.msra.mxu0 0.0
    %2973 = vmatprep.subr.mxu0 0.0
    %2974 = vmatpush1.msra.mxu0 0.0
    %2975 = vmatprep.subr.mxu0 0.0
    %2976 = vmatpush1.msra.mxu0 0.0
    %2977 = vmatprep.subr.mxu0 0.0
    %2978 = vmatpush1.msra.mxu0 0.0
    %2979 = vmatprep.subr.mxu0 0.0
    %2980 = vmatpush1.msra.mxu0 0.0
    %2981 = vmatprep.subr.mxu0 0.0
    %2982 = vmatpush1.msra.mxu0 0.0
    %2983 = vmatprep.subr.mxu0 0.0
    %2984 = vmatpush1.msra.mxu0 0.0
    %2985 = vmatprep.subr.mxu0 0.0
    %2986 = vmatpush1.msra.mxu0 0.0
    %2987 = vmatprep.subr.mxu0 0.0
    %2988 = vmatpush1.msra.mxu0 0.0
    %2989 = vmatprep.subr.mxu0 0.0
    %2990 = vmatpush1.msra.mxu0 0.0
    %2991 = vmatprep.subr.mxu0 0.0
    %2992 = vmatpush1.msra.mxu0 0.0
    %2993 = vmatprep.subr.mxu0 0.0
    %2994 = vmatpush1.msra.mxu0 0.0
    %2995 = vmatprep.subr.mxu0 0.0
    %2996 = vmatpush1.msra.mxu0 0.0
    %2997 = vmatprep.subr.mxu0 0.0
    %2998 = vmatpush1.msra.mxu0 0.0
    %2999 = vmatprep.subr.mxu0 0.0
    %3000 = vmatpush1.msra.mxu0 0.0
    %3001 = vmatprep.mubr.f32.mxu0 0.0
    %3002 = vmatmul.mubr.f32.gmra.mrb[0].mxu0 %v2929
    %v3003 = vpop.f32.mrb[0].mxu0
    %v3004 = vadd.f32 %v2899, %v3003
    %v3005 = vpop.f32.mrb[0].mxu0
    %v3006 = vadd.f32 %v2901, %v3005
    %3007 = vmatprep.mubr.f32.mxu0 0.0
    %3008 = vmatmul.mubr.f32.gmra.mrb[0].mxu0 %v2930
    %v3009 = vpop.f32.mrb[0].mxu0
    %v3010 = vadd.f32 %v2905, %v3009
    %v3011 = vpop.f32.mrb[0].mxu0
    %v3012 = vadd.f32 %v2907, %v3011
    %3013 = vmatprep.mubr.f32.mxu0 0.0
    %3014 = vmatmul.mubr.f32.gmra.mrb[0].mxu0 %v2931
    %v3015 = vpop.f32.mrb[0].mxu0
    %v3016 = vadd.f32 %v2911, %v3015
    %v3017 = vpop.f32.mrb[0].mxu0
    %v3018 = vadd.f32 %v2913, %v3017
    %3019 = vmatprep.mubr.f32.mxu0 0.0
    %3020 = vmatmul.mubr.f32.gmra.mrb[0].mxu0 %v2932
    %v3021 = vpop.f32.mrb[0].mxu0
    %v3022 = vadd.f32 %v2917, %v3021
    %v3023 = vpop.f32.mrb[0].mxu0
    %v3024 = vadd.f32 %v2919, %v3023
    %3025 = vdwg.mxu0
    %v3026 = vld [vmem:[#allocation3 + $0x2] sm:$0xf]
    %v3027 = vld [vmem:[#allocation3 + $0xa] sm:$0xf]
    %v3028 = vld [vmem:[#allocation3 + $0x12] sm:$0xf]
    %v3029 = vld [vmem:[#allocation3 + $0x1a] sm:$0xf]
    %v3030 = vld [vmem:[#allocation3 + $0x32] sm:$0xf]
    %v3031 = vld [vmem:[#allocation3 + $0x3a] sm:$0xf]
    %v3032 = vld [vmem:[#allocation3 + $0x42] sm:$0xf]
    %v3033 = vld [vmem:[#allocation3 + $0x4a] sm:$0xf]
    %s3034 = scalar_lea.vmem %s5, 512
    %v3035 = vld [vmem:[%s3034] sm:$0xff]
    %v3036 = vld [vmem:[%s3034 + $0x8] sm:$0xff]
    %v3037 = vld [vmem:[%s3034 + $0x10] sm:$0xff]
    %v3038 = vld [vmem:[%s3034 + $0x18] sm:$0xff]
    %v3039 = vld [vmem:[%s3034 + $0x20] sm:$0xff]
    %v3040 = vld [vmem:[%s3034 + $0x28] sm:$0xff]
    %v3041 = vld [vmem:[%s3034 + $0x30] sm:$0xff]
    %v3042 = vld [vmem:[%s3034 + $0x38] sm:$0xff]
    %v3043 = vld [vmem:[%s3034 + $0x40] sm:$0xff]
    %v3044 = vld [vmem:[%s3034 + $0x48] sm:$0xff]
    %v3045 = vld [vmem:[%s3034 + $0x50] sm:$0xff]
    %v3046 = vld [vmem:[%s3034 + $0x58] sm:$0xff]
    %v3047 = vld [vmem:[%s3034 + $0x60] sm:$0xff]
    %v3048 = vld [vmem:[%s3034 + $0x68] sm:$0xff]
    %v3049 = vld [vmem:[%s3034 + $0x70] sm:$0xff]
    %v3050 = vld [vmem:[%s3034 + $0x78] sm:$0xff]
    %v3051 = vld [vmem:[%s3034 + $0x80] sm:$0xff]
    %v3052 = vld [vmem:[%s3034 + $0x88] sm:$0xff]
    %v3053 = vld [vmem:[%s3034 + $0x90] sm:$0xff]
    %v3054 = vld [vmem:[%s3034 + $0x98] sm:$0xff]
    %v3055 = vld [vmem:[%s3034 + $0xa0] sm:$0xff]
    %v3056 = vld [vmem:[%s3034 + $0xa8] sm:$0xff]
    %v3057 = vld [vmem:[%s3034 + $0xb0] sm:$0xff]
    %v3058 = vld [vmem:[%s3034 + $0xb8] sm:$0xff]
    %v3059 = vld [vmem:[%s3034 + $0xc0] sm:$0xff]
    %v3060 = vld [vmem:[%s3034 + $0xc8] sm:$0xff]
    %v3061 = vld [vmem:[%s3034 + $0xd0] sm:$0xff]
    %v3062 = vld [vmem:[%s3034 + $0xd8] sm:$0xff]
    %v3063 = vld [vmem:[%s3034 + $0xe0] sm:$0xff]
    %v3064 = vld [vmem:[%s3034 + $0xe8] sm:$0xff]
    %v3065 = vld [vmem:[%s3034 + $0xf0] sm:$0xff]
    %v3066 = vld [vmem:[%s3034 + $0xf8] sm:$0xff]
    %v3075 = vcombine.low %v3026, %v3027
    %v3076 = vcombine.low %v3028, %v3029
    %v3077 = vcombine.low %v3030, %v3031
    %v3078 = vcombine.low %v3032, %v3033
    %3083 = vmatprep.subr.mxu0 %v3036
    %3084 = vmatpush1.msra.mxu0 %v3035
    %3085 = vmatprep.subr.mxu0 %v3038
    %3086 = vmatpush1.msra.mxu0 %v3037
    %3087 = vmatprep.subr.mxu0 %v3040
    %3088 = vmatpush1.msra.mxu0 %v3039
    %3089 = vmatprep.subr.mxu0 %v3042
    %3090 = vmatpush1.msra.mxu0 %v3041
    %3091 = vmatprep.subr.mxu0 %v3044
    %3092 = vmatpush1.msra.mxu0 %v3043
    %3093 = vmatprep.subr.mxu0 %v3046
    %3094 = vmatpush1.msra.mxu0 %v3045
    %3095 = vmatprep.subr.mxu0 %v3048
    %3096 = vmatpush1.msra.mxu0 %v3047
    %3097 = vmatprep.subr.mxu0 %v3050
    %3098 = vmatpush1.msra.mxu0 %v3049
    %3099 = vmatprep.subr.mxu0 %v3052
    %3100 = vmatpush1.msra.mxu0 %v3051
    %3101 = vmatprep.subr.mxu0 %v3054
    %3102 = vmatpush1.msra.mxu0 %v3053
    %3103 = vmatprep.subr.mxu0 %v3056
    %3104 = vmatpush1.msra.mxu0 %v3055
    %3105 = vmatprep.subr.mxu0 %v3058
    %3106 = vmatpush1.msra.mxu0 %v3057
    %3107 = vmatprep.subr.mxu0 %v3060
    %3108 = vmatpush1.msra.mxu0 %v3059
    %3109 = vmatprep.subr.mxu0 %v3062
    %3110 = vmatpush1.msra.mxu0 %v3061
    %3111 = vmatprep.subr.mxu0 %v3064
    %3112 = vmatpush1.msra.mxu0 %v3063
    %3113 = vmatprep.subr.mxu0 %v3066
    %3114 = vmatpush1.msra.mxu0 %v3065
    %3115 = vmatprep.subr.mxu0 0.0
    %3116 = vmatpush1.msra.mxu0 0.0
    %3117 = vmatprep.subr.mxu0 0.0
    %3118 = vmatpush1.msra.mxu0 0.0
    %3119 = vmatprep.subr.mxu0 0.0
    %3120 = vmatpush1.msra.mxu0 0.0
    %3121 = vmatprep.subr.mxu0 0.0
    %3122 = vmatpush1.msra.mxu0 0.0
    %3123 = vmatprep.subr.mxu0 0.0
    %3124 = vmatpush1.msra.mxu0 0.0
    %3125 = vmatprep.subr.mxu0 0.0
    %3126 = vmatpush1.msra.mxu0 0.0
    %3127 = vmatprep.subr.mxu0 0.0
    %3128 = vmatpush1.msra.mxu0 0.0
    %3129 = vmatprep.subr.mxu0 0.0
    %3130 = vmatpush1.msra.mxu0 0.0
    %3131 = vmatprep.subr.mxu0 0.0
    %3132 = vmatpush1.msra.mxu0 0.0
    %3133 = vmatprep.subr.mxu0 0.0
    %3134 = vmatpush1.msra.mxu0 0.0
    %3135 = vmatprep.subr.mxu0 0.0
    %3136 = vmatpush1.msra.mxu0 0.0
    %3137 = vmatprep.subr.mxu0 0.0
    %3138 = vmatpush1.msra.mxu0 0.0
    %3139 = vmatprep.subr.mxu0 0.0
    %3140 = vmatpush1.msra.mxu0 0.0
    %3141 = vmatprep.subr.mxu0 0.0
    %3142 = vmatpush1.msra.mxu0 0.0
    %3143 = vmatprep.subr.mxu0 0.0
    %3144 = vmatpush1.msra.mxu0 0.0
    %3145 = vmatprep.subr.mxu0 0.0
    %3146 = vmatpush1.msra.mxu0 0.0
    %3147 = vmatprep.mubr.f32.mxu0 0.0
    %3148 = vmatmul.mubr.f32.gmra.mrb[0].mxu0 %v3075
    %v3149 = vpop.f32.mrb[0].mxu0
    %v3150 = vadd.f32 0.0, %v3149
    %v3151 = vpop.f32.mrb[0].mxu0
    %v3152 = vadd.f32 0.0, %v3151
    %3153 = vmatprep.mubr.f32.mxu0 0.0
    %3154 = vmatmul.mubr.f32.gmra.mrb[0].mxu0 %v3076
    %v3155 = vpop.f32.mrb[0].mxu0
    %v3156 = vadd.f32 0.0, %v3155
    %v3157 = vpop.f32.mrb[0].mxu0
    %v3158 = vadd.f32 0.0, %v3157
    %3159 = vmatprep.mubr.f32.mxu0 0.0
    %3160 = vmatmul.mubr.f32.gmra.mrb[0].mxu0 %v3077
    %v3161 = vpop.f32.mrb[0].mxu0
    %v3162 = vadd.f32 0.0, %v3161
    %v3163 = vpop.f32.mrb[0].mxu0
    %v3164 = vadd.f32 0.0, %v3163
    %3165 = vmatprep.mubr.f32.mxu0 0.0
    %3166 = vmatmul.mubr.f32.gmra.mrb[0].mxu0 %v3078
    %v3167 = vpop.f32.mrb[0].mxu0
    %v3168 = vadd.f32 0.0, %v3167
    %v3169 = vpop.f32.mrb[0].mxu0
    %v3170 = vadd.f32 0.0, %v3169
    %3171 = vdwg.mxu0
    %v3172 = vadd.f32 %v3004, %v3150
    %v3173 = vadd.f32 %v3006, %v3152
    %v3174 = vadd.f32 %v3010, %v3156
    %v3175 = vadd.f32 %v3012, %v3158
    %v3176 = vadd.f32 %v3016, %v3162
    %v3177 = vadd.f32 %v3018, %v3164
    %v3178 = vadd.f32 %v3022, %v3168
    %v3179 = vadd.f32 %v3024, %v3170
    %v3180 = vld [vmem:[%s2726] sm:$0xf]
    %v3181 = vld [vmem:[%s2726 + $0x8] sm:$0xf]
    %v3182 = vld [vmem:[%s2726 + $0x10] sm:$0xf]
    %v3183 = vld [vmem:[%s2726 + $0x18] sm:$0xf]
    %v3184 = vld [vmem:[%s2726 + $0x30] sm:$0xf]
    %v3185 = vld [vmem:[%s2726 + $0x38] sm:$0xf]
    %v3186 = vld [vmem:[%s2726 + $0x40] sm:$0xf]
    %v3187 = vld [vmem:[%s2726 + $0x48] sm:$0xf]
    %s3188 = scalar_lea.vmem %s5, 768
    %v3189 = vld [vmem:[%s3188] sm:$0xff]
    %v3190 = vld [vmem:[%s3188 + $0x8] sm:$0xff]
    %v3191 = vld [vmem:[%s3188 + $0x10] sm:$0xff]
    %v3192 = vld [vmem:[%s3188 + $0x18] sm:$0xff]
    %v3193 = vld [vmem:[%s3188 + $0x20] sm:$0xff]
    %v3194 = vld [vmem:[%s3188 + $0x28] sm:$0xff]
    %v3195 = vld [vmem:[%s3188 + $0x30] sm:$0xff]
    %v3196 = vld [vmem:[%s3188 + $0x38] sm:$0xff]
    %v3197 = vld [vmem:[%s3188 + $0x40] sm:$0xff]
    %v3198 = vld [vmem:[%s3188 + $0x48] sm:$0xff]
    %v3199 = vld [vmem:[%s3188 + $0x50] sm:$0xff]
    %v3200 = vld [vmem:[%s3188 + $0x58] sm:$0xff]
    %v3201 = vld [vmem:[%s3188 + $0x60] sm:$0xff]
    %v3202 = vld [vmem:[%s3188 + $0x68] sm:$0xff]
    %v3203 = vld [vmem:[%s3188 + $0x70] sm:$0xff]
    %v3204 = vld [vmem:[%s3188 + $0x78] sm:$0xff]
    %v3205 = vld [vmem:[%s3188 + $0x80] sm:$0xff]
    %v3206 = vld [vmem:[%s3188 + $0x88] sm:$0xff]
    %v3207 = vld [vmem:[%s3188 + $0x90] sm:$0xff]
    %v3208 = vld [vmem:[%s3188 + $0x98] sm:$0xff]
    %v3209 = vld [vmem:[%s3188 + $0xa0] sm:$0xff]
    %v3210 = vld [vmem:[%s3188 + $0xa8] sm:$0xff]
    %v3211 = vld [vmem:[%s3188 + $0xb0] sm:$0xff]
    %v3212 = vld [vmem:[%s3188 + $0xb8] sm:$0xff]
    %v3213 = vld [vmem:[%s3188 + $0xc0] sm:$0xff]
    %v3214 = vld [vmem:[%s3188 + $0xc8] sm:$0xff]
    %v3215 = vld [vmem:[%s3188 + $0xd0] sm:$0xff]
    %v3216 = vld [vmem:[%s3188 + $0xd8] sm:$0xff]
    %v3217 = vld [vmem:[%s3188 + $0xe0] sm:$0xff]
    %v3218 = vld [vmem:[%s3188 + $0xe8] sm:$0xff]
    %v3219 = vld [vmem:[%s3188 + $0xf0] sm:$0xff]
    %v3220 = vld [vmem:[%s3188 + $0xf8] sm:$0xff]
    %v3229 = vcombine.low %v3180, %v3181
    %v3230 = vcombine.low %v3182, %v3183
    %v3231 = vcombine.low %v3184, %v3185
    %v3232 = vcombine.low %v3186, %v3187
    %3237 = vmatprep.subr.mxu0 %v3190
    %3238 = vmatpush1.msra.mxu0 %v3189
    %3239 = vmatprep.subr.mxu0 %v3192
    %3240 = vmatpush1.msra.mxu0 %v3191
    %3241 = vmatprep.subr.mxu0 %v3194
    %3242 = vmatpush1.msra.mxu0 %v3193
    %3243 = vmatprep.subr.mxu0 %v3196
    %3244 = vmatpush1.msra.mxu0 %v3195
    %3245 = vmatprep.subr.mxu0 %v3198
    %3246 = vmatpush1.msra.mxu0 %v3197
    %3247 = vmatprep.subr.mxu0 %v3200
    %3248 = vmatpush1.msra.mxu0 %v3199
    %3249 = vmatprep.subr.mxu0 %v3202
    %3250 = vmatpush1.msra.mxu0 %v3201
    %3251 = vmatprep.subr.mxu0 %v3204
    %3252 = vmatpush1.msra.mxu0 %v3203
    %3253 = vmatprep.subr.mxu0 %v3206
    %3254 = vmatpush1.msra.mxu0 %v3205
    %3255 = vmatprep.subr.mxu0 %v3208
    %3256 = vmatpush1.msra.mxu0 %v3207
    %3257 = vmatprep.subr.mxu0 %v3210
    %3258 = vmatpush1.msra.mxu0 %v3209
    %3259 = vmatprep.subr.mxu0 %v3212
    %3260 = vmatpush1.msra.mxu0 %v3211
    %3261 = vmatprep.subr.mxu0 %v3214
    %3262 = vmatpush1.msra.mxu0 %v3213
    %3263 = vmatprep.subr.mxu0 %v3216
    %3264 = vmatpush1.msra.mxu0 %v3215
    %3265 = vmatprep.subr.mxu0 %v3218
    %3266 = vmatpush1.msra.mxu0 %v3217
    %3267 = vmatprep.subr.mxu0 %v3220
    %3268 = vmatpush1.msra.mxu0 %v3219
    %3269 = vmatprep.subr.mxu0 0.0
    %3270 = vmatpush1.msra.mxu0 0.0
    %3271 = vmatprep.subr.mxu0 0.0
    %3272 = vmatpush1.msra.mxu0 0.0
    %3273 = vmatprep.subr.mxu0 0.0
    %3274 = vmatpush1.msra.mxu0 0.0
    %3275 = vmatprep.subr.mxu0 0.0
    %3276 = vmatpush1.msra.mxu0 0.0
    %3277 = vmatprep.subr.mxu0 0.0
    %3278 = vmatpush1.msra.mxu0 0.0
    %3279 = vmatprep.subr.mxu0 0.0
    %3280 = vmatpush1.msra.mxu0 0.0
    %3281 = vmatprep.subr.mxu0 0.0
    %3282 = vmatpush1.msra.mxu0 0.0
    %3283 = vmatprep.subr.mxu0 0.0
    %3284 = vmatpush1.msra.mxu0 0.0
    %3285 = vmatprep.subr.mxu0 0.0
    %3286 = vmatpush1.msra.mxu0 0.0
    %3287 = vmatprep.subr.mxu0 0.0
    %3288 = vmatpush1.msra.mxu0 0.0
    %3289 = vmatprep.subr.mxu0 0.0
    %3290 = vmatpush1.msra.mxu0 0.0
    %3291 = vmatprep.subr.mxu0 0.0
    %3292 = vmatpush1.msra.mxu0 0.0
    %3293 = vmatprep.subr.mxu0 0.0
    %3294 = vmatpush1.msra.mxu0 0.0
    %3295 = vmatprep.subr.mxu0 0.0
    %3296 = vmatpush1.msra.mxu0 0.0
    %3297 = vmatprep.subr.mxu0 0.0
    %3298 = vmatpush1.msra.mxu0 0.0
    %3299 = vmatprep.subr.mxu0 0.0
    %3300 = vmatpush1.msra.mxu0 0.0
    %3301 = vmatprep.mubr.f32.mxu0 0.0
    %3302 = vmatmul.mubr.f32.gmra.mrb[0].mxu0 %v3229
    %v3303 = vpop.f32.mrb[0].mxu0
    %v3304 = vadd.f32 0.0, %v3303
    %v3305 = vpop.f32.mrb[0].mxu0
    %v3306 = vadd.f32 0.0, %v3305
    %3307 = vmatprep.mubr.f32.mxu0 0.0
    %3308 = vmatmul.mubr.f32.gmra.mrb[0].mxu0 %v3230
    %v3309 = vpop.f32.mrb[0].mxu0
    %v3310 = vadd.f32 0.0, %v3309
    %v3311 = vpop.f32.mrb[0].mxu0
    %v3312 = vadd.f32 0.0, %v3311
    %3313 = vmatprep.mubr.f32.mxu0 0.0
    %3314 = vmatmul.mubr.f32.gmra.mrb[0].mxu0 %v3231
    %v3315 = vpop.f32.mrb[0].mxu0
    %v3316 = vadd.f32 0.0, %v3315
    %v3317 = vpop.f32.mrb[0].mxu0
    %v3318 = vadd.f32 0.0, %v3317
    %3319 = vmatprep.mubr.f32.mxu0 0.0
    %3320 = vmatmul.mubr.f32.gmra.mrb[0].mxu0 %v3232
    %v3321 = vpop.f32.mrb[0].mxu0
    %v3322 = vadd.f32 0.0, %v3321
    %v3323 = vpop.f32.mrb[0].mxu0
    %v3324 = vadd.f32 0.0, %v3323
    %3325 = vdwg.mxu0
    %v3326 = vadd.f32 %v3172, %v3304
    %v3327 = vadd.f32 %v3173, %v3306
    %v3328 = vadd.f32 %v3174, %v3310
    %v3329 = vadd.f32 %v3175, %v3312
    %v3330 = vadd.f32 %v3176, %v3316
    %v3331 = vadd.f32 %v3177, %v3318
    %v3332 = vadd.f32 %v3178, %v3322
    %v3333 = vadd.f32 %v3179, %v3324
    %v3334 = vld [vmem:[%s2726 + $0x1] sm:$0xf]
    %v3335 = vld [vmem:[%s2726 + $0x9] sm:$0xf]
    %v3336 = vld [vmem:[%s2726 + $0x11] sm:$0xf]
    %v3337 = vld [vmem:[%s2726 + $0x19] sm:$0xf]
    %v3338 = vld [vmem:[%s2726 + $0x31] sm:$0xf]
    %v3339 = vld [vmem:[%s2726 + $0x39] sm:$0xf]
    %v3340 = vld [vmem:[%s2726 + $0x41] sm:$0xf]
    %v3341 = vld [vmem:[%s2726 + $0x49] sm:$0xf]
    %s3342 = scalar_lea.vmem %s5, 1024
    %v3343 = vld [vmem:[%s3342] sm:$0xff]
    %v3344 = vld [vmem:[%s3342 + $0x8] sm:$0xff]
    %v3345 = vld [vmem:[%s3342 + $0x10] sm:$0xff]
    %v3346 = vld [vmem:[%s3342 + $0x18] sm:$0xff]
    %v3347 = vld [vmem:[%s3342 + $0x20] sm:$0xff]
    %v3348 = vld [vmem:[%s3342 + $0x28] sm:$0xff]
    %v3349 = vld [vmem:[%s3342 + $0x30] sm:$0xff]
    %v3350 = vld [vmem:[%s3342 + $0x38] sm:$0xff]
    %v3351 = vld [vmem:[%s3342 + $0x40] sm:$0xff]
    %v3352 = vld [vmem:[%s3342 + $0x48] sm:$0xff]
    %v3353 = vld [vmem:[%s3342 + $0x50] sm:$0xff]
    %v3354 = vld [vmem:[%s3342 + $0x58] sm:$0xff]
    %v3355 = vld [vmem:[%s3342 + $0x60] sm:$0xff]
    %v3356 = vld [vmem:[%s3342 + $0x68] sm:$0xff]
    %v3357 = vld [vmem:[%s3342 + $0x70] sm:$0xff]
    %v3358 = vld [vmem:[%s3342 + $0x78] sm:$0xff]
    %v3359 = vld [vmem:[%s3342 + $0x80] sm:$0xff]
    %v3360 = vld [vmem:[%s3342 + $0x88] sm:$0xff]
    %v3361 = vld [vmem:[%s3342 + $0x90] sm:$0xff]
    %v3362 = vld [vmem:[%s3342 + $0x98] sm:$0xff]
    %v3363 = vld [vmem:[%s3342 + $0xa0] sm:$0xff]
    %v3364 = vld [vmem:[%s3342 + $0xa8] sm:$0xff]
    %v3365 = vld [vmem:[%s3342 + $0xb0] sm:$0xff]
    %v3366 = vld [vmem:[%s3342 + $0xb8] sm:$0xff]
    %v3367 = vld [vmem:[%s3342 + $0xc0] sm:$0xff]
    %v3368 = vld [vmem:[%s3342 + $0xc8] sm:$0xff]
    %v3369 = vld [vmem:[%s3342 + $0xd0] sm:$0xff]
    %v3370 = vld [vmem:[%s3342 + $0xd8] sm:$0xff]
    %v3371 = vld [vmem:[%s3342 + $0xe0] sm:$0xff]
    %v3372 = vld [vmem:[%s3342 + $0xe8] sm:$0xff]
    %v3373 = vld [vmem:[%s3342 + $0xf0] sm:$0xff]
    %v3374 = vld [vmem:[%s3342 + $0xf8] sm:$0xff]
    %v3383 = vcombine.low %v3334, %v3335
    %v3384 = vcombine.low %v3336, %v3337
    %v3385 = vcombine.low %v3338, %v3339
    %v3386 = vcombine.low %v3340, %v3341
    %3391 = vmatprep.subr.mxu0 %v3344
    %3392 = vmatpush1.msra.mxu0 %v3343
    %3393 = vmatprep.subr.mxu0 %v3346
    %3394 = vmatpush1.msra.mxu0 %v3345
    %3395 = vmatprep.subr.mxu0 %v3348
    %3396 = vmatpush1.msra.mxu0 %v3347
    %3397 = vmatprep.subr.mxu0 %v3350
    %3398 = vmatpush1.msra.mxu0 %v3349
    %3399 = vmatprep.subr.mxu0 %v3352
    %3400 = vmatpush1.msra.mxu0 %v3351
    %3401 = vmatprep.subr.mxu0 %v3354
    %3402 = vmatpush1.msra.mxu0 %v3353
    %3403 = vmatprep.subr.mxu0 %v3356
    %3404 = vmatpush1.msra.mxu0 %v3355
    %3405 = vmatprep.subr.mxu0 %v3358
    %3406 = vmatpush1.msra.mxu0 %v3357
    %3407 = vmatprep.subr.mxu0 %v3360
    %3408 = vmatpush1.msra.mxu0 %v3359
    %3409 = vmatprep.subr.mxu0 %v3362
    %3410 = vmatpush1.msra.mxu0 %v3361
    %3411 = vmatprep.subr.mxu0 %v3364
    %3412 = vmatpush1.msra.mxu0 %v3363
    %3413 = vmatprep.subr.mxu0 %v3366
    %3414 = vmatpush1.msra.mxu0 %v3365
    %3415 = vmatprep.subr.mxu0 %v3368
    %3416 = vmatpush1.msra.mxu0 %v3367
    %3417 = vmatprep.subr.mxu0 %v3370
    %3418 = vmatpush1.msra.mxu0 %v3369
    %3419 = vmatprep.subr.mxu0 %v3372
    %3420 = vmatpush1.msra.mxu0 %v3371
    %3421 = vmatprep.subr.mxu0 %v3374
    %3422 = vmatpush1.msra.mxu0 %v3373
    %3423 = vmatprep.subr.mxu0 0.0
    %3424 = vmatpush1.msra.mxu0 0.0
    %3425 = vmatprep.subr.mxu0 0.0
    %3426 = vmatpush1.msra.mxu0 0.0
    %3427 = vmatprep.subr.mxu0 0.0
    %3428 = vmatpush1.msra.mxu0 0.0
    %3429 = vmatprep.subr.mxu0 0.0
    %3430 = vmatpush1.msra.mxu0 0.0
    %3431 = vmatprep.subr.mxu0 0.0
    %3432 = vmatpush1.msra.mxu0 0.0
    %3433 = vmatprep.subr.mxu0 0.0
    %3434 = vmatpush1.msra.mxu0 0.0
    %3435 = vmatprep.subr.mxu0 0.0
    %3436 = vmatpush1.msra.mxu0 0.0
    %3437 = vmatprep.subr.mxu0 0.0
    %3438 = vmatpush1.msra.mxu0 0.0
    %3439 = vmatprep.subr.mxu0 0.0
    %3440 = vmatpush1.msra.mxu0 0.0
    %3441 = vmatprep.subr.mxu0 0.0
    %3442 = vmatpush1.msra.mxu0 0.0
    %3443 = vmatprep.subr.mxu0 0.0
    %3444 = vmatpush1.msra.mxu0 0.0
    %3445 = vmatprep.subr.mxu0 0.0
    %3446 = vmatpush1.msra.mxu0 0.0
    %3447 = vmatprep.subr.mxu0 0.0
    %3448 = vmatpush1.msra.mxu0 0.0
    %3449 = vmatprep.subr.mxu0 0.0
    %3450 = vmatpush1.msra.mxu0 0.0
    %3451 = vmatprep.subr.mxu0 0.0
    %3452 = vmatpush1.msra.mxu0 0.0
    %3453 = vmatprep.subr.mxu0 0.0
    %3454 = vmatpush1.msra.mxu0 0.0
    %3455 = vmatprep.mubr.f32.mxu0 0.0
    %3456 = vmatmul.mubr.f32.gmra.mrb[0].mxu0 %v3383
    %v3457 = vpop.f32.mrb[0].mxu0
    %v3458 = vadd.f32 0.0, %v3457
    %v3459 = vpop.f32.mrb[0].mxu0
    %v3460 = vadd.f32 0.0, %v3459
    %3461 = vmatprep.mubr.f32.mxu0 0.0
    %3462 = vmatmul.mubr.f32.gmra.mrb[0].mxu0 %v3384
    %v3463 = vpop.f32.mrb[0].mxu0
    %v3464 = vadd.f32 0.0, %v3463
    %v3465 = vpop.f32.mrb[0].mxu0
    %v3466 = vadd.f32 0.0, %v3465
    %3467 = vmatprep.mubr.f32.mxu0 0.0
    %3468 = vmatmul.mubr.f32.gmra.mrb[0].mxu0 %v3385
    %v3469 = vpop.f32.mrb[0].mxu0
    %v3470 = vadd.f32 0.0, %v3469
    %v3471 = vpop.f32.mrb[0].mxu0
    %v3472 = vadd.f32 0.0, %v3471
    %3473 = vmatprep.mubr.f32.mxu0 0.0
    %3474 = vmatmul.mubr.f32.gmra.mrb[0].mxu0 %v3386
    %v3475 = vpop.f32.mrb[0].mxu0
    %v3476 = vadd.f32 0.0, %v3475
    %v3477 = vpop.f32.mrb[0].mxu0
    %v3478 = vadd.f32 0.0, %v3477
    %3479 = vdwg.mxu0
    %v3480 = vadd.f32 %v3326, %v3458
    %v3481 = vadd.f32 %v3327, %v3460
    %v3482 = vadd.f32 %v3328, %v3464
    %v3483 = vadd.f32 %v3329, %v3466
    %v3484 = vadd.f32 %v3330, %v3470
    %v3485 = vadd.f32 %v3331, %v3472
    %v3486 = vadd.f32 %v3332, %v3476
    %v3487 = vadd.f32 %v3333, %v3478
    %v3488 = vld [vmem:[%s2726 + $0x2] sm:$0xf]
    %v3489 = vld [vmem:[%s2726 + $0xa] sm:$0xf]
    %v3490 = vld [vmem:[%s2726 + $0x12] sm:$0xf]
    %v3491 = vld [vmem:[%s2726 + $0x1a] sm:$0xf]
    %v3492 = vld [vmem:[%s2726 + $0x32] sm:$0xf]
    %v3493 = vld [vmem:[%s2726 + $0x3a] sm:$0xf]
    %v3494 = vld [vmem:[%s2726 + $0x42] sm:$0xf]
    %v3495 = vld [vmem:[%s2726 + $0x4a] sm:$0xf]
    %s3496 = scalar_lea.vmem %s5, 1280
    %v3497 = vld [vmem:[%s3496] sm:$0xff]
    %v3498 = vld [vmem:[%s3496 + $0x8] sm:$0xff]
    %v3499 = vld [vmem:[%s3496 + $0x10] sm:$0xff]
    %v3500 = vld [vmem:[%s3496 + $0x18] sm:$0xff]
    %v3501 = vld [vmem:[%s3496 + $0x20] sm:$0xff]
    %v3502 = vld [vmem:[%s3496 + $0x28] sm:$0xff]
    %v3503 = vld [vmem:[%s3496 + $0x30] sm:$0xff]
    %v3504 = vld [vmem:[%s3496 + $0x38] sm:$0xff]
    %v3505 = vld [vmem:[%s3496 + $0x40] sm:$0xff]
    %v3506 = vld [vmem:[%s3496 + $0x48] sm:$0xff]
    %v3507 = vld [vmem:[%s3496 + $0x50] sm:$0xff]
    %v3508 = vld [vmem:[%s3496 + $0x58] sm:$0xff]
    %v3509 = vld [vmem:[%s3496 + $0x60] sm:$0xff]
    %v3510 = vld [vmem:[%s3496 + $0x68] sm:$0xff]
    %v3511 = vld [vmem:[%s3496 + $0x70] sm:$0xff]
    %v3512 = vld [vmem:[%s3496 + $0x78] sm:$0xff]
    %v3513 = vld [vmem:[%s3496 + $0x80] sm:$0xff]
    %v3514 = vld [vmem:[%s3496 + $0x88] sm:$0xff]
    %v3515 = vld [vmem:[%s3496 + $0x90] sm:$0xff]
    %v3516 = vld [vmem:[%s3496 + $0x98] sm:$0xff]
    %v3517 = vld [vmem:[%s3496 + $0xa0] sm:$0xff]
    %v3518 = vld [vmem:[%s3496 + $0xa8] sm:$0xff]
    %v3519 = vld [vmem:[%s3496 + $0xb0] sm:$0xff]
    %v3520 = vld [vmem:[%s3496 + $0xb8] sm:$0xff]
    %v3521 = vld [vmem:[%s3496 + $0xc0] sm:$0xff]
    %v3522 = vld [vmem:[%s3496 + $0xc8] sm:$0xff]
    %v3523 = vld [vmem:[%s3496 + $0xd0] sm:$0xff]
    %v3524 = vld [vmem:[%s3496 + $0xd8] sm:$0xff]
    %v3525 = vld [vmem:[%s3496 + $0xe0] sm:$0xff]
    %v3526 = vld [vmem:[%s3496 + $0xe8] sm:$0xff]
    %v3527 = vld [vmem:[%s3496 + $0xf0] sm:$0xff]
    %v3528 = vld [vmem:[%s3496 + $0xf8] sm:$0xff]
    %v3537 = vcombine.low %v3488, %v3489
    %v3538 = vcombine.low %v3490, %v3491
    %v3539 = vcombine.low %v3492, %v3493
    %v3540 = vcombine.low %v3494, %v3495
    %3545 = vmatprep.subr.mxu0 %v3498
    %3546 = vmatpush1.msra.mxu0 %v3497
    %3547 = vmatprep.subr.mxu0 %v3500
    %3548 = vmatpush1.msra.mxu0 %v3499
    %3549 = vmatprep.subr.mxu0 %v3502
    %3550 = vmatpush1.msra.mxu0 %v3501
    %3551 = vmatprep.subr.mxu0 %v3504
    %3552 = vmatpush1.msra.mxu0 %v3503
    %3553 = vmatprep.subr.mxu0 %v3506
    %3554 = vmatpush1.msra.mxu0 %v3505
    %3555 = vmatprep.subr.mxu0 %v3508
    %3556 = vmatpush1.msra.mxu0 %v3507
    %3557 = vmatprep.subr.mxu0 %v3510
    %3558 = vmatpush1.msra.mxu0 %v3509
    %3559 = vmatprep.subr.mxu0 %v3512
    %3560 = vmatpush1.msra.mxu0 %v3511
    %3561 = vmatprep.subr.mxu0 %v3514
    %3562 = vmatpush1.msra.mxu0 %v3513
    %3563 = vmatprep.subr.mxu0 %v3516
    %3564 = vmatpush1.msra.mxu0 %v3515
    %3565 = vmatprep.subr.mxu0 %v3518
    %3566 = vmatpush1.msra.mxu0 %v3517
    %3567 = vmatprep.subr.mxu0 %v3520
    %3568 = vmatpush1.msra.mxu0 %v3519
    %3569 = vmatprep.subr.mxu0 %v3522
    %3570 = vmatpush1.msra.mxu0 %v3521
    %3571 = vmatprep.subr.mxu0 %v3524
    %3572 = vmatpush1.msra.mxu0 %v3523
    %3573 = vmatprep.subr.mxu0 %v3526
    %3574 = vmatpush1.msra.mxu0 %v3525
    %3575 = vmatprep.subr.mxu0 %v3528
    %3576 = vmatpush1.msra.mxu0 %v3527
    %3577 = vmatprep.subr.mxu0 0.0
    %3578 = vmatpush1.msra.mxu0 0.0
    %3579 = vmatprep.subr.mxu0 0.0
    %3580 = vmatpush1.msra.mxu0 0.0
    %3581 = vmatprep.subr.mxu0 0.0
    %3582 = vmatpush1.msra.mxu0 0.0
    %3583 = vmatprep.subr.mxu0 0.0
    %3584 = vmatpush1.msra.mxu0 0.0
    %3585 = vmatprep.subr.mxu0 0.0
    %3586 = vmatpush1.msra.mxu0 0.0
    %3587 = vmatprep.subr.mxu0 0.0
    %3588 = vmatpush1.msra.mxu0 0.0
    %3589 = vmatprep.subr.mxu0 0.0
    %3590 = vmatpush1.msra.mxu0 0.0
    %3591 = vmatprep.subr.mxu0 0.0
    %3592 = vmatpush1.msra.mxu0 0.0
    %3593 = vmatprep.subr.mxu0 0.0
    %3594 = vmatpush1.msra.mxu0 0.0
    %3595 = vmatprep.subr.mxu0 0.0
    %3596 = vmatpush1.msra.mxu0 0.0
    %3597 = vmatprep.subr.mxu0 0.0
    %3598 = vmatpush1.msra.mxu0 0.0
    %3599 = vmatprep.subr.mxu0 0.0
    %3600 = vmatpush1.msra.mxu0 0.0
    %3601 = vmatprep.subr.mxu0 0.0
    %3602 = vmatpush1.msra.mxu0 0.0
    %3603 = vmatprep.subr.mxu0 0.0
    %3604 = vmatpush1.msra.mxu0 0.0
    %3605 = vmatprep.subr.mxu0 0.0
    %3606 = vmatpush1.msra.mxu0 0.0
    %3607 = vmatprep.subr.mxu0 0.0
    %3608 = vmatpush1.msra.mxu0 0.0
    %3609 = vmatprep.mubr.f32.mxu0 0.0
    %3610 = vmatmul.mubr.f32.gmra.mrb[0].mxu0 %v3537
    %v3611 = vpop.f32.mrb[0].mxu0
    %v3612 = vadd.f32 0.0, %v3611
    %v3613 = vpop.f32.mrb[0].mxu0
    %v3614 = vadd.f32 0.0, %v3613
    %3615 = vmatprep.mubr.f32.mxu0 0.0
    %3616 = vmatmul.mubr.f32.gmra.mrb[0].mxu0 %v3538
    %v3617 = vpop.f32.mrb[0].mxu0
    %v3618 = vadd.f32 0.0, %v3617
    %v3619 = vpop.f32.mrb[0].mxu0
    %v3620 = vadd.f32 0.0, %v3619
    %3621 = vmatprep.mubr.f32.mxu0 0.0
    %3622 = vmatmul.mubr.f32.gmra.mrb[0].mxu0 %v3539
    %v3623 = vpop.f32.mrb[0].mxu0
    %v3624 = vadd.f32 0.0, %v3623
    %v3625 = vpop.f32.mrb[0].mxu0
    %v3626 = vadd.f32 0.0, %v3625
    %3627 = vmatprep.mubr.f32.mxu0 0.0
    %3628 = vmatmul.mubr.f32.gmra.mrb[0].mxu0 %v3540
    %v3629 = vpop.f32.mrb[0].mxu0
    %v3630 = vadd.f32 0.0, %v3629
    %v3631 = vpop.f32.mrb[0].mxu0
    %v3632 = vadd.f32 0.0, %v3631
    %3633 = vdwg.mxu0
    %v3634 = vadd.f32 %v3480, %v3612
    %v3635 = vadd.f32 %v3481, %v3614
    %v3636 = vadd.f32 %v3482, %v3618
    %v3637 = vadd.f32 %v3483, %v3620
    %v3638 = vadd.f32 %v3484, %v3624
    %v3639 = vadd.f32 %v3485, %v3626
    %v3640 = vadd.f32 %v3486, %v3630
    %v3641 = vadd.f32 %v3487, %v3632
    %s3642 = scalar_lea.vmem [#allocation3], 16
    %v3643 = vld [vmem:[%s3642] sm:$0xf]
    %v3644 = vld [vmem:[%s3642 + $0x8] sm:$0xf]
    %v3645 = vld [vmem:[%s3642 + $0x10] sm:$0xf]
    %v3646 = vld [vmem:[%s3642 + $0x18] sm:$0xf]
    %v3647 = vld [vmem:[%s3642 + $0x30] sm:$0xf]
    %v3648 = vld [vmem:[%s3642 + $0x38] sm:$0xf]
    %v3649 = vld [vmem:[%s3642 + $0x40] sm:$0xf]
    %v3650 = vld [vmem:[%s3642 + $0x48] sm:$0xf]
    %s3651 = scalar_lea.vmem %s5, 1536
    %v3652 = vld [vmem:[%s3651] sm:$0xff]
    %v3653 = vld [vmem:[%s3651 + $0x8] sm:$0xff]
    %v3654 = vld [vmem:[%s3651 + $0x10] sm:$0xff]
    %v3655 = vld [vmem:[%s3651 + $0x18] sm:$0xff]
    %v3656 = vld [vmem:[%s3651 + $0x20] sm:$0xff]
    %v3657 = vld [vmem:[%s3651 + $0x28] sm:$0xff]
    %v3658 = vld [vmem:[%s3651 + $0x30] sm:$0xff]
    %v3659 = vld [vmem:[%s3651 + $0x38] sm:$0xff]
    %v3660 = vld [vmem:[%s3651 + $0x40] sm:$0xff]
    %v3661 = vld [vmem:[%s3651 + $0x48] sm:$0xff]
    %v3662 = vld [vmem:[%s3651 + $0x50] sm:$0xff]
    %v3663 = vld [vmem:[%s3651 + $0x58] sm:$0xff]
    %v3664 = vld [vmem:[%s3651 + $0x60] sm:$0xff]
    %v3665 = vld [vmem:[%s3651 + $0x68] sm:$0xff]
    %v3666 = vld [vmem:[%s3651 + $0x70] sm:$0xff]
    %v3667 = vld [vmem:[%s3651 + $0x78] sm:$0xff]
    %v3668 = vld [vmem:[%s3651 + $0x80] sm:$0xff]
    %v3669 = vld [vmem:[%s3651 + $0x88] sm:$0xff]
    %v3670 = vld [vmem:[%s3651 + $0x90] sm:$0xff]
    %v3671 = vld [vmem:[%s3651 + $0x98] sm:$0xff]
    %v3672 = vld [vmem:[%s3651 + $0xa0] sm:$0xff]
    %v3673 = vld [vmem:[%s3651 + $0xa8] sm:$0xff]
    %v3674 = vld [vmem:[%s3651 + $0xb0] sm:$0xff]
    %v3675 = vld [vmem:[%s3651 + $0xb8] sm:$0xff]
    %v3676 = vld [vmem:[%s3651 + $0xc0] sm:$0xff]
    %v3677 = vld [vmem:[%s3651 + $0xc8] sm:$0xff]
    %v3678 = vld [vmem:[%s3651 + $0xd0] sm:$0xff]
    %v3679 = vld [vmem:[%s3651 + $0xd8] sm:$0xff]
    %v3680 = vld [vmem:[%s3651 + $0xe0] sm:$0xff]
    %v3681 = vld [vmem:[%s3651 + $0xe8] sm:$0xff]
    %v3682 = vld [vmem:[%s3651 + $0xf0] sm:$0xff]
    %v3683 = vld [vmem:[%s3651 + $0xf8] sm:$0xff]
    %v3692 = vcombine.low %v3643, %v3644
    %v3693 = vcombine.low %v3645, %v3646
    %v3694 = vcombine.low %v3647, %v3648
    %v3695 = vcombine.low %v3649, %v3650
    %3700 = vmatprep.subr.mxu0 %v3653
    %3701 = vmatpush1.msra.mxu0 %v3652
    %3702 = vmatprep.subr.mxu0 %v3655
    %3703 = vmatpush1.msra.mxu0 %v3654
    %3704 = vmatprep.subr.mxu0 %v3657
    %3705 = vmatpush1.msra.mxu0 %v3656
    %3706 = vmatprep.subr.mxu0 %v3659
    %3707 = vmatpush1.msra.mxu0 %v3658
    %3708 = vmatprep.subr.mxu0 %v3661
    %3709 = vmatpush1.msra.mxu0 %v3660
    %3710 = vmatprep.subr.mxu0 %v3663
    %3711 = vmatpush1.msra.mxu0 %v3662
    %3712 = vmatprep.subr.mxu0 %v3665
    %3713 = vmatpush1.msra.mxu0 %v3664
    %3714 = vmatprep.subr.mxu0 %v3667
    %3715 = vmatpush1.msra.mxu0 %v3666
    %3716 = vmatprep.subr.mxu0 %v3669
    %3717 = vmatpush1.msra.mxu0 %v3668
    %3718 = vmatprep.subr.mxu0 %v3671
    %3719 = vmatpush1.msra.mxu0 %v3670
    %3720 = vmatprep.subr.mxu0 %v3673
    %3721 = vmatpush1.msra.mxu0 %v3672
    %3722 = vmatprep.subr.mxu0 %v3675
    %3723 = vmatpush1.msra.mxu0 %v3674
    %3724 = vmatprep.subr.mxu0 %v3677
    %3725 = vmatpush1.msra.mxu0 %v3676
    %3726 = vmatprep.subr.mxu0 %v3679
    %3727 = vmatpush1.msra.mxu0 %v3678
    %3728 = vmatprep.subr.mxu0 %v3681
    %3729 = vmatpush1.msra.mxu0 %v3680
    %3730 = vmatprep.subr.mxu0 %v3683
    %3731 = vmatpush1.msra.mxu0 %v3682
    %3732 = vmatprep.subr.mxu0 0.0
    %3733 = vmatpush1.msra.mxu0 0.0
    %3734 = vmatprep.subr.mxu0 0.0
    %3735 = vmatpush1.msra.mxu0 0.0
    %3736 = vmatprep.subr.mxu0 0.0
    %3737 = vmatpush1.msra.mxu0 0.0
    %3738 = vmatprep.subr.mxu0 0.0
    %3739 = vmatpush1.msra.mxu0 0.0
    %3740 = vmatprep.subr.mxu0 0.0
    %3741 = vmatpush1.msra.mxu0 0.0
    %3742 = vmatprep.subr.mxu0 0.0
    %3743 = vmatpush1.msra.mxu0 0.0
    %3744 = vmatprep.subr.mxu0 0.0
    %3745 = vmatpush1.msra.mxu0 0.0
    %3746 = vmatprep.subr.mxu0 0.0
    %3747 = vmatpush1.msra.mxu0 0.0
    %3748 = vmatprep.subr.mxu0 0.0
    %3749 = vmatpush1.msra.mxu0 0.0
    %3750 = vmatprep.subr.mxu0 0.0
    %3751 = vmatpush1.msra.mxu0 0.0
    %3752 = vmatprep.subr.mxu0 0.0
    %3753 = vmatpush1.msra.mxu0 0.0
    %3754 = vmatprep.subr.mxu0 0.0
    %3755 = vmatpush1.msra.mxu0 0.0
    %3756 = vmatprep.subr.mxu0 0.0
    %3757 = vmatpush1.msra.mxu0 0.0
    %3758 = vmatprep.subr.mxu0 0.0
    %3759 = vmatpush1.msra.mxu0 0.0
    %3760 = vmatprep.subr.mxu0 0.0
    %3761 = vmatpush1.msra.mxu0 0.0
    %3762 = vmatprep.subr.mxu0 0.0
    %3763 = vmatpush1.msra.mxu0 0.0
    %3764 = vmatprep.mubr.f32.mxu0 0.0
    %3765 = vmatmul.mubr.f32.gmra.mrb[0].mxu0 %v3692
    %v3766 = vpop.f32.mrb[0].mxu0
    %v3767 = vadd.f32 0.0, %v3766
    %v3768 = vpop.f32.mrb[0].mxu0
    %v3769 = vadd.f32 0.0, %v3768
    %3770 = vmatprep.mubr.f32.mxu0 0.0
    %3771 = vmatmul.mubr.f32.gmra.mrb[0].mxu0 %v3693
    %v3772 = vpop.f32.mrb[0].mxu0
    %v3773 = vadd.f32 0.0, %v3772
    %v3774 = vpop.f32.mrb[0].mxu0
    %v3775 = vadd.f32 0.0, %v3774
    %3776 = vmatprep.mubr.f32.mxu0 0.0
    %3777 = vmatmul.mubr.f32.gmra.mrb[0].mxu0 %v3694
    %v3778 = vpop.f32.mrb[0].mxu0
    %v3779 = vadd.f32 0.0, %v3778
    %v3780 = vpop.f32.mrb[0].mxu0
    %v3781 = vadd.f32 0.0, %v3780
    %3782 = vmatprep.mubr.f32.mxu0 0.0
    %3783 = vmatmul.mubr.f32.gmra.mrb[0].mxu0 %v3695
    %v3784 = vpop.f32.mrb[0].mxu0
    %v3785 = vadd.f32 0.0, %v3784
    %v3786 = vpop.f32.mrb[0].mxu0
    %v3787 = vadd.f32 0.0, %v3786
    %3788 = vdwg.mxu0
    %v3789 = vadd.f32 %v3634, %v3767
    %v3790 = vadd.f32 %v3635, %v3769
    %v3791 = vadd.f32 %v3636, %v3773
    %v3792 = vadd.f32 %v3637, %v3775
    %v3793 = vadd.f32 %v3638, %v3779
    %v3794 = vadd.f32 %v3639, %v3781
    %v3795 = vadd.f32 %v3640, %v3785
    %v3796 = vadd.f32 %v3641, %v3787
    %v3797 = vld [vmem:[%s3642 + $0x1] sm:$0xf]
    %v3798 = vld [vmem:[%s3642 + $0x9] sm:$0xf]
    %v3799 = vld [vmem:[%s3642 + $0x11] sm:$0xf]
    %v3800 = vld [vmem:[%s3642 + $0x19] sm:$0xf]
    %v3801 = vld [vmem:[%s3642 + $0x31] sm:$0xf]
    %v3802 = vld [vmem:[%s3642 + $0x39] sm:$0xf]
    %v3803 = vld [vmem:[%s3642 + $0x41] sm:$0xf]
    %v3804 = vld [vmem:[%s3642 + $0x49] sm:$0xf]
    %s3805 = scalar_lea.vmem %s5, 1792
    %v3806 = vld [vmem:[%s3805] sm:$0xff]
    %v3807 = vld [vmem:[%s3805 + $0x8] sm:$0xff]
    %v3808 = vld [vmem:[%s3805 + $0x10] sm:$0xff]
    %v3809 = vld [vmem:[%s3805 + $0x18] sm:$0xff]
    %v3810 = vld [vmem:[%s3805 + $0x20] sm:$0xff]
    %v3811 = vld [vmem:[%s3805 + $0x28] sm:$0xff]
    %v3812 = vld [vmem:[%s3805 + $0x30] sm:$0xff]
    %v3813 = vld [vmem:[%s3805 + $0x38] sm:$0xff]
    %v3814 = vld [vmem:[%s3805 + $0x40] sm:$0xff]
    %v3815 = vld [vmem:[%s3805 + $0x48] sm:$0xff]
    %v3816 = vld [vmem:[%s3805 + $0x50] sm:$0xff]
    %v3817 = vld [vmem:[%s3805 + $0x58] sm:$0xff]
    %v3818 = vld [vmem:[%s3805 + $0x60] sm:$0xff]
    %v3819 = vld [vmem:[%s3805 + $0x68] sm:$0xff]
    %v3820 = vld [vmem:[%s3805 + $0x70] sm:$0xff]
    %v3821 = vld [vmem:[%s3805 + $0x78] sm:$0xff]
    %v3822 = vld [vmem:[%s3805 + $0x80] sm:$0xff]
    %v3823 = vld [vmem:[%s3805 + $0x88] sm:$0xff]
    %v3824 = vld [vmem:[%s3805 + $0x90] sm:$0xff]
    %v3825 = vld [vmem:[%s3805 + $0x98] sm:$0xff]
    %v3826 = vld [vmem:[%s3805 + $0xa0] sm:$0xff]
    %v3827 = vld [vmem:[%s3805 + $0xa8] sm:$0xff]
    %v3828 = vld [vmem:[%s3805 + $0xb0] sm:$0xff]
    %v3829 = vld [vmem:[%s3805 + $0xb8] sm:$0xff]
    %v3830 = vld [vmem:[%s3805 + $0xc0] sm:$0xff]
    %v3831 = vld [vmem:[%s3805 + $0xc8] sm:$0xff]
    %v3832 = vld [vmem:[%s3805 + $0xd0] sm:$0xff]
    %v3833 = vld [vmem:[%s3805 + $0xd8] sm:$0xff]
    %v3834 = vld [vmem:[%s3805 + $0xe0] sm:$0xff]
    %v3835 = vld [vmem:[%s3805 + $0xe8] sm:$0xff]
    %v3836 = vld [vmem:[%s3805 + $0xf0] sm:$0xff]
    %v3837 = vld [vmem:[%s3805 + $0xf8] sm:$0xff]
    %v3846 = vcombine.low %v3797, %v3798
    %v3847 = vcombine.low %v3799, %v3800
    %v3848 = vcombine.low %v3801, %v3802
    %v3849 = vcombine.low %v3803, %v3804
    %3854 = vmatprep.subr.mxu0 %v3807
    %3855 = vmatpush1.msra.mxu0 %v3806
    %3856 = vmatprep.subr.mxu0 %v3809
    %3857 = vmatpush1.msra.mxu0 %v3808
    %3858 = vmatprep.subr.mxu0 %v3811
    %3859 = vmatpush1.msra.mxu0 %v3810
    %3860 = vmatprep.subr.mxu0 %v3813
    %3861 = vmatpush1.msra.mxu0 %v3812
    %3862 = vmatprep.subr.mxu0 %v3815
    %3863 = vmatpush1.msra.mxu0 %v3814
    %3864 = vmatprep.subr.mxu0 %v3817
    %3865 = vmatpush1.msra.mxu0 %v3816
    %3866 = vmatprep.subr.mxu0 %v3819
    %3867 = vmatpush1.msra.mxu0 %v3818
    %3868 = vmatprep.subr.mxu0 %v3821
    %3869 = vmatpush1.msra.mxu0 %v3820
    %3870 = vmatprep.subr.mxu0 %v3823
    %3871 = vmatpush1.msra.mxu0 %v3822
    %3872 = vmatprep.subr.mxu0 %v3825
    %3873 = vmatpush1.msra.mxu0 %v3824
    %3874 = vmatprep.subr.mxu0 %v3827
    %3875 = vmatpush1.msra.mxu0 %v3826
    %3876 = vmatprep.subr.mxu0 %v3829
    %3877 = vmatpush1.msra.mxu0 %v3828
    %3878 = vmatprep.subr.mxu0 %v3831
    %3879 = vmatpush1.msra.mxu0 %v3830
    %3880 = vmatprep.subr.mxu0 %v3833
    %3881 = vmatpush1.msra.mxu0 %v3832
    %3882 = vmatprep.subr.mxu0 %v3835
    %3883 = vmatpush1.msra.mxu0 %v3834
    %3884 = vmatprep.subr.mxu0 %v3837
    %3885 = vmatpush1.msra.mxu0 %v3836
    %3886 = vmatprep.subr.mxu0 0.0
    %3887 = vmatpush1.msra.mxu0 0.0
    %3888 = vmatprep.subr.mxu0 0.0
    %3889 = vmatpush1.msra.mxu0 0.0
    %3890 = vmatprep.subr.mxu0 0.0
    %3891 = vmatpush1.msra.mxu0 0.0
    %3892 = vmatprep.subr.mxu0 0.0
    %3893 = vmatpush1.msra.mxu0 0.0
    %3894 = vmatprep.subr.mxu0 0.0
    %3895 = vmatpush1.msra.mxu0 0.0
    %3896 = vmatprep.subr.mxu0 0.0
    %3897 = vmatpush1.msra.mxu0 0.0
    %3898 = vmatprep.subr.mxu0 0.0
    %3899 = vmatpush1.msra.mxu0 0.0
    %3900 = vmatprep.subr.mxu0 0.0
    %3901 = vmatpush1.msra.mxu0 0.0
    %3902 = vmatprep.subr.mxu0 0.0
    %3903 = vmatpush1.msra.mxu0 0.0
    %3904 = vmatprep.subr.mxu0 0.0
    %3905 = vmatpush1.msra.mxu0 0.0
    %3906 = vmatprep.subr.mxu0 0.0
    %3907 = vmatpush1.msra.mxu0 0.0
    %3908 = vmatprep.subr.mxu0 0.0
    %3909 = vmatpush1.msra.mxu0 0.0
    %3910 = vmatprep.subr.mxu0 0.0
    %3911 = vmatpush1.msra.mxu0 0.0
    %3912 = vmatprep.subr.mxu0 0.0
    %3913 = vmatpush1.msra.mxu0 0.0
    %3914 = vmatprep.subr.mxu0 0.0
    %3915 = vmatpush1.msra.mxu0 0.0
    %3916 = vmatprep.subr.mxu0 0.0
    %3917 = vmatpush1.msra.mxu0 0.0
    %3918 = vmatprep.mubr.f32.mxu0 0.0
    %3919 = vmatmul.mubr.f32.gmra.mrb[0].mxu0 %v3846
    %v3920 = vpop.f32.mrb[0].mxu0
    %v3921 = vadd.f32 0.0, %v3920
    %v3922 = vpop.f32.mrb[0].mxu0
    %v3923 = vadd.f32 0.0, %v3922
    %3924 = vmatprep.mubr.f32.mxu0 0.0
    %3925 = vmatmul.mubr.f32.gmra.mrb[0].mxu0 %v3847
    %v3926 = vpop.f32.mrb[0].mxu0
    %v3927 = vadd.f32 0.0, %v3926
    %v3928 = vpop.f32.mrb[0].mxu0
    %v3929 = vadd.f32 0.0, %v3928
    %3930 = vmatprep.mubr.f32.mxu0 0.0
    %3931 = vmatmul.mubr.f32.gmra.mrb[0].mxu0 %v3848
    %v3932 = vpop.f32.mrb[0].mxu0
    %v3933 = vadd.f32 0.0, %v3932
    %v3934 = vpop.f32.mrb[0].mxu0
    %v3935 = vadd.f32 0.0, %v3934
    %3936 = vmatprep.mubr.f32.mxu0 0.0
    %3937 = vmatmul.mubr.f32.gmra.mrb[0].mxu0 %v3849
    %v3938 = vpop.f32.mrb[0].mxu0
    %v3939 = vadd.f32 0.0, %v3938
    %v3940 = vpop.f32.mrb[0].mxu0
    %v3941 = vadd.f32 0.0, %v3940
    %3942 = vdwg.mxu0
    %v3943 = vadd.f32 %v3789, %v3921
    %v3944 = vadd.f32 %v3790, %v3923
    %v3945 = vadd.f32 %v3791, %v3927
    %v3946 = vadd.f32 %v3792, %v3929
    %v3947 = vadd.f32 %v3793, %v3933
    %v3948 = vadd.f32 %v3794, %v3935
    %v3949 = vadd.f32 %v3795, %v3939
    %v3950 = vadd.f32 %v3796, %v3941
    %v3951 = vld [vmem:[%s3642 + $0x2] sm:$0xf]
    %v3952 = vld [vmem:[%s3642 + $0xa] sm:$0xf]
    %v3953 = vld [vmem:[%s3642 + $0x12] sm:$0xf]
    %v3954 = vld [vmem:[%s3642 + $0x1a] sm:$0xf]
    %v3955 = vld [vmem:[%s3642 + $0x32] sm:$0xf]
    %v3956 = vld [vmem:[%s3642 + $0x3a] sm:$0xf]
    %v3957 = vld [vmem:[%s3642 + $0x42] sm:$0xf]
    %v3958 = vld [vmem:[%s3642 + $0x4a] sm:$0xf]
    %s3959 = scalar_lea.vmem %s5, 2048
    %v3960 = vld [vmem:[%s3959] sm:$0xff]
    %v3961 = vld [vmem:[%s3959 + $0x8] sm:$0xff]
    %v3962 = vld [vmem:[%s3959 + $0x10] sm:$0xff]
    %v3963 = vld [vmem:[%s3959 + $0x18] sm:$0xff]
    %v3964 = vld [vmem:[%s3959 + $0x20] sm:$0xff]
    %v3965 = vld [vmem:[%s3959 + $0x28] sm:$0xff]
    %v3966 = vld [vmem:[%s3959 + $0x30] sm:$0xff]
    %v3967 = vld [vmem:[%s3959 + $0x38] sm:$0xff]
    %v3968 = vld [vmem:[%s3959 + $0x40] sm:$0xff]
    %v3969 = vld [vmem:[%s3959 + $0x48] sm:$0xff]
    %v3970 = vld [vmem:[%s3959 + $0x50] sm:$0xff]
    %v3971 = vld [vmem:[%s3959 + $0x58] sm:$0xff]
    %v3972 = vld [vmem:[%s3959 + $0x60] sm:$0xff]
    %v3973 = vld [vmem:[%s3959 + $0x68] sm:$0xff]
    %v3974 = vld [vmem:[%s3959 + $0x70] sm:$0xff]
    %v3975 = vld [vmem:[%s3959 + $0x78] sm:$0xff]
    %v3976 = vld [vmem:[%s3959 + $0x80] sm:$0xff]
    %v3977 = vld [vmem:[%s3959 + $0x88] sm:$0xff]
    %v3978 = vld [vmem:[%s3959 + $0x90] sm:$0xff]
    %v3979 = vld [vmem:[%s3959 + $0x98] sm:$0xff]
    %v3980 = vld [vmem:[%s3959 + $0xa0] sm:$0xff]
    %v3981 = vld [vmem:[%s3959 + $0xa8] sm:$0xff]
    %v3982 = vld [vmem:[%s3959 + $0xb0] sm:$0xff]
    %v3983 = vld [vmem:[%s3959 + $0xb8] sm:$0xff]
    %v3984 = vld [vmem:[%s3959 + $0xc0] sm:$0xff]
    %v3985 = vld [vmem:[%s3959 + $0xc8] sm:$0xff]
    %v3986 = vld [vmem:[%s3959 + $0xd0] sm:$0xff]
    %v3987 = vld [vmem:[%s3959 + $0xd8] sm:$0xff]
    %v3988 = vld [vmem:[%s3959 + $0xe0] sm:$0xff]
    %v3989 = vld [vmem:[%s3959 + $0xe8] sm:$0xff]
    %v3990 = vld [vmem:[%s3959 + $0xf0] sm:$0xff]
    %v3991 = vld [vmem:[%s3959 + $0xf8] sm:$0xff]
    %v4000 = vcombine.low %v3951, %v3952
    %v4001 = vcombine.low %v3953, %v3954
    %v4002 = vcombine.low %v3955, %v3956
    %v4003 = vcombine.low %v3957, %v3958
    %4008 = vmatprep.subr.mxu0 %v3961
    %4009 = vmatpush1.msra.mxu0 %v3960
    %4010 = vmatprep.subr.mxu0 %v3963
    %4011 = vmatpush1.msra.mxu0 %v3962
    %4012 = vmatprep.subr.mxu0 %v3965
    %4013 = vmatpush1.msra.mxu0 %v3964
    %4014 = vmatprep.subr.mxu0 %v3967
    %4015 = vmatpush1.msra.mxu0 %v3966
    %4016 = vmatprep.subr.mxu0 %v3969
    %4017 = vmatpush1.msra.mxu0 %v3968
    %4018 = vmatprep.subr.mxu0 %v3971
    %4019 = vmatpush1.msra.mxu0 %v3970
    %4020 = vmatprep.subr.mxu0 %v3973
    %4021 = vmatpush1.msra.mxu0 %v3972
    %4022 = vmatprep.subr.mxu0 %v3975
    %4023 = vmatpush1.msra.mxu0 %v3974
    %4024 = vmatprep.subr.mxu0 %v3977
    %4025 = vmatpush1.msra.mxu0 %v3976
    %4026 = vmatprep.subr.mxu0 %v3979
    %4027 = vmatpush1.msra.mxu0 %v3978
    %4028 = vmatprep.subr.mxu0 %v3981
    %4029 = vmatpush1.msra.mxu0 %v3980
    %4030 = vmatprep.subr.mxu0 %v3983
    %4031 = vmatpush1.msra.mxu0 %v3982
    %4032 = vmatprep.subr.mxu0 %v3985
    %4033 = vmatpush1.msra.mxu0 %v3984
    %4034 = vmatprep.subr.mxu0 %v3987
    %4035 = vmatpush1.msra.mxu0 %v3986
    %4036 = vmatprep.subr.mxu0 %v3989
    %4037 = vmatpush1.msra.mxu0 %v3988
    %4038 = vmatprep.subr.mxu0 %v3991
    %4039 = vmatpush1.msra.mxu0 %v3990
    %4040 = vmatprep.subr.mxu0 0.0
    %4041 = vmatpush1.msra.mxu0 0.0
    %4042 = vmatprep.subr.mxu0 0.0
    %4043 = vmatpush1.msra.mxu0 0.0
    %4044 = vmatprep.subr.mxu0 0.0
    %4045 = vmatpush1.msra.mxu0 0.0
    %4046 = vmatprep.subr.mxu0 0.0
    %4047 = vmatpush1.msra.mxu0 0.0
    %4048 = vmatprep.subr.mxu0 0.0
    %4049 = vmatpush1.msra.mxu0 0.0
    %4050 = vmatprep.subr.mxu0 0.0
    %4051 = vmatpush1.msra.mxu0 0.0
    %4052 = vmatprep.subr.mxu0 0.0
    %4053 = vmatpush1.msra.mxu0 0.0
    %4054 = vmatprep.subr.mxu0 0.0
    %4055 = vmatpush1.msra.mxu0 0.0
    %4056 = vmatprep.subr.mxu0 0.0
    %4057 = vmatpush1.msra.mxu0 0.0
    %4058 = vmatprep.subr.mxu0 0.0
    %4059 = vmatpush1.msra.mxu0 0.0
    %4060 = vmatprep.subr.mxu0 0.0
    %4061 = vmatpush1.msra.mxu0 0.0
    %4062 = vmatprep.subr.mxu0 0.0
    %4063 = vmatpush1.msra.mxu0 0.0
    %4064 = vmatprep.subr.mxu0 0.0
    %4065 = vmatpush1.msra.mxu0 0.0
    %4066 = vmatprep.subr.mxu0 0.0
    %4067 = vmatpush1.msra.mxu0 0.0
    %4068 = vmatprep.subr.mxu0 0.0
    %4069 = vmatpush1.msra.mxu0 0.0
    %4070 = vmatprep.subr.mxu0 0.0
    %4071 = vmatpush1.msra.mxu0 0.0
    %4072 = vmatprep.mubr.f32.mxu0 0.0
    %4073 = vmatmul.mubr.f32.gmra.mrb[0].mxu0 %v4000
    %v4074 = vpop.f32.mrb[0].mxu0
    %v4075 = vadd.f32 0.0, %v4074
    %v4076 = vpop.f32.mrb[0].mxu0
    %v4077 = vadd.f32 0.0, %v4076
    %4078 = vmatprep.mubr.f32.mxu0 0.0
    %4079 = vmatmul.mubr.f32.gmra.mrb[0].mxu0 %v4001
    %v4080 = vpop.f32.mrb[0].mxu0
    %v4081 = vadd.f32 0.0, %v4080
    %v4082 = vpop.f32.mrb[0].mxu0
    %v4083 = vadd.f32 0.0, %v4082
    %4084 = vmatprep.mubr.f32.mxu0 0.0
    %4085 = vmatmul.mubr.f32.gmra.mrb[0].mxu0 %v4002
    %v4086 = vpop.f32.mrb[0].mxu0
    %v4087 = vadd.f32 0.0, %v4086
    %v4088 = vpop.f32.mrb[0].mxu0
    %v4089 = vadd.f32 0.0, %v4088
    %4090 = vmatprep.mubr.f32.mxu0 0.0
    %4091 = vmatmul.mubr.f32.gmra.mrb[0].mxu0 %v4003
    %v4092 = vpop.f32.mrb[0].mxu0
    %v4093 = vadd.f32 0.0, %v4092
    %v4094 = vpop.f32.mrb[0].mxu0
    %v4095 = vadd.f32 0.0, %v4094
    %4096 = vdwg.mxu0
    %v4097 = vadd.f32 %v3943, %v4075
    %v4098 = vadd.f32 %v3944, %v4077
    %v4099 = vadd.f32 %v3945, %v4081
    %v4100 = vadd.f32 %v3946, %v4083
    %v4101 = vadd.f32 %v3947, %v4087
    %v4102 = vadd.f32 %v3948, %v4089
    %v4103 = vadd.f32 %v3949, %v4093
    %v4104 = vadd.f32 %v3950, %v4095
    %v4105 = vld [vmem:[%s6] sm:$0x3]
    %v4107 = vlaneseq
    %v4108 = vshrl.u32 %v4107, 7
    %v4109 = vsub.s32 0, %v4108
    %v4110 = vrot.slane %v4105, %v4109
    %v4111 = vlaneseq
    %v4112 = vshrl.u32 %v4111, 7
    %v4113 = vsub.s32 1, %v4112
    %v4114 = vrot.slane %v4105, %v4113
    %v4117 = vadd.f32 %v4097, %v4110
    %v4118 = vadd.f32 %v4098, %v4114
    %v4119 = vadd.f32 %v4099, %v4110
    %v4120 = vadd.f32 %v4100, %v4114
    %v4121 = vadd.f32 %v4101, %v4110
    %v4122 = vadd.f32 %v4102, %v4114
    %v4123 = vadd.f32 %v4103, %v4110
    %v4124 = vadd.f32 %v4104, %v4114
    %v4125 = vmax.f32 %v4117, 0.0
    %v4126 = vmax.f32 %v4118, 0.0
    %v4127 = vmax.f32 %v4119, 0.0
    %v4128 = vmax.f32 %v4120, 0.0
    %v4129 = vmax.f32 %v4121, 0.0
    %v4130 = vmax.f32 %v4122, 0.0
    %v4131 = vmax.f32 %v4123, 0.0
    %v4132 = vmax.f32 %v4124, 0.0
    %4133 = vst [vmem:[#allocation4] sm:$0x3f] 0.0
    %4134 = vst [vmem:[#allocation4 + $0x8] sm:$0x3f] 0.0
    %4135 = vst [vmem:[#allocation4 + $0x10] sm:$0x3f] 0.0
    %4136 = vst [vmem:[#allocation4 + $0x18] sm:$0x3f] 0.0
    %4137 = vst [vmem:[#allocation4 + $0x20] sm:$0x3f] 0.0
    %4138 = vst [vmem:[#allocation4 + $0x28] sm:$0x3f] 0.0
    %4139 = vst [vmem:[#allocation4 + $0x30] sm:$0x3f] 0.0
    %4140 = vst [vmem:[#allocation4 + $0x38] sm:$0x3f] 0.0
    %4141 = vst [vmem:[#allocation4 + $0x40] sm:$0x3f] 0.0
    %4142 = vst [vmem:[#allocation4 + $0x48] sm:$0x3f] 0.0
    %4143 = vst [vmem:[#allocation4 + $0x50] sm:$0x3f] 0.0
    %4144 = vst [vmem:[#allocation4 + $0x58] sm:$0x3f] 0.0
    %4145 = vst [vmem:[#allocation4 + $0x60] sm:$0x3f] 0.0
    %4146 = vst [vmem:[#allocation4 + $0x68] sm:$0x3f] 0.0
    %4147 = vst [vmem:[#allocation4 + $0x70] sm:$0x3f] 0.0
    %4148 = vst [vmem:[#allocation4 + $0x78] sm:$0x3f] 0.0
    %4149 = vst [vmem:[#allocation4 + $0x80] sm:$0x3f] 0.0
    %4150 = vst [vmem:[#allocation4 + $0x88] sm:$0x3f] 0.0
    %4151 = vst [vmem:[#allocation4 + $0x90] sm:$0x3f] 0.0
    %4152 = vst [vmem:[#allocation4 + $0x98] sm:$0x3f] 0.0
    %4153 = vst [vmem:[#allocation4 + $0xa0] sm:$0x3f] 0.0
    %4154 = vst [vmem:[#allocation4 + $0xa8] sm:$0x3f] 0.0
    %4155 = vst [vmem:[#allocation4 + $0xb0] sm:$0x3f] 0.0
    %4156 = vst [vmem:[#allocation4 + $0xb8] sm:$0x3f] 0.0
    %v4165 = vcombine.low %v4125, %v4126
    %v4166 = vcombine.high %v4125, %v4126
    %v4167 = vcombine.low %v4127, %v4128
    %v4168 = vcombine.high %v4127, %v4128
    %v4169 = vcombine.low %v4129, %v4130
    %v4170 = vcombine.high %v4129, %v4130
    %v4171 = vcombine.low %v4131, %v4132
    %v4172 = vcombine.high %v4131, %v4132
    %v4173 = vcombine.high %v4165, %v4165
    %v4174 = vcombine.high %v4166, %v4166
    %v4175 = vcombine.high %v4167, %v4167
    %v4176 = vcombine.high %v4168, %v4168
    %v4177 = vcombine.high %v4169, %v4169
    %v4178 = vcombine.high %v4170, %v4170
    %v4179 = vcombine.high %v4171, %v4171
    %v4180 = vcombine.high %v4172, %v4172
    %v4181 = vrot.slane %v4165, 7
    %v4182 = vrot.slane %v4173, 7
    %v4183 = vrot.slane %v4166, 7
    %v4184 = vrot.slane %v4174, 7
    %v4185 = vrot.slane %v4167, 7
    %v4186 = vrot.slane %v4175, 7
    %v4187 = vrot.slane %v4168, 7
    %v4188 = vrot.slane %v4176, 7
    %v4189 = vrot.slane %v4169, 7
    %v4190 = vrot.slane %v4177, 7
    %v4191 = vrot.slane %v4170, 7
    %v4192 = vrot.slane %v4178, 7
    %v4193 = vrot.slane %v4171, 7
    %v4194 = vrot.slane %v4179, 7
    %v4195 = vrot.slane %v4172, 7
    %v4196 = vrot.slane %v4180, 7
    %s4213 = scalar_lea.vmem [#allocation4], 16
    %4214 = vst [vmem:[%s4213] sm:$0x1e] %v4181
    %4215 = vst [vmem:[%s4213 + $0x8] sm:$0x1e] %v4182
    %4216 = vst [vmem:[%s4213 + $0x10] sm:$0x1e] %v4183
    %4217 = vst [vmem:[%s4213 + $0x18] sm:$0x1e] %v4184
    %4218 = vst [vmem:[%s4213 + $0x20] sm:$0x1e] %v4185
    %4219 = vst [vmem:[%s4213 + $0x28] sm:$0x1e] %v4186
    %4220 = vst [vmem:[%s4213 + $0x30] sm:$0x1e] %v4187
    %4221 = vst [vmem:[%s4213 + $0x38] sm:$0x1e] %v4188
    %4222 = vst [vmem:[%s4213 + $0x60] sm:$0x1e] %v4189
    %4223 = vst [vmem:[%s4213 + $0x68] sm:$0x1e] %v4190
    %4224 = vst [vmem:[%s4213 + $0x70] sm:$0x1e] %v4191
    %4225 = vst [vmem:[%s4213 + $0x78] sm:$0x1e] %v4192
    %4226 = vst [vmem:[%s4213 + $0x80] sm:$0x1e] %v4193
    %4227 = vst [vmem:[%s4213 + $0x88] sm:$0x1e] %v4194
    %4228 = vst [vmem:[%s4213 + $0x90] sm:$0x1e] %v4195
    %4229 = vst [vmem:[%s4213 + $0x98] sm:$0x1e] %v4196
    %v4230 = vld [vmem:[#allocation4] sm:$0xf]
    %v4231 = vld [vmem:[#allocation4 + $0x8] sm:$0xf]
    %v4232 = vld [vmem:[#allocation4 + $0x10] sm:$0xf]
    %v4233 = vld [vmem:[#allocation4 + $0x18] sm:$0xf]
    %v4234 = vld [vmem:[#allocation4 + $0x20] sm:$0xf]
    %v4235 = vld [vmem:[#allocation4 + $0x28] sm:$0xf]
    %v4236 = vld [vmem:[#allocation4 + $0x30] sm:$0xf]
    %v4237 = vld [vmem:[#allocation4 + $0x38] sm:$0xf]
    %v4238 = vld [vmem:[#allocation4 + $0x60] sm:$0xf]
    %v4239 = vld [vmem:[#allocation4 + $0x68] sm:$0xf]
    %v4240 = vld [vmem:[#allocation4 + $0x70] sm:$0xf]
    %v4241 = vld [vmem:[#allocation4 + $0x78] sm:$0xf]
    %v4242 = vld [vmem:[#allocation4 + $0x80] sm:$0xf]
    %v4243 = vld [vmem:[#allocation4 + $0x88] sm:$0xf]
    %v4244 = vld [vmem:[#allocation4 + $0x90] sm:$0xf]
    %v4245 = vld [vmem:[#allocation4 + $0x98] sm:$0xf]
    %v4262 = vcombine.low %v4230, %v4231
    %v4263 = vcombine.low %v4232, %v4233
    %v4264 = vcombine.low %v4234, %v4235
    %v4265 = vcombine.low %v4236, %v4237
    %v4266 = vcombine.low %v4238, %v4239
    %v4267 = vcombine.low %v4240, %v4241
    %v4268 = vcombine.low %v4242, %v4243
    %v4269 = vcombine.low %v4244, %v4245
    %v4270 = vld [vmem:[%s7] sm:$0xff]
    %v4271 = vld [vmem:[%s7 + $0x8] sm:$0xff]
    %v4272 = vld [vmem:[%s7 + $0x10] sm:$0xff]
    %v4273 = vld [vmem:[%s7 + $0x18] sm:$0xff]
    %v4274 = vld [vmem:[%s7 + $0x20] sm:$0xff]
    %v4275 = vld [vmem:[%s7 + $0x28] sm:$0xff]
    %v4276 = vld [vmem:[%s7 + $0x30] sm:$0xff]
    %v4277 = vld [vmem:[%s7 + $0x38] sm:$0xff]
    %v4278 = vld [vmem:[%s7 + $0x40] sm:$0xff]
    %v4279 = vld [vmem:[%s7 + $0x48] sm:$0xff]
    %v4280 = vld [vmem:[%s7 + $0x50] sm:$0xff]
    %v4281 = vld [vmem:[%s7 + $0x58] sm:$0xff]
    %v4282 = vld [vmem:[%s7 + $0x60] sm:$0xff]
    %v4283 = vld [vmem:[%s7 + $0x68] sm:$0xff]
    %v4284 = vld [vmem:[%s7 + $0x70] sm:$0xff]
    %v4285 = vld [vmem:[%s7 + $0x78] sm:$0xff]
    %v4286 = vld [vmem:[%s7 + $0x80] sm:$0xff]
    %v4287 = vld [vmem:[%s7 + $0x88] sm:$0xff]
    %v4288 = vld [vmem:[%s7 + $0x90] sm:$0xff]
    %v4289 = vld [vmem:[%s7 + $0x98] sm:$0xff]
    %v4290 = vld [vmem:[%s7 + $0xa0] sm:$0xff]
    %v4291 = vld [vmem:[%s7 + $0xa8] sm:$0xff]
    %v4292 = vld [vmem:[%s7 + $0xb0] sm:$0xff]
    %v4293 = vld [vmem:[%s7 + $0xb8] sm:$0xff]
    %v4294 = vld [vmem:[%s7 + $0xc0] sm:$0xff]
    %v4295 = vld [vmem:[%s7 + $0xc8] sm:$0xff]
    %v4296 = vld [vmem:[%s7 + $0xd0] sm:$0xff]
    %v4297 = vld [vmem:[%s7 + $0xd8] sm:$0xff]
    %v4298 = vld [vmem:[%s7 + $0xe0] sm:$0xff]
    %v4299 = vld [vmem:[%s7 + $0xe8] sm:$0xff]
    %v4300 = vld [vmem:[%s7 + $0xf0] sm:$0xff]
    %v4301 = vld [vmem:[%s7 + $0xf8] sm:$0xff]
    %v4302 = vld [vmem:[#allocation4] sm:$0x1e]
    %v4303 = vld [vmem:[#allocation4 + $0x8] sm:$0x1e]
    %v4304 = vld [vmem:[#allocation4 + $0x10] sm:$0x1e]
    %v4305 = vld [vmem:[#allocation4 + $0x18] sm:$0x1e]
    %v4306 = vld [vmem:[#allocation4 + $0x20] sm:$0x1e]
    %v4307 = vld [vmem:[#allocation4 + $0x28] sm:$0x1e]
    %v4308 = vld [vmem:[#allocation4 + $0x30] sm:$0x1e]
    %v4309 = vld [vmem:[#allocation4 + $0x38] sm:$0x1e]
    %v4310 = vld [vmem:[#allocation4 + $0x60] sm:$0x1e]
    %v4311 = vld [vmem:[#allocation4 + $0x68] sm:$0x1e]
    %v4312 = vld [vmem:[#allocation4 + $0x70] sm:$0x1e]
    %v4313 = vld [vmem:[#allocation4 + $0x78] sm:$0x1e]
    %v4314 = vld [vmem:[#allocation4 + $0x80] sm:$0x1e]
    %v4315 = vld [vmem:[#allocation4 + $0x88] sm:$0x1e]
    %v4316 = vld [vmem:[#allocation4 + $0x90] sm:$0x1e]
    %v4317 = vld [vmem:[#allocation4 + $0x98] sm:$0x1e]
    %v4334 = vcombine.low %v4302, %v4303
    %v4335 = vcombine.high %v4302, %v4303
    %v4336 = vcombine.low %v4304, %v4305
    %v4337 = vcombine.high %v4304, %v4305
    %v4338 = vcombine.low %v4306, %v4307
    %v4339 = vcombine.high %v4306, %v4307
    %v4340 = vcombine.low %v4308, %v4309
    %v4341 = vcombine.high %v4308, %v4309
    %v4342 = vcombine.low %v4310, %v4311
    %v4343 = vcombine.high %v4310, %v4311
    %v4344 = vcombine.low %v4312, %v4313
    %v4345 = vcombine.high %v4312, %v4313
    %v4346 = vcombine.low %v4314, %v4315
    %v4347 = vcombine.high %v4314, %v4315
    %v4348 = vcombine.low %v4316, %v4317
    %v4349 = vcombine.high %v4316, %v4317
    %vm4350 = vcmask 1042432
    %vm4351 = vcmask 1046532
    %vm4352 = vmor %vm4350, %vm4351
    %v4353 = vrot.slane %v4334, 5
    %v4354 = vrot.slane %v4353, 4
    %v4355 = vrot.slane %v4335, 5
    %v4356 = vsel %vm4352, %v4354, %v4355
    %v4357 = vrot.slane %v4336, 5
    %v4358 = vrot.slane %v4357, 4
    %v4359 = vrot.slane %v4337, 5
    %v4360 = vsel %vm4352, %v4358, %v4359
    %v4361 = vrot.slane %v4338, 5
    %v4362 = vrot.slane %v4361, 4
    %v4363 = vrot.slane %v4339, 5
    %v4364 = vsel %vm4352, %v4362, %v4363
    %v4365 = vrot.slane %v4340, 5
    %v4366 = vrot.slane %v4365, 4
    %v4367 = vrot.slane %v4341, 5
    %v4368 = vsel %vm4352, %v4366, %v4367
    %v4369 = vrot.slane %v4342, 5
    %v4370 = vrot.slane %v4369, 4
    %v4371 = vrot.slane %v4343, 5
    %v4372 = vsel %vm4352, %v4370, %v4371
    %v4373 = vrot.slane %v4344, 5
    %v4374 = vrot.slane %v4373, 4
    %v4375 = vrot.slane %v4345, 5
    %v4376 = vsel %vm4352, %v4374, %v4375
    %v4377 = vrot.slane %v4346, 5
    %v4378 = vrot.slane %v4377, 4
    %v4379 = vrot.slane %v4347, 5
    %v4380 = vsel %vm4352, %v4378, %v4379
    %v4381 = vrot.slane %v4348, 5
    %v4382 = vrot.slane %v4381, 4
    %v4383 = vrot.slane %v4349, 5
    %v4384 = vsel %vm4352, %v4382, %v4383
    %s4385 = scalar_lea.vmem %s7, 256
    %v4386 = vld [vmem:[%s4385] sm:$0xff]
    %v4387 = vld [vmem:[%s4385 + $0x8] sm:$0xff]
    %v4388 = vld [vmem:[%s4385 + $0x10] sm:$0xff]
    %v4389 = vld [vmem:[%s4385 + $0x18] sm:$0xff]
    %v4390 = vld [vmem:[%s4385 + $0x20] sm:$0xff]
    %v4391 = vld [vmem:[%s4385 + $0x28] sm:$0xff]
    %v4392 = vld [vmem:[%s4385 + $0x30] sm:$0xff]
    %v4393 = vld [vmem:[%s4385 + $0x38] sm:$0xff]
    %v4394 = vld [vmem:[%s4385 + $0x40] sm:$0xff]
    %v4395 = vld [vmem:[%s4385 + $0x48] sm:$0xff]
    %v4396 = vld [vmem:[%s4385 + $0x50] sm:$0xff]
    %v4397 = vld [vmem:[%s4385 + $0x58] sm:$0xff]
    %v4398 = vld [vmem:[%s4385 + $0x60] sm:$0xff]
    %v4399 = vld [vmem:[%s4385 + $0x68] sm:$0xff]
    %v4400 = vld [vmem:[%s4385 + $0x70] sm:$0xff]
    %v4401 = vld [vmem:[%s4385 + $0x78] sm:$0xff]
    %v4402 = vld [vmem:[%s4385 + $0x80] sm:$0xff]
    %v4403 = vld [vmem:[%s4385 + $0x88] sm:$0xff]
    %v4404 = vld [vmem:[%s4385 + $0x90] sm:$0xff]
    %v4405 = vld [vmem:[%s4385 + $0x98] sm:$0xff]
    %v4406 = vld [vmem:[%s4385 + $0xa0] sm:$0xff]
    %v4407 = vld [vmem:[%s4385 + $0xa8] sm:$0xff]
    %v4408 = vld [vmem:[%s4385 + $0xb0] sm:$0xff]
    %v4409 = vld [vmem:[%s4385 + $0xb8] sm:$0xff]
    %v4410 = vld [vmem:[%s4385 + $0xc0] sm:$0xff]
    %v4411 = vld [vmem:[%s4385 + $0xc8] sm:$0xff]
    %v4412 = vld [vmem:[%s4385 + $0xd0] sm:$0xff]
    %v4413 = vld [vmem:[%s4385 + $0xd8] sm:$0xff]
    %v4414 = vld [vmem:[%s4385 + $0xe0] sm:$0xff]
    %v4415 = vld [vmem:[%s4385 + $0xe8] sm:$0xff]
    %v4416 = vld [vmem:[%s4385 + $0xf0] sm:$0xff]
    %v4417 = vld [vmem:[%s4385 + $0xf8] sm:$0xff]
    %v4418 = vcombine.low %v4356, %v4360
    %v4419 = vcombine.high %v4356, %v4360
    %v4420 = vcombine.low %v4364, %v4368
    %v4421 = vcombine.high %v4364, %v4368
    %v4422 = vcombine.low %v4372, %v4376
    %v4423 = vcombine.high %v4372, %v4376
    %v4424 = vcombine.low %v4380, %v4384
    %v4425 = vcombine.high %v4380, %v4384
    %4434 = vmatprep.subr.mxu0 0.0
    %4435 = vmatpush1.msra.mxu0 %v4386
    %4436 = vmatprep.subr.mxu0 0.0
    %4437 = vmatpush1.msra.mxu0 %v4387
    %4438 = vmatprep.subr.mxu0 0.0
    %4439 = vmatpush1.msra.mxu0 %v4388
    %4440 = vmatprep.subr.mxu0 0.0
    %4441 = vmatpush1.msra.mxu0 %v4389
    %4442 = vmatprep.subr.mxu0 0.0
    %4443 = vmatpush1.msra.mxu0 %v4390
    %4444 = vmatprep.subr.mxu0 0.0
    %4445 = vmatpush1.msra.mxu0 %v4391
    %4446 = vmatprep.subr.mxu0 0.0
    %4447 = vmatpush1.msra.mxu0 %v4392
    %4448 = vmatprep.subr.mxu0 0.0
    %4449 = vmatpush1.msra.mxu0 %v4393
    %4450 = vmatprep.subr.mxu0 0.0
    %4451 = vmatpush1.msra.mxu0 %v4394
    %4452 = vmatprep.subr.mxu0 0.0
    %4453 = vmatpush1.msra.mxu0 %v4395
    %4454 = vmatprep.subr.mxu0 0.0
    %4455 = vmatpush1.msra.mxu0 %v4396
    %4456 = vmatprep.subr.mxu0 0.0
    %4457 = vmatpush1.msra.mxu0 %v4397
    %4458 = vmatprep.subr.mxu0 0.0
    %4459 = vmatpush1.msra.mxu0 %v4398
    %4460 = vmatprep.subr.mxu0 0.0
    %4461 = vmatpush1.msra.mxu0 %v4399
    %4462 = vmatprep.subr.mxu0 0.0
    %4463 = vmatpush1.msra.mxu0 %v4400
    %4464 = vmatprep.subr.mxu0 0.0
    %4465 = vmatpush1.msra.mxu0 %v4401
    %4466 = vmatprep.subr.mxu0 0.0
    %4467 = vmatpush1.msra.mxu0 %v4402
    %4468 = vmatprep.subr.mxu0 0.0
    %4469 = vmatpush1.msra.mxu0 %v4403
    %4470 = vmatprep.subr.mxu0 0.0
    %4471 = vmatpush1.msra.mxu0 %v4404
    %4472 = vmatprep.subr.mxu0 0.0
    %4473 = vmatpush1.msra.mxu0 %v4405
    %4474 = vmatprep.subr.mxu0 0.0
    %4475 = vmatpush1.msra.mxu0 %v4406
    %4476 = vmatprep.subr.mxu0 0.0
    %4477 = vmatpush1.msra.mxu0 %v4407
    %4478 = vmatprep.subr.mxu0 0.0
    %4479 = vmatpush1.msra.mxu0 %v4408
    %4480 = vmatprep.subr.mxu0 0.0
    %4481 = vmatpush1.msra.mxu0 %v4409
    %4482 = vmatprep.subr.mxu0 0.0
    %4483 = vmatpush1.msra.mxu0 %v4410
    %4484 = vmatprep.subr.mxu0 0.0
    %4485 = vmatpush1.msra.mxu0 %v4411
    %4486 = vmatprep.subr.mxu0 0.0
    %4487 = vmatpush1.msra.mxu0 %v4412
    %4488 = vmatprep.subr.mxu0 0.0
    %4489 = vmatpush1.msra.mxu0 %v4413
    %4490 = vmatprep.subr.mxu0 0.0
    %4491 = vmatpush1.msra.mxu0 %v4414
    %4492 = vmatprep.subr.mxu0 0.0
    %4493 = vmatpush1.msra.mxu0 %v4415
    %4494 = vmatprep.subr.mxu0 0.0
    %4495 = vmatpush1.msra.mxu0 %v4416
    %4496 = vmatprep.subr.mxu0 0.0
    %4497 = vmatpush1.msra.mxu0 %v4417
    %4498 = vmatprep.mubr.f32.mxu0 %v4419
    %4499 = vmatmul.mubr.f32.gmra.mrb[0].mxu0 %v4418
    %v4500 = vpop.f32.mrb[0].mxu0
    %v4501 = vadd.f32 0.0, %v4500
    %v4502 = vpop.f32.mrb[0].mxu0
    %4503 = vmatprep.mubr.f32.mxu0 %v4421
    %4504 = vmatmul.mubr.f32.gmra.mrb[0].mxu0 %v4420
    %v4505 = vpop.f32.mrb[0].mxu0
    %v4506 = vadd.f32 0.0, %v4505
    %v4507 = vpop.f32.mrb[0].mxu0
    %4508 = vmatprep.mubr.f32.mxu0 %v4423
    %4509 = vmatmul.mubr.f32.gmra.mrb[0].mxu0 %v4422
    %v4510 = vpop.f32.mrb[0].mxu0
    %v4511 = vadd.f32 0.0, %v4510
    %v4512 = vpop.f32.mrb[0].mxu0
    %4513 = vmatprep.mubr.f32.mxu0 %v4425
    %4514 = vmatmul.mubr.f32.gmra.mrb[0].mxu0 %v4424
    %v4515 = vpop.f32.mrb[0].mxu0
    %v4516 = vadd.f32 0.0, %v4515
    %v4517 = vpop.f32.mrb[0].mxu0
    %4518 = vdwg.mxu0
    %v4519 = vcombine.low %v4262, %v4263
    %v4520 = vcombine.high %v4262, %v4263
    %v4521 = vcombine.low %v4264, %v4265
    %v4522 = vcombine.high %v4264, %v4265
    %v4523 = vcombine.low %v4266, %v4267
    %v4524 = vcombine.high %v4266, %v4267
    %v4525 = vcombine.low %v4268, %v4269
    %v4526 = vcombine.high %v4268, %v4269
    %4535 = vmatprep.subr.mxu0 0.0
    %4536 = vmatpush1.msra.mxu0 %v4270
    %4537 = vmatprep.subr.mxu0 0.0
    %4538 = vmatpush1.msra.mxu0 %v4271
    %4539 = vmatprep.subr.mxu0 0.0
    %4540 = vmatpush1.msra.mxu0 %v4272
    %4541 = vmatprep.subr.mxu0 0.0
    %4542 = vmatpush1.msra.mxu0 %v4273
    %4543 = vmatprep.subr.mxu0 0.0
    %4544 = vmatpush1.msra.mxu0 %v4274
    %4545 = vmatprep.subr.mxu0 0.0
    %4546 = vmatpush1.msra.mxu0 %v4275
    %4547 = vmatprep.subr.mxu0 0.0
    %4548 = vmatpush1.msra.mxu0 %v4276
    %4549 = vmatprep.subr.mxu0 0.0
    %4550 = vmatpush1.msra.mxu0 %v4277
    %4551 = vmatprep.subr.mxu0 0.0
    %4552 = vmatpush1.msra.mxu0 %v4278
    %4553 = vmatprep.subr.mxu0 0.0
    %4554 = vmatpush1.msra.mxu0 %v4279
    %4555 = vmatprep.subr.mxu0 0.0
    %4556 = vmatpush1.msra.mxu0 %v4280
    %4557 = vmatprep.subr.mxu0 0.0
    %4558 = vmatpush1.msra.mxu0 %v4281
    %4559 = vmatprep.subr.mxu0 0.0
    %4560 = vmatpush1.msra.mxu0 %v4282
    %4561 = vmatprep.subr.mxu0 0.0
    %4562 = vmatpush1.msra.mxu0 %v4283
    %4563 = vmatprep.subr.mxu0 0.0
    %4564 = vmatpush1.msra.mxu0 %v4284
    %4565 = vmatprep.subr.mxu0 0.0
    %4566 = vmatpush1.msra.mxu0 %v4285
    %4567 = vmatprep.subr.mxu0 0.0
    %4568 = vmatpush1.msra.mxu0 %v4286
    %4569 = vmatprep.subr.mxu0 0.0
    %4570 = vmatpush1.msra.mxu0 %v4287
    %4571 = vmatprep.subr.mxu0 0.0
    %4572 = vmatpush1.msra.mxu0 %v4288
    %4573 = vmatprep.subr.mxu0 0.0
    %4574 = vmatpush1.msra.mxu0 %v4289
    %4575 = vmatprep.subr.mxu0 0.0
    %4576 = vmatpush1.msra.mxu0 %v4290
    %4577 = vmatprep.subr.mxu0 0.0
    %4578 = vmatpush1.msra.mxu0 %v4291
    %4579 = vmatprep.subr.mxu0 0.0
    %4580 = vmatpush1.msra.mxu0 %v4292
    %4581 = vmatprep.subr.mxu0 0.0
    %4582 = vmatpush1.msra.mxu0 %v4293
    %4583 = vmatprep.subr.mxu0 0.0
    %4584 = vmatpush1.msra.mxu0 %v4294
    %4585 = vmatprep.subr.mxu0 0.0
    %4586 = vmatpush1.msra.mxu0 %v4295
    %4587 = vmatprep.subr.mxu0 0.0
    %4588 = vmatpush1.msra.mxu0 %v4296
    %4589 = vmatprep.subr.mxu0 0.0
    %4590 = vmatpush1.msra.mxu0 %v4297
    %4591 = vmatprep.subr.mxu0 0.0
    %4592 = vmatpush1.msra.mxu0 %v4298
    %4593 = vmatprep.subr.mxu0 0.0
    %4594 = vmatpush1.msra.mxu0 %v4299
    %4595 = vmatprep.subr.mxu0 0.0
    %4596 = vmatpush1.msra.mxu0 %v4300
    %4597 = vmatprep.subr.mxu0 0.0
    %4598 = vmatpush1.msra.mxu0 %v4301
    %4599 = vmatprep.mubr.f32.mxu0 %v4520
    %4600 = vmatmul.mubr.f32.gmra.mrb[0].mxu0 %v4519
    %v4601 = vpop.f32.mrb[0].mxu0
    %v4602 = vadd.f32 %v4501, %v4601
    %v4603 = vpop.f32.mrb[0].mxu0
    %4604 = vmatprep.mubr.f32.mxu0 %v4522
    %4605 = vmatmul.mubr.f32.gmra.mrb[0].mxu0 %v4521
    %v4606 = vpop.f32.mrb[0].mxu0
    %v4607 = vadd.f32 %v4506, %v4606
    %v4608 = vpop.f32.mrb[0].mxu0
    %4609 = vmatprep.mubr.f32.mxu0 %v4524
    %4610 = vmatmul.mubr.f32.gmra.mrb[0].mxu0 %v4523
    %v4611 = vpop.f32.mrb[0].mxu0
    %v4612 = vadd.f32 %v4511, %v4611
    %v4613 = vpop.f32.mrb[0].mxu0
    %4614 = vmatprep.mubr.f32.mxu0 %v4526
    %4615 = vmatmul.mubr.f32.gmra.mrb[0].mxu0 %v4525
    %v4616 = vpop.f32.mrb[0].mxu0
    %v4617 = vadd.f32 %v4516, %v4616
    %v4618 = vpop.f32.mrb[0].mxu0
    %4619 = vdwg.mxu0
    %v4620 = vld [vmem:[#allocation4] sm:$0x3c]
    %v4621 = vld [vmem:[#allocation4 + $0x8] sm:$0x3c]
    %v4622 = vld [vmem:[#allocation4 + $0x10] sm:$0x3c]
    %v4623 = vld [vmem:[#allocation4 + $0x18] sm:$0x3c]
    %v4624 = vld [vmem:[#allocation4 + $0x20] sm:$0x3c]
    %v4625 = vld [vmem:[#allocation4 + $0x28] sm:$0x3c]
    %v4626 = vld [vmem:[#allocation4 + $0x30] sm:$0x3c]
    %v4627 = vld [vmem:[#allocation4 + $0x38] sm:$0x3c]
    %v4628 = vld [vmem:[#allocation4 + $0x60] sm:$0x3c]
    %v4629 = vld [vmem:[#allocation4 + $0x68] sm:$0x3c]
    %v4630 = vld [vmem:[#allocation4 + $0x70] sm:$0x3c]
    %v4631 = vld [vmem:[#allocation4 + $0x78] sm:$0x3c]
    %v4632 = vld [vmem:[#allocation4 + $0x80] sm:$0x3c]
    %v4633 = vld [vmem:[#allocation4 + $0x88] sm:$0x3c]
    %v4634 = vld [vmem:[#allocation4 + $0x90] sm:$0x3c]
    %v4635 = vld [vmem:[#allocation4 + $0x98] sm:$0x3c]
    %v4652 = vcombine.low %v4620, %v4621
    %v4653 = vcombine.high %v4620, %v4621
    %v4654 = vcombine.low %v4622, %v4623
    %v4655 = vcombine.high %v4622, %v4623
    %v4656 = vcombine.low %v4624, %v4625
    %v4657 = vcombine.high %v4624, %v4625
    %v4658 = vcombine.low %v4626, %v4627
    %v4659 = vcombine.high %v4626, %v4627
    %v4660 = vcombine.low %v4628, %v4629
    %v4661 = vcombine.high %v4628, %v4629
    %v4662 = vcombine.low %v4630, %v4631
    %v4663 = vcombine.high %v4630, %v4631
    %v4664 = vcombine.low %v4632, %v4633
    %v4665 = vcombine.high %v4632, %v4633
    %v4666 = vcombine.low %v4634, %v4635
    %v4667 = vcombine.high %v4634, %v4635
    %vm4668 = vcmask 1041408
    %vm4669 = vcmask 1045508
    %vm4670 = vmor %vm4668, %vm4669
    %v4671 = vrot.slane %v4652, 6
    %v4672 = vrot.slane %v4671, 4
    %v4673 = vrot.slane %v4653, 6
    %v4674 = vsel %vm4670, %v4672, %v4673
    %v4675 = vrot.slane %v4654, 6
    %v4676 = vrot.slane %v4675, 4
    %v4677 = vrot.slane %v4655, 6
    %v4678 = vsel %vm4670, %v4676, %v4677
    %v4679 = vrot.slane %v4656, 6
    %v4680 = vrot.slane %v4679, 4
    %v4681 = vrot.slane %v4657, 6
    %v4682 = vsel %vm4670, %v4680, %v4681
    %v4683 = vrot.slane %v4658, 6
    %v4684 = vrot.slane %v4683, 4
    %v4685 = vrot.slane %v4659, 6
    %v4686 = vsel %vm4670, %v4684, %v4685
    %v4687 = vrot.slane %v4660, 6
    %v4688 = vrot.slane %v4687, 4
    %v4689 = vrot.slane %v4661, 6
    %v4690 = vsel %vm4670, %v4688, %v4689
    %v4691 = vrot.slane %v4662, 6
    %v4692 = vrot.slane %v4691, 4
    %v4693 = vrot.slane %v4663, 6
    %v4694 = vsel %vm4670, %v4692, %v4693
    %v4695 = vrot.slane %v4664, 6
    %v4696 = vrot.slane %v4695, 4
    %v4697 = vrot.slane %v4665, 6
    %v4698 = vsel %vm4670, %v4696, %v4697
    %v4699 = vrot.slane %v4666, 6
    %v4700 = vrot.slane %v4699, 4
    %v4701 = vrot.slane %v4667, 6
    %v4702 = vsel %vm4670, %v4700, %v4701
    %s4703 = scalar_lea.vmem %s7, 512
    %v4704 = vld [vmem:[%s4703] sm:$0xff]
    %v4705 = vld [vmem:[%s4703 + $0x8] sm:$0xff]
    %v4706 = vld [vmem:[%s4703 + $0x10] sm:$0xff]
    %v4707 = vld [vmem:[%s4703 + $0x18] sm:$0xff]
    %v4708 = vld [vmem:[%s4703 + $0x20] sm:$0xff]
    %v4709 = vld [vmem:[%s4703 + $0x28] sm:$0xff]
    %v4710 = vld [vmem:[%s4703 + $0x30] sm:$0xff]
    %v4711 = vld [vmem:[%s4703 + $0x38] sm:$0xff]
    %v4712 = vld [vmem:[%s4703 + $0x40] sm:$0xff]
    %v4713 = vld [vmem:[%s4703 + $0x48] sm:$0xff]
    %v4714 = vld [vmem:[%s4703 + $0x50] sm:$0xff]
    %v4715 = vld [vmem:[%s4703 + $0x58] sm:$0xff]
    %v4716 = vld [vmem:[%s4703 + $0x60] sm:$0xff]
    %v4717 = vld [vmem:[%s4703 + $0x68] sm:$0xff]
    %v4718 = vld [vmem:[%s4703 + $0x70] sm:$0xff]
    %v4719 = vld [vmem:[%s4703 + $0x78] sm:$0xff]
    %v4720 = vld [vmem:[%s4703 + $0x80] sm:$0xff]
    %v4721 = vld [vmem:[%s4703 + $0x88] sm:$0xff]
    %v4722 = vld [vmem:[%s4703 + $0x90] sm:$0xff]
    %v4723 = vld [vmem:[%s4703 + $0x98] sm:$0xff]
    %v4724 = vld [vmem:[%s4703 + $0xa0] sm:$0xff]
    %v4725 = vld [vmem:[%s4703 + $0xa8] sm:$0xff]
    %v4726 = vld [vmem:[%s4703 + $0xb0] sm:$0xff]
    %v4727 = vld [vmem:[%s4703 + $0xb8] sm:$0xff]
    %v4728 = vld [vmem:[%s4703 + $0xc0] sm:$0xff]
    %v4729 = vld [vmem:[%s4703 + $0xc8] sm:$0xff]
    %v4730 = vld [vmem:[%s4703 + $0xd0] sm:$0xff]
    %v4731 = vld [vmem:[%s4703 + $0xd8] sm:$0xff]
    %v4732 = vld [vmem:[%s4703 + $0xe0] sm:$0xff]
    %v4733 = vld [vmem:[%s4703 + $0xe8] sm:$0xff]
    %v4734 = vld [vmem:[%s4703 + $0xf0] sm:$0xff]
    %v4735 = vld [vmem:[%s4703 + $0xf8] sm:$0xff]
    %v4736 = vcombine.low %v4674, %v4678
    %v4737 = vcombine.high %v4674, %v4678
    %v4738 = vcombine.low %v4682, %v4686
    %v4739 = vcombine.high %v4682, %v4686
    %v4740 = vcombine.low %v4690, %v4694
    %v4741 = vcombine.high %v4690, %v4694
    %v4742 = vcombine.low %v4698, %v4702
    %v4743 = vcombine.high %v4698, %v4702
    %4752 = vmatprep.subr.mxu0 0.0
    %4753 = vmatpush1.msra.mxu0 %v4704
    %4754 = vmatprep.subr.mxu0 0.0
    %4755 = vmatpush1.msra.mxu0 %v4705
    %4756 = vmatprep.subr.mxu0 0.0
    %4757 = vmatpush1.msra.mxu0 %v4706
    %4758 = vmatprep.subr.mxu0 0.0
    %4759 = vmatpush1.msra.mxu0 %v4707
    %4760 = vmatprep.subr.mxu0 0.0
    %4761 = vmatpush1.msra.mxu0 %v4708
    %4762 = vmatprep.subr.mxu0 0.0
    %4763 = vmatpush1.msra.mxu0 %v4709
    %4764 = vmatprep.subr.mxu0 0.0
    %4765 = vmatpush1.msra.mxu0 %v4710
    %4766 = vmatprep.subr.mxu0 0.0
    %4767 = vmatpush1.msra.mxu0 %v4711
    %4768 = vmatprep.subr.mxu0 0.0
    %4769 = vmatpush1.msra.mxu0 %v4712
    %4770 = vmatprep.subr.mxu0 0.0
    %4771 = vmatpush1.msra.mxu0 %v4713
    %4772 = vmatprep.subr.mxu0 0.0
    %4773 = vmatpush1.msra.mxu0 %v4714
    %4774 = vmatprep.subr.mxu0 0.0
    %4775 = vmatpush1.msra.mxu0 %v4715
    %4776 = vmatprep.subr.mxu0 0.0
    %4777 = vmatpush1.msra.mxu0 %v4716
    %4778 = vmatprep.subr.mxu0 0.0
    %4779 = vmatpush1.msra.mxu0 %v4717
    %4780 = vmatprep.subr.mxu0 0.0
    %4781 = vmatpush1.msra.mxu0 %v4718
    %4782 = vmatprep.subr.mxu0 0.0
    %4783 = vmatpush1.msra.mxu0 %v4719
    %4784 = vmatprep.subr.mxu0 0.0
    %4785 = vmatpush1.msra.mxu0 %v4720
    %4786 = vmatprep.subr.mxu0 0.0
    %4787 = vmatpush1.msra.mxu0 %v4721
    %4788 = vmatprep.subr.mxu0 0.0
    %4789 = vmatpush1.msra.mxu0 %v4722
    %4790 = vmatprep.subr.mxu0 0.0
    %4791 = vmatpush1.msra.mxu0 %v4723
    %4792 = vmatprep.subr.mxu0 0.0
    %4793 = vmatpush1.msra.mxu0 %v4724
    %4794 = vmatprep.subr.mxu0 0.0
    %4795 = vmatpush1.msra.mxu0 %v4725
    %4796 = vmatprep.subr.mxu0 0.0
    %4797 = vmatpush1.msra.mxu0 %v4726
    %4798 = vmatprep.subr.mxu0 0.0
    %4799 = vmatpush1.msra.mxu0 %v4727
    %4800 = vmatprep.subr.mxu0 0.0
    %4801 = vmatpush1.msra.mxu0 %v4728
    %4802 = vmatprep.subr.mxu0 0.0
    %4803 = vmatpush1.msra.mxu0 %v4729
    %4804 = vmatprep.subr.mxu0 0.0
    %4805 = vmatpush1.msra.mxu0 %v4730
    %4806 = vmatprep.subr.mxu0 0.0
    %4807 = vmatpush1.msra.mxu0 %v4731
    %4808 = vmatprep.subr.mxu0 0.0
    %4809 = vmatpush1.msra.mxu0 %v4732
    %4810 = vmatprep.subr.mxu0 0.0
    %4811 = vmatpush1.msra.mxu0 %v4733
    %4812 = vmatprep.subr.mxu0 0.0
    %4813 = vmatpush1.msra.mxu0 %v4734
    %4814 = vmatprep.subr.mxu0 0.0
    %4815 = vmatpush1.msra.mxu0 %v4735
    %4816 = vmatprep.mubr.f32.mxu0 %v4737
    %4817 = vmatmul.mubr.f32.gmra.mrb[0].mxu0 %v4736
    %v4818 = vpop.f32.mrb[0].mxu0
    %v4819 = vadd.f32 0.0, %v4818
    %v4820 = vpop.f32.mrb[0].mxu0
    %4821 = vmatprep.mubr.f32.mxu0 %v4739
    %4822 = vmatmul.mubr.f32.gmra.mrb[0].mxu0 %v4738
    %v4823 = vpop.f32.mrb[0].mxu0
    %v4824 = vadd.f32 0.0, %v4823
    %v4825 = vpop.f32.mrb[0].mxu0
    %4826 = vmatprep.mubr.f32.mxu0 %v4741
    %4827 = vmatmul.mubr.f32.gmra.mrb[0].mxu0 %v4740
    %v4828 = vpop.f32.mrb[0].mxu0
    %v4829 = vadd.f32 0.0, %v4828
    %v4830 = vpop.f32.mrb[0].mxu0
    %4831 = vmatprep.mubr.f32.mxu0 %v4743
    %4832 = vmatmul.mubr.f32.gmra.mrb[0].mxu0 %v4742
    %v4833 = vpop.f32.mrb[0].mxu0
    %v4834 = vadd.f32 0.0, %v4833
    %v4835 = vpop.f32.mrb[0].mxu0
    %4836 = vdwg.mxu0
    %v4837 = vadd.f32 %v4602, %v4819
    %v4838 = vadd.f32 %v4607, %v4824
    %v4839 = vadd.f32 %v4612, %v4829
    %v4840 = vadd.f32 %v4617, %v4834
    %v4841 = vld [vmem:[%s4213] sm:$0xf]
    %v4842 = vld [vmem:[%s4213 + $0x8] sm:$0xf]
    %v4843 = vld [vmem:[%s4213 + $0x10] sm:$0xf]
    %v4844 = vld [vmem:[%s4213 + $0x18] sm:$0xf]
    %v4845 = vld [vmem:[%s4213 + $0x20] sm:$0xf]
    %v4846 = vld [vmem:[%s4213 + $0x28] sm:$0xf]
    %v4847 = vld [vmem:[%s4213 + $0x30] sm:$0xf]
    %v4848 = vld [vmem:[%s4213 + $0x38] sm:$0xf]
    %v4849 = vld [vmem:[%s4213 + $0x60] sm:$0xf]
    %v4850 = vld [vmem:[%s4213 + $0x68] sm:$0xf]
    %v4851 = vld [vmem:[%s4213 + $0x70] sm:$0xf]
    %v4852 = vld [vmem:[%s4213 + $0x78] sm:$0xf]
    %v4853 = vld [vmem:[%s4213 + $0x80] sm:$0xf]
    %v4854 = vld [vmem:[%s4213 + $0x88] sm:$0xf]
    %v4855 = vld [vmem:[%s4213 + $0x90] sm:$0xf]
    %v4856 = vld [vmem:[%s4213 + $0x98] sm:$0xf]
    %v4873 = vcombine.low %v4841, %v4842
    %v4874 = vcombine.low %v4843, %v4844
    %v4875 = vcombine.low %v4845, %v4846
    %v4876 = vcombine.low %v4847, %v4848
    %v4877 = vcombine.low %v4849, %v4850
    %v4878 = vcombine.low %v4851, %v4852
    %v4879 = vcombine.low %v4853, %v4854
    %v4880 = vcombine.low %v4855, %v4856
    %s4881 = scalar_lea.vmem %s7, 768
    %v4882 = vld [vmem:[%s4881] sm:$0xff]
    %v4883 = vld [vmem:[%s4881 + $0x8] sm:$0xff]
    %v4884 = vld [vmem:[%s4881 + $0x10] sm:$0xff]
    %v4885 = vld [vmem:[%s4881 + $0x18] sm:$0xff]
    %v4886 = vld [vmem:[%s4881 + $0x20] sm:$0xff]
    %v4887 = vld [vmem:[%s4881 + $0x28] sm:$0xff]
    %v4888 = vld [vmem:[%s4881 + $0x30] sm:$0xff]
    %v4889 = vld [vmem:[%s4881 + $0x38] sm:$0xff]
    %v4890 = vld [vmem:[%s4881 + $0x40] sm:$0xff]
    %v4891 = vld [vmem:[%s4881 + $0x48] sm:$0xff]
    %v4892 = vld [vmem:[%s4881 + $0x50] sm:$0xff]
    %v4893 = vld [vmem:[%s4881 + $0x58] sm:$0xff]
    %v4894 = vld [vmem:[%s4881 + $0x60] sm:$0xff]
    %v4895 = vld [vmem:[%s4881 + $0x68] sm:$0xff]
    %v4896 = vld [vmem:[%s4881 + $0x70] sm:$0xff]
    %v4897 = vld [vmem:[%s4881 + $0x78] sm:$0xff]
    %v4898 = vld [vmem:[%s4881 + $0x80] sm:$0xff]
    %v4899 = vld [vmem:[%s4881 + $0x88] sm:$0xff]
    %v4900 = vld [vmem:[%s4881 + $0x90] sm:$0xff]
    %v4901 = vld [vmem:[%s4881 + $0x98] sm:$0xff]
    %v4902 = vld [vmem:[%s4881 + $0xa0] sm:$0xff]
    %v4903 = vld [vmem:[%s4881 + $0xa8] sm:$0xff]
    %v4904 = vld [vmem:[%s4881 + $0xb0] sm:$0xff]
    %v4905 = vld [vmem:[%s4881 + $0xb8] sm:$0xff]
    %v4906 = vld [vmem:[%s4881 + $0xc0] sm:$0xff]
    %v4907 = vld [vmem:[%s4881 + $0xc8] sm:$0xff]
    %v4908 = vld [vmem:[%s4881 + $0xd0] sm:$0xff]
    %v4909 = vld [vmem:[%s4881 + $0xd8] sm:$0xff]
    %v4910 = vld [vmem:[%s4881 + $0xe0] sm:$0xff]
    %v4911 = vld [vmem:[%s4881 + $0xe8] sm:$0xff]
    %v4912 = vld [vmem:[%s4881 + $0xf0] sm:$0xff]
    %v4913 = vld [vmem:[%s4881 + $0xf8] sm:$0xff]
    %v4914 = vcombine.low %v4873, %v4874
    %v4915 = vcombine.high %v4873, %v4874
    %v4916 = vcombine.low %v4875, %v4876
    %v4917 = vcombine.high %v4875, %v4876
    %v4918 = vcombine.low %v4877, %v4878
    %v4919 = vcombine.high %v4877, %v4878
    %v4920 = vcombine.low %v4879, %v4880
    %v4921 = vcombine.high %v4879, %v4880
    %4930 = vmatprep.subr.mxu0 0.0
    %4931 = vmatpush1.msra.mxu0 %v4882
    %4932 = vmatprep.subr.mxu0 0.0
    %4933 = vmatpush1.msra.mxu0 %v4883
    %4934 = vmatprep.subr.mxu0 0.0
    %4935 = vmatpush1.msra.mxu0 %v4884
    %4936 = vmatprep.subr.mxu0 0.0
    %4937 = vmatpush1.msra.mxu0 %v4885
    %4938 = vmatprep.subr.mxu0 0.0
    %4939 = vmatpush1.msra.mxu0 %v4886
    %4940 = vmatprep.subr.mxu0 0.0
    %4941 = vmatpush1.msra.mxu0 %v4887
    %4942 = vmatprep.subr.mxu0 0.0
    %4943 = vmatpush1.msra.mxu0 %v4888
    %4944 = vmatprep.subr.mxu0 0.0
    %4945 = vmatpush1.msra.mxu0 %v4889
    %4946 = vmatprep.subr.mxu0 0.0
    %4947 = vmatpush1.msra.mxu0 %v4890
    %4948 = vmatprep.subr.mxu0 0.0
    %4949 = vmatpush1.msra.mxu0 %v4891
    %4950 = vmatprep.subr.mxu0 0.0
    %4951 = vmatpush1.msra.mxu0 %v4892
    %4952 = vmatprep.subr.mxu0 0.0
    %4953 = vmatpush1.msra.mxu0 %v4893
    %4954 = vmatprep.subr.mxu0 0.0
    %4955 = vmatpush1.msra.mxu0 %v4894
    %4956 = vmatprep.subr.mxu0 0.0
    %4957 = vmatpush1.msra.mxu0 %v4895
    %4958 = vmatprep.subr.mxu0 0.0
    %4959 = vmatpush1.msra.mxu0 %v4896
    %4960 = vmatprep.subr.mxu0 0.0
    %4961 = vmatpush1.msra.mxu0 %v4897
    %4962 = vmatprep.subr.mxu0 0.0
    %4963 = vmatpush1.msra.mxu0 %v4898
    %4964 = vmatprep.subr.mxu0 0.0
    %4965 = vmatpush1.msra.mxu0 %v4899
    %4966 = vmatprep.subr.mxu0 0.0
    %4967 = vmatpush1.msra.mxu0 %v4900
    %4968 = vmatprep.subr.mxu0 0.0
    %4969 = vmatpush1.msra.mxu0 %v4901
    %4970 = vmatprep.subr.mxu0 0.0
    %4971 = vmatpush1.msra.mxu0 %v4902
    %4972 = vmatprep.subr.mxu0 0.0
    %4973 = vmatpush1.msra.mxu0 %v4903
    %4974 = vmatprep.subr.mxu0 0.0
    %4975 = vmatpush1.msra.mxu0 %v4904
    %4976 = vmatprep.subr.mxu0 0.0
    %4977 = vmatpush1.msra.mxu0 %v4905
    %4978 = vmatprep.subr.mxu0 0.0
    %4979 = vmatpush1.msra.mxu0 %v4906
    %4980 = vmatprep.subr.mxu0 0.0
    %4981 = vmatpush1.msra.mxu0 %v4907
    %4982 = vmatprep.subr.mxu0 0.0
    %4983 = vmatpush1.msra.mxu0 %v4908
    %4984 = vmatprep.subr.mxu0 0.0
    %4985 = vmatpush1.msra.mxu0 %v4909
    %4986 = vmatprep.subr.mxu0 0.0
    %4987 = vmatpush1.msra.mxu0 %v4910
    %4988 = vmatprep.subr.mxu0 0.0
    %4989 = vmatpush1.msra.mxu0 %v4911
    %4990 = vmatprep.subr.mxu0 0.0
    %4991 = vmatpush1.msra.mxu0 %v4912
    %4992 = vmatprep.subr.mxu0 0.0
    %4993 = vmatpush1.msra.mxu0 %v4913
    %4994 = vmatprep.mubr.f32.mxu0 %v4915
    %4995 = vmatmul.mubr.f32.gmra.mrb[0].mxu0 %v4914
    %v4996 = vpop.f32.mrb[0].mxu0
    %v4997 = vadd.f32 0.0, %v4996
    %v4998 = vpop.f32.mrb[0].mxu0
    %4999 = vmatprep.mubr.f32.mxu0 %v4917
    %5000 = vmatmul.mubr.f32.gmra.mrb[0].mxu0 %v4916
    %v5001 = vpop.f32.mrb[0].mxu0
    %v5002 = vadd.f32 0.0, %v5001
    %v5003 = vpop.f32.mrb[0].mxu0
    %5004 = vmatprep.mubr.f32.mxu0 %v4919
    %5005 = vmatmul.mubr.f32.gmra.mrb[0].mxu0 %v4918
    %v5006 = vpop.f32.mrb[0].mxu0
    %v5007 = vadd.f32 0.0, %v5006
    %v5008 = vpop.f32.mrb[0].mxu0
    %5009 = vmatprep.mubr.f32.mxu0 %v4921
    %5010 = vmatmul.mubr.f32.gmra.mrb[0].mxu0 %v4920
    %v5011 = vpop.f32.mrb[0].mxu0
    %v5012 = vadd.f32 0.0, %v5011
    %v5013 = vpop.f32.mrb[0].mxu0
    %5014 = vdwg.mxu0
    %v5015 = vadd.f32 %v4837, %v4997
    %v5016 = vadd.f32 %v4838, %v5002
    %v5017 = vadd.f32 %v4839, %v5007
    %v5018 = vadd.f32 %v4840, %v5012
    %v5019 = vld [vmem:[%s4213] sm:$0x1e]
    %v5020 = vld [vmem:[%s4213 + $0x8] sm:$0x1e]
    %v5021 = vld [vmem:[%s4213 + $0x10] sm:$0x1e]
    %v5022 = vld [vmem:[%s4213 + $0x18] sm:$0x1e]
    %v5023 = vld [vmem:[%s4213 + $0x20] sm:$0x1e]
    %v5024 = vld [vmem:[%s4213 + $0x28] sm:$0x1e]
    %v5025 = vld [vmem:[%s4213 + $0x30] sm:$0x1e]
    %v5026 = vld [vmem:[%s4213 + $0x38] sm:$0x1e]
    %v5027 = vld [vmem:[%s4213 + $0x60] sm:$0x1e]
    %v5028 = vld [vmem:[%s4213 + $0x68] sm:$0x1e]
    %v5029 = vld [vmem:[%s4213 + $0x70] sm:$0x1e]
    %v5030 = vld [vmem:[%s4213 + $0x78] sm:$0x1e]
    %v5031 = vld [vmem:[%s4213 + $0x80] sm:$0x1e]
    %v5032 = vld [vmem:[%s4213 + $0x88] sm:$0x1e]
    %v5033 = vld [vmem:[%s4213 + $0x90] sm:$0x1e]
    %v5034 = vld [vmem:[%s4213 + $0x98] sm:$0x1e]
    %v5051 = vcombine.low %v5019, %v5020
    %v5052 = vcombine.high %v5019, %v5020
    %v5053 = vcombine.low %v5021, %v5022
    %v5054 = vcombine.high %v5021, %v5022
    %v5055 = vcombine.low %v5023, %v5024
    %v5056 = vcombine.high %v5023, %v5024
    %v5057 = vcombine.low %v5025, %v5026
    %v5058 = vcombine.high %v5025, %v5026
    %v5059 = vcombine.low %v5027, %v5028
    %v5060 = vcombine.high %v5027, %v5028
    %v5061 = vcombine.low %v5029, %v5030
    %v5062 = vcombine.high %v5029, %v5030
    %v5063 = vcombine.low %v5031, %v5032
    %v5064 = vcombine.high %v5031, %v5032
    %v5065 = vcombine.low %v5033, %v5034
    %v5066 = vcombine.high %v5033, %v5034
    %v5067 = vrot.slane %v5051, 5
    %v5068 = vrot.slane %v5067, 4
    %v5069 = vrot.slane %v5052, 5
    %v5070 = vsel %vm4352, %v5068, %v5069
    %v5071 = vrot.slane %v5053, 5
    %v5072 = vrot.slane %v5071, 4
    %v5073 = vrot.slane %v5054, 5
    %v5074 = vsel %vm4352, %v5072, %v5073
    %v5075 = vrot.slane %v5055, 5
    %v5076 = vrot.slane %v5075, 4
    %v5077 = vrot.slane %v5056, 5
    %v5078 = vsel %vm4352, %v5076, %v5077
    %v5079 = vrot.slane %v5057, 5
    %v5080 = vrot.slane %v5079, 4
    %v5081 = vrot.slane %v5058, 5
    %v5082 = vsel %vm4352, %v5080, %v5081
    %v5083 = vrot.slane %v5059, 5
    %v5084 = vrot.slane %v5083, 4
    %v5085 = vrot.slane %v5060, 5
    %v5086 = vsel %vm4352, %v5084, %v5085
    %v5087 = vrot.slane %v5061, 5
    %v5088 = vrot.slane %v5087, 4
    %v5089 = vrot.slane %v5062, 5
    %v5090 = vsel %vm4352, %v5088, %v5089
    %v5091 = vrot.slane %v5063, 5
    %v5092 = vrot.slane %v5091, 4
    %v5093 = vrot.slane %v5064, 5
    %v5094 = vsel %vm4352, %v5092, %v5093
    %v5095 = vrot.slane %v5065, 5
    %v5096 = vrot.slane %v5095, 4
    %v5097 = vrot.slane %v5066, 5
    %v5098 = vsel %vm4352, %v5096, %v5097
    %s5099 = scalar_lea.vmem %s7, 1024
    %v5100 = vld [vmem:[%s5099] sm:$0xff]
    %v5101 = vld [vmem:[%s5099 + $0x8] sm:$0xff]
    %v5102 = vld [vmem:[%s5099 + $0x10] sm:$0xff]
    %v5103 = vld [vmem:[%s5099 + $0x18] sm:$0xff]
    %v5104 = vld [vmem:[%s5099 + $0x20] sm:$0xff]
    %v5105 = vld [vmem:[%s5099 + $0x28] sm:$0xff]
    %v5106 = vld [vmem:[%s5099 + $0x30] sm:$0xff]
    %v5107 = vld [vmem:[%s5099 + $0x38] sm:$0xff]
    %v5108 = vld [vmem:[%s5099 + $0x40] sm:$0xff]
    %v5109 = vld [vmem:[%s5099 + $0x48] sm:$0xff]
    %v5110 = vld [vmem:[%s5099 + $0x50] sm:$0xff]
    %v5111 = vld [vmem:[%s5099 + $0x58] sm:$0xff]
    %v5112 = vld [vmem:[%s5099 + $0x60] sm:$0xff]
    %v5113 = vld [vmem:[%s5099 + $0x68] sm:$0xff]
    %v5114 = vld [vmem:[%s5099 + $0x70] sm:$0xff]
    %v5115 = vld [vmem:[%s5099 + $0x78] sm:$0xff]
    %v5116 = vld [vmem:[%s5099 + $0x80] sm:$0xff]
    %v5117 = vld [vmem:[%s5099 + $0x88] sm:$0xff]
    %v5118 = vld [vmem:[%s5099 + $0x90] sm:$0xff]
    %v5119 = vld [vmem:[%s5099 + $0x98] sm:$0xff]
    %v5120 = vld [vmem:[%s5099 + $0xa0] sm:$0xff]
    %v5121 = vld [vmem:[%s5099 + $0xa8] sm:$0xff]
    %v5122 = vld [vmem:[%s5099 + $0xb0] sm:$0xff]
    %v5123 = vld [vmem:[%s5099 + $0xb8] sm:$0xff]
    %v5124 = vld [vmem:[%s5099 + $0xc0] sm:$0xff]
    %v5125 = vld [vmem:[%s5099 + $0xc8] sm:$0xff]
    %v5126 = vld [vmem:[%s5099 + $0xd0] sm:$0xff]
    %v5127 = vld [vmem:[%s5099 + $0xd8] sm:$0xff]
    %v5128 = vld [vmem:[%s5099 + $0xe0] sm:$0xff]
    %v5129 = vld [vmem:[%s5099 + $0xe8] sm:$0xff]
    %v5130 = vld [vmem:[%s5099 + $0xf0] sm:$0xff]
    %v5131 = vld [vmem:[%s5099 + $0xf8] sm:$0xff]
    %v5132 = vcombine.low %v5070, %v5074
    %v5133 = vcombine.high %v5070, %v5074
    %v5134 = vcombine.low %v5078, %v5082
    %v5135 = vcombine.high %v5078, %v5082
    %v5136 = vcombine.low %v5086, %v5090
    %v5137 = vcombine.high %v5086, %v5090
    %v5138 = vcombine.low %v5094, %v5098
    %v5139 = vcombine.high %v5094, %v5098
    %5148 = vmatprep.subr.mxu0 0.0
    %5149 = vmatpush1.msra.mxu0 %v5100
    %5150 = vmatprep.subr.mxu0 0.0
    %5151 = vmatpush1.msra.mxu0 %v5101
    %5152 = vmatprep.subr.mxu0 0.0
    %5153 = vmatpush1.msra.mxu0 %v5102
    %5154 = vmatprep.subr.mxu0 0.0
    %5155 = vmatpush1.msra.mxu0 %v5103
    %5156 = vmatprep.subr.mxu0 0.0
    %5157 = vmatpush1.msra.mxu0 %v5104
    %5158 = vmatprep.subr.mxu0 0.0
    %5159 = vmatpush1.msra.mxu0 %v5105
    %5160 = vmatprep.subr.mxu0 0.0
    %5161 = vmatpush1.msra.mxu0 %v5106
    %5162 = vmatprep.subr.mxu0 0.0
    %5163 = vmatpush1.msra.mxu0 %v5107
    %5164 = vmatprep.subr.mxu0 0.0
    %5165 = vmatpush1.msra.mxu0 %v5108
    %5166 = vmatprep.subr.mxu0 0.0
    %5167 = vmatpush1.msra.mxu0 %v5109
    %5168 = vmatprep.subr.mxu0 0.0
    %5169 = vmatpush1.msra.mxu0 %v5110
    %5170 = vmatprep.subr.mxu0 0.0
    %5171 = vmatpush1.msra.mxu0 %v5111
    %5172 = vmatprep.subr.mxu0 0.0
    %5173 = vmatpush1.msra.mxu0 %v5112
    %5174 = vmatprep.subr.mxu0 0.0
    %5175 = vmatpush1.msra.mxu0 %v5113
    %5176 = vmatprep.subr.mxu0 0.0
    %5177 = vmatpush1.msra.mxu0 %v5114
    %5178 = vmatprep.subr.mxu0 0.0
    %5179 = vmatpush1.msra.mxu0 %v5115
    %5180 = vmatprep.subr.mxu0 0.0
    %5181 = vmatpush1.msra.mxu0 %v5116
    %5182 = vmatprep.subr.mxu0 0.0
    %5183 = vmatpush1.msra.mxu0 %v5117
    %5184 = vmatprep.subr.mxu0 0.0
    %5185 = vmatpush1.msra.mxu0 %v5118
    %5186 = vmatprep.subr.mxu0 0.0
    %5187 = vmatpush1.msra.mxu0 %v5119
    %5188 = vmatprep.subr.mxu0 0.0
    %5189 = vmatpush1.msra.mxu0 %v5120
    %5190 = vmatprep.subr.mxu0 0.0
    %5191 = vmatpush1.msra.mxu0 %v5121
    %5192 = vmatprep.subr.mxu0 0.0
    %5193 = vmatpush1.msra.mxu0 %v5122
    %5194 = vmatprep.subr.mxu0 0.0
    %5195 = vmatpush1.msra.mxu0 %v5123
    %5196 = vmatprep.subr.mxu0 0.0
    %5197 = vmatpush1.msra.mxu0 %v5124
    %5198 = vmatprep.subr.mxu0 0.0
    %5199 = vmatpush1.msra.mxu0 %v5125
    %5200 = vmatprep.subr.mxu0 0.0
    %5201 = vmatpush1.msra.mxu0 %v5126
    %5202 = vmatprep.subr.mxu0 0.0
    %5203 = vmatpush1.msra.mxu0 %v5127
    %5204 = vmatprep.subr.mxu0 0.0
    %5205 = vmatpush1.msra.mxu0 %v5128
    %5206 = vmatprep.subr.mxu0 0.0
    %5207 = vmatpush1.msra.mxu0 %v5129
    %5208 = vmatprep.subr.mxu0 0.0
    %5209 = vmatpush1.msra.mxu0 %v5130
    %5210 = vmatprep.subr.mxu0 0.0
    %5211 = vmatpush1.msra.mxu0 %v5131
    %5212 = vmatprep.mubr.f32.mxu0 %v5133
    %5213 = vmatmul.mubr.f32.gmra.mrb[0].mxu0 %v5132
    %v5214 = vpop.f32.mrb[0].mxu0
    %v5215 = vadd.f32 0.0, %v5214
    %v5216 = vpop.f32.mrb[0].mxu0
    %5217 = vmatprep.mubr.f32.mxu0 %v5135
    %5218 = vmatmul.mubr.f32.gmra.mrb[0].mxu0 %v5134
    %v5219 = vpop.f32.mrb[0].mxu0
    %v5220 = vadd.f32 0.0, %v5219
    %v5221 = vpop.f32.mrb[0].mxu0
    %5222 = vmatprep.mubr.f32.mxu0 %v5137
    %5223 = vmatmul.mubr.f32.gmra.mrb[0].mxu0 %v5136
    %v5224 = vpop.f32.mrb[0].mxu0
    %v5225 = vadd.f32 0.0, %v5224
    %v5226 = vpop.f32.mrb[0].mxu0
    %5227 = vmatprep.mubr.f32.mxu0 %v5139
    %5228 = vmatmul.mubr.f32.gmra.mrb[0].mxu0 %v5138
    %v5229 = vpop.f32.mrb[0].mxu0
    %v5230 = vadd.f32 0.0, %v5229
    %v5231 = vpop.f32.mrb[0].mxu0
    %5232 = vdwg.mxu0
    %v5233 = vadd.f32 %v5015, %v5215
    %v5234 = vadd.f32 %v5016, %v5220
    %v5235 = vadd.f32 %v5017, %v5225
    %v5236 = vadd.f32 %v5018, %v5230
    %v5237 = vld [vmem:[%s4213] sm:$0x3c]
    %v5238 = vld [vmem:[%s4213 + $0x8] sm:$0x3c]
    %v5239 = vld [vmem:[%s4213 + $0x10] sm:$0x3c]
    %v5240 = vld [vmem:[%s4213 + $0x18] sm:$0x3c]
    %v5241 = vld [vmem:[%s4213 + $0x20] sm:$0x3c]
    %v5242 = vld [vmem:[%s4213 + $0x28] sm:$0x3c]
    %v5243 = vld [vmem:[%s4213 + $0x30] sm:$0x3c]
    %v5244 = vld [vmem:[%s4213 + $0x38] sm:$0x3c]
    %v5245 = vld [vmem:[%s4213 + $0x60] sm:$0x3c]
    %v5246 = vld [vmem:[%s4213 + $0x68] sm:$0x3c]
    %v5247 = vld [vmem:[%s4213 + $0x70] sm:$0x3c]
    %v5248 = vld [vmem:[%s4213 + $0x78] sm:$0x3c]
    %v5249 = vld [vmem:[%s4213 + $0x80] sm:$0x3c]
    %v5250 = vld [vmem:[%s4213 + $0x88] sm:$0x3c]
    %v5251 = vld [vmem:[%s4213 + $0x90] sm:$0x3c]
    %v5252 = vld [vmem:[%s4213 + $0x98] sm:$0x3c]
    %v5269 = vcombine.low %v5237, %v5238
    %v5270 = vcombine.high %v5237, %v5238
    %v5271 = vcombine.low %v5239, %v5240
    %v5272 = vcombine.high %v5239, %v5240
    %v5273 = vcombine.low %v5241, %v5242
    %v5274 = vcombine.high %v5241, %v5242
    %v5275 = vcombine.low %v5243, %v5244
    %v5276 = vcombine.high %v5243, %v5244
    %v5277 = vcombine.low %v5245, %v5246
    %v5278 = vcombine.high %v5245, %v5246
    %v5279 = vcombine.low %v5247, %v5248
    %v5280 = vcombine.high %v5247, %v5248
    %v5281 = vcombine.low %v5249, %v5250
    %v5282 = vcombine.high %v5249, %v5250
    %v5283 = vcombine.low %v5251, %v5252
    %v5284 = vcombine.high %v5251, %v5252
    %v5285 = vrot.slane %v5269, 6
    %v5286 = vrot.slane %v5285, 4
    %v5287 = vrot.slane %v5270, 6
    %v5288 = vsel %vm4670, %v5286, %v5287
    %v5289 = vrot.slane %v5271, 6
    %v5290 = vrot.slane %v5289, 4
    %v5291 = vrot.slane %v5272, 6
    %v5292 = vsel %vm4670, %v5290, %v5291
    %v5293 = vrot.slane %v5273, 6
    %v5294 = vrot.slane %v5293, 4
    %v5295 = vrot.slane %v5274, 6
    %v5296 = vsel %vm4670, %v5294, %v5295
    %v5297 = vrot.slane %v5275, 6
    %v5298 = vrot.slane %v5297, 4
    %v5299 = vrot.slane %v5276, 6
    %v5300 = vsel %vm4670, %v5298, %v5299
    %v5301 = vrot.slane %v5277, 6
    %v5302 = vrot.slane %v5301, 4
    %v5303 = vrot.slane %v5278, 6
    %v5304 = vsel %vm4670, %v5302, %v5303
    %v5305 = vrot.slane %v5279, 6
    %v5306 = vrot.slane %v5305, 4
    %v5307 = vrot.slane %v5280, 6
    %v5308 = vsel %vm4670, %v5306, %v5307
    %v5309 = vrot.slane %v5281, 6
    %v5310 = vrot.slane %v5309, 4
    %v5311 = vrot.slane %v5282, 6
    %v5312 = vsel %vm4670, %v5310, %v5311
    %v5313 = vrot.slane %v5283, 6
    %v5314 = vrot.slane %v5313, 4
    %v5315 = vrot.slane %v5284, 6
    %v5316 = vsel %vm4670, %v5314, %v5315
    %s5317 = scalar_lea.vmem %s7, 1280
    %v5318 = vld [vmem:[%s5317] sm:$0xff]
    %v5319 = vld [vmem:[%s5317 + $0x8] sm:$0xff]
    %v5320 = vld [vmem:[%s5317 + $0x10] sm:$0xff]
    %v5321 = vld [vmem:[%s5317 + $0x18] sm:$0xff]
    %v5322 = vld [vmem:[%s5317 + $0x20] sm:$0xff]
    %v5323 = vld [vmem:[%s5317 + $0x28] sm:$0xff]
    %v5324 = vld [vmem:[%s5317 + $0x30] sm:$0xff]
    %v5325 = vld [vmem:[%s5317 + $0x38] sm:$0xff]
    %v5326 = vld [vmem:[%s5317 + $0x40] sm:$0xff]
    %v5327 = vld [vmem:[%s5317 + $0x48] sm:$0xff]
    %v5328 = vld [vmem:[%s5317 + $0x50] sm:$0xff]
    %v5329 = vld [vmem:[%s5317 + $0x58] sm:$0xff]
    %v5330 = vld [vmem:[%s5317 + $0x60] sm:$0xff]
    %v5331 = vld [vmem:[%s5317 + $0x68] sm:$0xff]
    %v5332 = vld [vmem:[%s5317 + $0x70] sm:$0xff]
    %v5333 = vld [vmem:[%s5317 + $0x78] sm:$0xff]
    %v5334 = vld [vmem:[%s5317 + $0x80] sm:$0xff]
    %v5335 = vld [vmem:[%s5317 + $0x88] sm:$0xff]
    %v5336 = vld [vmem:[%s5317 + $0x90] sm:$0xff]
    %v5337 = vld [vmem:[%s5317 + $0x98] sm:$0xff]
    %v5338 = vld [vmem:[%s5317 + $0xa0] sm:$0xff]
    %v5339 = vld [vmem:[%s5317 + $0xa8] sm:$0xff]
    %v5340 = vld [vmem:[%s5317 + $0xb0] sm:$0xff]
    %v5341 = vld [vmem:[%s5317 + $0xb8] sm:$0xff]
    %v5342 = vld [vmem:[%s5317 + $0xc0] sm:$0xff]
    %v5343 = vld [vmem:[%s5317 + $0xc8] sm:$0xff]
    %v5344 = vld [vmem:[%s5317 + $0xd0] sm:$0xff]
    %v5345 = vld [vmem:[%s5317 + $0xd8] sm:$0xff]
    %v5346 = vld [vmem:[%s5317 + $0xe0] sm:$0xff]
    %v5347 = vld [vmem:[%s5317 + $0xe8] sm:$0xff]
    %v5348 = vld [vmem:[%s5317 + $0xf0] sm:$0xff]
    %v5349 = vld [vmem:[%s5317 + $0xf8] sm:$0xff]
    %v5350 = vcombine.low %v5288, %v5292
    %v5351 = vcombine.high %v5288, %v5292
    %v5352 = vcombine.low %v5296, %v5300
    %v5353 = vcombine.high %v5296, %v5300
    %v5354 = vcombine.low %v5304, %v5308
    %v5355 = vcombine.high %v5304, %v5308
    %v5356 = vcombine.low %v5312, %v5316
    %v5357 = vcombine.high %v5312, %v5316
    %5366 = vmatprep.subr.mxu0 0.0
    %5367 = vmatpush1.msra.mxu0 %v5318
    %5368 = vmatprep.subr.mxu0 0.0
    %5369 = vmatpush1.msra.mxu0 %v5319
    %5370 = vmatprep.subr.mxu0 0.0
    %5371 = vmatpush1.msra.mxu0 %v5320
    %5372 = vmatprep.subr.mxu0 0.0
    %5373 = vmatpush1.msra.mxu0 %v5321
    %5374 = vmatprep.subr.mxu0 0.0
    %5375 = vmatpush1.msra.mxu0 %v5322
    %5376 = vmatprep.subr.mxu0 0.0
    %5377 = vmatpush1.msra.mxu0 %v5323
    %5378 = vmatprep.subr.mxu0 0.0
    %5379 = vmatpush1.msra.mxu0 %v5324
    %5380 = vmatprep.subr.mxu0 0.0
    %5381 = vmatpush1.msra.mxu0 %v5325
    %5382 = vmatprep.subr.mxu0 0.0
    %5383 = vmatpush1.msra.mxu0 %v5326
    %5384 = vmatprep.subr.mxu0 0.0
    %5385 = vmatpush1.msra.mxu0 %v5327
    %5386 = vmatprep.subr.mxu0 0.0
    %5387 = vmatpush1.msra.mxu0 %v5328
    %5388 = vmatprep.subr.mxu0 0.0
    %5389 = vmatpush1.msra.mxu0 %v5329
    %5390 = vmatprep.subr.mxu0 0.0
    %5391 = vmatpush1.msra.mxu0 %v5330
    %5392 = vmatprep.subr.mxu0 0.0
    %5393 = vmatpush1.msra.mxu0 %v5331
    %5394 = vmatprep.subr.mxu0 0.0
    %5395 = vmatpush1.msra.mxu0 %v5332
    %5396 = vmatprep.subr.mxu0 0.0
    %5397 = vmatpush1.msra.mxu0 %v5333
    %5398 = vmatprep.subr.mxu0 0.0
    %5399 = vmatpush1.msra.mxu0 %v5334
    %5400 = vmatprep.subr.mxu0 0.0
    %5401 = vmatpush1.msra.mxu0 %v5335
    %5402 = vmatprep.subr.mxu0 0.0
    %5403 = vmatpush1.msra.mxu0 %v5336
    %5404 = vmatprep.subr.mxu0 0.0
    %5405 = vmatpush1.msra.mxu0 %v5337
    %5406 = vmatprep.subr.mxu0 0.0
    %5407 = vmatpush1.msra.mxu0 %v5338
    %5408 = vmatprep.subr.mxu0 0.0
    %5409 = vmatpush1.msra.mxu0 %v5339
    %5410 = vmatprep.subr.mxu0 0.0
    %5411 = vmatpush1.msra.mxu0 %v5340
    %5412 = vmatprep.subr.mxu0 0.0
    %5413 = vmatpush1.msra.mxu0 %v5341
    %5414 = vmatprep.subr.mxu0 0.0
    %5415 = vmatpush1.msra.mxu0 %v5342
    %5416 = vmatprep.subr.mxu0 0.0
    %5417 = vmatpush1.msra.mxu0 %v5343
    %5418 = vmatprep.subr.mxu0 0.0
    %5419 = vmatpush1.msra.mxu0 %v5344
    %5420 = vmatprep.subr.mxu0 0.0
    %5421 = vmatpush1.msra.mxu0 %v5345
    %5422 = vmatprep.subr.mxu0 0.0
    %5423 = vmatpush1.msra.mxu0 %v5346
    %5424 = vmatprep.subr.mxu0 0.0
    %5425 = vmatpush1.msra.mxu0 %v5347
    %5426 = vmatprep.subr.mxu0 0.0
    %5427 = vmatpush1.msra.mxu0 %v5348
    %5428 = vmatprep.subr.mxu0 0.0
    %5429 = vmatpush1.msra.mxu0 %v5349
    %5430 = vmatprep.mubr.f32.mxu0 %v5351
    %5431 = vmatmul.mubr.f32.gmra.mrb[0].mxu0 %v5350
    %v5432 = vpop.f32.mrb[0].mxu0
    %v5433 = vadd.f32 0.0, %v5432
    %v5434 = vpop.f32.mrb[0].mxu0
    %5435 = vmatprep.mubr.f32.mxu0 %v5353
    %5436 = vmatmul.mubr.f32.gmra.mrb[0].mxu0 %v5352
    %v5437 = vpop.f32.mrb[0].mxu0
    %v5438 = vadd.f32 0.0, %v5437
    %v5439 = vpop.f32.mrb[0].mxu0
    %5440 = vmatprep.mubr.f32.mxu0 %v5355
    %5441 = vmatmul.mubr.f32.gmra.mrb[0].mxu0 %v5354
    %v5442 = vpop.f32.mrb[0].mxu0
    %v5443 = vadd.f32 0.0, %v5442
    %v5444 = vpop.f32.mrb[0].mxu0
    %5445 = vmatprep.mubr.f32.mxu0 %v5357
    %5446 = vmatmul.mubr.f32.gmra.mrb[0].mxu0 %v5356
    %v5447 = vpop.f32.mrb[0].mxu0
    %v5448 = vadd.f32 0.0, %v5447
    %v5449 = vpop.f32.mrb[0].mxu0
    %5450 = vdwg.mxu0
    %v5451 = vadd.f32 %v5233, %v5433
    %v5452 = vadd.f32 %v5234, %v5438
    %v5453 = vadd.f32 %v5235, %v5443
    %v5454 = vadd.f32 %v5236, %v5448
    %s5455 = scalar_lea.vmem [#allocation4], 32
    %v5456 = vld [vmem:[%s5455] sm:$0xf]
    %v5457 = vld [vmem:[%s5455 + $0x8] sm:$0xf]
    %v5458 = vld [vmem:[%s5455 + $0x10] sm:$0xf]
    %v5459 = vld [vmem:[%s5455 + $0x18] sm:$0xf]
    %v5460 = vld [vmem:[%s5455 + $0x20] sm:$0xf]
    %v5461 = vld [vmem:[%s5455 + $0x28] sm:$0xf]
    %v5462 = vld [vmem:[%s5455 + $0x30] sm:$0xf]
    %v5463 = vld [vmem:[%s5455 + $0x38] sm:$0xf]
    %v5464 = vld [vmem:[%s5455 + $0x60] sm:$0xf]
    %v5465 = vld [vmem:[%s5455 + $0x68] sm:$0xf]
    %v5466 = vld [vmem:[%s5455 + $0x70] sm:$0xf]
    %v5467 = vld [vmem:[%s5455 + $0x78] sm:$0xf]
    %v5468 = vld [vmem:[%s5455 + $0x80] sm:$0xf]
    %v5469 = vld [vmem:[%s5455 + $0x88] sm:$0xf]
    %v5470 = vld [vmem:[%s5455 + $0x90] sm:$0xf]
    %v5471 = vld [vmem:[%s5455 + $0x98] sm:$0xf]
    %v5488 = vcombine.low %v5456, %v5457
    %v5489 = vcombine.low %v5458, %v5459
    %v5490 = vcombine.low %v5460, %v5461
    %v5491 = vcombine.low %v5462, %v5463
    %v5492 = vcombine.low %v5464, %v5465
    %v5493 = vcombine.low %v5466, %v5467
    %v5494 = vcombine.low %v5468, %v5469
    %v5495 = vcombine.low %v5470, %v5471
    %s5496 = scalar_lea.vmem %s7, 1536
    %v5497 = vld [vmem:[%s5496] sm:$0xff]
    %v5498 = vld [vmem:[%s5496 + $0x8] sm:$0xff]
    %v5499 = vld [vmem:[%s5496 + $0x10] sm:$0xff]
    %v5500 = vld [vmem:[%s5496 + $0x18] sm:$0xff]
    %v5501 = vld [vmem:[%s5496 + $0x20] sm:$0xff]
    %v5502 = vld [vmem:[%s5496 + $0x28] sm:$0xff]
    %v5503 = vld [vmem:[%s5496 + $0x30] sm:$0xff]
    %v5504 = vld [vmem:[%s5496 + $0x38] sm:$0xff]
    %v5505 = vld [vmem:[%s5496 + $0x40] sm:$0xff]
    %v5506 = vld [vmem:[%s5496 + $0x48] sm:$0xff]
    %v5507 = vld [vmem:[%s5496 + $0x50] sm:$0xff]
    %v5508 = vld [vmem:[%s5496 + $0x58] sm:$0xff]
    %v5509 = vld [vmem:[%s5496 + $0x60] sm:$0xff]
    %v5510 = vld [vmem:[%s5496 + $0x68] sm:$0xff]
    %v5511 = vld [vmem:[%s5496 + $0x70] sm:$0xff]
    %v5512 = vld [vmem:[%s5496 + $0x78] sm:$0xff]
    %v5513 = vld [vmem:[%s5496 + $0x80] sm:$0xff]
    %v5514 = vld [vmem:[%s5496 + $0x88] sm:$0xff]
    %v5515 = vld [vmem:[%s5496 + $0x90] sm:$0xff]
    %v5516 = vld [vmem:[%s5496 + $0x98] sm:$0xff]
    %v5517 = vld [vmem:[%s5496 + $0xa0] sm:$0xff]
    %v5518 = vld [vmem:[%s5496 + $0xa8] sm:$0xff]
    %v5519 = vld [vmem:[%s5496 + $0xb0] sm:$0xff]
    %v5520 = vld [vmem:[%s5496 + $0xb8] sm:$0xff]
    %v5521 = vld [vmem:[%s5496 + $0xc0] sm:$0xff]
    %v5522 = vld [vmem:[%s5496 + $0xc8] sm:$0xff]
    %v5523 = vld [vmem:[%s5496 + $0xd0] sm:$0xff]
    %v5524 = vld [vmem:[%s5496 + $0xd8] sm:$0xff]
    %v5525 = vld [vmem:[%s5496 + $0xe0] sm:$0xff]
    %v5526 = vld [vmem:[%s5496 + $0xe8] sm:$0xff]
    %v5527 = vld [vmem:[%s5496 + $0xf0] sm:$0xff]
    %v5528 = vld [vmem:[%s5496 + $0xf8] sm:$0xff]
    %v5529 = vcombine.low %v5488, %v5489
    %v5530 = vcombine.high %v5488, %v5489
    %v5531 = vcombine.low %v5490, %v5491
    %v5532 = vcombine.high %v5490, %v5491
    %v5533 = vcombine.low %v5492, %v5493
    %v5534 = vcombine.high %v5492, %v5493
    %v5535 = vcombine.low %v5494, %v5495
    %v5536 = vcombine.high %v5494, %v5495
    %5545 = vmatprep.subr.mxu0 0.0
    %5546 = vmatpush1.msra.mxu0 %v5497
    %5547 = vmatprep.subr.mxu0 0.0
    %5548 = vmatpush1.msra.mxu0 %v5498
    %5549 = vmatprep.subr.mxu0 0.0
    %5550 = vmatpush1.msra.mxu0 %v5499
    %5551 = vmatprep.subr.mxu0 0.0
    %5552 = vmatpush1.msra.mxu0 %v5500
    %5553 = vmatprep.subr.mxu0 0.0
    %5554 = vmatpush1.msra.mxu0 %v5501
    %5555 = vmatprep.subr.mxu0 0.0
    %5556 = vmatpush1.msra.mxu0 %v5502
    %5557 = vmatprep.subr.mxu0 0.0
    %5558 = vmatpush1.msra.mxu0 %v5503
    %5559 = vmatprep.subr.mxu0 0.0
    %5560 = vmatpush1.msra.mxu0 %v5504
    %5561 = vmatprep.subr.mxu0 0.0
    %5562 = vmatpush1.msra.mxu0 %v5505
    %5563 = vmatprep.subr.mxu0 0.0
    %5564 = vmatpush1.msra.mxu0 %v5506
    %5565 = vmatprep.subr.mxu0 0.0
    %5566 = vmatpush1.msra.mxu0 %v5507
    %5567 = vmatprep.subr.mxu0 0.0
    %5568 = vmatpush1.msra.mxu0 %v5508
    %5569 = vmatprep.subr.mxu0 0.0
    %5570 = vmatpush1.msra.mxu0 %v5509
    %5571 = vmatprep.subr.mxu0 0.0
    %5572 = vmatpush1.msra.mxu0 %v5510
    %5573 = vmatprep.subr.mxu0 0.0
    %5574 = vmatpush1.msra.mxu0 %v5511
    %5575 = vmatprep.subr.mxu0 0.0
    %5576 = vmatpush1.msra.mxu0 %v5512
    %5577 = vmatprep.subr.mxu0 0.0
    %5578 = vmatpush1.msra.mxu0 %v5513
    %5579 = vmatprep.subr.mxu0 0.0
    %5580 = vmatpush1.msra.mxu0 %v5514
    %5581 = vmatprep.subr.mxu0 0.0
    %5582 = vmatpush1.msra.mxu0 %v5515
    %5583 = vmatprep.subr.mxu0 0.0
    %5584 = vmatpush1.msra.mxu0 %v5516
    %5585 = vmatprep.subr.mxu0 0.0
    %5586 = vmatpush1.msra.mxu0 %v5517
    %5587 = vmatprep.subr.mxu0 0.0
    %5588 = vmatpush1.msra.mxu0 %v5518
    %5589 = vmatprep.subr.mxu0 0.0
    %5590 = vmatpush1.msra.mxu0 %v5519
    %5591 = vmatprep.subr.mxu0 0.0
    %5592 = vmatpush1.msra.mxu0 %v5520
    %5593 = vmatprep.subr.mxu0 0.0
    %5594 = vmatpush1.msra.mxu0 %v5521
    %5595 = vmatprep.subr.mxu0 0.0
    %5596 = vmatpush1.msra.mxu0 %v5522
    %5597 = vmatprep.subr.mxu0 0.0
    %5598 = vmatpush1.msra.mxu0 %v5523
    %5599 = vmatprep.subr.mxu0 0.0
    %5600 = vmatpush1.msra.mxu0 %v5524
    %5601 = vmatprep.subr.mxu0 0.0
    %5602 = vmatpush1.msra.mxu0 %v5525
    %5603 = vmatprep.subr.mxu0 0.0
    %5604 = vmatpush1.msra.mxu0 %v5526
    %5605 = vmatprep.subr.mxu0 0.0
    %5606 = vmatpush1.msra.mxu0 %v5527
    %5607 = vmatprep.subr.mxu0 0.0
    %5608 = vmatpush1.msra.mxu0 %v5528
    %5609 = vmatprep.mubr.f32.mxu0 %v5530
    %5610 = vmatmul.mubr.f32.gmra.mrb[0].mxu0 %v5529
    %v5611 = vpop.f32.mrb[0].mxu0
    %v5612 = vadd.f32 0.0, %v5611
    %v5613 = vpop.f32.mrb[0].mxu0
    %5614 = vmatprep.mubr.f32.mxu0 %v5532
    %5615 = vmatmul.mubr.f32.gmra.mrb[0].mxu0 %v5531
    %v5616 = vpop.f32.mrb[0].mxu0
    %v5617 = vadd.f32 0.0, %v5616
    %v5618 = vpop.f32.mrb[0].mxu0
    %5619 = vmatprep.mubr.f32.mxu0 %v5534
    %5620 = vmatmul.mubr.f32.gmra.mrb[0].mxu0 %v5533
    %v5621 = vpop.f32.mrb[0].mxu0
    %v5622 = vadd.f32 0.0, %v5621
    %v5623 = vpop.f32.mrb[0].mxu0
    %5624 = vmatprep.mubr.f32.mxu0 %v5536
    %5625 = vmatmul.mubr.f32.gmra.mrb[0].mxu0 %v5535
    %v5626 = vpop.f32.mrb[0].mxu0
    %v5627 = vadd.f32 0.0, %v5626
    %v5628 = vpop.f32.mrb[0].mxu0
    %5629 = vdwg.mxu0
    %v5630 = vadd.f32 %v5451, %v5612
    %v5631 = vadd.f32 %v5452, %v5617
    %v5632 = vadd.f32 %v5453, %v5622
    %v5633 = vadd.f32 %v5454, %v5627
    %v5634 = vld [vmem:[%s5455] sm:$0x1e]
    %v5635 = vld [vmem:[%s5455 + $0x8] sm:$0x1e]
    %v5636 = vld [vmem:[%s5455 + $0x10] sm:$0x1e]
    %v5637 = vld [vmem:[%s5455 + $0x18] sm:$0x1e]
    %v5638 = vld [vmem:[%s5455 + $0x20] sm:$0x1e]
    %v5639 = vld [vmem:[%s5455 + $0x28] sm:$0x1e]
    %v5640 = vld [vmem:[%s5455 + $0x30] sm:$0x1e]
    %v5641 = vld [vmem:[%s5455 + $0x38] sm:$0x1e]
    %v5642 = vld [vmem:[%s5455 + $0x60] sm:$0x1e]
    %v5643 = vld [vmem:[%s5455 + $0x68] sm:$0x1e]
    %v5644 = vld [vmem:[%s5455 + $0x70] sm:$0x1e]
    %v5645 = vld [vmem:[%s5455 + $0x78] sm:$0x1e]
    %v5646 = vld [vmem:[%s5455 + $0x80] sm:$0x1e]
    %v5647 = vld [vmem:[%s5455 + $0x88] sm:$0x1e]
    %v5648 = vld [vmem:[%s5455 + $0x90] sm:$0x1e]
    %v5649 = vld [vmem:[%s5455 + $0x98] sm:$0x1e]
    %v5666 = vcombine.low %v5634, %v5635
    %v5667 = vcombine.high %v5634, %v5635
    %v5668 = vcombine.low %v5636, %v5637
    %v5669 = vcombine.high %v5636, %v5637
    %v5670 = vcombine.low %v5638, %v5639
    %v5671 = vcombine.high %v5638, %v5639
    %v5672 = vcombine.low %v5640, %v5641
    %v5673 = vcombine.high %v5640, %v5641
    %v5674 = vcombine.low %v5642, %v5643
    %v5675 = vcombine.high %v5642, %v5643
    %v5676 = vcombine.low %v5644, %v5645
    %v5677 = vcombine.high %v5644, %v5645
    %v5678 = vcombine.low %v5646, %v5647
    %v5679 = vcombine.high %v5646, %v5647
    %v5680 = vcombine.low %v5648, %v5649
    %v5681 = vcombine.high %v5648, %v5649
    %v5682 = vrot.slane %v5666, 5
    %v5683 = vrot.slane %v5682, 4
    %v5684 = vrot.slane %v5667, 5
    %v5685 = vsel %vm4352, %v5683, %v5684
    %v5686 = vrot.slane %v5668, 5
    %v5687 = vrot.slane %v5686, 4
    %v5688 = vrot.slane %v5669, 5
    %v5689 = vsel %vm4352, %v5687, %v5688
    %v5690 = vrot.slane %v5670, 5
    %v5691 = vrot.slane %v5690, 4
    %v5692 = vrot.slane %v5671, 5
    %v5693 = vsel %vm4352, %v5691, %v5692
    %v5694 = vrot.slane %v5672, 5
    %v5695 = vrot.slane %v5694, 4
    %v5696 = vrot.slane %v5673, 5
    %v5697 = vsel %vm4352, %v5695, %v5696
    %v5698 = vrot.slane %v5674, 5
    %v5699 = vrot.slane %v5698, 4
    %v5700 = vrot.slane %v5675, 5
    %v5701 = vsel %vm4352, %v5699, %v5700
    %v5702 = vrot.slane %v5676, 5
    %v5703 = vrot.slane %v5702, 4
    %v5704 = vrot.slane %v5677, 5
    %v5705 = vsel %vm4352, %v5703, %v5704
    %v5706 = vrot.slane %v5678, 5
    %v5707 = vrot.slane %v5706, 4
    %v5708 = vrot.slane %v5679, 5
    %v5709 = vsel %vm4352, %v5707, %v5708
    %v5710 = vrot.slane %v5680, 5
    %v5711 = vrot.slane %v5710, 4
    %v5712 = vrot.slane %v5681, 5
    %v5713 = vsel %vm4352, %v5711, %v5712
    %s5714 = scalar_lea.vmem %s7, 1792
    %v5715 = vld [vmem:[%s5714] sm:$0xff]
    %v5716 = vld [vmem:[%s5714 + $0x8] sm:$0xff]
    %v5717 = vld [vmem:[%s5714 + $0x10] sm:$0xff]
    %v5718 = vld [vmem:[%s5714 + $0x18] sm:$0xff]
    %v5719 = vld [vmem:[%s5714 + $0x20] sm:$0xff]
    %v5720 = vld [vmem:[%s5714 + $0x28] sm:$0xff]
    %v5721 = vld [vmem:[%s5714 + $0x30] sm:$0xff]
    %v5722 = vld [vmem:[%s5714 + $0x38] sm:$0xff]
    %v5723 = vld [vmem:[%s5714 + $0x40] sm:$0xff]
    %v5724 = vld [vmem:[%s5714 + $0x48] sm:$0xff]
    %v5725 = vld [vmem:[%s5714 + $0x50] sm:$0xff]
    %v5726 = vld [vmem:[%s5714 + $0x58] sm:$0xff]
    %v5727 = vld [vmem:[%s5714 + $0x60] sm:$0xff]
    %v5728 = vld [vmem:[%s5714 + $0x68] sm:$0xff]
    %v5729 = vld [vmem:[%s5714 + $0x70] sm:$0xff]
    %v5730 = vld [vmem:[%s5714 + $0x78] sm:$0xff]
    %v5731 = vld [vmem:[%s5714 + $0x80] sm:$0xff]
    %v5732 = vld [vmem:[%s5714 + $0x88] sm:$0xff]
    %v5733 = vld [vmem:[%s5714 + $0x90] sm:$0xff]
    %v5734 = vld [vmem:[%s5714 + $0x98] sm:$0xff]
    %v5735 = vld [vmem:[%s5714 + $0xa0] sm:$0xff]
    %v5736 = vld [vmem:[%s5714 + $0xa8] sm:$0xff]
    %v5737 = vld [vmem:[%s5714 + $0xb0] sm:$0xff]
    %v5738 = vld [vmem:[%s5714 + $0xb8] sm:$0xff]
    %v5739 = vld [vmem:[%s5714 + $0xc0] sm:$0xff]
    %v5740 = vld [vmem:[%s5714 + $0xc8] sm:$0xff]
    %v5741 = vld [vmem:[%s5714 + $0xd0] sm:$0xff]
    %v5742 = vld [vmem:[%s5714 + $0xd8] sm:$0xff]
    %v5743 = vld [vmem:[%s5714 + $0xe0] sm:$0xff]
    %v5744 = vld [vmem:[%s5714 + $0xe8] sm:$0xff]
    %v5745 = vld [vmem:[%s5714 + $0xf0] sm:$0xff]
    %v5746 = vld [vmem:[%s5714 + $0xf8] sm:$0xff]
    %v5747 = vcombine.low %v5685, %v5689
    %v5748 = vcombine.high %v5685, %v5689
    %v5749 = vcombine.low %v5693, %v5697
    %v5750 = vcombine.high %v5693, %v5697
    %v5751 = vcombine.low %v5701, %v5705
    %v5752 = vcombine.high %v5701, %v5705
    %v5753 = vcombine.low %v5709, %v5713
    %v5754 = vcombine.high %v5709, %v5713
    %5763 = vmatprep.subr.mxu0 0.0
    %5764 = vmatpush1.msra.mxu0 %v5715
    %5765 = vmatprep.subr.mxu0 0.0
    %5766 = vmatpush1.msra.mxu0 %v5716
    %5767 = vmatprep.subr.mxu0 0.0
    %5768 = vmatpush1.msra.mxu0 %v5717
    %5769 = vmatprep.subr.mxu0 0.0
    %5770 = vmatpush1.msra.mxu0 %v5718
    %5771 = vmatprep.subr.mxu0 0.0
    %5772 = vmatpush1.msra.mxu0 %v5719
    %5773 = vmatprep.subr.mxu0 0.0
    %5774 = vmatpush1.msra.mxu0 %v5720
    %5775 = vmatprep.subr.mxu0 0.0
    %5776 = vmatpush1.msra.mxu0 %v5721
    %5777 = vmatprep.subr.mxu0 0.0
    %5778 = vmatpush1.msra.mxu0 %v5722
    %5779 = vmatprep.subr.mxu0 0.0
    %5780 = vmatpush1.msra.mxu0 %v5723
    %5781 = vmatprep.subr.mxu0 0.0
    %5782 = vmatpush1.msra.mxu0 %v5724
    %5783 = vmatprep.subr.mxu0 0.0
    %5784 = vmatpush1.msra.mxu0 %v5725
    %5785 = vmatprep.subr.mxu0 0.0
    %5786 = vmatpush1.msra.mxu0 %v5726
    %5787 = vmatprep.subr.mxu0 0.0
    %5788 = vmatpush1.msra.mxu0 %v5727
    %5789 = vmatprep.subr.mxu0 0.0
    %5790 = vmatpush1.msra.mxu0 %v5728
    %5791 = vmatprep.subr.mxu0 0.0
    %5792 = vmatpush1.msra.mxu0 %v5729
    %5793 = vmatprep.subr.mxu0 0.0
    %5794 = vmatpush1.msra.mxu0 %v5730
    %5795 = vmatprep.subr.mxu0 0.0
    %5796 = vmatpush1.msra.mxu0 %v5731
    %5797 = vmatprep.subr.mxu0 0.0
    %5798 = vmatpush1.msra.mxu0 %v5732
    %5799 = vmatprep.subr.mxu0 0.0
    %5800 = vmatpush1.msra.mxu0 %v5733
    %5801 = vmatprep.subr.mxu0 0.0
    %5802 = vmatpush1.msra.mxu0 %v5734
    %5803 = vmatprep.subr.mxu0 0.0
    %5804 = vmatpush1.msra.mxu0 %v5735
    %5805 = vmatprep.subr.mxu0 0.0
    %5806 = vmatpush1.msra.mxu0 %v5736
    %5807 = vmatprep.subr.mxu0 0.0
    %5808 = vmatpush1.msra.mxu0 %v5737
    %5809 = vmatprep.subr.mxu0 0.0
    %5810 = vmatpush1.msra.mxu0 %v5738
    %5811 = vmatprep.subr.mxu0 0.0
    %5812 = vmatpush1.msra.mxu0 %v5739
    %5813 = vmatprep.subr.mxu0 0.0
    %5814 = vmatpush1.msra.mxu0 %v5740
    %5815 = vmatprep.subr.mxu0 0.0
    %5816 = vmatpush1.msra.mxu0 %v5741
    %5817 = vmatprep.subr.mxu0 0.0
    %5818 = vmatpush1.msra.mxu0 %v5742
    %5819 = vmatprep.subr.mxu0 0.0
    %5820 = vmatpush1.msra.mxu0 %v5743
    %5821 = vmatprep.subr.mxu0 0.0
    %5822 = vmatpush1.msra.mxu0 %v5744
    %5823 = vmatprep.subr.mxu0 0.0
    %5824 = vmatpush1.msra.mxu0 %v5745
    %5825 = vmatprep.subr.mxu0 0.0
    %5826 = vmatpush1.msra.mxu0 %v5746
    %5827 = vmatprep.mubr.f32.mxu0 %v5748
    %5828 = vmatmul.mubr.f32.gmra.mrb[0].mxu0 %v5747
    %v5829 = vpop.f32.mrb[0].mxu0
    %v5830 = vadd.f32 0.0, %v5829
    %v5831 = vpop.f32.mrb[0].mxu0
    %5832 = vmatprep.mubr.f32.mxu0 %v5750
    %5833 = vmatmul.mubr.f32.gmra.mrb[0].mxu0 %v5749
    %v5834 = vpop.f32.mrb[0].mxu0
    %v5835 = vadd.f32 0.0, %v5834
    %v5836 = vpop.f32.mrb[0].mxu0
    %5837 = vmatprep.mubr.f32.mxu0 %v5752
    %5838 = vmatmul.mubr.f32.gmra.mrb[0].mxu0 %v5751
    %v5839 = vpop.f32.mrb[0].mxu0
    %v5840 = vadd.f32 0.0, %v5839
    %v5841 = vpop.f32.mrb[0].mxu0
    %5842 = vmatprep.mubr.f32.mxu0 %v5754
    %5843 = vmatmul.mubr.f32.gmra.mrb[0].mxu0 %v5753
    %v5844 = vpop.f32.mrb[0].mxu0
    %v5845 = vadd.f32 0.0, %v5844
    %v5846 = vpop.f32.mrb[0].mxu0
    %5847 = vdwg.mxu0
    %v5848 = vadd.f32 %v5630, %v5830
    %v5849 = vadd.f32 %v5631, %v5835
    %v5850 = vadd.f32 %v5632, %v5840
    %v5851 = vadd.f32 %v5633, %v5845
    %v5852 = vld [vmem:[%s5455] sm:$0x3c]
    %v5853 = vld [vmem:[%s5455 + $0x8] sm:$0x3c]
    %v5854 = vld [vmem:[%s5455 + $0x10] sm:$0x3c]
    %v5855 = vld [vmem:[%s5455 + $0x18] sm:$0x3c]
    %v5856 = vld [vmem:[%s5455 + $0x20] sm:$0x3c]
    %v5857 = vld [vmem:[%s5455 + $0x28] sm:$0x3c]
    %v5858 = vld [vmem:[%s5455 + $0x30] sm:$0x3c]
    %v5859 = vld [vmem:[%s5455 + $0x38] sm:$0x3c]
    %v5860 = vld [vmem:[%s5455 + $0x60] sm:$0x3c]
    %v5861 = vld [vmem:[%s5455 + $0x68] sm:$0x3c]
    %v5862 = vld [vmem:[%s5455 + $0x70] sm:$0x3c]
    %v5863 = vld [vmem:[%s5455 + $0x78] sm:$0x3c]
    %v5864 = vld [vmem:[%s5455 + $0x80] sm:$0x3c]
    %v5865 = vld [vmem:[%s5455 + $0x88] sm:$0x3c]
    %v5866 = vld [vmem:[%s5455 + $0x90] sm:$0x3c]
    %v5867 = vld [vmem:[%s5455 + $0x98] sm:$0x3c]
    %v5884 = vcombine.low %v5852, %v5853
    %v5885 = vcombine.high %v5852, %v5853
    %v5886 = vcombine.low %v5854, %v5855
    %v5887 = vcombine.high %v5854, %v5855
    %v5888 = vcombine.low %v5856, %v5857
    %v5889 = vcombine.high %v5856, %v5857
    %v5890 = vcombine.low %v5858, %v5859
    %v5891 = vcombine.high %v5858, %v5859
    %v5892 = vcombine.low %v5860, %v5861
    %v5893 = vcombine.high %v5860, %v5861
    %v5894 = vcombine.low %v5862, %v5863
    %v5895 = vcombine.high %v5862, %v5863
    %v5896 = vcombine.low %v5864, %v5865
    %v5897 = vcombine.high %v5864, %v5865
    %v5898 = vcombine.low %v5866, %v5867
    %v5899 = vcombine.high %v5866, %v5867
    %v5900 = vrot.slane %v5884, 6
    %v5901 = vrot.slane %v5900, 4
    %v5902 = vrot.slane %v5885, 6
    %v5903 = vsel %vm4670, %v5901, %v5902
    %v5904 = vrot.slane %v5886, 6
    %v5905 = vrot.slane %v5904, 4
    %v5906 = vrot.slane %v5887, 6
    %v5907 = vsel %vm4670, %v5905, %v5906
    %v5908 = vrot.slane %v5888, 6
    %v5909 = vrot.slane %v5908, 4
    %v5910 = vrot.slane %v5889, 6
    %v5911 = vsel %vm4670, %v5909, %v5910
    %v5912 = vrot.slane %v5890, 6
    %v5913 = vrot.slane %v5912, 4
    %v5914 = vrot.slane %v5891, 6
    %v5915 = vsel %vm4670, %v5913, %v5914
    %v5916 = vrot.slane %v5892, 6
    %v5917 = vrot.slane %v5916, 4
    %v5918 = vrot.slane %v5893, 6
    %v5919 = vsel %vm4670, %v5917, %v5918
    %v5920 = vrot.slane %v5894, 6
    %v5921 = vrot.slane %v5920, 4
    %v5922 = vrot.slane %v5895, 6
    %v5923 = vsel %vm4670, %v5921, %v5922
    %v5924 = vrot.slane %v5896, 6
    %v5925 = vrot.slane %v5924, 4
    %v5926 = vrot.slane %v5897, 6
    %v5927 = vsel %vm4670, %v5925, %v5926
    %v5928 = vrot.slane %v5898, 6
    %v5929 = vrot.slane %v5928, 4
    %v5930 = vrot.slane %v5899, 6
    %v5931 = vsel %vm4670, %v5929, %v5930
    %s5932 = scalar_lea.vmem %s7, 2048
    %v5933 = vld [vmem:[%s5932] sm:$0xff]
    %v5934 = vld [vmem:[%s5932 + $0x8] sm:$0xff]
    %v5935 = vld [vmem:[%s5932 + $0x10] sm:$0xff]
    %v5936 = vld [vmem:[%s5932 + $0x18] sm:$0xff]
    %v5937 = vld [vmem:[%s5932 + $0x20] sm:$0xff]
    %v5938 = vld [vmem:[%s5932 + $0x28] sm:$0xff]
    %v5939 = vld [vmem:[%s5932 + $0x30] sm:$0xff]
    %v5940 = vld [vmem:[%s5932 + $0x38] sm:$0xff]
    %v5941 = vld [vmem:[%s5932 + $0x40] sm:$0xff]
    %v5942 = vld [vmem:[%s5932 + $0x48] sm:$0xff]
    %v5943 = vld [vmem:[%s5932 + $0x50] sm:$0xff]
    %v5944 = vld [vmem:[%s5932 + $0x58] sm:$0xff]
    %v5945 = vld [vmem:[%s5932 + $0x60] sm:$0xff]
    %v5946 = vld [vmem:[%s5932 + $0x68] sm:$0xff]
    %v5947 = vld [vmem:[%s5932 + $0x70] sm:$0xff]
    %v5948 = vld [vmem:[%s5932 + $0x78] sm:$0xff]
    %v5949 = vld [vmem:[%s5932 + $0x80] sm:$0xff]
    %v5950 = vld [vmem:[%s5932 + $0x88] sm:$0xff]
    %v5951 = vld [vmem:[%s5932 + $0x90] sm:$0xff]
    %v5952 = vld [vmem:[%s5932 + $0x98] sm:$0xff]
    %v5953 = vld [vmem:[%s5932 + $0xa0] sm:$0xff]
    %v5954 = vld [vmem:[%s5932 + $0xa8] sm:$0xff]
    %v5955 = vld [vmem:[%s5932 + $0xb0] sm:$0xff]
    %v5956 = vld [vmem:[%s5932 + $0xb8] sm:$0xff]
    %v5957 = vld [vmem:[%s5932 + $0xc0] sm:$0xff]
    %v5958 = vld [vmem:[%s5932 + $0xc8] sm:$0xff]
    %v5959 = vld [vmem:[%s5932 + $0xd0] sm:$0xff]
    %v5960 = vld [vmem:[%s5932 + $0xd8] sm:$0xff]
    %v5961 = vld [vmem:[%s5932 + $0xe0] sm:$0xff]
    %v5962 = vld [vmem:[%s5932 + $0xe8] sm:$0xff]
    %v5963 = vld [vmem:[%s5932 + $0xf0] sm:$0xff]
    %v5964 = vld [vmem:[%s5932 + $0xf8] sm:$0xff]
    %v5965 = vcombine.low %v5903, %v5907
    %v5966 = vcombine.high %v5903, %v5907
    %v5967 = vcombine.low %v5911, %v5915
    %v5968 = vcombine.high %v5911, %v5915
    %v5969 = vcombine.low %v5919, %v5923
    %v5970 = vcombine.high %v5919, %v5923
    %v5971 = vcombine.low %v5927, %v5931
    %v5972 = vcombine.high %v5927, %v5931
    %5981 = vmatprep.subr.mxu0 0.0
    %5982 = vmatpush1.msra.mxu0 %v5933
    %5983 = vmatprep.subr.mxu0 0.0
    %5984 = vmatpush1.msra.mxu0 %v5934
    %5985 = vmatprep.subr.mxu0 0.0
    %5986 = vmatpush1.msra.mxu0 %v5935
    %5987 = vmatprep.subr.mxu0 0.0
    %5988 = vmatpush1.msra.mxu0 %v5936
    %5989 = vmatprep.subr.mxu0 0.0
    %5990 = vmatpush1.msra.mxu0 %v5937
    %5991 = vmatprep.subr.mxu0 0.0
    %5992 = vmatpush1.msra.mxu0 %v5938
    %5993 = vmatprep.subr.mxu0 0.0
    %5994 = vmatpush1.msra.mxu0 %v5939
    %5995 = vmatprep.subr.mxu0 0.0
    %5996 = vmatpush1.msra.mxu0 %v5940
    %5997 = vmatprep.subr.mxu0 0.0
    %5998 = vmatpush1.msra.mxu0 %v5941
    %5999 = vmatprep.subr.mxu0 0.0
    %6000 = vmatpush1.msra.mxu0 %v5942
    %6001 = vmatprep.subr.mxu0 0.0
    %6002 = vmatpush1.msra.mxu0 %v5943
    %6003 = vmatprep.subr.mxu0 0.0
    %6004 = vmatpush1.msra.mxu0 %v5944
    %6005 = vmatprep.subr.mxu0 0.0
    %6006 = vmatpush1.msra.mxu0 %v5945
    %6007 = vmatprep.subr.mxu0 0.0
    %6008 = vmatpush1.msra.mxu0 %v5946
    %6009 = vmatprep.subr.mxu0 0.0
    %6010 = vmatpush1.msra.mxu0 %v5947
    %6011 = vmatprep.subr.mxu0 0.0
    %6012 = vmatpush1.msra.mxu0 %v5948
    %6013 = vmatprep.subr.mxu0 0.0
    %6014 = vmatpush1.msra.mxu0 %v5949
    %6015 = vmatprep.subr.mxu0 0.0
    %6016 = vmatpush1.msra.mxu0 %v5950
    %6017 = vmatprep.subr.mxu0 0.0
    %6018 = vmatpush1.msra.mxu0 %v5951
    %6019 = vmatprep.subr.mxu0 0.0
    %6020 = vmatpush1.msra.mxu0 %v5952
    %6021 = vmatprep.subr.mxu0 0.0
    %6022 = vmatpush1.msra.mxu0 %v5953
    %6023 = vmatprep.subr.mxu0 0.0
    %6024 = vmatpush1.msra.mxu0 %v5954
    %6025 = vmatprep.subr.mxu0 0.0
    %6026 = vmatpush1.msra.mxu0 %v5955
    %6027 = vmatprep.subr.mxu0 0.0
    %6028 = vmatpush1.msra.mxu0 %v5956
    %6029 = vmatprep.subr.mxu0 0.0
    %6030 = vmatpush1.msra.mxu0 %v5957
    %6031 = vmatprep.subr.mxu0 0.0
    %6032 = vmatpush1.msra.mxu0 %v5958
    %6033 = vmatprep.subr.mxu0 0.0
    %6034 = vmatpush1.msra.mxu0 %v5959
    %6035 = vmatprep.subr.mxu0 0.0
    %6036 = vmatpush1.msra.mxu0 %v5960
    %6037 = vmatprep.subr.mxu0 0.0
    %6038 = vmatpush1.msra.mxu0 %v5961
    %6039 = vmatprep.subr.mxu0 0.0
    %6040 = vmatpush1.msra.mxu0 %v5962
    %6041 = vmatprep.subr.mxu0 0.0
    %6042 = vmatpush1.msra.mxu0 %v5963
    %6043 = vmatprep.subr.mxu0 0.0
    %6044 = vmatpush1.msra.mxu0 %v5964
    %6045 = vmatprep.mubr.f32.mxu0 %v5966
    %6046 = vmatmul.mubr.f32.gmra.mrb[0].mxu0 %v5965
    %v6047 = vpop.f32.mrb[0].mxu0
    %v6048 = vadd.f32 0.0, %v6047
    %v6049 = vpop.f32.mrb[0].mxu0
    %6050 = vmatprep.mubr.f32.mxu0 %v5968
    %6051 = vmatmul.mubr.f32.gmra.mrb[0].mxu0 %v5967
    %v6052 = vpop.f32.mrb[0].mxu0
    %v6053 = vadd.f32 0.0, %v6052
    %v6054 = vpop.f32.mrb[0].mxu0
    %6055 = vmatprep.mubr.f32.mxu0 %v5970
    %6056 = vmatmul.mubr.f32.gmra.mrb[0].mxu0 %v5969
    %v6057 = vpop.f32.mrb[0].mxu0
    %v6058 = vadd.f32 0.0, %v6057
    %v6059 = vpop.f32.mrb[0].mxu0
    %6060 = vmatprep.mubr.f32.mxu0 %v5972
    %6061 = vmatmul.mubr.f32.gmra.mrb[0].mxu0 %v5971
    %v6062 = vpop.f32.mrb[0].mxu0
    %v6063 = vadd.f32 0.0, %v6062
    %v6064 = vpop.f32.mrb[0].mxu0
    %6065 = vdwg.mxu0
    %v6066 = vadd.f32 %v5848, %v6048
    %v6067 = vadd.f32 %v5849, %v6053
    %v6068 = vadd.f32 %v5850, %v6058
    %v6069 = vadd.f32 %v5851, %v6063
    %v6070 = vld [vmem:[%s8] sm:$0x1]
    %v6072 = vlaneseq
    %v6073 = vshrl.u32 %v6072, 7
    %v6074 = vsub.s32 0, %v6073
    %v6075 = vrot.slane %v6070, %v6074
    %v6077 = vadd.f32 %v6066, %v6075
    %v6078 = vadd.f32 %v6067, %v6075
    %v6079 = vadd.f32 %v6068, %v6075
    %v6080 = vadd.f32 %v6069, %v6075
    %v6081 = vmax.f32 %v6077, 0.0
    %v6082 = vmax.f32 %v6078, 0.0
    %v6083 = vmax.f32 %v6079, 0.0
    %v6084 = vmax.f32 %v6080, 0.0
    %v6085 = vsel %vm1606, %v6081, inf
    %v6086 = vsel %vm1606, %v6082, inf
    %v6087 = vsel %vm1606, %v6083, inf
    %v6088 = vsel %vm1606, %v6084, inf
    %v6089 = vmin.f32 %v6085, %v6086
    %v6090 = vmin.f32 %v6087, %v6088
    %v6091 = vmin.f32 %v6089, %v6090
    %6092 = vmin.xlane.f32.xlu0 %v6091
    %v6093 = vpop.xlane.xlu0 %6092
    %v6094 = vrot.slane %v6093, 4
    %v6095 = vmin.f32 %v6093, %v6094
    %v6096 = vrot.slane %v6095, 2
    %v6097 = vmin.f32 %v6095, %v6096
    %v6098 = vrot.slane %v6097, 1
    %v6099 = vmin.f32 %v6097, %v6098
    %s6100 = vtos %v6099
    %v6101 = vstv %s6100
    %v6102 = vsub.f32 %v6081, %v6101
    %v6103 = vsub.f32 %v6082, %v6101
    %v6104 = vsub.f32 %v6083, %v6101
    %v6105 = vsub.f32 %v6084, %v6101
    %v6106 = vsel %vm1606, %v6102, -inf
    %v6107 = vsel %vm1606, %v6103, -inf
    %v6108 = vsel %vm1606, %v6104, -inf
    %v6109 = vsel %vm1606, %v6105, -inf
    %v6110 = vmax.f32 %v6106, %v6107
    %v6111 = vmax.f32 %v6108, %v6109
    %v6112 = vmax.f32 %v6110, %v6111
    %6113 = vmax.xlane.f32.xlu0 %v6112
    %v6114 = vpop.xlane.xlu0 %6113
    %v6115 = vrot.slane %v6114, 4
    %v6116 = vmax.f32 %v6114, %v6115
    %v6117 = vrot.slane %v6116, 2
    %v6118 = vmax.f32 %v6116, %v6117
    %v6119 = vrot.slane %v6118, 1
    %v6120 = vmax.f32 %v6118, %v6119
    %s6121 = vtos %v6120
    %s6122 = sadd.f32 %s6121, 0.0001
    %v6123 = vstv %s6122
    %v6124 = vrcp.pop %v6123
    %v6125 = vmul.f32 %v6102, %v6124
    %v6126 = vmul.f32 %v6103, %v6124
    %v6127 = vmul.f32 %v6104, %v6124
    %v6128 = vmul.f32 %v6105, %v6124
    %6129 = vst.msk [vmem:[%s9] sm:$0xff] %vm1606, %v6125
    %6130 = vst.msk [vmem:[%s9 + $0x8] sm:$0xff] %vm1606, %v6126
    %6131 = vst.msk [vmem:[%s9 + $0x10] sm:$0xff] %vm1606, %v6127
    %6132 = vst.msk [vmem:[%s9 + $0x18] sm:$0xff] %vm1606, %v6128
    // Predicated region
    $region42: #{decoder_forward.1} parent=1 // pred_check
      _
    $region43: #{decoder_forward.1} parent=1 // pred_check_branch
      %6134 = sbr.rel (0) target = $region45
    $region44: #{decoder_forward.1} parent=1 // pred_region
      _
    $region45: #{decoder_forward.1} parent=1 // pred_fallthru
      _
    // Predicated region
    $region46: #{decoder_forward.1} parent=1 // pred_check
      _
    $region47: #{decoder_forward.1} parent=1 // pred_check_branch
      %6136 = sbr.rel (0) target = $region49
    $region48: #{decoder_forward.1} parent=1 // pred_region
      _
    $region49: #{decoder_forward.1} parent=1 // pred_fallthru
      _
    %6137 = vsyncpa [#allocation6], 1

</llo_original>
